<compile_context>
chip_gen: v7x
topology: tpu7x:2x2x1
jax: 0.10.0
libtpu: 0.0.40
codegen_flags: <defaults>
</compile_context>

<pallas_src>
import math
from functools import partial

import numpy as np
import jax
import jax.numpy as jnp
from jax.experimental import pallas as pl
from jax.experimental.pallas import tpu as pltpu


def _round_up(x, m):
    return (x + m - 1) // m * m


# ------------------------------ Pallas kernel ------------------------------ #
def _conv_tap_kernel(*refs, taps, L_rows, use_lrelu, use_sigmoid, emit_stats):
    """Fused Conv2d(k=4, s=2, p=1) (+bias, +optional act) for one batch element.

    refs (emit_stats=False): ph_ref, w_ref, b_ref, o_ref
    refs (emit_stats=True) : ph_ref, w_ref, b_ref, mask_ref, o_ref, sum_ref, sq_ref

      ph_ref : (2, 2, 1, Lq_pad, Cin_pad) bf16  stride-2 phase-decomposed, spatially
                                                zero-padded input, spatial flattened.
      w_ref  : (16, Cin_pad, Cout_pad)    bf16  per-tap weight matrices (resident).
      b_ref  : (1, Cout_pad)              f32   bias.
      o_ref  : (1, L_rows, Cout_pad)            conv output in the "Wq domain"
                                                (one junk column per output row,
                                                dropped by the XLA unpack).
      sum/sq : (1, 1, Cout_pad)           f32   per-block partial BN statistics.
    """
    if emit_stats:
        ph_ref, w_ref, b_ref, mask_ref, o_ref, sum_ref, sq_ref = refs
    else:
        ph_ref, w_ref, b_ref, o_ref = refs

    cout_pad = w_ref.shape[-1]
    acc = jnp.zeros((L_rows, cout_pad), jnp.float32)

    # 16 kernel taps -> 16 unrolled MXU matmuls, f32 accumulation.
    for idx, (pi, pj, start) in enumerate(taps):
        a = ph_ref[pi, pj, 0, start:start + L_rows, :]           # (L_rows, Cin_pad) bf16
        acc = acc + jnp.dot(a, w_ref[idx], preferred_element_type=jnp.float32)

    acc = acc + b_ref[...]                                       # (1, C) broadcast

    if emit_stats:
        # Per-block partial BatchNorm statistics (junk rows/columns masked out).
        masked = acc * mask_ref[...]                             # (L_rows, 1) mask
        sum_ref[0] = jnp.sum(masked, axis=0, keepdims=True)
        sq_ref[0] = jnp.sum(masked * acc, axis=0, keepdims=True)

    if use_lrelu:
        acc = jnp.where(acc > 0, acc, 0.2 * acc)
    if use_sigmoid:
        acc = 1.0 / (1.0 + jnp.exp(-acc))                        # exact sigmoid

    o_ref[0] = acc.astype(o_ref.dtype)


# ------------------------------- layer wrapper ------------------------------ #
def conv_block(h, w, b, *, use_lrelu, use_sigmoid, emit_stats, out_dtype):
    """One ConvBlock conv: Conv2d(k=4, s=2, p=1) + bias [+LeakyReLU | +Sigmoid].

    h: (N, H, W, Cin) NHWC.  Returns conv output in the padded "Wq domain":
    (N, L_rows, Cout_pad), valid entries at rows r = oh*(Wo+1) + ow with ow < Wo.
    When emit_stats, also returns per-batch-element (N, 1, Cout_pad) sum and sumsq.
    """
    N, H, W, Cin = h.shape
    Ho, Wo = H // 2, W // 2
    Hq, Wq = Ho + 1, Wo + 1
    Cout = w.shape[-1]
    Cin_pad = _round_up(Cin, 128)
    Cout_pad = _round_up(Cout, 128)
    L_rows = _round_up(Ho * Wq, 8)
    Lq_pad = _round_up(Wq + 1 + L_rows, 8)          # >= Hq*Wq + 1 (covers all tap windows)

    # --- XLA input prep: zero-pad + stride-2 phase split + flatten + cast (one fused
    #     pass, ~1x activation bytes; any preceding folded elementwise fuses in too). ---
    xp = jnp.pad(h, ((0, 0), (1, 1), (1, 1), (0, 0)))
    ph = jnp.stack([
        jnp.stack([xp[:, 0::2, 0::2, :], xp[:, 0::2, 1::2, :]], axis=0),
        jnp.stack([xp[:, 1::2, 0::2, :], xp[:, 1::2, 1::2, :]], axis=0),
    ], axis=0)                                              # (2, 2, N, Hq, Wq, Cin)
    ph = ph.reshape(2, 2, N, Hq * Wq, Cin)
    ph = jnp.pad(ph, ((0, 0), (0, 0), (0, 0),
                      (0, Lq_pad - Hq * Wq),
                      (0, Cin_pad - Cin))).astype(jnp.bfloat16)

    w_p = jnp.pad(w.reshape(16, Cin, Cout),
                  ((0, 0), (0, Cin_pad - Cin), (0, Cout_pad - Cout))).astype(jnp.bfloat16)
    b_p = jnp.pad(b.reshape(1, Cout), ((0, 0), (0, Cout_pad - Cout))).astype(jnp.float32)

    # Tap t = di*4 + dj -> (phase_i, phase_j, flat start offset in the Wq domain).
    taps = tuple((di % 2, dj % 2, (di // 2) * Wq + (dj // 2))
                 for di in range(4) for dj in range(4))

    in_specs = [
        pl.BlockSpec((2, 2, 1, Lq_pad, Cin_pad), lambda i: (0, 0, i, 0, 0)),
        pl.BlockSpec((16, Cin_pad, Cout_pad), lambda i: (0, 0, 0)),
        pl.BlockSpec((1, Cout_pad), lambda i: (0, 0)),
    ]
    inputs = [ph, w_p, b_p]
    out_shapes = [jax.ShapeDtypeStruct((N, L_rows, Cout_pad), out_dtype)]
    out_specs = [pl.BlockSpec((1, L_rows, Cout_pad), lambda i: (i, 0, 0))]

    if emit_stats:
        rows = np.arange(L_rows)
        mask = ((rows < Ho * Wq) & (rows % Wq < Wo)).astype(np.float32).reshape(L_rows, 1)
        inputs.append(jnp.asarray(mask))
        in_specs.append(pl.BlockSpec((L_rows, 1), lambda i: (0, 0)))
        out_shapes += [jax.ShapeDtypeStruct((N, 1, Cout_pad), jnp.float32)] * 2
        out_specs += [pl.BlockSpec((1, 1, Cout_pad), lambda i: (i, 0, 0)),
                      pl.BlockSpec((1, 1, Cout_pad), lambda i: (i, 0, 0))]

    # VMEM budget: double-buffered phase/out blocks + resident weights + f32 acc.
    out_isize = jnp.dtype(out_dtype).itemsize
    need = (2 * 4 * Lq_pad * Cin_pad * 2                 # phase block (bf16, 2 bufs)
            + 2 * 16 * Cin_pad * Cout_pad * 2            # weights (bf16, 2 bufs)
            + 2 * L_rows * Cout_pad * out_isize          # output block (2 bufs)
            + L_rows * Cout_pad * 4                      # f32 accumulator
            + 32 * Cout_pad * 4)                         # bias / mask / stats slack
    vmem_limit = int(min(max(2 * need + (2 << 20), 4 << 20), 48 << 20))

    cost = pl.CostEstimate(
        flops=2 * N * 16 * L_rows * Cin_pad * Cout_pad,
        transcendentals=(N * L_rows * Cout_pad) if use_sigmoid else 0,
        bytes_accessed=int(ph.size) * 2 + int(w_p.size) * 2
                       + N * L_rows * Cout_pad * out_isize)

    kern = partial(_conv_tap_kernel, taps=taps, L_rows=L_rows,
                   use_lrelu=use_lrelu, use_sigmoid=use_sigmoid, emit_stats=emit_stats)

    return pl.pallas_call(
        kern,
        grid=(N,),
        in_specs=in_specs,
        out_specs=tuple(out_specs) if emit_stats else out_specs[0],
        out_shape=tuple(out_shapes) if emit_stats else out_shapes[0],
        compiler_params=pltpu.CompilerParams(
            dimension_semantics=("parallel",),
            vmem_limit_bytes=vmem_limit),
        cost_estimate=cost,
    )(*inputs)


def _unpack(out, N, Ho, Wo, Cout):
    """Drop the junk column / padded rows / padded channels of a conv_block output."""
    Wq = Wo + 1
    return out[:, :Ho * Wq, :Cout].reshape(N, Ho, Wq, Cout)[:, :, :Wo, :]


# ------------------------------ params / model ------------------------------ #
def init_conv_params(key, cin, cout, k=4):
    # PyTorch Conv2d default init: U(-1/sqrt(fan_in), 1/sqrt(fan_in)).
    fan_in = cin * k * k
    bound = 1.0 / math.sqrt(fan_in)
    kw, kb = jax.random.split(key)
    w = jax.random.uniform(kw, (k, k, cin, cout), jnp.float32, -bound, bound)  # HWIO
    b = jax.random.uniform(kb, (1, cout), jnp.float32, -bound, bound)
    return w, b


def init_discriminator_params(key, in_ch, ndf):
    k1, k4, k5 = jax.random.split(key, 3)
    w1, b1 = init_conv_params(k1, in_ch, ndf * 4)
    w4, b4 = init_conv_params(k4, ndf * 4, ndf * 2)
    w5, b5 = init_conv_params(k5, ndf * 2, ndf)
    return {
        "c1": (w1, b1),
        "c4": (w4, b4,
               jnp.ones((1, ndf * 2), jnp.float32),     # BN gamma
               jnp.zeros((1, ndf * 2), jnp.float32)),   # BN beta
        "c5": (w5, b5),
    }


@jax.jit
def discriminator_forward(x_nchw, params):
    # layout: NCHW in -> NHWC internally -> NCHW out
    x = jnp.transpose(x_nchw, (0, 2, 3, 1)).astype(jnp.float32)
    N, H, W, _ = x.shape

    # conv1: Conv + LeakyReLU (no BN), bf16 output.
    w1, b1 = params["c1"]
    c1 = conv_block(x, w1, b1, use_lrelu=True, use_sigmoid=False,
                    emit_stats=False, out_dtype=jnp.bfloat16)
    h1 = _unpack(c1, N, H // 2, W // 2, w1.shape[-1])

    # conv4: Conv with in-kernel partial BN stats; BN apply + LeakyReLU folded into
    # conv5's XLA input prep (fuses with the phase build -> no extra HBM pass).
    w4, b4, g4, be4 = params["c4"]
    Ho2, Wo2 = H // 4, W // 4
    c4, s1, s2 = conv_block(h1, w4, b4, use_lrelu=False, use_sigmoid=False,
                            emit_stats=True, out_dtype=jnp.bfloat16)
    Cout2 = w4.shape[-1]
    y2 = _unpack(c4, N, Ho2, Wo2, Cout2).astype(jnp.float32)
    m = N * Ho2 * Wo2
    s1t = jnp.sum(s1, axis=0).reshape(-1)[:Cout2]
    s2t = jnp.sum(s2, axis=0).reshape(-1)[:Cout2]
    mean = s1t / m
    var = jnp.maximum(s2t / m - mean * mean, 0.0)       # biased batch variance (train mode)
    scale = g4.reshape(-1) * jax.lax.rsqrt(var + 1e-5)
    shift = be4.reshape(-1) - mean * scale
    h2 = y2 * scale + shift
    h2 = jnp.where(h2 > 0, h2, 0.2 * h2)

    # conv5: Conv + Sigmoid (no BN, no LeakyReLU), f32 output.
    w5, b5 = params["c5"]
    Ho3, Wo3 = H // 8, W // 8
    c5 = conv_block(h2, w5, b5, use_lrelu=False, use_sigmoid=True,
                    emit_stats=False, out_dtype=jnp.float32)
    y3 = _unpack(c5, N, Ho3, Wo3, w5.shape[-1])
    return jnp.transpose(y3, (0, 3, 1, 2))


# ------------------------- plain-JAX reference (check) ---------------------- #
def reference_forward(x_nchw, params):
    x = jnp.transpose(x_nchw, (0, 2, 3, 1)).astype(jnp.float32)

    def conv(y, w, b):
        y = jax.lax.conv_general_dilated(
            y, w, window_strides=(2, 2), padding=((1, 1), (1, 1)),
            dimension_numbers=("NHWC", "HWIO", "NHWC"))
        return y + b.reshape(1, 1, 1, -1)

    w1, b1 = params["c1"]
    x = conv(x, w1, b1)
    x = jnp.where(x > 0, x, 0.2 * x)

    w4, b4, g4, be4 = params["c4"]
    x = conv(x, w4, b4)
    mean = jnp.mean(x, axis=(0, 1, 2), keepdims=True)
    var = jnp.mean((x - mean) ** 2, axis=(0, 1, 2), keepdims=True)
    x = (x - mean) * jax.lax.rsqrt(var + 1e-5)
    x = x * g4.reshape(1, 1, 1, -1) + be4.reshape(1, 1, 1, -1)
    x = jnp.where(x > 0, x, 0.2 * x)

    w5, b5 = params["c5"]
    x = conv(x, w5, b5)
    x = jax.nn.sigmoid(x)
    return jnp.transpose(x, (0, 3, 1, 2))


if __name__ == "__main__":
    key = jax.random.PRNGKey(0)
    k_x, k_p = jax.random.split(key)

    in_ch, ndf = 4, 16
    x = jax.random.normal(k_x, (2, in_ch, 16, 16), dtype=jnp.float32)  # NCHW
    params = init_discriminator_params(k_p, in_ch, ndf)

    out = discriminator_forward(x, params)
    jax.block_until_ready(out)

    # Expected: (2, ndf, 2, 2) after three stride-2 convs on 16x16 input.
    assert out.shape == (2, ndf, 2, 2), out.shape
    assert bool(jnp.all((out >= 0.0) & (out <= 1.0)))

    ref = reference_forward(x, params)
    max_diff = float(jnp.max(jnp.abs(out - ref)))
    assert max_diff < 0.05, f"max |diff| vs reference = {max_diff}"

    print("KERNEL_OK")
</pallas_src>

<mosaic_0001>
module attributes {stable_mosaic.version = 11 : i64} {
  func.func @_conv_tap_kernel(%arg0: i32, %arg1: memref<2x2x1x88x128xbf16, #tpu.memory_space<vmem>>, %arg2: memref<16x128x128xbf16, #tpu.memory_space<vmem>>, %arg3: memref<1x128xf32, #tpu.memory_space<vmem>>, %arg4: memref<1x72x128xbf16, #tpu.memory_space<vmem>>) attributes {dimension_semantics = [#tpu.dimension_semantics<parallel>], iteration_bounds = array<i64: 2>, scalar_prefetch = 0 : i64, scratch_operands = 0 : i64, tpu.core_type = #tpu.core_type<tc>, window_params = [{transform_indices = @transform_0, window_bounds = array<i64: 2, 2, 1, 88, 128>}, {pipeline_mode = #tpu.pipeline_mode<synchronous>, transform_indices = @transform_1, window_bounds = array<i64: 16, 128, 128>}, {pipeline_mode = #tpu.pipeline_mode<synchronous>, transform_indices = @transform_2, window_bounds = array<i64: 1, 128>}, {transform_indices = @transform_3, window_bounds = array<i64: 1, 72, 128>}]} {
    %cst = arith.constant 0.000000e+00 : f32
    %0 = vector.broadcast %cst : f32 to vector<72x128xf32>
    %c0 = arith.constant 0 : index
    %c0_0 = arith.constant 0 : index
    %c0_1 = arith.constant 0 : index
    %c0_2 = arith.constant 0 : index
    %c0_3 = arith.constant 0 : index
    %1 = vector.load %arg1[%c0, %c0_0, %c0_1, %c0_2, %c0_3] : memref<2x2x1x88x128xbf16, #tpu.memory_space<vmem>>, vector<1x1x1x72x128xbf16>
    %2 = vector.shape_cast %1 : vector<1x1x1x72x128xbf16> to vector<72x128xbf16>
    %c0_4 = arith.constant 0 : index
    %c0_5 = arith.constant 0 : index
    %c0_6 = arith.constant 0 : index
    %3 = vector.load %arg2[%c0_4, %c0_5, %c0_6] : memref<16x128x128xbf16, #tpu.memory_space<vmem>>, vector<1x128x128xbf16>
    %4 = vector.shape_cast %3 : vector<1x128x128xbf16> to vector<128x128xbf16>
    %cst_7 = arith.constant dense<0.000000e+00> : vector<72x128xf32>
    %5 = tpu.matmul %2, %4, %cst_7 {dimension_numbers = #tpu.dot_dimension_numbers<[1], [0], [0], [1], [0, 0, 1, 1], [], []>} : vector<72x128xbf16>, vector<128x128xbf16>, vector<72x128xf32> -> vector<72x128xf32>
    %6 = arith.addf %0, %5 : vector<72x128xf32>
    %c0_8 = arith.constant 0 : index
    %c1 = arith.constant 1 : index
    %c0_9 = arith.constant 0 : index
    %c0_10 = arith.constant 0 : index
    %c0_11 = arith.constant 0 : index
    %7 = vector.load %arg1[%c0_8, %c1, %c0_9, %c0_10, %c0_11] : memref<2x2x1x88x128xbf16, #tpu.memory_space<vmem>>, vector<1x1x1x72x128xbf16>
    %8 = vector.shape_cast %7 : vector<1x1x1x72x128xbf16> to vector<72x128xbf16>
    %c1_12 = arith.constant 1 : index
    %c0_13 = arith.constant 0 : index
    %c0_14 = arith.constant 0 : index
    %9 = vector.load %arg2[%c1_12, %c0_13, %c0_14] : memref<16x128x128xbf16, #tpu.memory_space<vmem>>, vector<1x128x128xbf16>
    %10 = vector.shape_cast %9 : vector<1x128x128xbf16> to vector<128x128xbf16>
    %cst_15 = arith.constant dense<0.000000e+00> : vector<72x128xf32>
    %11 = tpu.matmul %8, %10, %cst_15 {dimension_numbers = #tpu.dot_dimension_numbers<[1], [0], [0], [1], [0, 0, 1, 1], [], []>} : vector<72x128xbf16>, vector<128x128xbf16>, vector<72x128xf32> -> vector<72x128xf32>
    %12 = arith.addf %6, %11 : vector<72x128xf32>
    %c0_16 = arith.constant 0 : index
    %c0_17 = arith.constant 0 : index
    %c0_18 = arith.constant 0 : index
    %c1_19 = arith.constant 1 : index
    %c0_20 = arith.constant 0 : index
    %13 = vector.load %arg1[%c0_16, %c0_17, %c0_18, %c1_19, %c0_20] : memref<2x2x1x88x128xbf16, #tpu.memory_space<vmem>>, vector<1x1x1x72x128xbf16>
    %14 = vector.shape_cast %13 : vector<1x1x1x72x128xbf16> to vector<72x128xbf16>
    %c2 = arith.constant 2 : index
    %c0_21 = arith.constant 0 : index
    %c0_22 = arith.constant 0 : index
    %15 = vector.load %arg2[%c2, %c0_21, %c0_22] : memref<16x128x128xbf16, #tpu.memory_space<vmem>>, vector<1x128x128xbf16>
    %16 = vector.shape_cast %15 : vector<1x128x128xbf16> to vector<128x128xbf16>
    %cst_23 = arith.constant dense<0.000000e+00> : vector<72x128xf32>
    %17 = tpu.matmul %14, %16, %cst_23 {dimension_numbers = #tpu.dot_dimension_numbers<[1], [0], [0], [1], [0, 0, 1, 1], [], []>} : vector<72x128xbf16>, vector<128x128xbf16>, vector<72x128xf32> -> vector<72x128xf32>
    %18 = arith.addf %12, %17 : vector<72x128xf32>
    %c0_24 = arith.constant 0 : index
    %c1_25 = arith.constant 1 : index
    %c0_26 = arith.constant 0 : index
    %c1_27 = arith.constant 1 : index
    %c0_28 = arith.constant 0 : index
    %19 = vector.load %arg1[%c0_24, %c1_25, %c0_26, %c1_27, %c0_28] : memref<2x2x1x88x128xbf16, #tpu.memory_space<vmem>>, vector<1x1x1x72x128xbf16>
    %20 = vector.shape_cast %19 : vector<1x1x1x72x128xbf16> to vector<72x128xbf16>
    %c3 = arith.constant 3 : index
    %c0_29 = arith.constant 0 : index
    %c0_30 = arith.constant 0 : index
    %21 = vector.load %arg2[%c3, %c0_29, %c0_30] : memref<16x128x128xbf16, #tpu.memory_space<vmem>>, vector<1x128x128xbf16>
    %22 = vector.shape_cast %21 : vector<1x128x128xbf16> to vector<128x128xbf16>
    %cst_31 = arith.constant dense<0.000000e+00> : vector<72x128xf32>
    %23 = tpu.matmul %20, %22, %cst_31 {dimension_numbers = #tpu.dot_dimension_numbers<[1], [0], [0], [1], [0, 0, 1, 1], [], []>} : vector<72x128xbf16>, vector<128x128xbf16>, vector<72x128xf32> -> vector<72x128xf32>
    %24 = arith.addf %18, %23 : vector<72x128xf32>
    %c1_32 = arith.constant 1 : index
    %c0_33 = arith.constant 0 : index
    %c0_34 = arith.constant 0 : index
    %c0_35 = arith.constant 0 : index
    %c0_36 = arith.constant 0 : index
    %25 = vector.load %arg1[%c1_32, %c0_33, %c0_34, %c0_35, %c0_36] : memref<2x2x1x88x128xbf16, #tpu.memory_space<vmem>>, vector<1x1x1x72x128xbf16>
    %26 = vector.shape_cast %25 : vector<1x1x1x72x128xbf16> to vector<72x128xbf16>
    %c4 = arith.constant 4 : index
    %c0_37 = arith.constant 0 : index
    %c0_38 = arith.constant 0 : index
    %27 = vector.load %arg2[%c4, %c0_37, %c0_38] : memref<16x128x128xbf16, #tpu.memory_space<vmem>>, vector<1x128x128xbf16>
    %28 = vector.shape_cast %27 : vector<1x128x128xbf16> to vector<128x128xbf16>
    %cst_39 = arith.constant dense<0.000000e+00> : vector<72x128xf32>
    %29 = tpu.matmul %26, %28, %cst_39 {dimension_numbers = #tpu.dot_dimension_numbers<[1], [0], [0], [1], [0, 0, 1, 1], [], []>} : vector<72x128xbf16>, vector<128x128xbf16>, vector<72x128xf32> -> vector<72x128xf32>
    %30 = arith.addf %24, %29 : vector<72x128xf32>
    %c1_40 = arith.constant 1 : index
    %c1_41 = arith.constant 1 : index
    %c0_42 = arith.constant 0 : index
    %c0_43 = arith.constant 0 : index
    %c0_44 = arith.constant 0 : index
    %31 = vector.load %arg1[%c1_40, %c1_41, %c0_42, %c0_43, %c0_44] : memref<2x2x1x88x128xbf16, #tpu.memory_space<vmem>>, vector<1x1x1x72x128xbf16>
    %32 = vector.shape_cast %31 : vector<1x1x1x72x128xbf16> to vector<72x128xbf16>
    %c5 = arith.constant 5 : index
    %c0_45 = arith.constant 0 : index
    %c0_46 = arith.constant 0 : index
    %33 = vector.load %arg2[%c5, %c0_45, %c0_46] : memref<16x128x128xbf16, #tpu.memory_space<vmem>>, vector<1x128x128xbf16>
    %34 = vector.shape_cast %33 : vector<1x128x128xbf16> to vector<128x128xbf16>
    %cst_47 = arith.constant dense<0.000000e+00> : vector<72x128xf32>
    %35 = tpu.matmul %32, %34, %cst_47 {dimension_numbers = #tpu.dot_dimension_numbers<[1], [0], [0], [1], [0, 0, 1, 1], [], []>} : vector<72x128xbf16>, vector<128x128xbf16>, vector<72x128xf32> -> vector<72x128xf32>
    %36 = arith.addf %30, %35 : vector<72x128xf32>
    %c1_48 = arith.constant 1 : index
    %c0_49 = arith.constant 0 : index
    %c0_50 = arith.constant 0 : index
    %c1_51 = arith.constant 1 : index
    %c0_52 = arith.constant 0 : index
    %37 = vector.load %arg1[%c1_48, %c0_49, %c0_50, %c1_51, %c0_52] : memref<2x2x1x88x128xbf16, #tpu.memory_space<vmem>>, vector<1x1x1x72x128xbf16>
    %38 = vector.shape_cast %37 : vector<1x1x1x72x128xbf16> to vector<72x128xbf16>
    %c6 = arith.constant 6 : index
    %c0_53 = arith.constant 0 : index
    %c0_54 = arith.constant 0 : index
    %39 = vector.load %arg2[%c6, %c0_53, %c0_54] : memref<16x128x128xbf16, #tpu.memory_space<vmem>>, vector<1x128x128xbf16>
    %40 = vector.shape_cast %39 : vector<1x128x128xbf16> to vector<128x128xbf16>
    %cst_55 = arith.constant dense<0.000000e+00> : vector<72x128xf32>
    %41 = tpu.matmul %38, %40, %cst_55 {dimension_numbers = #tpu.dot_dimension_numbers<[1], [0], [0], [1], [0, 0, 1, 1], [], []>} : vector<72x128xbf16>, vector<128x128xbf16>, vector<72x128xf32> -> vector<72x128xf32>
    %42 = arith.addf %36, %41 : vector<72x128xf32>
    %c1_56 = arith.constant 1 : index
    %c1_57 = arith.constant 1 : index
    %c0_58 = arith.constant 0 : index
    %c1_59 = arith.constant 1 : index
    %c0_60 = arith.constant 0 : index
    %43 = vector.load %arg1[%c1_56, %c1_57, %c0_58, %c1_59, %c0_60] : memref<2x2x1x88x128xbf16, #tpu.memory_space<vmem>>, vector<1x1x1x72x128xbf16>
    %44 = vector.shape_cast %43 : vector<1x1x1x72x128xbf16> to vector<72x128xbf16>
    %c7 = arith.constant 7 : index
    %c0_61 = arith.constant 0 : index
    %c0_62 = arith.constant 0 : index
    %45 = vector.load %arg2[%c7, %c0_61, %c0_62] : memref<16x128x128xbf16, #tpu.memory_space<vmem>>, vector<1x128x128xbf16>
    %46 = vector.shape_cast %45 : vector<1x128x128xbf16> to vector<128x128xbf16>
    %cst_63 = arith.constant dense<0.000000e+00> : vector<72x128xf32>
    %47 = tpu.matmul %44, %46, %cst_63 {dimension_numbers = #tpu.dot_dimension_numbers<[1], [0], [0], [1], [0, 0, 1, 1], [], []>} : vector<72x128xbf16>, vector<128x128xbf16>, vector<72x128xf32> -> vector<72x128xf32>
    %48 = arith.addf %42, %47 : vector<72x128xf32>
    %c0_64 = arith.constant 0 : index
    %c0_65 = arith.constant 0 : index
    %c0_66 = arith.constant 0 : index
    %c9 = arith.constant 9 : index
    %c0_67 = arith.constant 0 : index
    %49 = vector.load %arg1[%c0_64, %c0_65, %c0_66, %c9, %c0_67] : memref<2x2x1x88x128xbf16, #tpu.memory_space<vmem>>, vector<1x1x1x72x128xbf16>
    %50 = vector.shape_cast %49 : vector<1x1x1x72x128xbf16> to vector<72x128xbf16>
    %c8 = arith.constant 8 : index
    %c0_68 = arith.constant 0 : index
    %c0_69 = arith.constant 0 : index
    %51 = vector.load %arg2[%c8, %c0_68, %c0_69] : memref<16x128x128xbf16, #tpu.memory_space<vmem>>, vector<1x128x128xbf16>
    %52 = vector.shape_cast %51 : vector<1x128x128xbf16> to vector<128x128xbf16>
    %cst_70 = arith.constant dense<0.000000e+00> : vector<72x128xf32>
    %53 = tpu.matmul %50, %52, %cst_70 {dimension_numbers = #tpu.dot_dimension_numbers<[1], [0], [0], [1], [0, 0, 1, 1], [], []>} : vector<72x128xbf16>, vector<128x128xbf16>, vector<72x128xf32> -> vector<72x128xf32>
    %54 = arith.addf %48, %53 : vector<72x128xf32>
    %c0_71 = arith.constant 0 : index
    %c1_72 = arith.constant 1 : index
    %c0_73 = arith.constant 0 : index
    %c9_74 = arith.constant 9 : index
    %c0_75 = arith.constant 0 : index
    %55 = vector.load %arg1[%c0_71, %c1_72, %c0_73, %c9_74, %c0_75] : memref<2x2x1x88x128xbf16, #tpu.memory_space<vmem>>, vector<1x1x1x72x128xbf16>
    %56 = vector.shape_cast %55 : vector<1x1x1x72x128xbf16> to vector<72x128xbf16>
    %c9_76 = arith.constant 9 : index
    %c0_77 = arith.constant 0 : index
    %c0_78 = arith.constant 0 : index
    %57 = vector.load %arg2[%c9_76, %c0_77, %c0_78] : memref<16x128x128xbf16, #tpu.memory_space<vmem>>, vector<1x128x128xbf16>
    %58 = vector.shape_cast %57 : vector<1x128x128xbf16> to vector<128x128xbf16>
    %cst_79 = arith.constant dense<0.000000e+00> : vector<72x128xf32>
    %59 = tpu.matmul %56, %58, %cst_79 {dimension_numbers = #tpu.dot_dimension_numbers<[1], [0], [0], [1], [0, 0, 1, 1], [], []>} : vector<72x128xbf16>, vector<128x128xbf16>, vector<72x128xf32> -> vector<72x128xf32>
    %60 = arith.addf %54, %59 : vector<72x128xf32>
    %c0_80 = arith.constant 0 : index
    %c0_81 = arith.constant 0 : index
    %c0_82 = arith.constant 0 : index
    %c10 = arith.constant 10 : index
    %c0_83 = arith.constant 0 : index
    %61 = vector.load %arg1[%c0_80, %c0_81, %c0_82, %c10, %c0_83] : memref<2x2x1x88x128xbf16, #tpu.memory_space<vmem>>, vector<1x1x1x72x128xbf16>
    %62 = vector.shape_cast %61 : vector<1x1x1x72x128xbf16> to vector<72x128xbf16>
    %c10_84 = arith.constant 10 : index
    %c0_85 = arith.constant 0 : index
    %c0_86 = arith.constant 0 : index
    %63 = vector.load %arg2[%c10_84, %c0_85, %c0_86] : memref<16x128x128xbf16, #tpu.memory_space<vmem>>, vector<1x128x128xbf16>
    %64 = vector.shape_cast %63 : vector<1x128x128xbf16> to vector<128x128xbf16>
    %cst_87 = arith.constant dense<0.000000e+00> : vector<72x128xf32>
    %65 = tpu.matmul %62, %64, %cst_87 {dimension_numbers = #tpu.dot_dimension_numbers<[1], [0], [0], [1], [0, 0, 1, 1], [], []>} : vector<72x128xbf16>, vector<128x128xbf16>, vector<72x128xf32> -> vector<72x128xf32>
    %66 = arith.addf %60, %65 : vector<72x128xf32>
    %c0_88 = arith.constant 0 : index
    %c1_89 = arith.constant 1 : index
    %c0_90 = arith.constant 0 : index
    %c10_91 = arith.constant 10 : index
    %c0_92 = arith.constant 0 : index
    %67 = vector.load %arg1[%c0_88, %c1_89, %c0_90, %c10_91, %c0_92] : memref<2x2x1x88x128xbf16, #tpu.memory_space<vmem>>, vector<1x1x1x72x128xbf16>
    %68 = vector.shape_cast %67 : vector<1x1x1x72x128xbf16> to vector<72x128xbf16>
    %c11 = arith.constant 11 : index
    %c0_93 = arith.constant 0 : index
    %c0_94 = arith.constant 0 : index
    %69 = vector.load %arg2[%c11, %c0_93, %c0_94] : memref<16x128x128xbf16, #tpu.memory_space<vmem>>, vector<1x128x128xbf16>
    %70 = vector.shape_cast %69 : vector<1x128x128xbf16> to vector<128x128xbf16>
    %cst_95 = arith.constant dense<0.000000e+00> : vector<72x128xf32>
    %71 = tpu.matmul %68, %70, %cst_95 {dimension_numbers = #tpu.dot_dimension_numbers<[1], [0], [0], [1], [0, 0, 1, 1], [], []>} : vector<72x128xbf16>, vector<128x128xbf16>, vector<72x128xf32> -> vector<72x128xf32>
    %72 = arith.addf %66, %71 : vector<72x128xf32>
    %c1_96 = arith.constant 1 : index
    %c0_97 = arith.constant 0 : index
    %c0_98 = arith.constant 0 : index
    %c9_99 = arith.constant 9 : index
    %c0_100 = arith.constant 0 : index
    %73 = vector.load %arg1[%c1_96, %c0_97, %c0_98, %c9_99, %c0_100] : memref<2x2x1x88x128xbf16, #tpu.memory_space<vmem>>, vector<1x1x1x72x128xbf16>
    %74 = vector.shape_cast %73 : vector<1x1x1x72x128xbf16> to vector<72x128xbf16>
    %c12 = arith.constant 12 : index
    %c0_101 = arith.constant 0 : index
    %c0_102 = arith.constant 0 : index
    %75 = vector.load %arg2[%c12, %c0_101, %c0_102] : memref<16x128x128xbf16, #tpu.memory_space<vmem>>, vector<1x128x128xbf16>
    %76 = vector.shape_cast %75 : vector<1x128x128xbf16> to vector<128x128xbf16>
    %cst_103 = arith.constant dense<0.000000e+00> : vector<72x128xf32>
    %77 = tpu.matmul %74, %76, %cst_103 {dimension_numbers = #tpu.dot_dimension_numbers<[1], [0], [0], [1], [0, 0, 1, 1], [], []>} : vector<72x128xbf16>, vector<128x128xbf16>, vector<72x128xf32> -> vector<72x128xf32>
    %78 = arith.addf %72, %77 : vector<72x128xf32>
    %c1_104 = arith.constant 1 : index
    %c1_105 = arith.constant 1 : index
    %c0_106 = arith.constant 0 : index
    %c9_107 = arith.constant 9 : index
    %c0_108 = arith.constant 0 : index
    %79 = vector.load %arg1[%c1_104, %c1_105, %c0_106, %c9_107, %c0_108] : memref<2x2x1x88x128xbf16, #tpu.memory_space<vmem>>, vector<1x1x1x72x128xbf16>
    %80 = vector.shape_cast %79 : vector<1x1x1x72x128xbf16> to vector<72x128xbf16>
    %c13 = arith.constant 13 : index
    %c0_109 = arith.constant 0 : index
    %c0_110 = arith.constant 0 : index
    %81 = vector.load %arg2[%c13, %c0_109, %c0_110] : memref<16x128x128xbf16, #tpu.memory_space<vmem>>, vector<1x128x128xbf16>
    %82 = vector.shape_cast %81 : vector<1x128x128xbf16> to vector<128x128xbf16>
    %cst_111 = arith.constant dense<0.000000e+00> : vector<72x128xf32>
    %83 = tpu.matmul %80, %82, %cst_111 {dimension_numbers = #tpu.dot_dimension_numbers<[1], [0], [0], [1], [0, 0, 1, 1], [], []>} : vector<72x128xbf16>, vector<128x128xbf16>, vector<72x128xf32> -> vector<72x128xf32>
    %84 = arith.addf %78, %83 : vector<72x128xf32>
    %c1_112 = arith.constant 1 : index
    %c0_113 = arith.constant 0 : index
    %c0_114 = arith.constant 0 : index
    %c10_115 = arith.constant 10 : index
    %c0_116 = arith.constant 0 : index
    %85 = vector.load %arg1[%c1_112, %c0_113, %c0_114, %c10_115, %c0_116] : memref<2x2x1x88x128xbf16, #tpu.memory_space<vmem>>, vector<1x1x1x72x128xbf16>
    %86 = vector.shape_cast %85 : vector<1x1x1x72x128xbf16> to vector<72x128xbf16>
    %c14 = arith.constant 14 : index
    %c0_117 = arith.constant 0 : index
    %c0_118 = arith.constant 0 : index
    %87 = vector.load %arg2[%c14, %c0_117, %c0_118] : memref<16x128x128xbf16, #tpu.memory_space<vmem>>, vector<1x128x128xbf16>
    %88 = vector.shape_cast %87 : vector<1x128x128xbf16> to vector<128x128xbf16>
    %cst_119 = arith.constant dense<0.000000e+00> : vector<72x128xf32>
    %89 = tpu.matmul %86, %88, %cst_119 {dimension_numbers = #tpu.dot_dimension_numbers<[1], [0], [0], [1], [0, 0, 1, 1], [], []>} : vector<72x128xbf16>, vector<128x128xbf16>, vector<72x128xf32> -> vector<72x128xf32>
    %90 = arith.addf %84, %89 : vector<72x128xf32>
    %c1_120 = arith.constant 1 : index
    %c1_121 = arith.constant 1 : index
    %c0_122 = arith.constant 0 : index
    %c10_123 = arith.constant 10 : index
    %c0_124 = arith.constant 0 : index
    %91 = vector.load %arg1[%c1_120, %c1_121, %c0_122, %c10_123, %c0_124] : memref<2x2x1x88x128xbf16, #tpu.memory_space<vmem>>, vector<1x1x1x72x128xbf16>
    %92 = vector.shape_cast %91 : vector<1x1x1x72x128xbf16> to vector<72x128xbf16>
    %c15 = arith.constant 15 : index
    %c0_125 = arith.constant 0 : index
    %c0_126 = arith.constant 0 : index
    %93 = vector.load %arg2[%c15, %c0_125, %c0_126] : memref<16x128x128xbf16, #tpu.memory_space<vmem>>, vector<1x128x128xbf16>
    %94 = vector.shape_cast %93 : vector<1x128x128xbf16> to vector<128x128xbf16>
    %cst_127 = arith.constant dense<0.000000e+00> : vector<72x128xf32>
    %95 = tpu.matmul %92, %94, %cst_127 {dimension_numbers = #tpu.dot_dimension_numbers<[1], [0], [0], [1], [0, 0, 1, 1], [], []>} : vector<72x128xbf16>, vector<128x128xbf16>, vector<72x128xf32> -> vector<72x128xf32>
    %96 = arith.addf %90, %95 : vector<72x128xf32>
    %c0_128 = arith.constant 0 : index
    %c0_129 = arith.constant 0 : index
    %97 = vector.load %arg3[%c0_128, %c0_129] : memref<1x128xf32, #tpu.memory_space<vmem>>, vector<1x128xf32>
    %98 = vector.broadcast %97 : vector<1x128xf32> to vector<72x128xf32>
    %99 = arith.addf %96, %98 : vector<72x128xf32>
    %cst_130 = arith.constant 0.000000e+00 : f32
    %100 = vector.broadcast %cst_130 : f32 to vector<72x128xf32>
    %101 = arith.cmpf ogt, %99, %100 : vector<72x128xf32>
    %cst_131 = arith.constant 2.000000e-01 : f32
    %102 = vector.broadcast %cst_131 : f32 to vector<72x128xf32>
    %103 = arith.mulf %102, %99 : vector<72x128xf32>
    %104 = arith.select %101, %99, %103 : vector<72x128xi1>, vector<72x128xf32>
    %105 = arith.truncf %104 : vector<72x128xf32> to vector<72x128xbf16>
    %c0_132 = arith.constant 0 : index
    %c0_133 = arith.constant 0 : index
    %c0_134 = arith.constant 0 : index
    %106 = vector.load %arg4[%c0_132, %c0_133, %c0_134] : memref<1x72x128xbf16, #tpu.memory_space<vmem>>, vector<1x72x128xbf16>
    %107 = vector.shape_cast %106 : vector<1x72x128xbf16> to vector<72x128xbf16>
    %108 = vector.shape_cast %105 : vector<72x128xbf16> to vector<1x72x128xbf16>
    tpu.vector_store %arg4[%c0_132, %c0_133, %c0_134], %108 {strides = array<i32>} : memref<1x72x128xbf16, #tpu.memory_space<vmem>>, vector<1x72x128xbf16>,
    return
  }
  func.func @transform_0(%arg0: i32) -> (i32, i32, i32, i32, i32) {
    %c0_i32 = arith.constant 0 : i32
    %c0_i32_0 = arith.constant 0 : i32
    %c0_i32_1 = arith.constant 0 : i32
    %c0_i32_2 = arith.constant 0 : i32
    %c0_i32_3 = arith.constant 0 : i32
    return %c0_i32, %c0_i32_0, %arg0, %c0_i32_1, %c0_i32_2 : i32, i32, i32, i32, i32
  }
  func.func @transform_1(%arg0: i32) -> (i32, i32, i32) {
    %c0_i32 = arith.constant 0 : i32
    %c0_i32_0 = arith.constant 0 : i32
    %c0_i32_1 = arith.constant 0 : i32
    %c0_i32_2 = arith.constant 0 : i32
    return %c0_i32, %c0_i32_0, %c0_i32_1 : i32, i32, i32
  }
  func.func @transform_2(%arg0: i32) -> (i32, i32) {
    %c0_i32 = arith.constant 0 : i32
    %c0_i32_0 = arith.constant 0 : i32
    %c0_i32_1 = arith.constant 0 : i32
    return %c0_i32, %c0_i32_0 : i32, i32
  }
  func.func @transform_3(%arg0: i32) -> (i32, i32, i32) {
    %c0_i32 = arith.constant 0 : i32
    %c0_i32_0 = arith.constant 0 : i32
    %c0_i32_1 = arith.constant 0 : i32
    return %arg0, %c0_i32, %c0_i32_0 : i32, i32, i32
  }
}

module attributes {stable_mosaic.version = 11 : i64} {
  func.func @_conv_tap_kernel(%arg0: i32, %arg1: memref<2x2x1x32x128xbf16, #tpu.memory_space<vmem>>, %arg2: memref<16x128x128xbf16, #tpu.memory_space<vmem>>, %arg3: memref<1x128xf32, #tpu.memory_space<vmem>>, %arg4: memref<24x1xf32, #tpu.memory_space<vmem>>, %arg5: memref<1x24x128xbf16, #tpu.memory_space<vmem>>, %arg6: memref<1x1x128xf32, #tpu.memory_space<vmem>>, %arg7: memref<1x1x128xf32, #tpu.memory_space<vmem>>) attributes {dimension_semantics = [#tpu.dimension_semantics<parallel>], iteration_bounds = array<i64: 2>, scalar_prefetch = 0 : i64, scratch_operands = 0 : i64, tpu.core_type = #tpu.core_type<tc>, window_params = [{transform_indices = @transform_0, window_bounds = array<i64: 2, 2, 1, 32, 128>}, {pipeline_mode = #tpu.pipeline_mode<synchronous>, transform_indices = @transform_1, window_bounds = array<i64: 16, 128, 128>}, {pipeline_mode = #tpu.pipeline_mode<synchronous>, transform_indices = @transform_2, window_bounds = array<i64: 1, 128>}, {pipeline_mode = #tpu.pipeline_mode<synchronous>, transform_indices = @transform_3, window_bounds = array<i64: 24, 1>}, {transform_indices = @transform_4, window_bounds = array<i64: 1, 24, 128>}, {transform_indices = @transform_5, window_bounds = array<i64: 1, 1, 128>}, {transform_indices = @transform_6, window_bounds = array<i64: 1, 1, 128>}]} {
    %cst = arith.constant 0.000000e+00 : f32
    %0 = vector.broadcast %cst : f32 to vector<24x128xf32>
    %c0 = arith.constant 0 : index
    %c0_0 = arith.constant 0 : index
    %c0_1 = arith.constant 0 : index
    %c0_2 = arith.constant 0 : index
    %c0_3 = arith.constant 0 : index
    %1 = vector.load %arg1[%c0, %c0_0, %c0_1, %c0_2, %c0_3] : memref<2x2x1x32x128xbf16, #tpu.memory_space<vmem>>, vector<1x1x1x24x128xbf16>
    %2 = vector.shape_cast %1 : vector<1x1x1x24x128xbf16> to vector<24x128xbf16>
    %c0_4 = arith.constant 0 : index
    %c0_5 = arith.constant 0 : index
    %c0_6 = arith.constant 0 : index
    %3 = vector.load %arg2[%c0_4, %c0_5, %c0_6] : memref<16x128x128xbf16, #tpu.memory_space<vmem>>, vector<1x128x128xbf16>
    %4 = vector.shape_cast %3 : vector<1x128x128xbf16> to vector<128x128xbf16>
    %cst_7 = arith.constant dense<0.000000e+00> : vector<24x128xf32>
    %5 = tpu.matmul %2, %4, %cst_7 {dimension_numbers = #tpu.dot_dimension_numbers<[1], [0], [0], [1], [0, 0, 1, 1], [], []>} : vector<24x128xbf16>, vector<128x128xbf16>, vector<24x128xf32> -> vector<24x128xf32>
    %6 = arith.addf %0, %5 : vector<24x128xf32>
    %c0_8 = arith.constant 0 : index
    %c1 = arith.constant 1 : index
    %c0_9 = arith.constant 0 : index
    %c0_10 = arith.constant 0 : index
    %c0_11 = arith.constant 0 : index
    %7 = vector.load %arg1[%c0_8, %c1, %c0_9, %c0_10, %c0_11] : memref<2x2x1x32x128xbf16, #tpu.memory_space<vmem>>, vector<1x1x1x24x128xbf16>
    %8 = vector.shape_cast %7 : vector<1x1x1x24x128xbf16> to vector<24x128xbf16>
    %c1_12 = arith.constant 1 : index
    %c0_13 = arith.constant 0 : index
    %c0_14 = arith.constant 0 : index
    %9 = vector.load %arg2[%c1_12, %c0_13, %c0_14] : memref<16x128x128xbf16, #tpu.memory_space<vmem>>, vector<1x128x128xbf16>
    %10 = vector.shape_cast %9 : vector<1x128x128xbf16> to vector<128x128xbf16>
    %cst_15 = arith.constant dense<0.000000e+00> : vector<24x128xf32>
    %11 = tpu.matmul %8, %10, %cst_15 {dimension_numbers = #tpu.dot_dimension_numbers<[1], [0], [0], [1], [0, 0, 1, 1], [], []>} : vector<24x128xbf16>, vector<128x128xbf16>, vector<24x128xf32> -> vector<24x128xf32>
    %12 = arith.addf %6, %11 : vector<24x128xf32>
    %c0_16 = arith.constant 0 : index
    %c0_17 = arith.constant 0 : index
    %c0_18 = arith.constant 0 : index
    %c1_19 = arith.constant 1 : index
    %c0_20 = arith.constant 0 : index
    %13 = vector.load %arg1[%c0_16, %c0_17, %c0_18, %c1_19, %c0_20] : memref<2x2x1x32x128xbf16, #tpu.memory_space<vmem>>, vector<1x1x1x24x128xbf16>
    %14 = vector.shape_cast %13 : vector<1x1x1x24x128xbf16> to vector<24x128xbf16>
    %c2 = arith.constant 2 : index
    %c0_21 = arith.constant 0 : index
    %c0_22 = arith.constant 0 : index
    %15 = vector.load %arg2[%c2, %c0_21, %c0_22] : memref<16x128x128xbf16, #tpu.memory_space<vmem>>, vector<1x128x128xbf16>
    %16 = vector.shape_cast %15 : vector<1x128x128xbf16> to vector<128x128xbf16>
    %cst_23 = arith.constant dense<0.000000e+00> : vector<24x128xf32>
    %17 = tpu.matmul %14, %16, %cst_23 {dimension_numbers = #tpu.dot_dimension_numbers<[1], [0], [0], [1], [0, 0, 1, 1], [], []>} : vector<24x128xbf16>, vector<128x128xbf16>, vector<24x128xf32> -> vector<24x128xf32>
    %18 = arith.addf %12, %17 : vector<24x128xf32>
    %c0_24 = arith.constant 0 : index
    %c1_25 = arith.constant 1 : index
    %c0_26 = arith.constant 0 : index
    %c1_27 = arith.constant 1 : index
    %c0_28 = arith.constant 0 : index
    %19 = vector.load %arg1[%c0_24, %c1_25, %c0_26, %c1_27, %c0_28] : memref<2x2x1x32x128xbf16, #tpu.memory_space<vmem>>, vector<1x1x1x24x128xbf16>
    %20 = vector.shape_cast %19 : vector<1x1x1x24x128xbf16> to vector<24x128xbf16>
    %c3 = arith.constant 3 : index
    %c0_29 = arith.constant 0 : index
    %c0_30 = arith.constant 0 : index
    %21 = vector.load %arg2[%c3, %c0_29, %c0_30] : memref<16x128x128xbf16, #tpu.memory_space<vmem>>, vector<1x128x128xbf16>
    %22 = vector.shape_cast %21 : vector<1x128x128xbf16> to vector<128x128xbf16>
    %cst_31 = arith.constant dense<0.000000e+00> : vector<24x128xf32>
    %23 = tpu.matmul %20, %22, %cst_31 {dimension_numbers = #tpu.dot_dimension_numbers<[1], [0], [0], [1], [0, 0, 1, 1], [], []>} : vector<24x128xbf16>, vector<128x128xbf16>, vector<24x128xf32> -> vector<24x128xf32>
    %24 = arith.addf %18, %23 : vector<24x128xf32>
    %c1_32 = arith.constant 1 : index
    %c0_33 = arith.constant 0 : index
    %c0_34 = arith.constant 0 : index
    %c0_35 = arith.constant 0 : index
    %c0_36 = arith.constant 0 : index
    %25 = vector.load %arg1[%c1_32, %c0_33, %c0_34, %c0_35, %c0_36] : memref<2x2x1x32x128xbf16, #tpu.memory_space<vmem>>, vector<1x1x1x24x128xbf16>
    %26 = vector.shape_cast %25 : vector<1x1x1x24x128xbf16> to vector<24x128xbf16>
    %c4 = arith.constant 4 : index
    %c0_37 = arith.constant 0 : index
    %c0_38 = arith.constant 0 : index
    %27 = vector.load %arg2[%c4, %c0_37, %c0_38] : memref<16x128x128xbf16, #tpu.memory_space<vmem>>, vector<1x128x128xbf16>
    %28 = vector.shape_cast %27 : vector<1x128x128xbf16> to vector<128x128xbf16>
    %cst_39 = arith.constant dense<0.000000e+00> : vector<24x128xf32>
    %29 = tpu.matmul %26, %28, %cst_39 {dimension_numbers = #tpu.dot_dimension_numbers<[1], [0], [0], [1], [0, 0, 1, 1], [], []>} : vector<24x128xbf16>, vector<128x128xbf16>, vector<24x128xf32> -> vector<24x128xf32>
    %30 = arith.addf %24, %29 : vector<24x128xf32>
    %c1_40 = arith.constant 1 : index
    %c1_41 = arith.constant 1 : index
    %c0_42 = arith.constant 0 : index
    %c0_43 = arith.constant 0 : index
    %c0_44 = arith.constant 0 : index
    %31 = vector.load %arg1[%c1_40, %c1_41, %c0_42, %c0_43, %c0_44] : memref<2x2x1x32x128xbf16, #tpu.memory_space<vmem>>, vector<1x1x1x24x128xbf16>
    %32 = vector.shape_cast %31 : vector<1x1x1x24x128xbf16> to vector<24x128xbf16>
    %c5 = arith.constant 5 : index
    %c0_45 = arith.constant 0 : index
    %c0_46 = arith.constant 0 : index
    %33 = vector.load %arg2[%c5, %c0_45, %c0_46] : memref<16x128x128xbf16, #tpu.memory_space<vmem>>, vector<1x128x128xbf16>
    %34 = vector.shape_cast %33 : vector<1x128x128xbf16> to vector<128x128xbf16>
    %cst_47 = arith.constant dense<0.000000e+00> : vector<24x128xf32>
    %35 = tpu.matmul %32, %34, %cst_47 {dimension_numbers = #tpu.dot_dimension_numbers<[1], [0], [0], [1], [0, 0, 1, 1], [], []>} : vector<24x128xbf16>, vector<128x128xbf16>, vector<24x128xf32> -> vector<24x128xf32>
    %36 = arith.addf %30, %35 : vector<24x128xf32>
    %c1_48 = arith.constant 1 : index
    %c0_49 = arith.constant 0 : index
    %c0_50 = arith.constant 0 : index
    %c1_51 = arith.constant 1 : index
    %c0_52 = arith.constant 0 : index
    %37 = vector.load %arg1[%c1_48, %c0_49, %c0_50, %c1_51, %c0_52] : memref<2x2x1x32x128xbf16, #tpu.memory_space<vmem>>, vector<1x1x1x24x128xbf16>
    %38 = vector.shape_cast %37 : vector<1x1x1x24x128xbf16> to vector<24x128xbf16>
    %c6 = arith.constant 6 : index
    %c0_53 = arith.constant 0 : index
    %c0_54 = arith.constant 0 : index
    %39 = vector.load %arg2[%c6, %c0_53, %c0_54] : memref<16x128x128xbf16, #tpu.memory_space<vmem>>, vector<1x128x128xbf16>
    %40 = vector.shape_cast %39 : vector<1x128x128xbf16> to vector<128x128xbf16>
    %cst_55 = arith.constant dense<0.000000e+00> : vector<24x128xf32>
    %41 = tpu.matmul %38, %40, %cst_55 {dimension_numbers = #tpu.dot_dimension_numbers<[1], [0], [0], [1], [0, 0, 1, 1], [], []>} : vector<24x128xbf16>, vector<128x128xbf16>, vector<24x128xf32> -> vector<24x128xf32>
    %42 = arith.addf %36, %41 : vector<24x128xf32>
    %c1_56 = arith.constant 1 : index
    %c1_57 = arith.constant 1 : index
    %c0_58 = arith.constant 0 : index
    %c1_59 = arith.constant 1 : index
    %c0_60 = arith.constant 0 : index
    %43 = vector.load %arg1[%c1_56, %c1_57, %c0_58, %c1_59, %c0_60] : memref<2x2x1x32x128xbf16, #tpu.memory_space<vmem>>, vector<1x1x1x24x128xbf16>
    %44 = vector.shape_cast %43 : vector<1x1x1x24x128xbf16> to vector<24x128xbf16>
    %c7 = arith.constant 7 : index
    %c0_61 = arith.constant 0 : index
    %c0_62 = arith.constant 0 : index
    %45 = vector.load %arg2[%c7, %c0_61, %c0_62] : memref<16x128x128xbf16, #tpu.memory_space<vmem>>, vector<1x128x128xbf16>
    %46 = vector.shape_cast %45 : vector<1x128x128xbf16> to vector<128x128xbf16>
    %cst_63 = arith.constant dense<0.000000e+00> : vector<24x128xf32>
    %47 = tpu.matmul %44, %46, %cst_63 {dimension_numbers = #tpu.dot_dimension_numbers<[1], [0], [0], [1], [0, 0, 1, 1], [], []>} : vector<24x128xbf16>, vector<128x128xbf16>, vector<24x128xf32> -> vector<24x128xf32>
    %48 = arith.addf %42, %47 : vector<24x128xf32>
    %c0_64 = arith.constant 0 : index
    %c0_65 = arith.constant 0 : index
    %c0_66 = arith.constant 0 : index
    %c5_67 = arith.constant 5 : index
    %c0_68 = arith.constant 0 : index
    %49 = vector.load %arg1[%c0_64, %c0_65, %c0_66, %c5_67, %c0_68] : memref<2x2x1x32x128xbf16, #tpu.memory_space<vmem>>, vector<1x1x1x24x128xbf16>
    %50 = vector.shape_cast %49 : vector<1x1x1x24x128xbf16> to vector<24x128xbf16>
    %c8 = arith.constant 8 : index
    %c0_69 = arith.constant 0 : index
    %c0_70 = arith.constant 0 : index
    %51 = vector.load %arg2[%c8, %c0_69, %c0_70] : memref<16x128x128xbf16, #tpu.memory_space<vmem>>, vector<1x128x128xbf16>
    %52 = vector.shape_cast %51 : vector<1x128x128xbf16> to vector<128x128xbf16>
    %cst_71 = arith.constant dense<0.000000e+00> : vector<24x128xf32>
    %53 = tpu.matmul %50, %52, %cst_71 {dimension_numbers = #tpu.dot_dimension_numbers<[1], [0], [0], [1], [0, 0, 1, 1], [], []>} : vector<24x128xbf16>, vector<128x128xbf16>, vector<24x128xf32> -> vector<24x128xf32>
    %54 = arith.addf %48, %53 : vector<24x128xf32>
    %c0_72 = arith.constant 0 : index
    %c1_73 = arith.constant 1 : index
    %c0_74 = arith.constant 0 : index
    %c5_75 = arith.constant 5 : index
    %c0_76 = arith.constant 0 : index
    %55 = vector.load %arg1[%c0_72, %c1_73, %c0_74, %c5_75, %c0_76] : memref<2x2x1x32x128xbf16, #tpu.memory_space<vmem>>, vector<1x1x1x24x128xbf16>
    %56 = vector.shape_cast %55 : vector<1x1x1x24x128xbf16> to vector<24x128xbf16>
    %c9 = arith.constant 9 : index
    %c0_77 = arith.constant 0 : index
    %c0_78 = arith.constant 0 : index
    %57 = vector.load %arg2[%c9, %c0_77, %c0_78] : memref<16x128x128xbf16, #tpu.memory_space<vmem>>, vector<1x128x128xbf16>
    %58 = vector.shape_cast %57 : vector<1x128x128xbf16> to vector<128x128xbf16>
    %cst_79 = arith.constant dense<0.000000e+00> : vector<24x128xf32>
    %59 = tpu.matmul %56, %58, %cst_79 {dimension_numbers = #tpu.dot_dimension_numbers<[1], [0], [0], [1], [0, 0, 1, 1], [], []>} : vector<24x128xbf16>, vector<128x128xbf16>, vector<24x128xf32> -> vector<24x128xf32>
    %60 = arith.addf %54, %59 : vector<24x128xf32>
    %c0_80 = arith.constant 0 : index
    %c0_81 = arith.constant 0 : index
    %c0_82 = arith.constant 0 : index
    %c6_83 = arith.constant 6 : index
    %c0_84 = arith.constant 0 : index
    %61 = vector.load %arg1[%c0_80, %c0_81, %c0_82, %c6_83, %c0_84] : memref<2x2x1x32x128xbf16, #tpu.memory_space<vmem>>, vector<1x1x1x24x128xbf16>
    %62 = vector.shape_cast %61 : vector<1x1x1x24x128xbf16> to vector<24x128xbf16>
    %c10 = arith.constant 10 : index
    %c0_85 = arith.constant 0 : index
    %c0_86 = arith.constant 0 : index
    %63 = vector.load %arg2[%c10, %c0_85, %c0_86] : memref<16x128x128xbf16, #tpu.memory_space<vmem>>, vector<1x128x128xbf16>
    %64 = vector.shape_cast %63 : vector<1x128x128xbf16> to vector<128x128xbf16>
    %cst_87 = arith.constant dense<0.000000e+00> : vector<24x128xf32>
    %65 = tpu.matmul %62, %64, %cst_87 {dimension_numbers = #tpu.dot_dimension_numbers<[1], [0], [0], [1], [0, 0, 1, 1], [], []>} : vector<24x128xbf16>, vector<128x128xbf16>, vector<24x128xf32> -> vector<24x128xf32>
    %66 = arith.addf %60, %65 : vector<24x128xf32>
    %c0_88 = arith.constant 0 : index
    %c1_89 = arith.constant 1 : index
    %c0_90 = arith.constant 0 : index
    %c6_91 = arith.constant 6 : index
    %c0_92 = arith.constant 0 : index
    %67 = vector.load %arg1[%c0_88, %c1_89, %c0_90, %c6_91, %c0_92] : memref<2x2x1x32x128xbf16, #tpu.memory_space<vmem>>, vector<1x1x1x24x128xbf16>
    %68 = vector.shape_cast %67 : vector<1x1x1x24x128xbf16> to vector<24x128xbf16>
    %c11 = arith.constant 11 : index
    %c0_93 = arith.constant 0 : index
    %c0_94 = arith.constant 0 : index
    %69 = vector.load %arg2[%c11, %c0_93, %c0_94] : memref<16x128x128xbf16, #tpu.memory_space<vmem>>, vector<1x128x128xbf16>
    %70 = vector.shape_cast %69 : vector<1x128x128xbf16> to vector<128x128xbf16>
    %cst_95 = arith.constant dense<0.000000e+00> : vector<24x128xf32>
    %71 = tpu.matmul %68, %70, %cst_95 {dimension_numbers = #tpu.dot_dimension_numbers<[1], [0], [0], [1], [0, 0, 1, 1], [], []>} : vector<24x128xbf16>, vector<128x128xbf16>, vector<24x128xf32> -> vector<24x128xf32>
    %72 = arith.addf %66, %71 : vector<24x128xf32>
    %c1_96 = arith.constant 1 : index
    %c0_97 = arith.constant 0 : index
    %c0_98 = arith.constant 0 : index
    %c5_99 = arith.constant 5 : index
    %c0_100 = arith.constant 0 : index
    %73 = vector.load %arg1[%c1_96, %c0_97, %c0_98, %c5_99, %c0_100] : memref<2x2x1x32x128xbf16, #tpu.memory_space<vmem>>, vector<1x1x1x24x128xbf16>
    %74 = vector.shape_cast %73 : vector<1x1x1x24x128xbf16> to vector<24x128xbf16>
    %c12 = arith.constant 12 : index
    %c0_101 = arith.constant 0 : index
    %c0_102 = arith.constant 0 : index
    %75 = vector.load %arg2[%c12, %c0_101, %c0_102] : memref<16x128x128xbf16, #tpu.memory_space<vmem>>, vector<1x128x128xbf16>
    %76 = vector.shape_cast %75 : vector<1x128x128xbf16> to vector<128x128xbf16>
    %cst_103 = arith.constant dense<0.000000e+00> : vector<24x128xf32>
    %77 = tpu.matmul %74, %76, %cst_103 {dimension_numbers = #tpu.dot_dimension_numbers<[1], [0], [0], [1], [0, 0, 1, 1], [], []>} : vector<24x128xbf16>, vector<128x128xbf16>, vector<24x128xf32> -> vector<24x128xf32>
    %78 = arith.addf %72, %77 : vector<24x128xf32>
    %c1_104 = arith.constant 1 : index
    %c1_105 = arith.constant 1 : index
    %c0_106 = arith.constant 0 : index
    %c5_107 = arith.constant 5 : index
    %c0_108 = arith.constant 0 : index
    %79 = vector.load %arg1[%c1_104, %c1_105, %c0_106, %c5_107, %c0_108] : memref<2x2x1x32x128xbf16, #tpu.memory_space<vmem>>, vector<1x1x1x24x128xbf16>
    %80 = vector.shape_cast %79 : vector<1x1x1x24x128xbf16> to vector<24x128xbf16>
    %c13 = arith.constant 13 : index
    %c0_109 = arith.constant 0 : index
    %c0_110 = arith.constant 0 : index
    %81 = vector.load %arg2[%c13, %c0_109, %c0_110] : memref<16x128x128xbf16, #tpu.memory_space<vmem>>, vector<1x128x128xbf16>
    %82 = vector.shape_cast %81 : vector<1x128x128xbf16> to vector<128x128xbf16>
    %cst_111 = arith.constant dense<0.000000e+00> : vector<24x128xf32>
    %83 = tpu.matmul %80, %82, %cst_111 {dimension_numbers = #tpu.dot_dimension_numbers<[1], [0], [0], [1], [0, 0, 1, 1], [], []>} : vector<24x128xbf16>, vector<128x128xbf16>, vector<24x128xf32> -> vector<24x128xf32>
    %84 = arith.addf %78, %83 : vector<24x128xf32>
    %c1_112 = arith.constant 1 : index
    %c0_113 = arith.constant 0 : index
    %c0_114 = arith.constant 0 : index
    %c6_115 = arith.constant 6 : index
    %c0_116 = arith.constant 0 : index
    %85 = vector.load %arg1[%c1_112, %c0_113, %c0_114, %c6_115, %c0_116] : memref<2x2x1x32x128xbf16, #tpu.memory_space<vmem>>, vector<1x1x1x24x128xbf16>
    %86 = vector.shape_cast %85 : vector<1x1x1x24x128xbf16> to vector<24x128xbf16>
    %c14 = arith.constant 14 : index
    %c0_117 = arith.constant 0 : index
    %c0_118 = arith.constant 0 : index
    %87 = vector.load %arg2[%c14, %c0_117, %c0_118] : memref<16x128x128xbf16, #tpu.memory_space<vmem>>, vector<1x128x128xbf16>
    %88 = vector.shape_cast %87 : vector<1x128x128xbf16> to vector<128x128xbf16>
    %cst_119 = arith.constant dense<0.000000e+00> : vector<24x128xf32>
    %89 = tpu.matmul %86, %88, %cst_119 {dimension_numbers = #tpu.dot_dimension_numbers<[1], [0], [0], [1], [0, 0, 1, 1], [], []>} : vector<24x128xbf16>, vector<128x128xbf16>, vector<24x128xf32> -> vector<24x128xf32>
    %90 = arith.addf %84, %89 : vector<24x128xf32>
    %c1_120 = arith.constant 1 : index
    %c1_121 = arith.constant 1 : index
    %c0_122 = arith.constant 0 : index
    %c6_123 = arith.constant 6 : index
    %c0_124 = arith.constant 0 : index
    %91 = vector.load %arg1[%c1_120, %c1_121, %c0_122, %c6_123, %c0_124] : memref<2x2x1x32x128xbf16, #tpu.memory_space<vmem>>, vector<1x1x1x24x128xbf16>
    %92 = vector.shape_cast %91 : vector<1x1x1x24x128xbf16> to vector<24x128xbf16>
    %c15 = arith.constant 15 : index
    %c0_125 = arith.constant 0 : index
    %c0_126 = arith.constant 0 : index
    %93 = vector.load %arg2[%c15, %c0_125, %c0_126] : memref<16x128x128xbf16, #tpu.memory_space<vmem>>, vector<1x128x128xbf16>
    %94 = vector.shape_cast %93 : vector<1x128x128xbf16> to vector<128x128xbf16>
    %cst_127 = arith.constant dense<0.000000e+00> : vector<24x128xf32>
    %95 = tpu.matmul %92, %94, %cst_127 {dimension_numbers = #tpu.dot_dimension_numbers<[1], [0], [0], [1], [0, 0, 1, 1], [], []>} : vector<24x128xbf16>, vector<128x128xbf16>, vector<24x128xf32> -> vector<24x128xf32>
    %96 = arith.addf %90, %95 : vector<24x128xf32>
    %c0_128 = arith.constant 0 : index
    %c0_129 = arith.constant 0 : index
    %97 = vector.load %arg3[%c0_128, %c0_129] : memref<1x128xf32, #tpu.memory_space<vmem>>, vector<1x128xf32>
    %98 = vector.broadcast %97 : vector<1x128xf32> to vector<24x128xf32>
    %99 = arith.addf %96, %98 : vector<24x128xf32>
    %c0_130 = arith.constant 0 : index
    %c0_131 = arith.constant 0 : index
    %100 = vector.load %arg4[%c0_130, %c0_131] : memref<24x1xf32, #tpu.memory_space<vmem>>, vector<24x1xf32>
    %101 = vector.broadcast %100 : vector<24x1xf32> to vector<24x128xf32>
    %102 = arith.mulf %99, %101 : vector<24x128xf32>
    %cst_132 = arith.constant dense<0.000000e+00> : vector<128xf32>
    %103 = vector.multi_reduction <add>, %102, %cst_132 [0] : vector<24x128xf32> to vector<128xf32>
    %104 = vector.shape_cast %103 : vector<128xf32> to vector<1x128xf32>
    %c0_133 = arith.constant 0 : index
    %c0_134 = arith.constant 0 : index
    %c0_135 = arith.constant 0 : index
    %105 = vector.load %arg6[%c0_133, %c0_134, %c0_135] : memref<1x1x128xf32, #tpu.memory_space<vmem>>, vector<1x1x128xf32>
    %106 = vector.shape_cast %105 : vector<1x1x128xf32> to vector<1x128xf32>
    %107 = vector.shape_cast %104 : vector<1x128xf32> to vector<1x1x128xf32>
    tpu.vector_store %arg6[%c0_133, %c0_134, %c0_135], %107 {strides = array<i32>} : memref<1x1x128xf32, #tpu.memory_space<vmem>>, vector<1x1x128xf32>,
    %108 = arith.mulf %102, %99 : vector<24x128xf32>
    %cst_136 = arith.constant dense<0.000000e+00> : vector<128xf32>
    %109 = vector.multi_reduction <add>, %108, %cst_136 [0] : vector<24x128xf32> to vector<128xf32>
    %110 = vector.shape_cast %109 : vector<128xf32> to vector<1x128xf32>
    %c0_137 = arith.constant 0 : index
    %c0_138 = arith.constant 0 : index
    %c0_139 = arith.constant 0 : index
    %111 = vector.load %arg7[%c0_137, %c0_138, %c0_139] : memref<1x1x128xf32, #tpu.memory_space<vmem>>, vector<1x1x128xf32>
    %112 = vector.shape_cast %111 : vector<1x1x128xf32> to vector<1x128xf32>
    %113 = vector.shape_cast %110 : vector<1x128xf32> to vector<1x1x128xf32>
    tpu.vector_store %arg7[%c0_137, %c0_138, %c0_139], %113 {strides = array<i32>} : memref<1x1x128xf32, #tpu.memory_space<vmem>>, vector<1x1x128xf32>,
    %114 = arith.truncf %99 : vector<24x128xf32> to vector<24x128xbf16>
    %c0_140 = arith.constant 0 : index
    %c0_141 = arith.constant 0 : index
    %c0_142 = arith.constant 0 : index
    %115 = vector.load %arg5[%c0_140, %c0_141, %c0_142] : memref<1x24x128xbf16, #tpu.memory_space<vmem>>, vector<1x24x128xbf16>
    %116 = vector.shape_cast %115 : vector<1x24x128xbf16> to vector<24x128xbf16>
    %117 = vector.shape_cast %114 : vector<24x128xbf16> to vector<1x24x128xbf16>
    tpu.vector_store %arg5[%c0_140, %c0_141, %c0_142], %117 {strides = array<i32>} : memref<1x24x128xbf16, #tpu.memory_space<vmem>>, vector<1x24x128xbf16>,
    return
  }
  func.func @transform_0(%arg0: i32) -> (i32, i32, i32, i32, i32) {
    %c0_i32 = arith.constant 0 : i32
    %c0_i32_0 = arith.constant 0 : i32
    %c0_i32_1 = arith.constant 0 : i32
    %c0_i32_2 = arith.constant 0 : i32
    %c0_i32_3 = arith.constant 0 : i32
    return %c0_i32, %c0_i32_0, %arg0, %c0_i32_1, %c0_i32_2 : i32, i32, i32, i32, i32
  }
  func.func @transform_1(%arg0: i32) -> (i32, i32, i32) {
    %c0_i32 = arith.constant 0 : i32
    %c0_i32_0 = arith.constant 0 : i32
    %c0_i32_1 = arith.constant 0 : i32
    %c0_i32_2 = arith.constant 0 : i32
    return %c0_i32, %c0_i32_0, %c0_i32_1 : i32, i32, i32
  }
  func.func @transform_2(%arg0: i32) -> (i32, i32) {
    %c0_i32 = arith.constant 0 : i32
    %c0_i32_0 = arith.constant 0 : i32
    %c0_i32_1 = arith.constant 0 : i32
    return %c0_i32, %c0_i32_0 : i32, i32
  }
  func.func @transform_3(%arg0: i32) -> (i32, i32) {
    %c0_i32 = arith.constant 0 : i32
    %c0_i32_0 = arith.constant 0 : i32
    %c0_i32_1 = arith.constant 0 : i32
    return %c0_i32, %c0_i32_0 : i32, i32
  }
  func.func @transform_4(%arg0: i32) -> (i32, i32, i32) {
    %c0_i32 = arith.constant 0 : i32
    %c0_i32_0 = arith.constant 0 : i32
    %c0_i32_1 = arith.constant 0 : i32
    return %arg0, %c0_i32, %c0_i32_0 : i32, i32, i32
  }
  func.func @transform_5(%arg0: i32) -> (i32, i32, i32) {
    %c0_i32 = arith.constant 0 : i32
    %c0_i32_0 = arith.constant 0 : i32
    %c0_i32_1 = arith.constant 0 : i32
    return %arg0, %c0_i32, %c0_i32_0 : i32, i32, i32
  }
  func.func @transform_6(%arg0: i32) -> (i32, i32, i32) {
    %c0_i32 = arith.constant 0 : i32
    %c0_i32_0 = arith.constant 0 : i32
    %c0_i32_1 = arith.constant 0 : i32
    return %arg0, %c0_i32, %c0_i32_0 : i32, i32, i32
  }
}

module attributes {stable_mosaic.version = 11 : i64} {
  func.func @_conv_tap_kernel(%arg0: i32, %arg1: memref<2x2x1x16x128xbf16, #tpu.memory_space<vmem>>, %arg2: memref<16x128x128xbf16, #tpu.memory_space<vmem>>, %arg3: memref<1x128xf32, #tpu.memory_space<vmem>>, %arg4: memref<1x8x128xf32, #tpu.memory_space<vmem>>) attributes {dimension_semantics = [#tpu.dimension_semantics<parallel>], iteration_bounds = array<i64: 2>, scalar_prefetch = 0 : i64, scratch_operands = 0 : i64, tpu.core_type = #tpu.core_type<tc>, window_params = [{transform_indices = @transform_0, window_bounds = array<i64: 2, 2, 1, 16, 128>}, {pipeline_mode = #tpu.pipeline_mode<synchronous>, transform_indices = @transform_1, window_bounds = array<i64: 16, 128, 128>}, {pipeline_mode = #tpu.pipeline_mode<synchronous>, transform_indices = @transform_2, window_bounds = array<i64: 1, 128>}, {transform_indices = @transform_3, window_bounds = array<i64: 1, 8, 128>}]} {
    %cst = arith.constant 0.000000e+00 : f32
    %0 = vector.broadcast %cst : f32 to vector<8x128xf32>
    %c0 = arith.constant 0 : index
    %c0_0 = arith.constant 0 : index
    %c0_1 = arith.constant 0 : index
    %c0_2 = arith.constant 0 : index
    %c0_3 = arith.constant 0 : index
    %1 = vector.load %arg1[%c0, %c0_0, %c0_1, %c0_2, %c0_3] : memref<2x2x1x16x128xbf16, #tpu.memory_space<vmem>>, vector<1x1x1x8x128xbf16>
    %2 = vector.shape_cast %1 : vector<1x1x1x8x128xbf16> to vector<8x128xbf16>
    %c0_4 = arith.constant 0 : index
    %c0_5 = arith.constant 0 : index
    %c0_6 = arith.constant 0 : index
    %3 = vector.load %arg2[%c0_4, %c0_5, %c0_6] : memref<16x128x128xbf16, #tpu.memory_space<vmem>>, vector<1x128x128xbf16>
    %4 = vector.shape_cast %3 : vector<1x128x128xbf16> to vector<128x128xbf16>
    %cst_7 = arith.constant dense<0.000000e+00> : vector<8x128xf32>
    %5 = tpu.matmul %2, %4, %cst_7 {dimension_numbers = #tpu.dot_dimension_numbers<[1], [0], [0], [1], [0, 0, 1, 1], [], []>} : vector<8x128xbf16>, vector<128x128xbf16>, vector<8x128xf32> -> vector<8x128xf32>
    %6 = arith.addf %0, %5 : vector<8x128xf32>
    %c0_8 = arith.constant 0 : index
    %c1 = arith.constant 1 : index
    %c0_9 = arith.constant 0 : index
    %c0_10 = arith.constant 0 : index
    %c0_11 = arith.constant 0 : index
    %7 = vector.load %arg1[%c0_8, %c1, %c0_9, %c0_10, %c0_11] : memref<2x2x1x16x128xbf16, #tpu.memory_space<vmem>>, vector<1x1x1x8x128xbf16>
    %8 = vector.shape_cast %7 : vector<1x1x1x8x128xbf16> to vector<8x128xbf16>
    %c1_12 = arith.constant 1 : index
    %c0_13 = arith.constant 0 : index
    %c0_14 = arith.constant 0 : index
    %9 = vector.load %arg2[%c1_12, %c0_13, %c0_14] : memref<16x128x128xbf16, #tpu.memory_space<vmem>>, vector<1x128x128xbf16>
    %10 = vector.shape_cast %9 : vector<1x128x128xbf16> to vector<128x128xbf16>
    %cst_15 = arith.constant dense<0.000000e+00> : vector<8x128xf32>
    %11 = tpu.matmul %8, %10, %cst_15 {dimension_numbers = #tpu.dot_dimension_numbers<[1], [0], [0], [1], [0, 0, 1, 1], [], []>} : vector<8x128xbf16>, vector<128x128xbf16>, vector<8x128xf32> -> vector<8x128xf32>
    %12 = arith.addf %6, %11 : vector<8x128xf32>
    %c0_16 = arith.constant 0 : index
    %c0_17 = arith.constant 0 : index
    %c0_18 = arith.constant 0 : index
    %c1_19 = arith.constant 1 : index
    %c0_20 = arith.constant 0 : index
    %13 = vector.load %arg1[%c0_16, %c0_17, %c0_18, %c1_19, %c0_20] : memref<2x2x1x16x128xbf16, #tpu.memory_space<vmem>>, vector<1x1x1x8x128xbf16>
    %14 = vector.shape_cast %13 : vector<1x1x1x8x128xbf16> to vector<8x128xbf16>
    %c2 = arith.constant 2 : index
    %c0_21 = arith.constant 0 : index
    %c0_22 = arith.constant 0 : index
    %15 = vector.load %arg2[%c2, %c0_21, %c0_22] : memref<16x128x128xbf16, #tpu.memory_space<vmem>>, vector<1x128x128xbf16>
    %16 = vector.shape_cast %15 : vector<1x128x128xbf16> to vector<128x128xbf16>
    %cst_23 = arith.constant dense<0.000000e+00> : vector<8x128xf32>
    %17 = tpu.matmul %14, %16, %cst_23 {dimension_numbers = #tpu.dot_dimension_numbers<[1], [0], [0], [1], [0, 0, 1, 1], [], []>} : vector<8x128xbf16>, vector<128x128xbf16>, vector<8x128xf32> -> vector<8x128xf32>
    %18 = arith.addf %12, %17 : vector<8x128xf32>
    %c0_24 = arith.constant 0 : index
    %c1_25 = arith.constant 1 : index
    %c0_26 = arith.constant 0 : index
    %c1_27 = arith.constant 1 : index
    %c0_28 = arith.constant 0 : index
    %19 = vector.load %arg1[%c0_24, %c1_25, %c0_26, %c1_27, %c0_28] : memref<2x2x1x16x128xbf16, #tpu.memory_space<vmem>>, vector<1x1x1x8x128xbf16>
    %20 = vector.shape_cast %19 : vector<1x1x1x8x128xbf16> to vector<8x128xbf16>
    %c3 = arith.constant 3 : index
    %c0_29 = arith.constant 0 : index
    %c0_30 = arith.constant 0 : index
    %21 = vector.load %arg2[%c3, %c0_29, %c0_30] : memref<16x128x128xbf16, #tpu.memory_space<vmem>>, vector<1x128x128xbf16>
    %22 = vector.shape_cast %21 : vector<1x128x128xbf16> to vector<128x128xbf16>
    %cst_31 = arith.constant dense<0.000000e+00> : vector<8x128xf32>
    %23 = tpu.matmul %20, %22, %cst_31 {dimension_numbers = #tpu.dot_dimension_numbers<[1], [0], [0], [1], [0, 0, 1, 1], [], []>} : vector<8x128xbf16>, vector<128x128xbf16>, vector<8x128xf32> -> vector<8x128xf32>
    %24 = arith.addf %18, %23 : vector<8x128xf32>
    %c1_32 = arith.constant 1 : index
    %c0_33 = arith.constant 0 : index
    %c0_34 = arith.constant 0 : index
    %c0_35 = arith.constant 0 : index
    %c0_36 = arith.constant 0 : index
    %25 = vector.load %arg1[%c1_32, %c0_33, %c0_34, %c0_35, %c0_36] : memref<2x2x1x16x128xbf16, #tpu.memory_space<vmem>>, vector<1x1x1x8x128xbf16>
    %26 = vector.shape_cast %25 : vector<1x1x1x8x128xbf16> to vector<8x128xbf16>
    %c4 = arith.constant 4 : index
    %c0_37 = arith.constant 0 : index
    %c0_38 = arith.constant 0 : index
    %27 = vector.load %arg2[%c4, %c0_37, %c0_38] : memref<16x128x128xbf16, #tpu.memory_space<vmem>>, vector<1x128x128xbf16>
    %28 = vector.shape_cast %27 : vector<1x128x128xbf16> to vector<128x128xbf16>
    %cst_39 = arith.constant dense<0.000000e+00> : vector<8x128xf32>
    %29 = tpu.matmul %26, %28, %cst_39 {dimension_numbers = #tpu.dot_dimension_numbers<[1], [0], [0], [1], [0, 0, 1, 1], [], []>} : vector<8x128xbf16>, vector<128x128xbf16>, vector<8x128xf32> -> vector<8x128xf32>
    %30 = arith.addf %24, %29 : vector<8x128xf32>
    %c1_40 = arith.constant 1 : index
    %c1_41 = arith.constant 1 : index
    %c0_42 = arith.constant 0 : index
    %c0_43 = arith.constant 0 : index
    %c0_44 = arith.constant 0 : index
    %31 = vector.load %arg1[%c1_40, %c1_41, %c0_42, %c0_43, %c0_44] : memref<2x2x1x16x128xbf16, #tpu.memory_space<vmem>>, vector<1x1x1x8x128xbf16>
    %32 = vector.shape_cast %31 : vector<1x1x1x8x128xbf16> to vector<8x128xbf16>
    %c5 = arith.constant 5 : index
    %c0_45 = arith.constant 0 : index
    %c0_46 = arith.constant 0 : index
    %33 = vector.load %arg2[%c5, %c0_45, %c0_46] : memref<16x128x128xbf16, #tpu.memory_space<vmem>>, vector<1x128x128xbf16>
    %34 = vector.shape_cast %33 : vector<1x128x128xbf16> to vector<128x128xbf16>
    %cst_47 = arith.constant dense<0.000000e+00> : vector<8x128xf32>
    %35 = tpu.matmul %32, %34, %cst_47 {dimension_numbers = #tpu.dot_dimension_numbers<[1], [0], [0], [1], [0, 0, 1, 1], [], []>} : vector<8x128xbf16>, vector<128x128xbf16>, vector<8x128xf32> -> vector<8x128xf32>
    %36 = arith.addf %30, %35 : vector<8x128xf32>
    %c1_48 = arith.constant 1 : index
    %c0_49 = arith.constant 0 : index
    %c0_50 = arith.constant 0 : index
    %c1_51 = arith.constant 1 : index
    %c0_52 = arith.constant 0 : index
    %37 = vector.load %arg1[%c1_48, %c0_49, %c0_50, %c1_51, %c0_52] : memref<2x2x1x16x128xbf16, #tpu.memory_space<vmem>>, vector<1x1x1x8x128xbf16>
    %38 = vector.shape_cast %37 : vector<1x1x1x8x128xbf16> to vector<8x128xbf16>
    %c6 = arith.constant 6 : index
    %c0_53 = arith.constant 0 : index
    %c0_54 = arith.constant 0 : index
    %39 = vector.load %arg2[%c6, %c0_53, %c0_54] : memref<16x128x128xbf16, #tpu.memory_space<vmem>>, vector<1x128x128xbf16>
    %40 = vector.shape_cast %39 : vector<1x128x128xbf16> to vector<128x128xbf16>
    %cst_55 = arith.constant dense<0.000000e+00> : vector<8x128xf32>
    %41 = tpu.matmul %38, %40, %cst_55 {dimension_numbers = #tpu.dot_dimension_numbers<[1], [0], [0], [1], [0, 0, 1, 1], [], []>} : vector<8x128xbf16>, vector<128x128xbf16>, vector<8x128xf32> -> vector<8x128xf32>
    %42 = arith.addf %36, %41 : vector<8x128xf32>
    %c1_56 = arith.constant 1 : index
    %c1_57 = arith.constant 1 : index
    %c0_58 = arith.constant 0 : index
    %c1_59 = arith.constant 1 : index
    %c0_60 = arith.constant 0 : index
    %43 = vector.load %arg1[%c1_56, %c1_57, %c0_58, %c1_59, %c0_60] : memref<2x2x1x16x128xbf16, #tpu.memory_space<vmem>>, vector<1x1x1x8x128xbf16>
    %44 = vector.shape_cast %43 : vector<1x1x1x8x128xbf16> to vector<8x128xbf16>
    %c7 = arith.constant 7 : index
    %c0_61 = arith.constant 0 : index
    %c0_62 = arith.constant 0 : index
    %45 = vector.load %arg2[%c7, %c0_61, %c0_62] : memref<16x128x128xbf16, #tpu.memory_space<vmem>>, vector<1x128x128xbf16>
    %46 = vector.shape_cast %45 : vector<1x128x128xbf16> to vector<128x128xbf16>
    %cst_63 = arith.constant dense<0.000000e+00> : vector<8x128xf32>
    %47 = tpu.matmul %44, %46, %cst_63 {dimension_numbers = #tpu.dot_dimension_numbers<[1], [0], [0], [1], [0, 0, 1, 1], [], []>} : vector<8x128xbf16>, vector<128x128xbf16>, vector<8x128xf32> -> vector<8x128xf32>
    %48 = arith.addf %42, %47 : vector<8x128xf32>
    %c0_64 = arith.constant 0 : index
    %c0_65 = arith.constant 0 : index
    %c0_66 = arith.constant 0 : index
    %c3_67 = arith.constant 3 : index
    %c0_68 = arith.constant 0 : index
    %49 = vector.load %arg1[%c0_64, %c0_65, %c0_66, %c3_67, %c0_68] : memref<2x2x1x16x128xbf16, #tpu.memory_space<vmem>>, vector<1x1x1x8x128xbf16>
    %50 = vector.shape_cast %49 : vector<1x1x1x8x128xbf16> to vector<8x128xbf16>
    %c8 = arith.constant 8 : index
    %c0_69 = arith.constant 0 : index
    %c0_70 = arith.constant 0 : index
    %51 = vector.load %arg2[%c8, %c0_69, %c0_70] : memref<16x128x128xbf16, #tpu.memory_space<vmem>>, vector<1x128x128xbf16>
    %52 = vector.shape_cast %51 : vector<1x128x128xbf16> to vector<128x128xbf16>
    %cst_71 = arith.constant dense<0.000000e+00> : vector<8x128xf32>
    %53 = tpu.matmul %50, %52, %cst_71 {dimension_numbers = #tpu.dot_dimension_numbers<[1], [0], [0], [1], [0, 0, 1, 1], [], []>} : vector<8x128xbf16>, vector<128x128xbf16>, vector<8x128xf32> -> vector<8x128xf32>
    %54 = arith.addf %48, %53 : vector<8x128xf32>
    %c0_72 = arith.constant 0 : index
    %c1_73 = arith.constant 1 : index
    %c0_74 = arith.constant 0 : index
    %c3_75 = arith.constant 3 : index
    %c0_76 = arith.constant 0 : index
    %55 = vector.load %arg1[%c0_72, %c1_73, %c0_74, %c3_75, %c0_76] : memref<2x2x1x16x128xbf16, #tpu.memory_space<vmem>>, vector<1x1x1x8x128xbf16>
    %56 = vector.shape_cast %55 : vector<1x1x1x8x128xbf16> to vector<8x128xbf16>
    %c9 = arith.constant 9 : index
    %c0_77 = arith.constant 0 : index
    %c0_78 = arith.constant 0 : index
    %57 = vector.load %arg2[%c9, %c0_77, %c0_78] : memref<16x128x128xbf16, #tpu.memory_space<vmem>>, vector<1x128x128xbf16>
    %58 = vector.shape_cast %57 : vector<1x128x128xbf16> to vector<128x128xbf16>
    %cst_79 = arith.constant dense<0.000000e+00> : vector<8x128xf32>
    %59 = tpu.matmul %56, %58, %cst_79 {dimension_numbers = #tpu.dot_dimension_numbers<[1], [0], [0], [1], [0, 0, 1, 1], [], []>} : vector<8x128xbf16>, vector<128x128xbf16>, vector<8x128xf32> -> vector<8x128xf32>
    %60 = arith.addf %54, %59 : vector<8x128xf32>
    %c0_80 = arith.constant 0 : index
    %c0_81 = arith.constant 0 : index
    %c0_82 = arith.constant 0 : index
    %c4_83 = arith.constant 4 : index
    %c0_84 = arith.constant 0 : index
    %61 = vector.load %arg1[%c0_80, %c0_81, %c0_82, %c4_83, %c0_84] : memref<2x2x1x16x128xbf16, #tpu.memory_space<vmem>>, vector<1x1x1x8x128xbf16>
    %62 = vector.shape_cast %61 : vector<1x1x1x8x128xbf16> to vector<8x128xbf16>
    %c10 = arith.constant 10 : index
    %c0_85 = arith.constant 0 : index
    %c0_86 = arith.constant 0 : index
    %63 = vector.load %arg2[%c10, %c0_85, %c0_86] : memref<16x128x128xbf16, #tpu.memory_space<vmem>>, vector<1x128x128xbf16>
    %64 = vector.shape_cast %63 : vector<1x128x128xbf16> to vector<128x128xbf16>
    %cst_87 = arith.constant dense<0.000000e+00> : vector<8x128xf32>
    %65 = tpu.matmul %62, %64, %cst_87 {dimension_numbers = #tpu.dot_dimension_numbers<[1], [0], [0], [1], [0, 0, 1, 1], [], []>} : vector<8x128xbf16>, vector<128x128xbf16>, vector<8x128xf32> -> vector<8x128xf32>
    %66 = arith.addf %60, %65 : vector<8x128xf32>
    %c0_88 = arith.constant 0 : index
    %c1_89 = arith.constant 1 : index
    %c0_90 = arith.constant 0 : index
    %c4_91 = arith.constant 4 : index
    %c0_92 = arith.constant 0 : index
    %67 = vector.load %arg1[%c0_88, %c1_89, %c0_90, %c4_91, %c0_92] : memref<2x2x1x16x128xbf16, #tpu.memory_space<vmem>>, vector<1x1x1x8x128xbf16>
    %68 = vector.shape_cast %67 : vector<1x1x1x8x128xbf16> to vector<8x128xbf16>
    %c11 = arith.constant 11 : index
    %c0_93 = arith.constant 0 : index
    %c0_94 = arith.constant 0 : index
    %69 = vector.load %arg2[%c11, %c0_93, %c0_94] : memref<16x128x128xbf16, #tpu.memory_space<vmem>>, vector<1x128x128xbf16>
    %70 = vector.shape_cast %69 : vector<1x128x128xbf16> to vector<128x128xbf16>
    %cst_95 = arith.constant dense<0.000000e+00> : vector<8x128xf32>
    %71 = tpu.matmul %68, %70, %cst_95 {dimension_numbers = #tpu.dot_dimension_numbers<[1], [0], [0], [1], [0, 0, 1, 1], [], []>} : vector<8x128xbf16>, vector<128x128xbf16>, vector<8x128xf32> -> vector<8x128xf32>
    %72 = arith.addf %66, %71 : vector<8x128xf32>
    %c1_96 = arith.constant 1 : index
    %c0_97 = arith.constant 0 : index
    %c0_98 = arith.constant 0 : index
    %c3_99 = arith.constant 3 : index
    %c0_100 = arith.constant 0 : index
    %73 = vector.load %arg1[%c1_96, %c0_97, %c0_98, %c3_99, %c0_100] : memref<2x2x1x16x128xbf16, #tpu.memory_space<vmem>>, vector<1x1x1x8x128xbf16>
    %74 = vector.shape_cast %73 : vector<1x1x1x8x128xbf16> to vector<8x128xbf16>
    %c12 = arith.constant 12 : index
    %c0_101 = arith.constant 0 : index
    %c0_102 = arith.constant 0 : index
    %75 = vector.load %arg2[%c12, %c0_101, %c0_102] : memref<16x128x128xbf16, #tpu.memory_space<vmem>>, vector<1x128x128xbf16>
    %76 = vector.shape_cast %75 : vector<1x128x128xbf16> to vector<128x128xbf16>
    %cst_103 = arith.constant dense<0.000000e+00> : vector<8x128xf32>
    %77 = tpu.matmul %74, %76, %cst_103 {dimension_numbers = #tpu.dot_dimension_numbers<[1], [0], [0], [1], [0, 0, 1, 1], [], []>} : vector<8x128xbf16>, vector<128x128xbf16>, vector<8x128xf32> -> vector<8x128xf32>
    %78 = arith.addf %72, %77 : vector<8x128xf32>
    %c1_104 = arith.constant 1 : index
    %c1_105 = arith.constant 1 : index
    %c0_106 = arith.constant 0 : index
    %c3_107 = arith.constant 3 : index
    %c0_108 = arith.constant 0 : index
    %79 = vector.load %arg1[%c1_104, %c1_105, %c0_106, %c3_107, %c0_108] : memref<2x2x1x16x128xbf16, #tpu.memory_space<vmem>>, vector<1x1x1x8x128xbf16>
    %80 = vector.shape_cast %79 : vector<1x1x1x8x128xbf16> to vector<8x128xbf16>
    %c13 = arith.constant 13 : index
    %c0_109 = arith.constant 0 : index
    %c0_110 = arith.constant 0 : index
    %81 = vector.load %arg2[%c13, %c0_109, %c0_110] : memref<16x128x128xbf16, #tpu.memory_space<vmem>>, vector<1x128x128xbf16>
    %82 = vector.shape_cast %81 : vector<1x128x128xbf16> to vector<128x128xbf16>
    %cst_111 = arith.constant dense<0.000000e+00> : vector<8x128xf32>
    %83 = tpu.matmul %80, %82, %cst_111 {dimension_numbers = #tpu.dot_dimension_numbers<[1], [0], [0], [1], [0, 0, 1, 1], [], []>} : vector<8x128xbf16>, vector<128x128xbf16>, vector<8x128xf32> -> vector<8x128xf32>
    %84 = arith.addf %78, %83 : vector<8x128xf32>
    %c1_112 = arith.constant 1 : index
    %c0_113 = arith.constant 0 : index
    %c0_114 = arith.constant 0 : index
    %c4_115 = arith.constant 4 : index
    %c0_116 = arith.constant 0 : index
    %85 = vector.load %arg1[%c1_112, %c0_113, %c0_114, %c4_115, %c0_116] : memref<2x2x1x16x128xbf16, #tpu.memory_space<vmem>>, vector<1x1x1x8x128xbf16>
    %86 = vector.shape_cast %85 : vector<1x1x1x8x128xbf16> to vector<8x128xbf16>
    %c14 = arith.constant 14 : index
    %c0_117 = arith.constant 0 : index
    %c0_118 = arith.constant 0 : index
    %87 = vector.load %arg2[%c14, %c0_117, %c0_118] : memref<16x128x128xbf16, #tpu.memory_space<vmem>>, vector<1x128x128xbf16>
    %88 = vector.shape_cast %87 : vector<1x128x128xbf16> to vector<128x128xbf16>
    %cst_119 = arith.constant dense<0.000000e+00> : vector<8x128xf32>
    %89 = tpu.matmul %86, %88, %cst_119 {dimension_numbers = #tpu.dot_dimension_numbers<[1], [0], [0], [1], [0, 0, 1, 1], [], []>} : vector<8x128xbf16>, vector<128x128xbf16>, vector<8x128xf32> -> vector<8x128xf32>
    %90 = arith.addf %84, %89 : vector<8x128xf32>
    %c1_120 = arith.constant 1 : index
    %c1_121 = arith.constant 1 : index
    %c0_122 = arith.constant 0 : index
    %c4_123 = arith.constant 4 : index
    %c0_124 = arith.constant 0 : index
    %91 = vector.load %arg1[%c1_120, %c1_121, %c0_122, %c4_123, %c0_124] : memref<2x2x1x16x128xbf16, #tpu.memory_space<vmem>>, vector<1x1x1x8x128xbf16>
    %92 = vector.shape_cast %91 : vector<1x1x1x8x128xbf16> to vector<8x128xbf16>
    %c15 = arith.constant 15 : index
    %c0_125 = arith.constant 0 : index
    %c0_126 = arith.constant 0 : index
    %93 = vector.load %arg2[%c15, %c0_125, %c0_126] : memref<16x128x128xbf16, #tpu.memory_space<vmem>>, vector<1x128x128xbf16>
    %94 = vector.shape_cast %93 : vector<1x128x128xbf16> to vector<128x128xbf16>
    %cst_127 = arith.constant dense<0.000000e+00> : vector<8x128xf32>
    %95 = tpu.matmul %92, %94, %cst_127 {dimension_numbers = #tpu.dot_dimension_numbers<[1], [0], [0], [1], [0, 0, 1, 1], [], []>} : vector<8x128xbf16>, vector<128x128xbf16>, vector<8x128xf32> -> vector<8x128xf32>
    %96 = arith.addf %90, %95 : vector<8x128xf32>
    %c0_128 = arith.constant 0 : index
    %c0_129 = arith.constant 0 : index
    %97 = vector.load %arg3[%c0_128, %c0_129] : memref<1x128xf32, #tpu.memory_space<vmem>>, vector<1x128xf32>
    %98 = vector.broadcast %97 : vector<1x128xf32> to vector<8x128xf32>
    %99 = arith.addf %96, %98 : vector<8x128xf32>
    %cst_130 = arith.constant 0.000000e+00 : f32
    %100 = vector.broadcast %cst_130 : f32 to vector<8x128xf32>
    %101 = arith.subf %100, %99 : vector<8x128xf32>
    %102 = math.exp %101 : vector<8x128xf32>
    %cst_131 = arith.constant 1.000000e+00 : f32
    %103 = vector.broadcast %cst_131 : f32 to vector<8x128xf32>
    %104 = arith.addf %103, %102 : vector<8x128xf32>
    %cst_132 = arith.constant 1.000000e+00 : f32
    %105 = vector.broadcast %cst_132 : f32 to vector<8x128xf32>
    %106 = arith.divf %105, %104 : vector<8x128xf32>
    %c0_133 = arith.constant 0 : index
    %c0_134 = arith.constant 0 : index
    %c0_135 = arith.constant 0 : index
    %107 = vector.load %arg4[%c0_133, %c0_134, %c0_135] : memref<1x8x128xf32, #tpu.memory_space<vmem>>, vector<1x8x128xf32>
    %108 = vector.shape_cast %107 : vector<1x8x128xf32> to vector<8x128xf32>
    %109 = vector.shape_cast %106 : vector<8x128xf32> to vector<1x8x128xf32>
    tpu.vector_store %arg4[%c0_133, %c0_134, %c0_135], %109 {strides = array<i32>} : memref<1x8x128xf32, #tpu.memory_space<vmem>>, vector<1x8x128xf32>,
    return
  }
  func.func @transform_0(%arg0: i32) -> (i32, i32, i32, i32, i32) {
    %c0_i32 = arith.constant 0 : i32
    %c0_i32_0 = arith.constant 0 : i32
    %c0_i32_1 = arith.constant 0 : i32
    %c0_i32_2 = arith.constant 0 : i32
    %c0_i32_3 = arith.constant 0 : i32
    return %c0_i32, %c0_i32_0, %arg0, %c0_i32_1, %c0_i32_2 : i32, i32, i32, i32, i32
  }
  func.func @transform_1(%arg0: i32) -> (i32, i32, i32) {
    %c0_i32 = arith.constant 0 : i32
    %c0_i32_0 = arith.constant 0 : i32
    %c0_i32_1 = arith.constant 0 : i32
    %c0_i32_2 = arith.constant 0 : i32
    return %c0_i32, %c0_i32_0, %c0_i32_1 : i32, i32, i32
  }
  func.func @transform_2(%arg0: i32) -> (i32, i32) {
    %c0_i32 = arith.constant 0 : i32
    %c0_i32_0 = arith.constant 0 : i32
    %c0_i32_1 = arith.constant 0 : i32
    return %c0_i32, %c0_i32_0 : i32, i32
  }
  func.func @transform_3(%arg0: i32) -> (i32, i32, i32) {
    %c0_i32 = arith.constant 0 : i32
    %c0_i32_0 = arith.constant 0 : i32
    %c0_i32_1 = arith.constant 0 : i32
    return %arg0, %c0_i32, %c0_i32_0 : i32, i32, i32
  }
}

</mosaic_0001>

<llo_original>
// kernel: discriminator_forward.3
$region0: #{discriminator_forward.3}
  #allocation0 [shape = 'u32[]', space=smem, size = 0x4, offset = 0x4, fixed_abs, tag = 'smem constant byte address 0x4 - core index']
  #allocation1 [shape = 'u32[144,128]{1,0:T(1,128)}', space=vmem, size = 0x12000, scoped, tag = 'internal scratch']
  %s0 = inlined_call_operand.vmem [shape: bf16[2,2,2,88,128], index: 0, kind: input, shape index: {}]
  %s1 = inlined_call_operand.vmem [shape: bf16[16,128,128], index: 1, kind: input, shape index: {}]
  %s2 = inlined_call_operand.vmem [shape: f32[1,128], index: 2, kind: input, shape index: {}]
  %s3 = inlined_call_operand.vmem [shape: bf16[2,72,128], index: 3, kind: output, shape index: {}]
  %s4 = sld [smem:[#allocation0]]
  $region86: #{discriminator_forward.3} parent=0
    _
  %s6 = ssub.s32 1, %s4
  %s7 = scalar_select 0, %s6, %s4
  $region1: #{discriminator_forward.3} parent=0
    #allocation2 [shape = 'u8[180224]{0}', space=vmem, size = 0x2c000, scoped, tag = 'input window, operand 0']
    loop: start=0, step=1, limit=4
    $region2: #{discriminator_forward.3} parent=1 // loop_pre_header
      _
    $region3: #{discriminator_forward.3} parent=1 // loop_header
      %s9 = sphi 0, %s13
      %p10 = scmp.ge.s32.totalorder %s9, 4
      %s19 = sphi 0, %s21
      %s22 = sphi 0, %s19
      %s23 = sphi 0, %s22
      %s39 = sphi 0, %s23
      %s43 = sphi 0, %s43
      %s45 = sphi 0, %s43
      %s46 = sphi 0, %s45
      %s60 = sphi 0, %s46
      %s64 = sphi 0, %s64
      %s66 = sphi 0, %s64
      %s67 = sphi 0, %s66
      %s81 = sphi 0, %s67
      %s87 = sphi 0, %s89
      %s90 = sphi 0, %s87
      %s91 = sphi 0, %s90
      %s107 = sphi 0, %s91
    $region4: #{discriminator_forward.3} parent=1 // loop_header_branch
      %12 = sbr.rel (%p10) target = $region8
    $region5: #{discriminator_forward.3} parent=1 // loop_body
      %s14 = ssub.s32 %s9, 1
      %s15 = ssub.s32 %s9, 2
      %s16 = sadd.s32 %s9, 1
      %s17 = ssub.s32 %s9, %s16
      %p18 = scmp.eq.s32.totalorder %s17, 0
      %s20 = sadd.s32 %s19, 1
      %s21 = scalar_select %p18, %s19, %s20
      %p24 = pneg %p18
      %p25 = scmp.eq.s32.totalorder %s9, 1
      %p26 = por %p24, %p25
      %p27 = scmp.ne.s32.totalorder %s19, %s22
      %p28 = scmp.eq.s32.totalorder %s9, 0
      %p29 = por %p27, %p28
      %p30 = scmp.ne.s32.totalorder %s19, %s22
      %p31 = scmp.eq.s32.totalorder %s14, 1
      %p32 = por %p30, %p31
      %p33 = scmp.ne.s32.totalorder %s22, %s23
      %p34 = scmp.eq.s32.totalorder %s14, 0
      %p35 = por %p33, %p34
      %p36 = scmp.ne.s32.totalorder %s22, %s23
      %p37 = scmp.eq.s32.totalorder %s15, 1
      %p38 = por %p36, %p37
      %p40 = scmp.ne.s32.totalorder %s23, %s39
      %p41 = scmp.eq.s32.totalorder %s15, 0
      %p42 = por %p40, %p41
      %s44 = sadd.s32 %s43, 1
      %p47 = scmp.eq.s32.totalorder %s9, 1
      %p48 = scmp.ne.s32.totalorder %s43, %s45
      %p49 = scmp.eq.s32.totalorder %s9, 0
      %p50 = por %p48, %p49
      %p51 = scmp.ne.s32.totalorder %s43, %s45
      %p52 = scmp.eq.s32.totalorder %s14, 1
      %p53 = por %p51, %p52
      %p54 = scmp.ne.s32.totalorder %s45, %s46
      %p55 = scmp.eq.s32.totalorder %s14, 0
      %p56 = por %p54, %p55
      %p57 = scmp.ne.s32.totalorder %s45, %s46
      %p58 = scmp.eq.s32.totalorder %s15, 1
      %p59 = por %p57, %p58
      %p61 = scmp.ne.s32.totalorder %s46, %s60
      %p62 = scmp.eq.s32.totalorder %s15, 0
      %p63 = por %p61, %p62
      %s65 = sadd.s32 %s64, 1
      %p68 = scmp.eq.s32.totalorder %s9, 1
      %p69 = scmp.ne.s32.totalorder %s64, %s66
      %p70 = scmp.eq.s32.totalorder %s9, 0
      %p71 = por %p69, %p70
      %p72 = scmp.ne.s32.totalorder %s64, %s66
      %p73 = scmp.eq.s32.totalorder %s14, 1
      %p74 = por %p72, %p73
      %p75 = scmp.ne.s32.totalorder %s66, %s67
      %p76 = scmp.eq.s32.totalorder %s14, 0
      %p77 = por %p75, %p76
      %p78 = scmp.ne.s32.totalorder %s66, %s67
      %p79 = scmp.eq.s32.totalorder %s15, 1
      %p80 = por %p78, %p79
      %p82 = scmp.ne.s32.totalorder %s67, %s81
      %p83 = scmp.eq.s32.totalorder %s15, 0
      %p84 = por %p82, %p83
      %s85 = ssub.s32 %s9, %s16
      %p86 = scmp.eq.s32.totalorder %s85, 0
      %s88 = sadd.s32 %s87, 1
      %s89 = scalar_select %p86, %s87, %s88
      %p92 = pneg %p86
      %p93 = scmp.eq.s32.totalorder %s9, 1
      %p94 = por %p92, %p93
      %p95 = scmp.ne.s32.totalorder %s87, %s90
      %p96 = scmp.eq.s32.totalorder %s9, 0
      %p97 = por %p95, %p96
      %p98 = scmp.ne.s32.totalorder %s87, %s90
      %p99 = scmp.eq.s32.totalorder %s14, 1
      %p100 = por %p98, %p99
      %p101 = scmp.ne.s32.totalorder %s90, %s91
      %p102 = scmp.eq.s32.totalorder %s14, 0
      %p103 = por %p101, %p102
      %p104 = scmp.ne.s32.totalorder %s90, %s91
      %p105 = scmp.eq.s32.totalorder %s15, 1
      %p106 = por %p104, %p105
      %p108 = scmp.ne.s32.totalorder %s91, %s107
      %p109 = scmp.eq.s32.totalorder %s15, 0
      %p110 = por %p108, %p109
      %p111 = scmp.le.s32.totalorder 1, %s9
      %p112 = scmp.lt.s32.totalorder %s9, 3
      %p113 = pnand %p111, %p112
      %p114 = pneg %p113
      // Predicated region
      $region9: #{discriminator_forward.3} parent=5 // pred_check
        _
      $region10: #{discriminator_forward.3} parent=5 // pred_check_branch
        %116 = sbr.rel (%p113) target = $region12
      $region11: #{discriminator_forward.3} parent=5 // pred_region
        %s117 = ssub.s32 %s9, 1
        // Predicated region
        $region13: #{discriminator_forward.3} parent=11 // pred_check
          %p118 = pneg %p56
        $region14: #{discriminator_forward.3} parent=11 // pred_check_branch
          %120 = sbr.rel (%p118) target = $region16
        $region15: #{discriminator_forward.3} parent=11 // pred_region
          _
        $region16: #{discriminator_forward.3} parent=11 // pred_fallthru
          _
        // Predicated region
        $region17: #{discriminator_forward.3} parent=11 // pred_check
          %p121 = pneg %p77
        $region18: #{discriminator_forward.3} parent=11 // pred_check_branch
          %123 = sbr.rel (%p121) target = $region20
        $region19: #{discriminator_forward.3} parent=11 // pred_region
          _
        $region20: #{discriminator_forward.3} parent=11 // pred_fallthru
          _
      $region12: #{discriminator_forward.3} parent=5 // pred_fallthru
        _
      %p124 = scmp.lt.s32.totalorder %s9, 2
      // Predicated region
      $region21: #{discriminator_forward.3} parent=5 // pred_check
        %p125 = pneg %p124
      $region22: #{discriminator_forward.3} parent=5 // pred_check_branch
        %127 = sbr.rel (%p125) target = $region24
      $region23: #{discriminator_forward.3} parent=5 // pred_region
        // Predicated region
        $region25: #{discriminator_forward.3} parent=23 // pred_check
          %p128 = pneg %p29
        $region26: #{discriminator_forward.3} parent=23 // pred_check_branch
          %130 = sbr.rel (%p128) target = $region28
        $region27: #{discriminator_forward.3} parent=23 // pred_region
          %s131 = sand.u32 %s19, 1
          %s132 = sand.u32 %s19, 1
          %s133 = smul.addr %s132, 176
          %s134 = scalar_lea.vmem [#allocation2], %s133
          %s135 = smul.addr %s9, 11
          %s136 = smul.addr %s135, 4
          %s137 = scalar_lea.vmem %s0, %s136
          // Predicated region
          $region29: #{discriminator_forward.3} parent=27 // pred_check
            _
          $region30: #{discriminator_forward.3} parent=27 // pred_check_branch
            %139 = sbr.rel (0) target = $region32
          $region31: #{discriminator_forward.3} parent=27 // pred_region
            // Predicated region
            $region33: #{discriminator_forward.3} parent=31 // pred_check
              _
            $region34: #{discriminator_forward.3} parent=31 // pred_check_branch
              %141 = sbr.rel target = $region36
            $region35: #{discriminator_forward.3} parent=31 // pred_region
              // Predicated region
              $region48: #{discriminator_forward.3} parent=35 // pred_check
                _
              $region49: #{discriminator_forward.3} parent=35 // pred_check_branch
                %242 = sbr.rel (0) target = $region51
              $region50: #{discriminator_forward.3} parent=35 // pred_region
                loop: start=0, step=1, limit=1
                $region52: #{discriminator_forward.3} parent=50 // loop_pre_header
                  _
                $region53: #{discriminator_forward.3} parent=50 // loop_header
                  %s244 = sphi 0, %s248
                  %p245 = scmp.ge.s32.totalorder %s244, 1
                  %s249 = sphi %s137, %s137
                  %s250 = sphi %s134, %s134
                $region54: #{discriminator_forward.3} parent=50 // loop_header_branch
                  %247 = sbr.rel (%p245) target = $region58
                $region55: #{discriminator_forward.3} parent=50 // loop_body
                  _
                $region56: #{discriminator_forward.3} parent=50 // loop_footer
                  %s248 = sadd.s32 1, %s244
                $region57: #{discriminator_forward.3} parent=50 // loop_footer_branch
                  %243 = sbr.rel target = $region53
                $region58: #{discriminator_forward.3} parent=50 // loop_exit
                  _
                loop: start=0, step=1, limit=1
                $region59: #{discriminator_forward.3} parent=50 // loop_pre_header
                  _
                $region60: #{discriminator_forward.3} parent=50 // loop_header
                  %s253 = sphi 0, %s257
                  %p254 = scmp.ge.s32.totalorder %s253, 1
                  %s258 = sphi %s137, %s137
                  %s259 = sphi %s134, %s134
                $region61: #{discriminator_forward.3} parent=50 // loop_header_branch
                  %256 = sbr.rel (%p254) target = $region65
                $region62: #{discriminator_forward.3} parent=50 // loop_body
                  %v260 = vld [vmem:[%s258] sm:$0xf]
                  %261 = vst [vmem:[%s259] sm:$0xf] %v260
                  %v262 = vld [vmem:[%s258 + $0x4] sm:$0xf]
                  %263 = vst [vmem:[%s259 + $0x4] sm:$0xf] %v262
                  %v264 = vld [vmem:[%s258 + $0x8] sm:$0xf]
                  %265 = vst [vmem:[%s259 + $0x8] sm:$0xf] %v264
                  %v266 = vld [vmem:[%s258 + $0xc] sm:$0xf]
                  %267 = vst [vmem:[%s259 + $0xc] sm:$0xf] %v266
                  %v268 = vld [vmem:[%s258 + $0x10] sm:$0xf]
                  %269 = vst [vmem:[%s259 + $0x10] sm:$0xf] %v268
                  %v270 = vld [vmem:[%s258 + $0x14] sm:$0xf]
                  %271 = vst [vmem:[%s259 + $0x14] sm:$0xf] %v270
                  %v272 = vld [vmem:[%s258 + $0x18] sm:$0xf]
                  %273 = vst [vmem:[%s259 + $0x18] sm:$0xf] %v272
                  %v274 = vld [vmem:[%s258 + $0x1c] sm:$0xf]
                  %275 = vst [vmem:[%s259 + $0x1c] sm:$0xf] %v274
                  %v276 = vld [vmem:[%s258 + $0x20] sm:$0xf]
                  %277 = vst [vmem:[%s259 + $0x20] sm:$0xf] %v276
                  %v278 = vld [vmem:[%s258 + $0x24] sm:$0xf]
                  %279 = vst [vmem:[%s259 + $0x24] sm:$0xf] %v278
                  %v280 = vld [vmem:[%s258 + $0x28] sm:$0xf]
                  %281 = vst [vmem:[%s259 + $0x28] sm:$0xf] %v280
                  %v282 = vld [vmem:[%s258 + $0x58] sm:$0xf]
                  %283 = vst [vmem:[%s259 + $0x2c] sm:$0xf] %v282
                  %v284 = vld [vmem:[%s258 + $0x5c] sm:$0xf]
                  %285 = vst [vmem:[%s259 + $0x30] sm:$0xf] %v284
                  %v286 = vld [vmem:[%s258 + $0x60] sm:$0xf]
                  %287 = vst [vmem:[%s259 + $0x34] sm:$0xf] %v286
                  %v288 = vld [vmem:[%s258 + $0x64] sm:$0xf]
                  %289 = vst [vmem:[%s259 + $0x38] sm:$0xf] %v288
                  %v290 = vld [vmem:[%s258 + $0x68] sm:$0xf]
                  %291 = vst [vmem:[%s259 + $0x3c] sm:$0xf] %v290
                  %v292 = vld [vmem:[%s258 + $0x6c] sm:$0xf]
                  %293 = vst [vmem:[%s259 + $0x40] sm:$0xf] %v292
                  %v294 = vld [vmem:[%s258 + $0x70] sm:$0xf]
                  %295 = vst [vmem:[%s259 + $0x44] sm:$0xf] %v294
                  %v296 = vld [vmem:[%s258 + $0x74] sm:$0xf]
                  %297 = vst [vmem:[%s259 + $0x48] sm:$0xf] %v296
                  %v298 = vld [vmem:[%s258 + $0x78] sm:$0xf]
                  %299 = vst [vmem:[%s259 + $0x4c] sm:$0xf] %v298
                  %v300 = vld [vmem:[%s258 + $0x7c] sm:$0xf]
                  %301 = vst [vmem:[%s259 + $0x50] sm:$0xf] %v300
                  %v302 = vld [vmem:[%s258 + $0x80] sm:$0xf]
                  %303 = vst [vmem:[%s259 + $0x54] sm:$0xf] %v302
                  %v304 = vld [vmem:[%s258 + $0xb0] sm:$0xf]
                  %305 = vst [vmem:[%s259 + $0x58] sm:$0xf] %v304
                  %v306 = vld [vmem:[%s258 + $0xb4] sm:$0xf]
                  %307 = vst [vmem:[%s259 + $0x5c] sm:$0xf] %v306
                  %v308 = vld [vmem:[%s258 + $0xb8] sm:$0xf]
                  %309 = vst [vmem:[%s259 + $0x60] sm:$0xf] %v308
                  %v310 = vld [vmem:[%s258 + $0xbc] sm:$0xf]
                  %311 = vst [vmem:[%s259 + $0x64] sm:$0xf] %v310
                  %v312 = vld [vmem:[%s258 + $0xc0] sm:$0xf]
                  %313 = vst [vmem:[%s259 + $0x68] sm:$0xf] %v312
                  %v314 = vld [vmem:[%s258 + $0xc4] sm:$0xf]
                  %315 = vst [vmem:[%s259 + $0x6c] sm:$0xf] %v314
                  %v316 = vld [vmem:[%s258 + $0xc8] sm:$0xf]
                  %317 = vst [vmem:[%s259 + $0x70] sm:$0xf] %v316
                  %v318 = vld [vmem:[%s258 + $0xcc] sm:$0xf]
                  %319 = vst [vmem:[%s259 + $0x74] sm:$0xf] %v318
                  %v320 = vld [vmem:[%s258 + $0xd0] sm:$0xf]
                  %321 = vst [vmem:[%s259 + $0x78] sm:$0xf] %v320
                  %v322 = vld [vmem:[%s258 + $0xd4] sm:$0xf]
                  %323 = vst [vmem:[%s259 + $0x7c] sm:$0xf] %v322
                  %v324 = vld [vmem:[%s258 + $0xd8] sm:$0xf]
                  %325 = vst [vmem:[%s259 + $0x80] sm:$0xf] %v324
                  %v326 = vld [vmem:[%s258 + $0x108] sm:$0xf]
                  %327 = vst [vmem:[%s259 + $0x84] sm:$0xf] %v326
                  %v328 = vld [vmem:[%s258 + $0x10c] sm:$0xf]
                  %329 = vst [vmem:[%s259 + $0x88] sm:$0xf] %v328
                  %v330 = vld [vmem:[%s258 + $0x110] sm:$0xf]
                  %331 = vst [vmem:[%s259 + $0x8c] sm:$0xf] %v330
                  %v332 = vld [vmem:[%s258 + $0x114] sm:$0xf]
                  %333 = vst [vmem:[%s259 + $0x90] sm:$0xf] %v332
                  %v334 = vld [vmem:[%s258 + $0x118] sm:$0xf]
                  %335 = vst [vmem:[%s259 + $0x94] sm:$0xf] %v334
                  %v336 = vld [vmem:[%s258 + $0x11c] sm:$0xf]
                  %337 = vst [vmem:[%s259 + $0x98] sm:$0xf] %v336
                  %v338 = vld [vmem:[%s258 + $0x120] sm:$0xf]
                  %339 = vst [vmem:[%s259 + $0x9c] sm:$0xf] %v338
                  %v340 = vld [vmem:[%s258 + $0x124] sm:$0xf]
                  %341 = vst [vmem:[%s259 + $0xa0] sm:$0xf] %v340
                  %v342 = vld [vmem:[%s258 + $0x128] sm:$0xf]
                  %343 = vst [vmem:[%s259 + $0xa4] sm:$0xf] %v342
                  %v344 = vld [vmem:[%s258 + $0x12c] sm:$0xf]
                  %345 = vst [vmem:[%s259 + $0xa8] sm:$0xf] %v344
                  %v346 = vld [vmem:[%s258 + $0x130] sm:$0xf]
                  %347 = vst [vmem:[%s259 + $0xac] sm:$0xf] %v346
                $region63: #{discriminator_forward.3} parent=50 // loop_footer
                  %s257 = sadd.s32 1, %s253
                $region64: #{discriminator_forward.3} parent=50 // loop_footer_branch
                  %252 = sbr.rel target = $region60
                $region65: #{discriminator_forward.3} parent=50 // loop_exit
                  _
              $region51: #{discriminator_forward.3} parent=35 // pred_fallthru
                _
            $region36: #{discriminator_forward.3} parent=31 // pred_fallthru
              _
            // Predicated region
            $region37: #{discriminator_forward.3} parent=31 // pred_check
              _
            $region38: #{discriminator_forward.3} parent=31 // pred_check_branch
              %143 = sbr.rel (0) target = $region40
            $region39: #{discriminator_forward.3} parent=31 // pred_region
              loop: start=0, step=1, limit=1
              $region41: #{discriminator_forward.3} parent=39 // loop_pre_header
                _
              $region42: #{discriminator_forward.3} parent=39 // loop_header
                %s146 = sphi 0, %s150
                %p147 = scmp.ge.s32.totalorder %s146, 1
                %s151 = sphi %s137, %s137
                %s152 = sphi %s134, %s134
              $region43: #{discriminator_forward.3} parent=39 // loop_header_branch
                %149 = sbr.rel (%p147) target = $region47
              $region44: #{discriminator_forward.3} parent=39 // loop_body
                %v153 = vld [vmem:[%s151] sm:$0xf]
                %154 = vst [vmem:[%s152] sm:$0xf] %v153
                %v155 = vld [vmem:[%s151 + $0x4] sm:$0xf]
                %156 = vst [vmem:[%s152 + $0x4] sm:$0xf] %v155
                %v157 = vld [vmem:[%s151 + $0x8] sm:$0xf]
                %158 = vst [vmem:[%s152 + $0x8] sm:$0xf] %v157
                %v159 = vld [vmem:[%s151 + $0xc] sm:$0xf]
                %160 = vst [vmem:[%s152 + $0xc] sm:$0xf] %v159
                %v161 = vld [vmem:[%s151 + $0x10] sm:$0xf]
                %162 = vst [vmem:[%s152 + $0x10] sm:$0xf] %v161
                %v163 = vld [vmem:[%s151 + $0x14] sm:$0xf]
                %164 = vst [vmem:[%s152 + $0x14] sm:$0xf] %v163
                %v165 = vld [vmem:[%s151 + $0x18] sm:$0xf]
                %166 = vst [vmem:[%s152 + $0x18] sm:$0xf] %v165
                %v167 = vld [vmem:[%s151 + $0x1c] sm:$0xf]
                %168 = vst [vmem:[%s152 + $0x1c] sm:$0xf] %v167
                %v169 = vld [vmem:[%s151 + $0x20] sm:$0xf]
                %170 = vst [vmem:[%s152 + $0x20] sm:$0xf] %v169
                %v171 = vld [vmem:[%s151 + $0x24] sm:$0xf]
                %172 = vst [vmem:[%s152 + $0x24] sm:$0xf] %v171
                %v173 = vld [vmem:[%s151 + $0x28] sm:$0xf]
                %174 = vst [vmem:[%s152 + $0x28] sm:$0xf] %v173
                %v175 = vld [vmem:[%s151 + $0x58] sm:$0xf]
                %176 = vst [vmem:[%s152 + $0x2c] sm:$0xf] %v175
                %v177 = vld [vmem:[%s151 + $0x5c] sm:$0xf]
                %178 = vst [vmem:[%s152 + $0x30] sm:$0xf] %v177
                %v179 = vld [vmem:[%s151 + $0x60] sm:$0xf]
                %180 = vst [vmem:[%s152 + $0x34] sm:$0xf] %v179
                %v181 = vld [vmem:[%s151 + $0x64] sm:$0xf]
                %182 = vst [vmem:[%s152 + $0x38] sm:$0xf] %v181
                %v183 = vld [vmem:[%s151 + $0x68] sm:$0xf]
                %184 = vst [vmem:[%s152 + $0x3c] sm:$0xf] %v183
                %v185 = vld [vmem:[%s151 + $0x6c] sm:$0xf]
                %186 = vst [vmem:[%s152 + $0x40] sm:$0xf] %v185
                %v187 = vld [vmem:[%s151 + $0x70] sm:$0xf]
                %188 = vst [vmem:[%s152 + $0x44] sm:$0xf] %v187
                %v189 = vld [vmem:[%s151 + $0x74] sm:$0xf]
                %190 = vst [vmem:[%s152 + $0x48] sm:$0xf] %v189
                %v191 = vld [vmem:[%s151 + $0x78] sm:$0xf]
                %192 = vst [vmem:[%s152 + $0x4c] sm:$0xf] %v191
                %v193 = vld [vmem:[%s151 + $0x7c] sm:$0xf]
                %194 = vst [vmem:[%s152 + $0x50] sm:$0xf] %v193
                %v195 = vld [vmem:[%s151 + $0x80] sm:$0xf]
                %196 = vst [vmem:[%s152 + $0x54] sm:$0xf] %v195
                %v197 = vld [vmem:[%s151 + $0xb0] sm:$0xf]
                %198 = vst [vmem:[%s152 + $0x58] sm:$0xf] %v197
                %v199 = vld [vmem:[%s151 + $0xb4] sm:$0xf]
                %200 = vst [vmem:[%s152 + $0x5c] sm:$0xf] %v199
                %v201 = vld [vmem:[%s151 + $0xb8] sm:$0xf]
                %202 = vst [vmem:[%s152 + $0x60] sm:$0xf] %v201
                %v203 = vld [vmem:[%s151 + $0xbc] sm:$0xf]
                %204 = vst [vmem:[%s152 + $0x64] sm:$0xf] %v203
                %v205 = vld [vmem:[%s151 + $0xc0] sm:$0xf]
                %206 = vst [vmem:[%s152 + $0x68] sm:$0xf] %v205
                %v207 = vld [vmem:[%s151 + $0xc4] sm:$0xf]
                %208 = vst [vmem:[%s152 + $0x6c] sm:$0xf] %v207
                %v209 = vld [vmem:[%s151 + $0xc8] sm:$0xf]
                %210 = vst [vmem:[%s152 + $0x70] sm:$0xf] %v209
                %v211 = vld [vmem:[%s151 + $0xcc] sm:$0xf]
                %212 = vst [vmem:[%s152 + $0x74] sm:$0xf] %v211
                %v213 = vld [vmem:[%s151 + $0xd0] sm:$0xf]
                %214 = vst [vmem:[%s152 + $0x78] sm:$0xf] %v213
                %v215 = vld [vmem:[%s151 + $0xd4] sm:$0xf]
                %216 = vst [vmem:[%s152 + $0x7c] sm:$0xf] %v215
                %v217 = vld [vmem:[%s151 + $0xd8] sm:$0xf]
                %218 = vst [vmem:[%s152 + $0x80] sm:$0xf] %v217
                %v219 = vld [vmem:[%s151 + $0x108] sm:$0xf]
                %220 = vst [vmem:[%s152 + $0x84] sm:$0xf] %v219
                %v221 = vld [vmem:[%s151 + $0x10c] sm:$0xf]
                %222 = vst [vmem:[%s152 + $0x88] sm:$0xf] %v221
                %v223 = vld [vmem:[%s151 + $0x110] sm:$0xf]
                %224 = vst [vmem:[%s152 + $0x8c] sm:$0xf] %v223
                %v225 = vld [vmem:[%s151 + $0x114] sm:$0xf]
                %226 = vst [vmem:[%s152 + $0x90] sm:$0xf] %v225
                %v227 = vld [vmem:[%s151 + $0x118] sm:$0xf]
                %228 = vst [vmem:[%s152 + $0x94] sm:$0xf] %v227
                %v229 = vld [vmem:[%s151 + $0x11c] sm:$0xf]
                %230 = vst [vmem:[%s152 + $0x98] sm:$0xf] %v229
                %v231 = vld [vmem:[%s151 + $0x120] sm:$0xf]
                %232 = vst [vmem:[%s152 + $0x9c] sm:$0xf] %v231
                %v233 = vld [vmem:[%s151 + $0x124] sm:$0xf]
                %234 = vst [vmem:[%s152 + $0xa0] sm:$0xf] %v233
                %v235 = vld [vmem:[%s151 + $0x128] sm:$0xf]
                %236 = vst [vmem:[%s152 + $0xa4] sm:$0xf] %v235
                %v237 = vld [vmem:[%s151 + $0x12c] sm:$0xf]
                %238 = vst [vmem:[%s152 + $0xa8] sm:$0xf] %v237
                %v239 = vld [vmem:[%s151 + $0x130] sm:$0xf]
                %240 = vst [vmem:[%s152 + $0xac] sm:$0xf] %v239
              $region45: #{discriminator_forward.3} parent=39 // loop_footer
                %s150 = sadd.s32 1, %s146
              $region46: #{discriminator_forward.3} parent=39 // loop_footer_branch
                %145 = sbr.rel target = $region42
              $region47: #{discriminator_forward.3} parent=39 // loop_exit
                _
            $region40: #{discriminator_forward.3} parent=31 // pred_fallthru
              _
          $region32: #{discriminator_forward.3} parent=27 // pred_fallthru
            _
          %348 = vnop
        $region28: #{discriminator_forward.3} parent=23 // pred_fallthru
          _
      $region24: #{discriminator_forward.3} parent=5 // pred_fallthru
        _
      %p349 = scmp.le.s32.totalorder 1, %s9
      %p350 = scmp.lt.s32.totalorder %s9, 3
      %p351 = pnand %p349, %p350
      %p352 = pneg %p351
      // Predicated region
      $region66: #{discriminator_forward.3} parent=5 // pred_check
        _
      $region67: #{discriminator_forward.3} parent=5 // pred_check_branch
        %354 = sbr.rel (%p351) target = $region69
      $region68: #{discriminator_forward.3} parent=5 // pred_region
        %s355 = ssub.s32 %s9, 1
        %s356 = sand.u32 %s22, 1
        %s357 = sand.u32 %s22, 1
        %s358 = smul.addr %s357, 176
        %s359 = scalar_lea.vmem [#allocation2], %s358
        // Predicated region
        $region70: #{discriminator_forward.3} parent=68 // pred_check
          %p360 = pneg %p35
        $region71: #{discriminator_forward.3} parent=68 // pred_check_branch
          %362 = sbr.rel (%p360) target = $region73
        $region72: #{discriminator_forward.3} parent=68 // pred_region
          _
        $region73: #{discriminator_forward.3} parent=68 // pred_fallthru
          _
        %s363 = sand.u32 %s22, 1
        %s364 = sand.u32 %s22, 1
        %s365 = smul.addr %s364, 176
        %s366 = scalar_lea.vmem [#allocation2], %s365
        %p367 = pneg %p35
        %p368 = pneg %p32
        %p369 = pneg %p56
        %p370 = pneg %p53
        %p371 = pneg %p77
        %p372 = pneg %p74
        %p373 = pneg %p103
        %p374 = pneg %p100
        %p375 = scmp.lt.s32.totalorder %s14, 1
        %s376 = scalar_select %p375, %s14, 1
        %s377 = smul.addr %s376, 9
        %s378 = smul.addr %s377, 4
        %s379 = scalar_lea.vmem %s3, %s378
        %p380 = scmp.lt.s32.totalorder %s14, 1
        %s381 = scalar_select %p380, %s14, 1
        %s382 = smul.addr %s381, 9
        %s383 = smul.addr %s382, 4
        %s384 = scalar_lea.vmem %s3, %s383
        %v386 = vld [vmem:[%s359] sm:$0xf]
        %v387 = vld [vmem:[%s359 + $0x4] sm:$0xf]
        %v388 = vld [vmem:[%s359 + $0x8] sm:$0xf]
        %v389 = vld [vmem:[%s359 + $0xc] sm:$0xf]
        %v390 = vld [vmem:[%s359 + $0x10] sm:$0xf]
        %v391 = vld [vmem:[%s359 + $0x14] sm:$0xf]
        %v392 = vld [vmem:[%s359 + $0x18] sm:$0xf]
        %v393 = vld [vmem:[%s359 + $0x1c] sm:$0xf]
        %v394 = vld [vmem:[%s359 + $0x20] sm:$0xf]
        %v395 = vld [vmem:[%s1] sm:$0xf]
        %v396 = vld [vmem:[%s1 + $0x4] sm:$0xf]
        %v397 = vld [vmem:[%s1 + $0x8] sm:$0xf]
        %v398 = vld [vmem:[%s1 + $0xc] sm:$0xf]
        %v399 = vld [vmem:[%s1 + $0x10] sm:$0xf]
        %v400 = vld [vmem:[%s1 + $0x14] sm:$0xf]
        %v401 = vld [vmem:[%s1 + $0x18] sm:$0xf]
        %v402 = vld [vmem:[%s1 + $0x1c] sm:$0xf]
        %v403 = vld [vmem:[%s1 + $0x20] sm:$0xf]
        %v404 = vld [vmem:[%s1 + $0x24] sm:$0xf]
        %v405 = vld [vmem:[%s1 + $0x28] sm:$0xf]
        %v406 = vld [vmem:[%s1 + $0x2c] sm:$0xf]
        %v407 = vld [vmem:[%s1 + $0x30] sm:$0xf]
        %v408 = vld [vmem:[%s1 + $0x34] sm:$0xf]
        %v409 = vld [vmem:[%s1 + $0x38] sm:$0xf]
        %v410 = vld [vmem:[%s1 + $0x3c] sm:$0xf]
        %s411 = scalar_lea.vmem %s359, 44 [#allocation2]
        %v412 = vld [vmem:[%s411] sm:$0xf]
        %v413 = vld [vmem:[%s411 + $0x4] sm:$0xf]
        %v414 = vld [vmem:[%s411 + $0x8] sm:$0xf]
        %v415 = vld [vmem:[%s411 + $0xc] sm:$0xf]
        %v416 = vld [vmem:[%s411 + $0x10] sm:$0xf]
        %v417 = vld [vmem:[%s411 + $0x14] sm:$0xf]
        %v418 = vld [vmem:[%s411 + $0x18] sm:$0xf]
        %v419 = vld [vmem:[%s411 + $0x1c] sm:$0xf]
        %v420 = vld [vmem:[%s411 + $0x20] sm:$0xf]
        %s421 = scalar_lea.vmem %s1, 64
        %v422 = vld [vmem:[%s421] sm:$0xf]
        %v423 = vld [vmem:[%s421 + $0x4] sm:$0xf]
        %v424 = vld [vmem:[%s421 + $0x8] sm:$0xf]
        %v425 = vld [vmem:[%s421 + $0xc] sm:$0xf]
        %v426 = vld [vmem:[%s421 + $0x10] sm:$0xf]
        %v427 = vld [vmem:[%s421 + $0x14] sm:$0xf]
        %v428 = vld [vmem:[%s421 + $0x18] sm:$0xf]
        %v429 = vld [vmem:[%s421 + $0x1c] sm:$0xf]
        %v430 = vld [vmem:[%s421 + $0x20] sm:$0xf]
        %v431 = vld [vmem:[%s421 + $0x24] sm:$0xf]
        %v432 = vld [vmem:[%s421 + $0x28] sm:$0xf]
        %v433 = vld [vmem:[%s421 + $0x2c] sm:$0xf]
        %v434 = vld [vmem:[%s421 + $0x30] sm:$0xf]
        %v435 = vld [vmem:[%s421 + $0x34] sm:$0xf]
        %v436 = vld [vmem:[%s421 + $0x38] sm:$0xf]
        %v437 = vld [vmem:[%s421 + $0x3c] sm:$0xf]
        %v447 = vunpack.c.l.b16 %v412
        %v448 = vunpack.c.l.b16 %v413
        %v449 = vunpack.c.l.b16 %v414
        %v450 = vunpack.c.l.b16 %v415
        %v451 = vunpack.c.l.b16 %v416
        %v452 = vunpack.c.l.b16 %v417
        %v453 = vunpack.c.l.b16 %v418
        %v454 = vunpack.c.l.b16 %v419
        %v455 = vunpack.c.l.b16 %v420
        %v456 = vpack.c.b16 %v448, %v447
        %v457 = vpack.c.b16 %v450, %v449
        %v458 = vpack.c.b16 %v452, %v451
        %v459 = vpack.c.b16 %v454, %v453
        %v460 = vpack.c.b16 %v455, %v455
        %v482 = vunpack.c.l.b16 %v422
        %v483 = vunpack.c.l.b16 %v423
        %v484 = vunpack.c.l.b16 %v424
        %v485 = vunpack.c.l.b16 %v425
        %v486 = vunpack.c.l.b16 %v426
        %v487 = vunpack.c.l.b16 %v427
        %v488 = vunpack.c.l.b16 %v428
        %v489 = vunpack.c.l.b16 %v429
        %v490 = vunpack.c.l.b16 %v430
        %v491 = vunpack.c.l.b16 %v431
        %v492 = vunpack.c.l.b16 %v432
        %v493 = vunpack.c.l.b16 %v433
        %v494 = vunpack.c.l.b16 %v434
        %v495 = vunpack.c.l.b16 %v435
        %v496 = vunpack.c.l.b16 %v436
        %v497 = vunpack.c.l.b16 %v437
        %v498 = vpack.c.b16 %v483, %v482
        %v499 = vpack.c.b16 %v485, %v484
        %v500 = vpack.c.b16 %v487, %v486
        %v501 = vpack.c.b16 %v489, %v488
        %v502 = vpack.c.b16 %v491, %v490
        %v503 = vpack.c.b16 %v493, %v492
        %v504 = vpack.c.b16 %v495, %v494
        %v505 = vpack.c.b16 %v497, %v496
        %514 = vmatprep.subr.bf16.mxu0 0
        %515 = vmatpush1.bf16.msra.mxu0 %v498
        %516 = vmatprep.subr.bf16.mxu0 0
        %517 = vmatpush1.bf16.msra.mxu0 %v499
        %518 = vmatprep.subr.bf16.mxu0 0
        %519 = vmatpush1.bf16.msra.mxu0 %v500
        %520 = vmatprep.subr.bf16.mxu0 0
        %521 = vmatpush1.bf16.msra.mxu0 %v501
        %522 = vmatprep.subr.bf16.mxu0 0
        %523 = vmatpush1.bf16.msra.mxu0 %v502
        %524 = vmatprep.subr.bf16.mxu0 0
        %525 = vmatpush1.bf16.msra.mxu0 %v503
        %526 = vmatprep.subr.bf16.mxu0 0
        %527 = vmatpush1.bf16.msra.mxu0 %v504
        %528 = vmatprep.subr.bf16.mxu0 0
        %529 = vmatpush1.bf16.msra.mxu0 %v505
        %530 = vmatprep.subr.bf16.mxu0 0
        %531 = vmatpush1.bf16.msra.mxu0 0
        %532 = vmatprep.subr.bf16.mxu0 0
        %533 = vmatpush1.bf16.msra.mxu0 0
        %534 = vmatprep.subr.bf16.mxu0 0
        %535 = vmatpush1.bf16.msra.mxu0 0
        %536 = vmatprep.subr.bf16.mxu0 0
        %537 = vmatpush1.bf16.msra.mxu0 0
        %538 = vmatprep.subr.bf16.mxu0 0
        %539 = vmatpush1.bf16.msra.mxu0 0
        %540 = vmatprep.subr.bf16.mxu0 0
        %541 = vmatpush1.bf16.msra.mxu0 0
        %542 = vmatprep.subr.bf16.mxu0 0
        %543 = vmatpush1.bf16.msra.mxu0 0
        %544 = vmatprep.subr.bf16.mxu0 0
        %545 = vmatpush1.bf16.msra.mxu0 0
        %546 = vmatprep.mubr.bf16.mxu0 0
        %547 = vmatmul.mubr.bf16.gmra.mrb[0].mxu0 %v456
        %v548 = vpop.f32.mrb[0].mxu0
        %v549 = vadd.f32 0.0, %v548
        %v550 = vpop.f32.mrb[0].mxu0
        %v551 = vpop.f32.mrb[0].mxu0
        %v552 = vadd.f32 0.0, %v551
        %v553 = vpop.f32.mrb[0].mxu0
        %554 = vmatprep.mubr.bf16.mxu0 0
        %555 = vmatmul.mubr.bf16.gmra.mrb[0].mxu0 %v457
        %v556 = vpop.f32.mrb[0].mxu0
        %v557 = vadd.f32 0.0, %v556
        %v558 = vpop.f32.mrb[0].mxu0
        %v559 = vpop.f32.mrb[0].mxu0
        %v560 = vadd.f32 0.0, %v559
        %v561 = vpop.f32.mrb[0].mxu0
        %562 = vmatprep.mubr.bf16.mxu0 0
        %563 = vmatmul.mubr.bf16.gmra.mrb[0].mxu0 %v458
        %v564 = vpop.f32.mrb[0].mxu0
        %v565 = vadd.f32 0.0, %v564
        %v566 = vpop.f32.mrb[0].mxu0
        %v567 = vpop.f32.mrb[0].mxu0
        %v568 = vadd.f32 0.0, %v567
        %v569 = vpop.f32.mrb[0].mxu0
        %570 = vmatprep.mubr.bf16.mxu0 0
        %571 = vmatmul.mubr.bf16.gmra.mrb[0].mxu0 %v459
        %v572 = vpop.f32.mrb[0].mxu0
        %v573 = vadd.f32 0.0, %v572
        %v574 = vpop.f32.mrb[0].mxu0
        %v575 = vpop.f32.mrb[0].mxu0
        %v576 = vadd.f32 0.0, %v575
        %v577 = vpop.f32.mrb[0].mxu0
        %578 = vmatprep.mubr.bf16.mxu0 0
        %579 = vmatmul.mubr.bf16.gmra.mrb[0].mxu0 %v460
        %v580 = vpop.f32.mrb[0].mxu0
        %v581 = vadd.f32 0.0, %v580
        %v582 = vpop.f32.mrb[0].mxu0
        %v583 = vpop.f32.mrb[0].mxu0
        %v584 = vpop.f32.mrb[0].mxu0
        %585 = vdwg.mxu0
        %v595 = vunpack.c.l.b16 %v386
        %v596 = vunpack.c.l.b16 %v387
        %v597 = vunpack.c.l.b16 %v388
        %v598 = vunpack.c.l.b16 %v389
        %v599 = vunpack.c.l.b16 %v390
        %v600 = vunpack.c.l.b16 %v391
        %v601 = vunpack.c.l.b16 %v392
        %v602 = vunpack.c.l.b16 %v393
        %v603 = vunpack.c.l.b16 %v394
        %v604 = vpack.c.b16 %v596, %v595
        %v605 = vpack.c.b16 %v598, %v597
        %v606 = vpack.c.b16 %v600, %v599
        %v607 = vpack.c.b16 %v602, %v601
        %v608 = vpack.c.b16 %v603, %v603
        %v630 = vunpack.c.l.b16 %v395
        %v631 = vunpack.c.l.b16 %v396
        %v632 = vunpack.c.l.b16 %v397
        %v633 = vunpack.c.l.b16 %v398
        %v634 = vunpack.c.l.b16 %v399
        %v635 = vunpack.c.l.b16 %v400
        %v636 = vunpack.c.l.b16 %v401
        %v637 = vunpack.c.l.b16 %v402
        %v638 = vunpack.c.l.b16 %v403
        %v639 = vunpack.c.l.b16 %v404
        %v640 = vunpack.c.l.b16 %v405
        %v641 = vunpack.c.l.b16 %v406
        %v642 = vunpack.c.l.b16 %v407
        %v643 = vunpack.c.l.b16 %v408
        %v644 = vunpack.c.l.b16 %v409
        %v645 = vunpack.c.l.b16 %v410
        %v646 = vpack.c.b16 %v631, %v630
        %v647 = vpack.c.b16 %v633, %v632
        %v648 = vpack.c.b16 %v635, %v634
        %v649 = vpack.c.b16 %v637, %v636
        %v650 = vpack.c.b16 %v639, %v638
        %v651 = vpack.c.b16 %v641, %v640
        %v652 = vpack.c.b16 %v643, %v642
        %v653 = vpack.c.b16 %v645, %v644
        %662 = vmatprep.subr.bf16.mxu0 0
        %663 = vmatpush1.bf16.msra.mxu0 %v646
        %664 = vmatprep.subr.bf16.mxu0 0
        %665 = vmatpush1.bf16.msra.mxu0 %v647
        %666 = vmatprep.subr.bf16.mxu0 0
        %667 = vmatpush1.bf16.msra.mxu0 %v648
        %668 = vmatprep.subr.bf16.mxu0 0
        %669 = vmatpush1.bf16.msra.mxu0 %v649
        %670 = vmatprep.subr.bf16.mxu0 0
        %671 = vmatpush1.bf16.msra.mxu0 %v650
        %672 = vmatprep.subr.bf16.mxu0 0
        %673 = vmatpush1.bf16.msra.mxu0 %v651
        %674 = vmatprep.subr.bf16.mxu0 0
        %675 = vmatpush1.bf16.msra.mxu0 %v652
        %676 = vmatprep.subr.bf16.mxu0 0
        %677 = vmatpush1.bf16.msra.mxu0 %v653
        %678 = vmatprep.subr.bf16.mxu0 0
        %679 = vmatpush1.bf16.msra.mxu0 0
        %680 = vmatprep.subr.bf16.mxu0 0
        %681 = vmatpush1.bf16.msra.mxu0 0
        %682 = vmatprep.subr.bf16.mxu0 0
        %683 = vmatpush1.bf16.msra.mxu0 0
        %684 = vmatprep.subr.bf16.mxu0 0
        %685 = vmatpush1.bf16.msra.mxu0 0
        %686 = vmatprep.subr.bf16.mxu0 0
        %687 = vmatpush1.bf16.msra.mxu0 0
        %688 = vmatprep.subr.bf16.mxu0 0
        %689 = vmatpush1.bf16.msra.mxu0 0
        %690 = vmatprep.subr.bf16.mxu0 0
        %691 = vmatpush1.bf16.msra.mxu0 0
        %692 = vmatprep.subr.bf16.mxu0 0
        %693 = vmatpush1.bf16.msra.mxu0 0
        %694 = vmatprep.mubr.bf16.mxu0 0
        %695 = vmatmul.mubr.bf16.gmra.mrb[0].mxu0 %v604
        %v696 = vpop.f32.mrb[0].mxu0
        %v697 = vadd.f32 %v549, %v696
        %v698 = vpop.f32.mrb[0].mxu0
        %v699 = vpop.f32.mrb[0].mxu0
        %v700 = vadd.f32 %v552, %v699
        %v701 = vpop.f32.mrb[0].mxu0
        %702 = vmatprep.mubr.bf16.mxu0 0
        %703 = vmatmul.mubr.bf16.gmra.mrb[0].mxu0 %v605
        %v704 = vpop.f32.mrb[0].mxu0
        %v705 = vadd.f32 %v557, %v704
        %v706 = vpop.f32.mrb[0].mxu0
        %v707 = vpop.f32.mrb[0].mxu0
        %v708 = vadd.f32 %v560, %v707
        %v709 = vpop.f32.mrb[0].mxu0
        %710 = vmatprep.mubr.bf16.mxu0 0
        %711 = vmatmul.mubr.bf16.gmra.mrb[0].mxu0 %v606
        %v712 = vpop.f32.mrb[0].mxu0
        %v713 = vadd.f32 %v565, %v712
        %v714 = vpop.f32.mrb[0].mxu0
        %v715 = vpop.f32.mrb[0].mxu0
        %v716 = vadd.f32 %v568, %v715
        %v717 = vpop.f32.mrb[0].mxu0
        %718 = vmatprep.mubr.bf16.mxu0 0
        %719 = vmatmul.mubr.bf16.gmra.mrb[0].mxu0 %v607
        %v720 = vpop.f32.mrb[0].mxu0
        %v721 = vadd.f32 %v573, %v720
        %v722 = vpop.f32.mrb[0].mxu0
        %v723 = vpop.f32.mrb[0].mxu0
        %v724 = vadd.f32 %v576, %v723
        %v725 = vpop.f32.mrb[0].mxu0
        %726 = vmatprep.mubr.bf16.mxu0 0
        %727 = vmatmul.mubr.bf16.gmra.mrb[0].mxu0 %v608
        %v728 = vpop.f32.mrb[0].mxu0
        %v729 = vadd.f32 %v581, %v728
        %v730 = vpop.f32.mrb[0].mxu0
        %v731 = vpop.f32.mrb[0].mxu0
        %v732 = vpop.f32.mrb[0].mxu0
        %733 = vdwg.mxu0
        %v734 = vld [vmem:[%s359] sm:$0xf]
        %v735 = vld [vmem:[%s359 + $0x4] sm:$0xf]
        %v736 = vld [vmem:[%s359 + $0x8] sm:$0xf]
        %v737 = vld [vmem:[%s359 + $0xc] sm:$0xf]
        %v738 = vld [vmem:[%s359 + $0x10] sm:$0xf]
        %v739 = vld [vmem:[%s359 + $0x14] sm:$0xf]
        %v740 = vld [vmem:[%s359 + $0x18] sm:$0xf]
        %v741 = vld [vmem:[%s359 + $0x1c] sm:$0xf]
        %v742 = vld [vmem:[%s359 + $0x20] sm:$0xf]
        %v743 = vld [vmem:[%s359 + $0x24] sm:$0x1]
        %s744 = scalar_lea.vmem %s1, 128
        %v745 = vld [vmem:[%s744] sm:$0xf]
        %v746 = vld [vmem:[%s744 + $0x4] sm:$0xf]
        %v747 = vld [vmem:[%s744 + $0x8] sm:$0xf]
        %v748 = vld [vmem:[%s744 + $0xc] sm:$0xf]
        %v749 = vld [vmem:[%s744 + $0x10] sm:$0xf]
        %v750 = vld [vmem:[%s744 + $0x14] sm:$0xf]
        %v751 = vld [vmem:[%s744 + $0x18] sm:$0xf]
        %v752 = vld [vmem:[%s744 + $0x1c] sm:$0xf]
        %v753 = vld [vmem:[%s744 + $0x20] sm:$0xf]
        %v754 = vld [vmem:[%s744 + $0x24] sm:$0xf]
        %v755 = vld [vmem:[%s744 + $0x28] sm:$0xf]
        %v756 = vld [vmem:[%s744 + $0x2c] sm:$0xf]
        %v757 = vld [vmem:[%s744 + $0x30] sm:$0xf]
        %v758 = vld [vmem:[%s744 + $0x34] sm:$0xf]
        %v759 = vld [vmem:[%s744 + $0x38] sm:$0xf]
        %v760 = vld [vmem:[%s744 + $0x3c] sm:$0xf]
        %v771 = vunpack.c.l.b16 %v734
        %v772 = vunpack.c.l.b16 %v735
        %v773 = vunpack.c.l.b16 %v736
        %v774 = vunpack.c.l.b16 %v737
        %v775 = vunpack.c.l.b16 %v738
        %v776 = vunpack.c.l.b16 %v739
        %v777 = vunpack.c.l.b16 %v740
        %v778 = vunpack.c.l.b16 %v741
        %v779 = vunpack.c.l.b16 %v742
        %v780 = vunpack.c.l.b16 %v743
        %v781 = vpack.c.b16 %v772, %v771
        %v782 = vpack.c.b16 %v774, %v773
        %v783 = vpack.c.b16 %v776, %v775
        %v784 = vpack.c.b16 %v778, %v777
        %v785 = vpack.c.b16 %v780, %v779
        %vm786 = vsmask.f32 7424
        %v788 = vshrl.u32 %v781, 16
        %v790 = vshll.u32 %v781, 16
        %v792 = vrot.slane %v790, 1
        %v793 = vor.u32 %v788, %v792
        %v795 = vshll.u32 %v782, 16
        %v797 = vrot.slane %v795, 1
        %v798 = vsel %vm786, %v793, %v797
        %v799 = vshrl.u32 %v782, 16
        %v801 = vor.u32 %v799, %v797
        %v803 = vshll.u32 %v783, 16
        %v805 = vrot.slane %v803, 1
        %v806 = vsel %vm786, %v801, %v805
        %v807 = vshrl.u32 %v783, 16
        %v809 = vor.u32 %v807, %v805
        %v811 = vshll.u32 %v784, 16
        %v813 = vrot.slane %v811, 1
        %v814 = vsel %vm786, %v809, %v813
        %v815 = vshrl.u32 %v784, 16
        %v817 = vor.u32 %v815, %v813
        %v819 = vshll.u32 %v785, 16
        %v821 = vrot.slane %v819, 1
        %v822 = vsel %vm786, %v817, %v821
        %v823 = vshrl.u32 %v785, 16
        %v825 = vor.u32 %v823, %v821
        %v847 = vunpack.c.l.b16 %v745
        %v848 = vunpack.c.l.b16 %v746
        %v849 = vunpack.c.l.b16 %v747
        %v850 = vunpack.c.l.b16 %v748
        %v851 = vunpack.c.l.b16 %v749
        %v852 = vunpack.c.l.b16 %v750
        %v853 = vunpack.c.l.b16 %v751
        %v854 = vunpack.c.l.b16 %v752
        %v855 = vunpack.c.l.b16 %v753
        %v856 = vunpack.c.l.b16 %v754
        %v857 = vunpack.c.l.b16 %v755
        %v858 = vunpack.c.l.b16 %v756
        %v859 = vunpack.c.l.b16 %v757
        %v860 = vunpack.c.l.b16 %v758
        %v861 = vunpack.c.l.b16 %v759
        %v862 = vunpack.c.l.b16 %v760
        %v863 = vpack.c.b16 %v848, %v847
        %v864 = vpack.c.b16 %v850, %v849
        %v865 = vpack.c.b16 %v852, %v851
        %v866 = vpack.c.b16 %v854, %v853
        %v867 = vpack.c.b16 %v856, %v855
        %v868 = vpack.c.b16 %v858, %v857
        %v869 = vpack.c.b16 %v860, %v859
        %v870 = vpack.c.b16 %v862, %v861
        %879 = vmatprep.subr.bf16.mxu0 0
        %880 = vmatpush1.bf16.msra.mxu0 %v863
        %881 = vmatprep.subr.bf16.mxu0 0
        %882 = vmatpush1.bf16.msra.mxu0 %v864
        %883 = vmatprep.subr.bf16.mxu0 0
        %884 = vmatpush1.bf16.msra.mxu0 %v865
        %885 = vmatprep.subr.bf16.mxu0 0
        %886 = vmatpush1.bf16.msra.mxu0 %v866
        %887 = vmatprep.subr.bf16.mxu0 0
        %888 = vmatpush1.bf16.msra.mxu0 %v867
        %889 = vmatprep.subr.bf16.mxu0 0
        %890 = vmatpush1.bf16.msra.mxu0 %v868
        %891 = vmatprep.subr.bf16.mxu0 0
        %892 = vmatpush1.bf16.msra.mxu0 %v869
        %893 = vmatprep.subr.bf16.mxu0 0
        %894 = vmatpush1.bf16.msra.mxu0 %v870
        %895 = vmatprep.subr.bf16.mxu0 0
        %896 = vmatpush1.bf16.msra.mxu0 0
        %897 = vmatprep.subr.bf16.mxu0 0
        %898 = vmatpush1.bf16.msra.mxu0 0
        %899 = vmatprep.subr.bf16.mxu0 0
        %900 = vmatpush1.bf16.msra.mxu0 0
        %901 = vmatprep.subr.bf16.mxu0 0
        %902 = vmatpush1.bf16.msra.mxu0 0
        %903 = vmatprep.subr.bf16.mxu0 0
        %904 = vmatpush1.bf16.msra.mxu0 0
        %905 = vmatprep.subr.bf16.mxu0 0
        %906 = vmatpush1.bf16.msra.mxu0 0
        %907 = vmatprep.subr.bf16.mxu0 0
        %908 = vmatpush1.bf16.msra.mxu0 0
        %909 = vmatprep.subr.bf16.mxu0 0
        %910 = vmatpush1.bf16.msra.mxu0 0
        %911 = vmatprep.mubr.bf16.mxu0 0
        %912 = vmatmul.mubr.bf16.gmra.mrb[0].mxu0 %v798
        %v913 = vpop.f32.mrb[0].mxu0
        %v914 = vadd.f32 0.0, %v913
        %v915 = vpop.f32.mrb[0].mxu0
        %v916 = vpop.f32.mrb[0].mxu0
        %v917 = vadd.f32 0.0, %v916
        %v918 = vpop.f32.mrb[0].mxu0
        %919 = vmatprep.mubr.bf16.mxu0 0
        %920 = vmatmul.mubr.bf16.gmra.mrb[0].mxu0 %v806
        %v921 = vpop.f32.mrb[0].mxu0
        %v922 = vadd.f32 0.0, %v921
        %v923 = vpop.f32.mrb[0].mxu0
        %v924 = vpop.f32.mrb[0].mxu0
        %v925 = vadd.f32 0.0, %v924
        %v926 = vpop.f32.mrb[0].mxu0
        %927 = vmatprep.mubr.bf16.mxu0 0
        %928 = vmatmul.mubr.bf16.gmra.mrb[0].mxu0 %v814
        %v929 = vpop.f32.mrb[0].mxu0
        %v930 = vadd.f32 0.0, %v929
        %v931 = vpop.f32.mrb[0].mxu0
        %v932 = vpop.f32.mrb[0].mxu0
        %v933 = vadd.f32 0.0, %v932
        %v934 = vpop.f32.mrb[0].mxu0
        %935 = vmatprep.mubr.bf16.mxu0 0
        %936 = vmatmul.mubr.bf16.gmra.mrb[0].mxu0 %v822
        %v937 = vpop.f32.mrb[0].mxu0
        %v938 = vadd.f32 0.0, %v937
        %v939 = vpop.f32.mrb[0].mxu0
        %v940 = vpop.f32.mrb[0].mxu0
        %v941 = vadd.f32 0.0, %v940
        %v942 = vpop.f32.mrb[0].mxu0
        %943 = vmatprep.mubr.bf16.mxu0 0
        %944 = vmatmul.mubr.bf16.gmra.mrb[0].mxu0 %v825
        %v945 = vpop.f32.mrb[0].mxu0
        %v946 = vadd.f32 0.0, %v945
        %v947 = vpop.f32.mrb[0].mxu0
        %v948 = vpop.f32.mrb[0].mxu0
        %v949 = vpop.f32.mrb[0].mxu0
        %950 = vdwg.mxu0
        %v951 = vadd.f32 %v697, %v914
        %v952 = vadd.f32 %v700, %v917
        %v953 = vadd.f32 %v705, %v922
        %v954 = vadd.f32 %v708, %v925
        %v955 = vadd.f32 %v713, %v930
        %v956 = vadd.f32 %v716, %v933
        %v957 = vadd.f32 %v721, %v938
        %v958 = vadd.f32 %v724, %v941
        %v959 = vadd.f32 %v729, %v946
        %v960 = vld [vmem:[%s411] sm:$0xf]
        %v961 = vld [vmem:[%s411 + $0x4] sm:$0xf]
        %v962 = vld [vmem:[%s411 + $0x8] sm:$0xf]
        %v963 = vld [vmem:[%s411 + $0xc] sm:$0xf]
        %v964 = vld [vmem:[%s411 + $0x10] sm:$0xf]
        %v965 = vld [vmem:[%s411 + $0x14] sm:$0xf]
        %v966 = vld [vmem:[%s411 + $0x18] sm:$0xf]
        %v967 = vld [vmem:[%s411 + $0x1c] sm:$0xf]
        %v968 = vld [vmem:[%s411 + $0x20] sm:$0xf]
        %v969 = vld [vmem:[%s411 + $0x24] sm:$0x1]
        %s970 = scalar_lea.vmem %s1, 192
        %v971 = vld [vmem:[%s970] sm:$0xf]
        %v972 = vld [vmem:[%s970 + $0x4] sm:$0xf]
        %v973 = vld [vmem:[%s970 + $0x8] sm:$0xf]
        %v974 = vld [vmem:[%s970 + $0xc] sm:$0xf]
        %v975 = vld [vmem:[%s970 + $0x10] sm:$0xf]
        %v976 = vld [vmem:[%s970 + $0x14] sm:$0xf]
        %v977 = vld [vmem:[%s970 + $0x18] sm:$0xf]
        %v978 = vld [vmem:[%s970 + $0x1c] sm:$0xf]
        %v979 = vld [vmem:[%s970 + $0x20] sm:$0xf]
        %v980 = vld [vmem:[%s970 + $0x24] sm:$0xf]
        %v981 = vld [vmem:[%s970 + $0x28] sm:$0xf]
        %v982 = vld [vmem:[%s970 + $0x2c] sm:$0xf]
        %v983 = vld [vmem:[%s970 + $0x30] sm:$0xf]
        %v984 = vld [vmem:[%s970 + $0x34] sm:$0xf]
        %v985 = vld [vmem:[%s970 + $0x38] sm:$0xf]
        %v986 = vld [vmem:[%s970 + $0x3c] sm:$0xf]
        %v997 = vunpack.c.l.b16 %v960
        %v998 = vunpack.c.l.b16 %v961
        %v999 = vunpack.c.l.b16 %v962
        %v1000 = vunpack.c.l.b16 %v963
        %v1001 = vunpack.c.l.b16 %v964
        %v1002 = vunpack.c.l.b16 %v965
        %v1003 = vunpack.c.l.b16 %v966
        %v1004 = vunpack.c.l.b16 %v967
        %v1005 = vunpack.c.l.b16 %v968
        %v1006 = vunpack.c.l.b16 %v969
        %v1007 = vpack.c.b16 %v998, %v997
        %v1008 = vpack.c.b16 %v1000, %v999
        %v1009 = vpack.c.b16 %v1002, %v1001
        %v1010 = vpack.c.b16 %v1004, %v1003
        %v1011 = vpack.c.b16 %v1006, %v1005
        %v1013 = vshrl.u32 %v1007, 16
        %v1015 = vshll.u32 %v1007, 16
        %v1017 = vrot.slane %v1015, 1
        %v1018 = vor.u32 %v1013, %v1017
        %v1020 = vshll.u32 %v1008, 16
        %v1022 = vrot.slane %v1020, 1
        %v1023 = vsel %vm786, %v1018, %v1022
        %v1024 = vshrl.u32 %v1008, 16
        %v1026 = vor.u32 %v1024, %v1022
        %v1028 = vshll.u32 %v1009, 16
        %v1030 = vrot.slane %v1028, 1
        %v1031 = vsel %vm786, %v1026, %v1030
        %v1032 = vshrl.u32 %v1009, 16
        %v1034 = vor.u32 %v1032, %v1030
        %v1036 = vshll.u32 %v1010, 16
        %v1038 = vrot.slane %v1036, 1
        %v1039 = vsel %vm786, %v1034, %v1038
        %v1040 = vshrl.u32 %v1010, 16
        %v1042 = vor.u32 %v1040, %v1038
        %v1044 = vshll.u32 %v1011, 16
        %v1046 = vrot.slane %v1044, 1
        %v1047 = vsel %vm786, %v1042, %v1046
        %v1048 = vshrl.u32 %v1011, 16
        %v1050 = vor.u32 %v1048, %v1046
        %v1072 = vunpack.c.l.b16 %v971
        %v1073 = vunpack.c.l.b16 %v972
        %v1074 = vunpack.c.l.b16 %v973
        %v1075 = vunpack.c.l.b16 %v974
        %v1076 = vunpack.c.l.b16 %v975
        %v1077 = vunpack.c.l.b16 %v976
        %v1078 = vunpack.c.l.b16 %v977
        %v1079 = vunpack.c.l.b16 %v978
        %v1080 = vunpack.c.l.b16 %v979
        %v1081 = vunpack.c.l.b16 %v980
        %v1082 = vunpack.c.l.b16 %v981
        %v1083 = vunpack.c.l.b16 %v982
        %v1084 = vunpack.c.l.b16 %v983
        %v1085 = vunpack.c.l.b16 %v984
        %v1086 = vunpack.c.l.b16 %v985
        %v1087 = vunpack.c.l.b16 %v986
        %v1088 = vpack.c.b16 %v1073, %v1072
        %v1089 = vpack.c.b16 %v1075, %v1074
        %v1090 = vpack.c.b16 %v1077, %v1076
        %v1091 = vpack.c.b16 %v1079, %v1078
        %v1092 = vpack.c.b16 %v1081, %v1080
        %v1093 = vpack.c.b16 %v1083, %v1082
        %v1094 = vpack.c.b16 %v1085, %v1084
        %v1095 = vpack.c.b16 %v1087, %v1086
        %1104 = vmatprep.subr.bf16.mxu0 0
        %1105 = vmatpush1.bf16.msra.mxu0 %v1088
        %1106 = vmatprep.subr.bf16.mxu0 0
        %1107 = vmatpush1.bf16.msra.mxu0 %v1089
        %1108 = vmatprep.subr.bf16.mxu0 0
        %1109 = vmatpush1.bf16.msra.mxu0 %v1090
        %1110 = vmatprep.subr.bf16.mxu0 0
        %1111 = vmatpush1.bf16.msra.mxu0 %v1091
        %1112 = vmatprep.subr.bf16.mxu0 0
        %1113 = vmatpush1.bf16.msra.mxu0 %v1092
        %1114 = vmatprep.subr.bf16.mxu0 0
        %1115 = vmatpush1.bf16.msra.mxu0 %v1093
        %1116 = vmatprep.subr.bf16.mxu0 0
        %1117 = vmatpush1.bf16.msra.mxu0 %v1094
        %1118 = vmatprep.subr.bf16.mxu0 0
        %1119 = vmatpush1.bf16.msra.mxu0 %v1095
        %1120 = vmatprep.subr.bf16.mxu0 0
        %1121 = vmatpush1.bf16.msra.mxu0 0
        %1122 = vmatprep.subr.bf16.mxu0 0
        %1123 = vmatpush1.bf16.msra.mxu0 0
        %1124 = vmatprep.subr.bf16.mxu0 0
        %1125 = vmatpush1.bf16.msra.mxu0 0
        %1126 = vmatprep.subr.bf16.mxu0 0
        %1127 = vmatpush1.bf16.msra.mxu0 0
        %1128 = vmatprep.subr.bf16.mxu0 0
        %1129 = vmatpush1.bf16.msra.mxu0 0
        %1130 = vmatprep.subr.bf16.mxu0 0
        %1131 = vmatpush1.bf16.msra.mxu0 0
        %1132 = vmatprep.subr.bf16.mxu0 0
        %1133 = vmatpush1.bf16.msra.mxu0 0
        %1134 = vmatprep.subr.bf16.mxu0 0
        %1135 = vmatpush1.bf16.msra.mxu0 0
        %1136 = vmatprep.mubr.bf16.mxu0 0
        %1137 = vmatmul.mubr.bf16.gmra.mrb[0].mxu0 %v1023
        %v1138 = vpop.f32.mrb[0].mxu0
        %v1139 = vadd.f32 0.0, %v1138
        %v1140 = vpop.f32.mrb[0].mxu0
        %v1141 = vpop.f32.mrb[0].mxu0
        %v1142 = vadd.f32 0.0, %v1141
        %v1143 = vpop.f32.mrb[0].mxu0
        %1144 = vmatprep.mubr.bf16.mxu0 0
        %1145 = vmatmul.mubr.bf16.gmra.mrb[0].mxu0 %v1031
        %v1146 = vpop.f32.mrb[0].mxu0
        %v1147 = vadd.f32 0.0, %v1146
        %v1148 = vpop.f32.mrb[0].mxu0
        %v1149 = vpop.f32.mrb[0].mxu0
        %v1150 = vadd.f32 0.0, %v1149
        %v1151 = vpop.f32.mrb[0].mxu0
        %1152 = vmatprep.mubr.bf16.mxu0 0
        %1153 = vmatmul.mubr.bf16.gmra.mrb[0].mxu0 %v1039
        %v1154 = vpop.f32.mrb[0].mxu0
        %v1155 = vadd.f32 0.0, %v1154
        %v1156 = vpop.f32.mrb[0].mxu0
        %v1157 = vpop.f32.mrb[0].mxu0
        %v1158 = vadd.f32 0.0, %v1157
        %v1159 = vpop.f32.mrb[0].mxu0
        %1160 = vmatprep.mubr.bf16.mxu0 0
        %1161 = vmatmul.mubr.bf16.gmra.mrb[0].mxu0 %v1047
        %v1162 = vpop.f32.mrb[0].mxu0
        %v1163 = vadd.f32 0.0, %v1162
        %v1164 = vpop.f32.mrb[0].mxu0
        %v1165 = vpop.f32.mrb[0].mxu0
        %v1166 = vadd.f32 0.0, %v1165
        %v1167 = vpop.f32.mrb[0].mxu0
        %1168 = vmatprep.mubr.bf16.mxu0 0
        %1169 = vmatmul.mubr.bf16.gmra.mrb[0].mxu0 %v1050
        %v1170 = vpop.f32.mrb[0].mxu0
        %v1171 = vadd.f32 0.0, %v1170
        %v1172 = vpop.f32.mrb[0].mxu0
        %v1173 = vpop.f32.mrb[0].mxu0
        %v1174 = vpop.f32.mrb[0].mxu0
        %1175 = vdwg.mxu0
        %v1176 = vadd.f32 %v951, %v1139
        %v1177 = vadd.f32 %v952, %v1142
        %v1178 = vadd.f32 %v953, %v1147
        %v1179 = vadd.f32 %v954, %v1150
        %v1180 = vadd.f32 %v955, %v1155
        %v1181 = vadd.f32 %v956, %v1158
        %v1182 = vadd.f32 %v957, %v1163
        %v1183 = vadd.f32 %v958, %v1166
        %v1184 = vadd.f32 %v959, %v1171
        %s1185 = scalar_lea.vmem %s359, 88 [#allocation2]
        %v1186 = vld [vmem:[%s1185] sm:$0xf]
        %v1187 = vld [vmem:[%s1185 + $0x4] sm:$0xf]
        %v1188 = vld [vmem:[%s1185 + $0x8] sm:$0xf]
        %v1189 = vld [vmem:[%s1185 + $0xc] sm:$0xf]
        %v1190 = vld [vmem:[%s1185 + $0x10] sm:$0xf]
        %v1191 = vld [vmem:[%s1185 + $0x14] sm:$0xf]
        %v1192 = vld [vmem:[%s1185 + $0x18] sm:$0xf]
        %v1193 = vld [vmem:[%s1185 + $0x1c] sm:$0xf]
        %v1194 = vld [vmem:[%s1185 + $0x20] sm:$0xf]
        %s1195 = scalar_lea.vmem %s1, 256
        %v1196 = vld [vmem:[%s1195] sm:$0xf]
        %v1197 = vld [vmem:[%s1195 + $0x4] sm:$0xf]
        %v1198 = vld [vmem:[%s1195 + $0x8] sm:$0xf]
        %v1199 = vld [vmem:[%s1195 + $0xc] sm:$0xf]
        %v1200 = vld [vmem:[%s1195 + $0x10] sm:$0xf]
        %v1201 = vld [vmem:[%s1195 + $0x14] sm:$0xf]
        %v1202 = vld [vmem:[%s1195 + $0x18] sm:$0xf]
        %v1203 = vld [vmem:[%s1195 + $0x1c] sm:$0xf]
        %v1204 = vld [vmem:[%s1195 + $0x20] sm:$0xf]
        %v1205 = vld [vmem:[%s1195 + $0x24] sm:$0xf]
        %v1206 = vld [vmem:[%s1195 + $0x28] sm:$0xf]
        %v1207 = vld [vmem:[%s1195 + $0x2c] sm:$0xf]
        %v1208 = vld [vmem:[%s1195 + $0x30] sm:$0xf]
        %v1209 = vld [vmem:[%s1195 + $0x34] sm:$0xf]
        %v1210 = vld [vmem:[%s1195 + $0x38] sm:$0xf]
        %v1211 = vld [vmem:[%s1195 + $0x3c] sm:$0xf]
        %v1221 = vunpack.c.l.b16 %v1186
        %v1222 = vunpack.c.l.b16 %v1187
        %v1223 = vunpack.c.l.b16 %v1188
        %v1224 = vunpack.c.l.b16 %v1189
        %v1225 = vunpack.c.l.b16 %v1190
        %v1226 = vunpack.c.l.b16 %v1191
        %v1227 = vunpack.c.l.b16 %v1192
        %v1228 = vunpack.c.l.b16 %v1193
        %v1229 = vunpack.c.l.b16 %v1194
        %v1230 = vpack.c.b16 %v1222, %v1221
        %v1231 = vpack.c.b16 %v1224, %v1223
        %v1232 = vpack.c.b16 %v1226, %v1225
        %v1233 = vpack.c.b16 %v1228, %v1227
        %v1234 = vpack.c.b16 %v1229, %v1229
        %v1256 = vunpack.c.l.b16 %v1196
        %v1257 = vunpack.c.l.b16 %v1197
        %v1258 = vunpack.c.l.b16 %v1198
        %v1259 = vunpack.c.l.b16 %v1199
        %v1260 = vunpack.c.l.b16 %v1200
        %v1261 = vunpack.c.l.b16 %v1201
        %v1262 = vunpack.c.l.b16 %v1202
        %v1263 = vunpack.c.l.b16 %v1203
        %v1264 = vunpack.c.l.b16 %v1204
        %v1265 = vunpack.c.l.b16 %v1205
        %v1266 = vunpack.c.l.b16 %v1206
        %v1267 = vunpack.c.l.b16 %v1207
        %v1268 = vunpack.c.l.b16 %v1208
        %v1269 = vunpack.c.l.b16 %v1209
        %v1270 = vunpack.c.l.b16 %v1210
        %v1271 = vunpack.c.l.b16 %v1211
        %v1272 = vpack.c.b16 %v1257, %v1256
        %v1273 = vpack.c.b16 %v1259, %v1258
        %v1274 = vpack.c.b16 %v1261, %v1260
        %v1275 = vpack.c.b16 %v1263, %v1262
        %v1276 = vpack.c.b16 %v1265, %v1264
        %v1277 = vpack.c.b16 %v1267, %v1266
        %v1278 = vpack.c.b16 %v1269, %v1268
        %v1279 = vpack.c.b16 %v1271, %v1270
        %1288 = vmatprep.subr.bf16.mxu0 0
        %1289 = vmatpush1.bf16.msra.mxu0 %v1272
        %1290 = vmatprep.subr.bf16.mxu0 0
        %1291 = vmatpush1.bf16.msra.mxu0 %v1273
        %1292 = vmatprep.subr.bf16.mxu0 0
        %1293 = vmatpush1.bf16.msra.mxu0 %v1274
        %1294 = vmatprep.subr.bf16.mxu0 0
        %1295 = vmatpush1.bf16.msra.mxu0 %v1275
        %1296 = vmatprep.subr.bf16.mxu0 0
        %1297 = vmatpush1.bf16.msra.mxu0 %v1276
        %1298 = vmatprep.subr.bf16.mxu0 0
        %1299 = vmatpush1.bf16.msra.mxu0 %v1277
        %1300 = vmatprep.subr.bf16.mxu0 0
        %1301 = vmatpush1.bf16.msra.mxu0 %v1278
        %1302 = vmatprep.subr.bf16.mxu0 0
        %1303 = vmatpush1.bf16.msra.mxu0 %v1279
        %1304 = vmatprep.subr.bf16.mxu0 0
        %1305 = vmatpush1.bf16.msra.mxu0 0
        %1306 = vmatprep.subr.bf16.mxu0 0
        %1307 = vmatpush1.bf16.msra.mxu0 0
        %1308 = vmatprep.subr.bf16.mxu0 0
        %1309 = vmatpush1.bf16.msra.mxu0 0
        %1310 = vmatprep.subr.bf16.mxu0 0
        %1311 = vmatpush1.bf16.msra.mxu0 0
        %1312 = vmatprep.subr.bf16.mxu0 0
        %1313 = vmatpush1.bf16.msra.mxu0 0
        %1314 = vmatprep.subr.bf16.mxu0 0
        %1315 = vmatpush1.bf16.msra.mxu0 0
        %1316 = vmatprep.subr.bf16.mxu0 0
        %1317 = vmatpush1.bf16.msra.mxu0 0
        %1318 = vmatprep.subr.bf16.mxu0 0
        %1319 = vmatpush1.bf16.msra.mxu0 0
        %1320 = vmatprep.mubr.bf16.mxu0 0
        %1321 = vmatmul.mubr.bf16.gmra.mrb[0].mxu0 %v1230
        %v1322 = vpop.f32.mrb[0].mxu0
        %v1323 = vadd.f32 0.0, %v1322
        %v1324 = vpop.f32.mrb[0].mxu0
        %v1325 = vpop.f32.mrb[0].mxu0
        %v1326 = vadd.f32 0.0, %v1325
        %v1327 = vpop.f32.mrb[0].mxu0
        %1328 = vmatprep.mubr.bf16.mxu0 0
        %1329 = vmatmul.mubr.bf16.gmra.mrb[0].mxu0 %v1231
        %v1330 = vpop.f32.mrb[0].mxu0
        %v1331 = vadd.f32 0.0, %v1330
        %v1332 = vpop.f32.mrb[0].mxu0
        %v1333 = vpop.f32.mrb[0].mxu0
        %v1334 = vadd.f32 0.0, %v1333
        %v1335 = vpop.f32.mrb[0].mxu0
        %1336 = vmatprep.mubr.bf16.mxu0 0
        %1337 = vmatmul.mubr.bf16.gmra.mrb[0].mxu0 %v1232
        %v1338 = vpop.f32.mrb[0].mxu0
        %v1339 = vadd.f32 0.0, %v1338
        %v1340 = vpop.f32.mrb[0].mxu0
        %v1341 = vpop.f32.mrb[0].mxu0
        %v1342 = vadd.f32 0.0, %v1341
        %v1343 = vpop.f32.mrb[0].mxu0
        %1344 = vmatprep.mubr.bf16.mxu0 0
        %1345 = vmatmul.mubr.bf16.gmra.mrb[0].mxu0 %v1233
        %v1346 = vpop.f32.mrb[0].mxu0
        %v1347 = vadd.f32 0.0, %v1346
        %v1348 = vpop.f32.mrb[0].mxu0
        %v1349 = vpop.f32.mrb[0].mxu0
        %v1350 = vadd.f32 0.0, %v1349
        %v1351 = vpop.f32.mrb[0].mxu0
        %1352 = vmatprep.mubr.bf16.mxu0 0
        %1353 = vmatmul.mubr.bf16.gmra.mrb[0].mxu0 %v1234
        %v1354 = vpop.f32.mrb[0].mxu0
        %v1355 = vadd.f32 0.0, %v1354
        %v1356 = vpop.f32.mrb[0].mxu0
        %v1357 = vpop.f32.mrb[0].mxu0
        %v1358 = vpop.f32.mrb[0].mxu0
        %1359 = vdwg.mxu0
        %v1360 = vadd.f32 %v1176, %v1323
        %v1361 = vadd.f32 %v1177, %v1326
        %v1362 = vadd.f32 %v1178, %v1331
        %v1363 = vadd.f32 %v1179, %v1334
        %v1364 = vadd.f32 %v1180, %v1339
        %v1365 = vadd.f32 %v1181, %v1342
        %v1366 = vadd.f32 %v1182, %v1347
        %v1367 = vadd.f32 %v1183, %v1350
        %v1368 = vadd.f32 %v1184, %v1355
        %s1369 = scalar_lea.vmem %s359, 132 [#allocation2]
        %v1370 = vld [vmem:[%s1369] sm:$0xf]
        %v1371 = vld [vmem:[%s1369 + $0x4] sm:$0xf]
        %v1372 = vld [vmem:[%s1369 + $0x8] sm:$0xf]
        %v1373 = vld [vmem:[%s1369 + $0xc] sm:$0xf]
        %v1374 = vld [vmem:[%s1369 + $0x10] sm:$0xf]
        %v1375 = vld [vmem:[%s1369 + $0x14] sm:$0xf]
        %v1376 = vld [vmem:[%s1369 + $0x18] sm:$0xf]
        %v1377 = vld [vmem:[%s1369 + $0x1c] sm:$0xf]
        %v1378 = vld [vmem:[%s1369 + $0x20] sm:$0xf]
        %s1379 = scalar_lea.vmem %s1, 320
        %v1380 = vld [vmem:[%s1379] sm:$0xf]
        %v1381 = vld [vmem:[%s1379 + $0x4] sm:$0xf]
        %v1382 = vld [vmem:[%s1379 + $0x8] sm:$0xf]
        %v1383 = vld [vmem:[%s1379 + $0xc] sm:$0xf]
        %v1384 = vld [vmem:[%s1379 + $0x10] sm:$0xf]
        %v1385 = vld [vmem:[%s1379 + $0x14] sm:$0xf]
        %v1386 = vld [vmem:[%s1379 + $0x18] sm:$0xf]
        %v1387 = vld [vmem:[%s1379 + $0x1c] sm:$0xf]
        %v1388 = vld [vmem:[%s1379 + $0x20] sm:$0xf]
        %v1389 = vld [vmem:[%s1379 + $0x24] sm:$0xf]
        %v1390 = vld [vmem:[%s1379 + $0x28] sm:$0xf]
        %v1391 = vld [vmem:[%s1379 + $0x2c] sm:$0xf]
        %v1392 = vld [vmem:[%s1379 + $0x30] sm:$0xf]
        %v1393 = vld [vmem:[%s1379 + $0x34] sm:$0xf]
        %v1394 = vld [vmem:[%s1379 + $0x38] sm:$0xf]
        %v1395 = vld [vmem:[%s1379 + $0x3c] sm:$0xf]
        %v1405 = vunpack.c.l.b16 %v1370
        %v1406 = vunpack.c.l.b16 %v1371
        %v1407 = vunpack.c.l.b16 %v1372
        %v1408 = vunpack.c.l.b16 %v1373
        %v1409 = vunpack.c.l.b16 %v1374
        %v1410 = vunpack.c.l.b16 %v1375
        %v1411 = vunpack.c.l.b16 %v1376
        %v1412 = vunpack.c.l.b16 %v1377
        %v1413 = vunpack.c.l.b16 %v1378
        %v1414 = vpack.c.b16 %v1406, %v1405
        %v1415 = vpack.c.b16 %v1408, %v1407
        %v1416 = vpack.c.b16 %v1410, %v1409
        %v1417 = vpack.c.b16 %v1412, %v1411
        %v1418 = vpack.c.b16 %v1413, %v1413
        %v1440 = vunpack.c.l.b16 %v1380
        %v1441 = vunpack.c.l.b16 %v1381
        %v1442 = vunpack.c.l.b16 %v1382
        %v1443 = vunpack.c.l.b16 %v1383
        %v1444 = vunpack.c.l.b16 %v1384
        %v1445 = vunpack.c.l.b16 %v1385
        %v1446 = vunpack.c.l.b16 %v1386
        %v1447 = vunpack.c.l.b16 %v1387
        %v1448 = vunpack.c.l.b16 %v1388
        %v1449 = vunpack.c.l.b16 %v1389
        %v1450 = vunpack.c.l.b16 %v1390
        %v1451 = vunpack.c.l.b16 %v1391
        %v1452 = vunpack.c.l.b16 %v1392
        %v1453 = vunpack.c.l.b16 %v1393
        %v1454 = vunpack.c.l.b16 %v1394
        %v1455 = vunpack.c.l.b16 %v1395
        %v1456 = vpack.c.b16 %v1441, %v1440
        %v1457 = vpack.c.b16 %v1443, %v1442
        %v1458 = vpack.c.b16 %v1445, %v1444
        %v1459 = vpack.c.b16 %v1447, %v1446
        %v1460 = vpack.c.b16 %v1449, %v1448
        %v1461 = vpack.c.b16 %v1451, %v1450
        %v1462 = vpack.c.b16 %v1453, %v1452
        %v1463 = vpack.c.b16 %v1455, %v1454
        %1472 = vmatprep.subr.bf16.mxu0 0
        %1473 = vmatpush1.bf16.msra.mxu0 %v1456
        %1474 = vmatprep.subr.bf16.mxu0 0
        %1475 = vmatpush1.bf16.msra.mxu0 %v1457
        %1476 = vmatprep.subr.bf16.mxu0 0
        %1477 = vmatpush1.bf16.msra.mxu0 %v1458
        %1478 = vmatprep.subr.bf16.mxu0 0
        %1479 = vmatpush1.bf16.msra.mxu0 %v1459
        %1480 = vmatprep.subr.bf16.mxu0 0
        %1481 = vmatpush1.bf16.msra.mxu0 %v1460
        %1482 = vmatprep.subr.bf16.mxu0 0
        %1483 = vmatpush1.bf16.msra.mxu0 %v1461
        %1484 = vmatprep.subr.bf16.mxu0 0
        %1485 = vmatpush1.bf16.msra.mxu0 %v1462
        %1486 = vmatprep.subr.bf16.mxu0 0
        %1487 = vmatpush1.bf16.msra.mxu0 %v1463
        %1488 = vmatprep.subr.bf16.mxu0 0
        %1489 = vmatpush1.bf16.msra.mxu0 0
        %1490 = vmatprep.subr.bf16.mxu0 0
        %1491 = vmatpush1.bf16.msra.mxu0 0
        %1492 = vmatprep.subr.bf16.mxu0 0
        %1493 = vmatpush1.bf16.msra.mxu0 0
        %1494 = vmatprep.subr.bf16.mxu0 0
        %1495 = vmatpush1.bf16.msra.mxu0 0
        %1496 = vmatprep.subr.bf16.mxu0 0
        %1497 = vmatpush1.bf16.msra.mxu0 0
        %1498 = vmatprep.subr.bf16.mxu0 0
        %1499 = vmatpush1.bf16.msra.mxu0 0
        %1500 = vmatprep.subr.bf16.mxu0 0
        %1501 = vmatpush1.bf16.msra.mxu0 0
        %1502 = vmatprep.subr.bf16.mxu0 0
        %1503 = vmatpush1.bf16.msra.mxu0 0
        %1504 = vmatprep.mubr.bf16.mxu0 0
        %1505 = vmatmul.mubr.bf16.gmra.mrb[0].mxu0 %v1414
        %v1506 = vpop.f32.mrb[0].mxu0
        %v1507 = vadd.f32 0.0, %v1506
        %v1508 = vpop.f32.mrb[0].mxu0
        %v1509 = vpop.f32.mrb[0].mxu0
        %v1510 = vadd.f32 0.0, %v1509
        %v1511 = vpop.f32.mrb[0].mxu0
        %1512 = vmatprep.mubr.bf16.mxu0 0
        %1513 = vmatmul.mubr.bf16.gmra.mrb[0].mxu0 %v1415
        %v1514 = vpop.f32.mrb[0].mxu0
        %v1515 = vadd.f32 0.0, %v1514
        %v1516 = vpop.f32.mrb[0].mxu0
        %v1517 = vpop.f32.mrb[0].mxu0
        %v1518 = vadd.f32 0.0, %v1517
        %v1519 = vpop.f32.mrb[0].mxu0
        %1520 = vmatprep.mubr.bf16.mxu0 0
        %1521 = vmatmul.mubr.bf16.gmra.mrb[0].mxu0 %v1416
        %v1522 = vpop.f32.mrb[0].mxu0
        %v1523 = vadd.f32 0.0, %v1522
        %v1524 = vpop.f32.mrb[0].mxu0
        %v1525 = vpop.f32.mrb[0].mxu0
        %v1526 = vadd.f32 0.0, %v1525
        %v1527 = vpop.f32.mrb[0].mxu0
        %1528 = vmatprep.mubr.bf16.mxu0 0
        %1529 = vmatmul.mubr.bf16.gmra.mrb[0].mxu0 %v1417
        %v1530 = vpop.f32.mrb[0].mxu0
        %v1531 = vadd.f32 0.0, %v1530
        %v1532 = vpop.f32.mrb[0].mxu0
        %v1533 = vpop.f32.mrb[0].mxu0
        %v1534 = vadd.f32 0.0, %v1533
        %v1535 = vpop.f32.mrb[0].mxu0
        %1536 = vmatprep.mubr.bf16.mxu0 0
        %1537 = vmatmul.mubr.bf16.gmra.mrb[0].mxu0 %v1418
        %v1538 = vpop.f32.mrb[0].mxu0
        %v1539 = vadd.f32 0.0, %v1538
        %v1540 = vpop.f32.mrb[0].mxu0
        %v1541 = vpop.f32.mrb[0].mxu0
        %v1542 = vpop.f32.mrb[0].mxu0
        %1543 = vdwg.mxu0
        %v1544 = vadd.f32 %v1360, %v1507
        %v1545 = vadd.f32 %v1361, %v1510
        %v1546 = vadd.f32 %v1362, %v1515
        %v1547 = vadd.f32 %v1363, %v1518
        %v1548 = vadd.f32 %v1364, %v1523
        %v1549 = vadd.f32 %v1365, %v1526
        %v1550 = vadd.f32 %v1366, %v1531
        %v1551 = vadd.f32 %v1367, %v1534
        %v1552 = vadd.f32 %v1368, %v1539
        %v1553 = vld [vmem:[%s1185] sm:$0xf]
        %v1554 = vld [vmem:[%s1185 + $0x4] sm:$0xf]
        %v1555 = vld [vmem:[%s1185 + $0x8] sm:$0xf]
        %v1556 = vld [vmem:[%s1185 + $0xc] sm:$0xf]
        %v1557 = vld [vmem:[%s1185 + $0x10] sm:$0xf]
        %v1558 = vld [vmem:[%s1185 + $0x14] sm:$0xf]
        %v1559 = vld [vmem:[%s1185 + $0x18] sm:$0xf]
        %v1560 = vld [vmem:[%s1185 + $0x1c] sm:$0xf]
        %v1561 = vld [vmem:[%s1185 + $0x20] sm:$0xf]
        %v1562 = vld [vmem:[%s1185 + $0x24] sm:$0x1]
        %s1563 = scalar_lea.vmem %s1, 384
        %v1564 = vld [vmem:[%s1563] sm:$0xf]
        %v1565 = vld [vmem:[%s1563 + $0x4] sm:$0xf]
        %v1566 = vld [vmem:[%s1563 + $0x8] sm:$0xf]
        %v1567 = vld [vmem:[%s1563 + $0xc] sm:$0xf]
        %v1568 = vld [vmem:[%s1563 + $0x10] sm:$0xf]
        %v1569 = vld [vmem:[%s1563 + $0x14] sm:$0xf]
        %v1570 = vld [vmem:[%s1563 + $0x18] sm:$0xf]
        %v1571 = vld [vmem:[%s1563 + $0x1c] sm:$0xf]
        %v1572 = vld [vmem:[%s1563 + $0x20] sm:$0xf]
        %v1573 = vld [vmem:[%s1563 + $0x24] sm:$0xf]
        %v1574 = vld [vmem:[%s1563 + $0x28] sm:$0xf]
        %v1575 = vld [vmem:[%s1563 + $0x2c] sm:$0xf]
        %v1576 = vld [vmem:[%s1563 + $0x30] sm:$0xf]
        %v1577 = vld [vmem:[%s1563 + $0x34] sm:$0xf]
        %v1578 = vld [vmem:[%s1563 + $0x38] sm:$0xf]
        %v1579 = vld [vmem:[%s1563 + $0x3c] sm:$0xf]
        %v1590 = vunpack.c.l.b16 %v1553
        %v1591 = vunpack.c.l.b16 %v1554
        %v1592 = vunpack.c.l.b16 %v1555
        %v1593 = vunpack.c.l.b16 %v1556
        %v1594 = vunpack.c.l.b16 %v1557
        %v1595 = vunpack.c.l.b16 %v1558
        %v1596 = vunpack.c.l.b16 %v1559
        %v1597 = vunpack.c.l.b16 %v1560
        %v1598 = vunpack.c.l.b16 %v1561
        %v1599 = vunpack.c.l.b16 %v1562
        %v1600 = vpack.c.b16 %v1591, %v1590
        %v1601 = vpack.c.b16 %v1593, %v1592
        %v1602 = vpack.c.b16 %v1595, %v1594
        %v1603 = vpack.c.b16 %v1597, %v1596
        %v1604 = vpack.c.b16 %v1599, %v1598
        %v1606 = vshrl.u32 %v1600, 16
        %v1608 = vshll.u32 %v1600, 16
        %v1610 = vrot.slane %v1608, 1
        %v1611 = vor.u32 %v1606, %v1610
        %v1613 = vshll.u32 %v1601, 16
        %v1615 = vrot.slane %v1613, 1
        %v1616 = vsel %vm786, %v1611, %v1615
        %v1617 = vshrl.u32 %v1601, 16
        %v1619 = vor.u32 %v1617, %v1615
        %v1621 = vshll.u32 %v1602, 16
        %v1623 = vrot.slane %v1621, 1
        %v1624 = vsel %vm786, %v1619, %v1623
        %v1625 = vshrl.u32 %v1602, 16
        %v1627 = vor.u32 %v1625, %v1623
        %v1629 = vshll.u32 %v1603, 16
        %v1631 = vrot.slane %v1629, 1
        %v1632 = vsel %vm786, %v1627, %v1631
        %v1633 = vshrl.u32 %v1603, 16
        %v1635 = vor.u32 %v1633, %v1631
        %v1637 = vshll.u32 %v1604, 16
        %v1639 = vrot.slane %v1637, 1
        %v1640 = vsel %vm786, %v1635, %v1639
        %v1641 = vshrl.u32 %v1604, 16
        %v1643 = vor.u32 %v1641, %v1639
        %v1665 = vunpack.c.l.b16 %v1564
        %v1666 = vunpack.c.l.b16 %v1565
        %v1667 = vunpack.c.l.b16 %v1566
        %v1668 = vunpack.c.l.b16 %v1567
        %v1669 = vunpack.c.l.b16 %v1568
        %v1670 = vunpack.c.l.b16 %v1569
        %v1671 = vunpack.c.l.b16 %v1570
        %v1672 = vunpack.c.l.b16 %v1571
        %v1673 = vunpack.c.l.b16 %v1572
        %v1674 = vunpack.c.l.b16 %v1573
        %v1675 = vunpack.c.l.b16 %v1574
        %v1676 = vunpack.c.l.b16 %v1575
        %v1677 = vunpack.c.l.b16 %v1576
        %v1678 = vunpack.c.l.b16 %v1577
        %v1679 = vunpack.c.l.b16 %v1578
        %v1680 = vunpack.c.l.b16 %v1579
        %v1681 = vpack.c.b16 %v1666, %v1665
        %v1682 = vpack.c.b16 %v1668, %v1667
        %v1683 = vpack.c.b16 %v1670, %v1669
        %v1684 = vpack.c.b16 %v1672, %v1671
        %v1685 = vpack.c.b16 %v1674, %v1673
        %v1686 = vpack.c.b16 %v1676, %v1675
        %v1687 = vpack.c.b16 %v1678, %v1677
        %v1688 = vpack.c.b16 %v1680, %v1679
        %1697 = vmatprep.subr.bf16.mxu0 0
        %1698 = vmatpush1.bf16.msra.mxu0 %v1681
        %1699 = vmatprep.subr.bf16.mxu0 0
        %1700 = vmatpush1.bf16.msra.mxu0 %v1682
        %1701 = vmatprep.subr.bf16.mxu0 0
        %1702 = vmatpush1.bf16.msra.mxu0 %v1683
        %1703 = vmatprep.subr.bf16.mxu0 0
        %1704 = vmatpush1.bf16.msra.mxu0 %v1684
        %1705 = vmatprep.subr.bf16.mxu0 0
        %1706 = vmatpush1.bf16.msra.mxu0 %v1685
        %1707 = vmatprep.subr.bf16.mxu0 0
        %1708 = vmatpush1.bf16.msra.mxu0 %v1686
        %1709 = vmatprep.subr.bf16.mxu0 0
        %1710 = vmatpush1.bf16.msra.mxu0 %v1687
        %1711 = vmatprep.subr.bf16.mxu0 0
        %1712 = vmatpush1.bf16.msra.mxu0 %v1688
        %1713 = vmatprep.subr.bf16.mxu0 0
        %1714 = vmatpush1.bf16.msra.mxu0 0
        %1715 = vmatprep.subr.bf16.mxu0 0
        %1716 = vmatpush1.bf16.msra.mxu0 0
        %1717 = vmatprep.subr.bf16.mxu0 0
        %1718 = vmatpush1.bf16.msra.mxu0 0
        %1719 = vmatprep.subr.bf16.mxu0 0
        %1720 = vmatpush1.bf16.msra.mxu0 0
        %1721 = vmatprep.subr.bf16.mxu0 0
        %1722 = vmatpush1.bf16.msra.mxu0 0
        %1723 = vmatprep.subr.bf16.mxu0 0
        %1724 = vmatpush1.bf16.msra.mxu0 0
        %1725 = vmatprep.subr.bf16.mxu0 0
        %1726 = vmatpush1.bf16.msra.mxu0 0
        %1727 = vmatprep.subr.bf16.mxu0 0
        %1728 = vmatpush1.bf16.msra.mxu0 0
        %1729 = vmatprep.mubr.bf16.mxu0 0
        %1730 = vmatmul.mubr.bf16.gmra.mrb[0].mxu0 %v1616
        %v1731 = vpop.f32.mrb[0].mxu0
        %v1732 = vadd.f32 0.0, %v1731
        %v1733 = vpop.f32.mrb[0].mxu0
        %v1734 = vpop.f32.mrb[0].mxu0
        %v1735 = vadd.f32 0.0, %v1734
        %v1736 = vpop.f32.mrb[0].mxu0
        %1737 = vmatprep.mubr.bf16.mxu0 0
        %1738 = vmatmul.mubr.bf16.gmra.mrb[0].mxu0 %v1624
        %v1739 = vpop.f32.mrb[0].mxu0
        %v1740 = vadd.f32 0.0, %v1739
        %v1741 = vpop.f32.mrb[0].mxu0
        %v1742 = vpop.f32.mrb[0].mxu0
        %v1743 = vadd.f32 0.0, %v1742
        %v1744 = vpop.f32.mrb[0].mxu0
        %1745 = vmatprep.mubr.bf16.mxu0 0
        %1746 = vmatmul.mubr.bf16.gmra.mrb[0].mxu0 %v1632
        %v1747 = vpop.f32.mrb[0].mxu0
        %v1748 = vadd.f32 0.0, %v1747
        %v1749 = vpop.f32.mrb[0].mxu0
        %v1750 = vpop.f32.mrb[0].mxu0
        %v1751 = vadd.f32 0.0, %v1750
        %v1752 = vpop.f32.mrb[0].mxu0
        %1753 = vmatprep.mubr.bf16.mxu0 0
        %1754 = vmatmul.mubr.bf16.gmra.mrb[0].mxu0 %v1640
        %v1755 = vpop.f32.mrb[0].mxu0
        %v1756 = vadd.f32 0.0, %v1755
        %v1757 = vpop.f32.mrb[0].mxu0
        %v1758 = vpop.f32.mrb[0].mxu0
        %v1759 = vadd.f32 0.0, %v1758
        %v1760 = vpop.f32.mrb[0].mxu0
        %1761 = vmatprep.mubr.bf16.mxu0 0
        %1762 = vmatmul.mubr.bf16.gmra.mrb[0].mxu0 %v1643
        %v1763 = vpop.f32.mrb[0].mxu0
        %v1764 = vadd.f32 0.0, %v1763
        %v1765 = vpop.f32.mrb[0].mxu0
        %v1766 = vpop.f32.mrb[0].mxu0
        %v1767 = vpop.f32.mrb[0].mxu0
        %1768 = vdwg.mxu0
        %v1769 = vadd.f32 %v1544, %v1732
        %v1770 = vadd.f32 %v1545, %v1735
        %v1771 = vadd.f32 %v1546, %v1740
        %v1772 = vadd.f32 %v1547, %v1743
        %v1773 = vadd.f32 %v1548, %v1748
        %v1774 = vadd.f32 %v1549, %v1751
        %v1775 = vadd.f32 %v1550, %v1756
        %v1776 = vadd.f32 %v1551, %v1759
        %v1777 = vadd.f32 %v1552, %v1764
        %v1778 = vld [vmem:[%s1369] sm:$0xf]
        %v1779 = vld [vmem:[%s1369 + $0x4] sm:$0xf]
        %v1780 = vld [vmem:[%s1369 + $0x8] sm:$0xf]
        %v1781 = vld [vmem:[%s1369 + $0xc] sm:$0xf]
        %v1782 = vld [vmem:[%s1369 + $0x10] sm:$0xf]
        %v1783 = vld [vmem:[%s1369 + $0x14] sm:$0xf]
        %v1784 = vld [vmem:[%s1369 + $0x18] sm:$0xf]
        %v1785 = vld [vmem:[%s1369 + $0x1c] sm:$0xf]
        %v1786 = vld [vmem:[%s1369 + $0x20] sm:$0xf]
        %v1787 = vld [vmem:[%s1369 + $0x24] sm:$0x1]
        %s1788 = scalar_lea.vmem %s1, 448
        %v1789 = vld [vmem:[%s1788] sm:$0xf]
        %v1790 = vld [vmem:[%s1788 + $0x4] sm:$0xf]
        %v1791 = vld [vmem:[%s1788 + $0x8] sm:$0xf]
        %v1792 = vld [vmem:[%s1788 + $0xc] sm:$0xf]
        %v1793 = vld [vmem:[%s1788 + $0x10] sm:$0xf]
        %v1794 = vld [vmem:[%s1788 + $0x14] sm:$0xf]
        %v1795 = vld [vmem:[%s1788 + $0x18] sm:$0xf]
        %v1796 = vld [vmem:[%s1788 + $0x1c] sm:$0xf]
        %v1797 = vld [vmem:[%s1788 + $0x20] sm:$0xf]
        %v1798 = vld [vmem:[%s1788 + $0x24] sm:$0xf]
        %v1799 = vld [vmem:[%s1788 + $0x28] sm:$0xf]
        %v1800 = vld [vmem:[%s1788 + $0x2c] sm:$0xf]
        %v1801 = vld [vmem:[%s1788 + $0x30] sm:$0xf]
        %v1802 = vld [vmem:[%s1788 + $0x34] sm:$0xf]
        %v1803 = vld [vmem:[%s1788 + $0x38] sm:$0xf]
        %v1804 = vld [vmem:[%s1788 + $0x3c] sm:$0xf]
        %v1815 = vunpack.c.l.b16 %v1778
        %v1816 = vunpack.c.l.b16 %v1779
        %v1817 = vunpack.c.l.b16 %v1780
        %v1818 = vunpack.c.l.b16 %v1781
        %v1819 = vunpack.c.l.b16 %v1782
        %v1820 = vunpack.c.l.b16 %v1783
        %v1821 = vunpack.c.l.b16 %v1784
        %v1822 = vunpack.c.l.b16 %v1785
        %v1823 = vunpack.c.l.b16 %v1786
        %v1824 = vunpack.c.l.b16 %v1787
        %v1825 = vpack.c.b16 %v1816, %v1815
        %v1826 = vpack.c.b16 %v1818, %v1817
        %v1827 = vpack.c.b16 %v1820, %v1819
        %v1828 = vpack.c.b16 %v1822, %v1821
        %v1829 = vpack.c.b16 %v1824, %v1823
        %v1831 = vshrl.u32 %v1825, 16
        %v1833 = vshll.u32 %v1825, 16
        %v1835 = vrot.slane %v1833, 1
        %v1836 = vor.u32 %v1831, %v1835
        %v1838 = vshll.u32 %v1826, 16
        %v1840 = vrot.slane %v1838, 1
        %v1841 = vsel %vm786, %v1836, %v1840
        %v1842 = vshrl.u32 %v1826, 16
        %v1844 = vor.u32 %v1842, %v1840
        %v1846 = vshll.u32 %v1827, 16
        %v1848 = vrot.slane %v1846, 1
        %v1849 = vsel %vm786, %v1844, %v1848
        %v1850 = vshrl.u32 %v1827, 16
        %v1852 = vor.u32 %v1850, %v1848
        %v1854 = vshll.u32 %v1828, 16
        %v1856 = vrot.slane %v1854, 1
        %v1857 = vsel %vm786, %v1852, %v1856
        %v1858 = vshrl.u32 %v1828, 16
        %v1860 = vor.u32 %v1858, %v1856
        %v1862 = vshll.u32 %v1829, 16
        %v1864 = vrot.slane %v1862, 1
        %v1865 = vsel %vm786, %v1860, %v1864
        %v1866 = vshrl.u32 %v1829, 16
        %v1868 = vor.u32 %v1866, %v1864
        %v1890 = vunpack.c.l.b16 %v1789
        %v1891 = vunpack.c.l.b16 %v1790
        %v1892 = vunpack.c.l.b16 %v1791
        %v1893 = vunpack.c.l.b16 %v1792
        %v1894 = vunpack.c.l.b16 %v1793
        %v1895 = vunpack.c.l.b16 %v1794
        %v1896 = vunpack.c.l.b16 %v1795
        %v1897 = vunpack.c.l.b16 %v1796
        %v1898 = vunpack.c.l.b16 %v1797
        %v1899 = vunpack.c.l.b16 %v1798
        %v1900 = vunpack.c.l.b16 %v1799
        %v1901 = vunpack.c.l.b16 %v1800
        %v1902 = vunpack.c.l.b16 %v1801
        %v1903 = vunpack.c.l.b16 %v1802
        %v1904 = vunpack.c.l.b16 %v1803
        %v1905 = vunpack.c.l.b16 %v1804
        %v1906 = vpack.c.b16 %v1891, %v1890
        %v1907 = vpack.c.b16 %v1893, %v1892
        %v1908 = vpack.c.b16 %v1895, %v1894
        %v1909 = vpack.c.b16 %v1897, %v1896
        %v1910 = vpack.c.b16 %v1899, %v1898
        %v1911 = vpack.c.b16 %v1901, %v1900
        %v1912 = vpack.c.b16 %v1903, %v1902
        %v1913 = vpack.c.b16 %v1905, %v1904
        %1922 = vmatprep.subr.bf16.mxu0 0
        %1923 = vmatpush1.bf16.msra.mxu0 %v1906
        %1924 = vmatprep.subr.bf16.mxu0 0
        %1925 = vmatpush1.bf16.msra.mxu0 %v1907
        %1926 = vmatprep.subr.bf16.mxu0 0
        %1927 = vmatpush1.bf16.msra.mxu0 %v1908
        %1928 = vmatprep.subr.bf16.mxu0 0
        %1929 = vmatpush1.bf16.msra.mxu0 %v1909
        %1930 = vmatprep.subr.bf16.mxu0 0
        %1931 = vmatpush1.bf16.msra.mxu0 %v1910
        %1932 = vmatprep.subr.bf16.mxu0 0
        %1933 = vmatpush1.bf16.msra.mxu0 %v1911
        %1934 = vmatprep.subr.bf16.mxu0 0
        %1935 = vmatpush1.bf16.msra.mxu0 %v1912
        %1936 = vmatprep.subr.bf16.mxu0 0
        %1937 = vmatpush1.bf16.msra.mxu0 %v1913
        %1938 = vmatprep.subr.bf16.mxu0 0
        %1939 = vmatpush1.bf16.msra.mxu0 0
        %1940 = vmatprep.subr.bf16.mxu0 0
        %1941 = vmatpush1.bf16.msra.mxu0 0
        %1942 = vmatprep.subr.bf16.mxu0 0
        %1943 = vmatpush1.bf16.msra.mxu0 0
        %1944 = vmatprep.subr.bf16.mxu0 0
        %1945 = vmatpush1.bf16.msra.mxu0 0
        %1946 = vmatprep.subr.bf16.mxu0 0
        %1947 = vmatpush1.bf16.msra.mxu0 0
        %1948 = vmatprep.subr.bf16.mxu0 0
        %1949 = vmatpush1.bf16.msra.mxu0 0
        %1950 = vmatprep.subr.bf16.mxu0 0
        %1951 = vmatpush1.bf16.msra.mxu0 0
        %1952 = vmatprep.subr.bf16.mxu0 0
        %1953 = vmatpush1.bf16.msra.mxu0 0
        %1954 = vmatprep.mubr.bf16.mxu0 0
        %1955 = vmatmul.mubr.bf16.gmra.mrb[0].mxu0 %v1841
        %v1956 = vpop.f32.mrb[0].mxu0
        %v1957 = vadd.f32 0.0, %v1956
        %v1958 = vpop.f32.mrb[0].mxu0
        %v1959 = vpop.f32.mrb[0].mxu0
        %v1960 = vadd.f32 0.0, %v1959
        %v1961 = vpop.f32.mrb[0].mxu0
        %1962 = vmatprep.mubr.bf16.mxu0 0
        %1963 = vmatmul.mubr.bf16.gmra.mrb[0].mxu0 %v1849
        %v1964 = vpop.f32.mrb[0].mxu0
        %v1965 = vadd.f32 0.0, %v1964
        %v1966 = vpop.f32.mrb[0].mxu0
        %v1967 = vpop.f32.mrb[0].mxu0
        %v1968 = vadd.f32 0.0, %v1967
        %v1969 = vpop.f32.mrb[0].mxu0
        %1970 = vmatprep.mubr.bf16.mxu0 0
        %1971 = vmatmul.mubr.bf16.gmra.mrb[0].mxu0 %v1857
        %v1972 = vpop.f32.mrb[0].mxu0
        %v1973 = vadd.f32 0.0, %v1972
        %v1974 = vpop.f32.mrb[0].mxu0
        %v1975 = vpop.f32.mrb[0].mxu0
        %v1976 = vadd.f32 0.0, %v1975
        %v1977 = vpop.f32.mrb[0].mxu0
        %1978 = vmatprep.mubr.bf16.mxu0 0
        %1979 = vmatmul.mubr.bf16.gmra.mrb[0].mxu0 %v1865
        %v1980 = vpop.f32.mrb[0].mxu0
        %v1981 = vadd.f32 0.0, %v1980
        %v1982 = vpop.f32.mrb[0].mxu0
        %v1983 = vpop.f32.mrb[0].mxu0
        %v1984 = vadd.f32 0.0, %v1983
        %v1985 = vpop.f32.mrb[0].mxu0
        %1986 = vmatprep.mubr.bf16.mxu0 0
        %1987 = vmatmul.mubr.bf16.gmra.mrb[0].mxu0 %v1868
        %v1988 = vpop.f32.mrb[0].mxu0
        %v1989 = vadd.f32 0.0, %v1988
        %v1990 = vpop.f32.mrb[0].mxu0
        %v1991 = vpop.f32.mrb[0].mxu0
        %v1992 = vpop.f32.mrb[0].mxu0
        %1993 = vdwg.mxu0
        %v1994 = vadd.f32 %v1769, %v1957
        %v1995 = vadd.f32 %v1770, %v1960
        %v1996 = vadd.f32 %v1771, %v1965
        %v1997 = vadd.f32 %v1772, %v1968
        %v1998 = vadd.f32 %v1773, %v1973
        %v1999 = vadd.f32 %v1774, %v1976
        %v2000 = vadd.f32 %v1775, %v1981
        %v2001 = vadd.f32 %v1776, %v1984
        %v2002 = vadd.f32 %v1777, %v1989
        %v2003 = vld [vmem:[%s359 + $0x4] sm:$0xf]
        %v2004 = vld [vmem:[%s359 + $0x8] sm:$0xf]
        %v2005 = vld [vmem:[%s359 + $0xc] sm:$0xf]
        %v2006 = vld [vmem:[%s359 + $0x10] sm:$0xf]
        %v2007 = vld [vmem:[%s359 + $0x14] sm:$0xf]
        %v2008 = vld [vmem:[%s359 + $0x18] sm:$0xf]
        %v2009 = vld [vmem:[%s359 + $0x1c] sm:$0xf]
        %v2010 = vld [vmem:[%s359 + $0x20] sm:$0xf]
        %v2011 = vld [vmem:[%s359 + $0x24] sm:$0xf]
        %v2012 = vld [vmem:[%s359 + $0x28] sm:$0x1]
        %s2013 = scalar_lea.vmem %s1, 512
        %v2014 = vld [vmem:[%s2013] sm:$0xf]
        %v2015 = vld [vmem:[%s2013 + $0x4] sm:$0xf]
        %v2016 = vld [vmem:[%s2013 + $0x8] sm:$0xf]
        %v2017 = vld [vmem:[%s2013 + $0xc] sm:$0xf]
        %v2018 = vld [vmem:[%s2013 + $0x10] sm:$0xf]
        %v2019 = vld [vmem:[%s2013 + $0x14] sm:$0xf]
        %v2020 = vld [vmem:[%s2013 + $0x18] sm:$0xf]
        %v2021 = vld [vmem:[%s2013 + $0x1c] sm:$0xf]
        %v2022 = vld [vmem:[%s2013 + $0x20] sm:$0xf]
        %v2023 = vld [vmem:[%s2013 + $0x24] sm:$0xf]
        %v2024 = vld [vmem:[%s2013 + $0x28] sm:$0xf]
        %v2025 = vld [vmem:[%s2013 + $0x2c] sm:$0xf]
        %v2026 = vld [vmem:[%s2013 + $0x30] sm:$0xf]
        %v2027 = vld [vmem:[%s2013 + $0x34] sm:$0xf]
        %v2028 = vld [vmem:[%s2013 + $0x38] sm:$0xf]
        %v2029 = vld [vmem:[%s2013 + $0x3c] sm:$0xf]
        %v2040 = vunpack.c.l.b16 %v2003
        %v2041 = vunpack.c.l.b16 %v2004
        %v2042 = vunpack.c.l.b16 %v2005
        %v2043 = vunpack.c.l.b16 %v2006
        %v2044 = vunpack.c.l.b16 %v2007
        %v2045 = vunpack.c.l.b16 %v2008
        %v2046 = vunpack.c.l.b16 %v2009
        %v2047 = vunpack.c.l.b16 %v2010
        %v2048 = vunpack.c.l.b16 %v2011
        %v2049 = vunpack.c.l.b16 %v2012
        %v2050 = vpack.c.b16 %v2041, %v2040
        %v2051 = vpack.c.b16 %v2043, %v2042
        %v2052 = vpack.c.b16 %v2045, %v2044
        %v2053 = vpack.c.b16 %v2047, %v2046
        %v2054 = vpack.c.b16 %v2049, %v2048
        %v2056 = vshrl.u32 %v2050, 16
        %v2058 = vshll.u32 %v2050, 16
        %v2060 = vrot.slane %v2058, 1
        %v2061 = vor.u32 %v2056, %v2060
        %v2063 = vshll.u32 %v2051, 16
        %v2065 = vrot.slane %v2063, 1
        %v2066 = vsel %vm786, %v2061, %v2065
        %v2067 = vshrl.u32 %v2051, 16
        %v2069 = vor.u32 %v2067, %v2065
        %v2071 = vshll.u32 %v2052, 16
        %v2073 = vrot.slane %v2071, 1
        %v2074 = vsel %vm786, %v2069, %v2073
        %v2075 = vshrl.u32 %v2052, 16
        %v2077 = vor.u32 %v2075, %v2073
        %v2079 = vshll.u32 %v2053, 16
        %v2081 = vrot.slane %v2079, 1
        %v2082 = vsel %vm786, %v2077, %v2081
        %v2083 = vshrl.u32 %v2053, 16
        %v2085 = vor.u32 %v2083, %v2081
        %v2087 = vshll.u32 %v2054, 16
        %v2089 = vrot.slane %v2087, 1
        %v2090 = vsel %vm786, %v2085, %v2089
        %v2091 = vshrl.u32 %v2054, 16
        %v2093 = vor.u32 %v2091, %v2089
        %v2115 = vunpack.c.l.b16 %v2014
        %v2116 = vunpack.c.l.b16 %v2015
        %v2117 = vunpack.c.l.b16 %v2016
        %v2118 = vunpack.c.l.b16 %v2017
        %v2119 = vunpack.c.l.b16 %v2018
        %v2120 = vunpack.c.l.b16 %v2019
        %v2121 = vunpack.c.l.b16 %v2020
        %v2122 = vunpack.c.l.b16 %v2021
        %v2123 = vunpack.c.l.b16 %v2022
        %v2124 = vunpack.c.l.b16 %v2023
        %v2125 = vunpack.c.l.b16 %v2024
        %v2126 = vunpack.c.l.b16 %v2025
        %v2127 = vunpack.c.l.b16 %v2026
        %v2128 = vunpack.c.l.b16 %v2027
        %v2129 = vunpack.c.l.b16 %v2028
        %v2130 = vunpack.c.l.b16 %v2029
        %v2131 = vpack.c.b16 %v2116, %v2115
        %v2132 = vpack.c.b16 %v2118, %v2117
        %v2133 = vpack.c.b16 %v2120, %v2119
        %v2134 = vpack.c.b16 %v2122, %v2121
        %v2135 = vpack.c.b16 %v2124, %v2123
        %v2136 = vpack.c.b16 %v2126, %v2125
        %v2137 = vpack.c.b16 %v2128, %v2127
        %v2138 = vpack.c.b16 %v2130, %v2129
        %2147 = vmatprep.subr.bf16.mxu0 0
        %2148 = vmatpush1.bf16.msra.mxu0 %v2131
        %2149 = vmatprep.subr.bf16.mxu0 0
        %2150 = vmatpush1.bf16.msra.mxu0 %v2132
        %2151 = vmatprep.subr.bf16.mxu0 0
        %2152 = vmatpush1.bf16.msra.mxu0 %v2133
        %2153 = vmatprep.subr.bf16.mxu0 0
        %2154 = vmatpush1.bf16.msra.mxu0 %v2134
        %2155 = vmatprep.subr.bf16.mxu0 0
        %2156 = vmatpush1.bf16.msra.mxu0 %v2135
        %2157 = vmatprep.subr.bf16.mxu0 0
        %2158 = vmatpush1.bf16.msra.mxu0 %v2136
        %2159 = vmatprep.subr.bf16.mxu0 0
        %2160 = vmatpush1.bf16.msra.mxu0 %v2137
        %2161 = vmatprep.subr.bf16.mxu0 0
        %2162 = vmatpush1.bf16.msra.mxu0 %v2138
        %2163 = vmatprep.subr.bf16.mxu0 0
        %2164 = vmatpush1.bf16.msra.mxu0 0
        %2165 = vmatprep.subr.bf16.mxu0 0
        %2166 = vmatpush1.bf16.msra.mxu0 0
        %2167 = vmatprep.subr.bf16.mxu0 0
        %2168 = vmatpush1.bf16.msra.mxu0 0
        %2169 = vmatprep.subr.bf16.mxu0 0
        %2170 = vmatpush1.bf16.msra.mxu0 0
        %2171 = vmatprep.subr.bf16.mxu0 0
        %2172 = vmatpush1.bf16.msra.mxu0 0
        %2173 = vmatprep.subr.bf16.mxu0 0
        %2174 = vmatpush1.bf16.msra.mxu0 0
        %2175 = vmatprep.subr.bf16.mxu0 0
        %2176 = vmatpush1.bf16.msra.mxu0 0
        %2177 = vmatprep.subr.bf16.mxu0 0
        %2178 = vmatpush1.bf16.msra.mxu0 0
        %2179 = vmatprep.mubr.bf16.mxu0 0
        %2180 = vmatmul.mubr.bf16.gmra.mrb[0].mxu0 %v2066
        %v2181 = vpop.f32.mrb[0].mxu0
        %v2182 = vadd.f32 0.0, %v2181
        %v2183 = vpop.f32.mrb[0].mxu0
        %v2184 = vpop.f32.mrb[0].mxu0
        %v2185 = vadd.f32 0.0, %v2184
        %v2186 = vpop.f32.mrb[0].mxu0
        %2187 = vmatprep.mubr.bf16.mxu0 0
        %2188 = vmatmul.mubr.bf16.gmra.mrb[0].mxu0 %v2074
        %v2189 = vpop.f32.mrb[0].mxu0
        %v2190 = vadd.f32 0.0, %v2189
        %v2191 = vpop.f32.mrb[0].mxu0
        %v2192 = vpop.f32.mrb[0].mxu0
        %v2193 = vadd.f32 0.0, %v2192
        %v2194 = vpop.f32.mrb[0].mxu0
        %2195 = vmatprep.mubr.bf16.mxu0 0
        %2196 = vmatmul.mubr.bf16.gmra.mrb[0].mxu0 %v2082
        %v2197 = vpop.f32.mrb[0].mxu0
        %v2198 = vadd.f32 0.0, %v2197
        %v2199 = vpop.f32.mrb[0].mxu0
        %v2200 = vpop.f32.mrb[0].mxu0
        %v2201 = vadd.f32 0.0, %v2200
        %v2202 = vpop.f32.mrb[0].mxu0
        %2203 = vmatprep.mubr.bf16.mxu0 0
        %2204 = vmatmul.mubr.bf16.gmra.mrb[0].mxu0 %v2090
        %v2205 = vpop.f32.mrb[0].mxu0
        %v2206 = vadd.f32 0.0, %v2205
        %v2207 = vpop.f32.mrb[0].mxu0
        %v2208 = vpop.f32.mrb[0].mxu0
        %v2209 = vadd.f32 0.0, %v2208
        %v2210 = vpop.f32.mrb[0].mxu0
        %2211 = vmatprep.mubr.bf16.mxu0 0
        %2212 = vmatmul.mubr.bf16.gmra.mrb[0].mxu0 %v2093
        %v2213 = vpop.f32.mrb[0].mxu0
        %v2214 = vadd.f32 0.0, %v2213
        %v2215 = vpop.f32.mrb[0].mxu0
        %v2216 = vpop.f32.mrb[0].mxu0
        %v2217 = vpop.f32.mrb[0].mxu0
        %2218 = vdwg.mxu0
        %v2219 = vadd.f32 %v1994, %v2182
        %v2220 = vadd.f32 %v1995, %v2185
        %v2221 = vadd.f32 %v1996, %v2190
        %v2222 = vadd.f32 %v1997, %v2193
        %v2223 = vadd.f32 %v1998, %v2198
        %v2224 = vadd.f32 %v1999, %v2201
        %v2225 = vadd.f32 %v2000, %v2206
        %v2226 = vadd.f32 %v2001, %v2209
        %v2227 = vadd.f32 %v2002, %v2214
        %v2228 = vld [vmem:[%s411 + $0x4] sm:$0xf]
        %v2229 = vld [vmem:[%s411 + $0x8] sm:$0xf]
        %v2230 = vld [vmem:[%s411 + $0xc] sm:$0xf]
        %v2231 = vld [vmem:[%s411 + $0x10] sm:$0xf]
        %v2232 = vld [vmem:[%s411 + $0x14] sm:$0xf]
        %v2233 = vld [vmem:[%s411 + $0x18] sm:$0xf]
        %v2234 = vld [vmem:[%s411 + $0x1c] sm:$0xf]
        %v2235 = vld [vmem:[%s411 + $0x20] sm:$0xf]
        %v2236 = vld [vmem:[%s411 + $0x24] sm:$0xf]
        %v2237 = vld [vmem:[%s411 + $0x28] sm:$0x1]
        %s2238 = scalar_lea.vmem %s1, 576
        %v2239 = vld [vmem:[%s2238] sm:$0xf]
        %v2240 = vld [vmem:[%s2238 + $0x4] sm:$0xf]
        %v2241 = vld [vmem:[%s2238 + $0x8] sm:$0xf]
        %v2242 = vld [vmem:[%s2238 + $0xc] sm:$0xf]
        %v2243 = vld [vmem:[%s2238 + $0x10] sm:$0xf]
        %v2244 = vld [vmem:[%s2238 + $0x14] sm:$0xf]
        %v2245 = vld [vmem:[%s2238 + $0x18] sm:$0xf]
        %v2246 = vld [vmem:[%s2238 + $0x1c] sm:$0xf]
        %v2247 = vld [vmem:[%s2238 + $0x20] sm:$0xf]
        %v2248 = vld [vmem:[%s2238 + $0x24] sm:$0xf]
        %v2249 = vld [vmem:[%s2238 + $0x28] sm:$0xf]
        %v2250 = vld [vmem:[%s2238 + $0x2c] sm:$0xf]
        %v2251 = vld [vmem:[%s2238 + $0x30] sm:$0xf]
        %v2252 = vld [vmem:[%s2238 + $0x34] sm:$0xf]
        %v2253 = vld [vmem:[%s2238 + $0x38] sm:$0xf]
        %v2254 = vld [vmem:[%s2238 + $0x3c] sm:$0xf]
        %v2265 = vunpack.c.l.b16 %v2228
        %v2266 = vunpack.c.l.b16 %v2229
        %v2267 = vunpack.c.l.b16 %v2230
        %v2268 = vunpack.c.l.b16 %v2231
        %v2269 = vunpack.c.l.b16 %v2232
        %v2270 = vunpack.c.l.b16 %v2233
        %v2271 = vunpack.c.l.b16 %v2234
        %v2272 = vunpack.c.l.b16 %v2235
        %v2273 = vunpack.c.l.b16 %v2236
        %v2274 = vunpack.c.l.b16 %v2237
        %v2275 = vpack.c.b16 %v2266, %v2265
        %v2276 = vpack.c.b16 %v2268, %v2267
        %v2277 = vpack.c.b16 %v2270, %v2269
        %v2278 = vpack.c.b16 %v2272, %v2271
        %v2279 = vpack.c.b16 %v2274, %v2273
        %v2281 = vshrl.u32 %v2275, 16
        %v2283 = vshll.u32 %v2275, 16
        %v2285 = vrot.slane %v2283, 1
        %v2286 = vor.u32 %v2281, %v2285
        %v2288 = vshll.u32 %v2276, 16
        %v2290 = vrot.slane %v2288, 1
        %v2291 = vsel %vm786, %v2286, %v2290
        %v2292 = vshrl.u32 %v2276, 16
        %v2294 = vor.u32 %v2292, %v2290
        %v2296 = vshll.u32 %v2277, 16
        %v2298 = vrot.slane %v2296, 1
        %v2299 = vsel %vm786, %v2294, %v2298
        %v2300 = vshrl.u32 %v2277, 16
        %v2302 = vor.u32 %v2300, %v2298
        %v2304 = vshll.u32 %v2278, 16
        %v2306 = vrot.slane %v2304, 1
        %v2307 = vsel %vm786, %v2302, %v2306
        %v2308 = vshrl.u32 %v2278, 16
        %v2310 = vor.u32 %v2308, %v2306
        %v2312 = vshll.u32 %v2279, 16
        %v2314 = vrot.slane %v2312, 1
        %v2315 = vsel %vm786, %v2310, %v2314
        %v2316 = vshrl.u32 %v2279, 16
        %v2318 = vor.u32 %v2316, %v2314
        %v2340 = vunpack.c.l.b16 %v2239
        %v2341 = vunpack.c.l.b16 %v2240
        %v2342 = vunpack.c.l.b16 %v2241
        %v2343 = vunpack.c.l.b16 %v2242
        %v2344 = vunpack.c.l.b16 %v2243
        %v2345 = vunpack.c.l.b16 %v2244
        %v2346 = vunpack.c.l.b16 %v2245
        %v2347 = vunpack.c.l.b16 %v2246
        %v2348 = vunpack.c.l.b16 %v2247
        %v2349 = vunpack.c.l.b16 %v2248
        %v2350 = vunpack.c.l.b16 %v2249
        %v2351 = vunpack.c.l.b16 %v2250
        %v2352 = vunpack.c.l.b16 %v2251
        %v2353 = vunpack.c.l.b16 %v2252
        %v2354 = vunpack.c.l.b16 %v2253
        %v2355 = vunpack.c.l.b16 %v2254
        %v2356 = vpack.c.b16 %v2341, %v2340
        %v2357 = vpack.c.b16 %v2343, %v2342
        %v2358 = vpack.c.b16 %v2345, %v2344
        %v2359 = vpack.c.b16 %v2347, %v2346
        %v2360 = vpack.c.b16 %v2349, %v2348
        %v2361 = vpack.c.b16 %v2351, %v2350
        %v2362 = vpack.c.b16 %v2353, %v2352
        %v2363 = vpack.c.b16 %v2355, %v2354
        %2372 = vmatprep.subr.bf16.mxu0 0
        %2373 = vmatpush1.bf16.msra.mxu0 %v2356
        %2374 = vmatprep.subr.bf16.mxu0 0
        %2375 = vmatpush1.bf16.msra.mxu0 %v2357
        %2376 = vmatprep.subr.bf16.mxu0 0
        %2377 = vmatpush1.bf16.msra.mxu0 %v2358
        %2378 = vmatprep.subr.bf16.mxu0 0
        %2379 = vmatpush1.bf16.msra.mxu0 %v2359
        %2380 = vmatprep.subr.bf16.mxu0 0
        %2381 = vmatpush1.bf16.msra.mxu0 %v2360
        %2382 = vmatprep.subr.bf16.mxu0 0
        %2383 = vmatpush1.bf16.msra.mxu0 %v2361
        %2384 = vmatprep.subr.bf16.mxu0 0
        %2385 = vmatpush1.bf16.msra.mxu0 %v2362
        %2386 = vmatprep.subr.bf16.mxu0 0
        %2387 = vmatpush1.bf16.msra.mxu0 %v2363
        %2388 = vmatprep.subr.bf16.mxu0 0
        %2389 = vmatpush1.bf16.msra.mxu0 0
        %2390 = vmatprep.subr.bf16.mxu0 0
        %2391 = vmatpush1.bf16.msra.mxu0 0
        %2392 = vmatprep.subr.bf16.mxu0 0
        %2393 = vmatpush1.bf16.msra.mxu0 0
        %2394 = vmatprep.subr.bf16.mxu0 0
        %2395 = vmatpush1.bf16.msra.mxu0 0
        %2396 = vmatprep.subr.bf16.mxu0 0
        %2397 = vmatpush1.bf16.msra.mxu0 0
        %2398 = vmatprep.subr.bf16.mxu0 0
        %2399 = vmatpush1.bf16.msra.mxu0 0
        %2400 = vmatprep.subr.bf16.mxu0 0
        %2401 = vmatpush1.bf16.msra.mxu0 0
        %2402 = vmatprep.subr.bf16.mxu0 0
        %2403 = vmatpush1.bf16.msra.mxu0 0
        %2404 = vmatprep.mubr.bf16.mxu0 0
        %2405 = vmatmul.mubr.bf16.gmra.mrb[0].mxu0 %v2291
        %v2406 = vpop.f32.mrb[0].mxu0
        %v2407 = vadd.f32 0.0, %v2406
        %v2408 = vpop.f32.mrb[0].mxu0
        %v2409 = vpop.f32.mrb[0].mxu0
        %v2410 = vadd.f32 0.0, %v2409
        %v2411 = vpop.f32.mrb[0].mxu0
        %2412 = vmatprep.mubr.bf16.mxu0 0
        %2413 = vmatmul.mubr.bf16.gmra.mrb[0].mxu0 %v2299
        %v2414 = vpop.f32.mrb[0].mxu0
        %v2415 = vadd.f32 0.0, %v2414
        %v2416 = vpop.f32.mrb[0].mxu0
        %v2417 = vpop.f32.mrb[0].mxu0
        %v2418 = vadd.f32 0.0, %v2417
        %v2419 = vpop.f32.mrb[0].mxu0
        %2420 = vmatprep.mubr.bf16.mxu0 0
        %2421 = vmatmul.mubr.bf16.gmra.mrb[0].mxu0 %v2307
        %v2422 = vpop.f32.mrb[0].mxu0
        %v2423 = vadd.f32 0.0, %v2422
        %v2424 = vpop.f32.mrb[0].mxu0
        %v2425 = vpop.f32.mrb[0].mxu0
        %v2426 = vadd.f32 0.0, %v2425
        %v2427 = vpop.f32.mrb[0].mxu0
        %2428 = vmatprep.mubr.bf16.mxu0 0
        %2429 = vmatmul.mubr.bf16.gmra.mrb[0].mxu0 %v2315
        %v2430 = vpop.f32.mrb[0].mxu0
        %v2431 = vadd.f32 0.0, %v2430
        %v2432 = vpop.f32.mrb[0].mxu0
        %v2433 = vpop.f32.mrb[0].mxu0
        %v2434 = vadd.f32 0.0, %v2433
        %v2435 = vpop.f32.mrb[0].mxu0
        %2436 = vmatprep.mubr.bf16.mxu0 0
        %2437 = vmatmul.mubr.bf16.gmra.mrb[0].mxu0 %v2318
        %v2438 = vpop.f32.mrb[0].mxu0
        %v2439 = vadd.f32 0.0, %v2438
        %v2440 = vpop.f32.mrb[0].mxu0
        %v2441 = vpop.f32.mrb[0].mxu0
        %v2442 = vpop.f32.mrb[0].mxu0
        %2443 = vdwg.mxu0
        %v2444 = vadd.f32 %v2219, %v2407
        %v2445 = vadd.f32 %v2220, %v2410
        %v2446 = vadd.f32 %v2221, %v2415
        %v2447 = vadd.f32 %v2222, %v2418
        %v2448 = vadd.f32 %v2223, %v2423
        %v2449 = vadd.f32 %v2224, %v2426
        %v2450 = vadd.f32 %v2225, %v2431
        %v2451 = vadd.f32 %v2226, %v2434
        %v2452 = vadd.f32 %v2227, %v2439
        %v2453 = vld [vmem:[%s359 + $0x4] sm:$0xe]
        %s2454 = scalar_lea.vmem %s1, 640
        %v2455 = vld [vmem:[%s2454] sm:$0xf]
        %v2456 = vld [vmem:[%s2454 + $0x4] sm:$0xf]
        %v2457 = vld [vmem:[%s2454 + $0x8] sm:$0xf]
        %v2458 = vld [vmem:[%s2454 + $0xc] sm:$0xf]
        %v2459 = vld [vmem:[%s2454 + $0x10] sm:$0xf]
        %v2460 = vld [vmem:[%s2454 + $0x14] sm:$0xf]
        %v2461 = vld [vmem:[%s2454 + $0x18] sm:$0xf]
        %v2462 = vld [vmem:[%s2454 + $0x1c] sm:$0xf]
        %v2463 = vld [vmem:[%s2454 + $0x20] sm:$0xf]
        %v2464 = vld [vmem:[%s2454 + $0x24] sm:$0xf]
        %v2465 = vld [vmem:[%s2454 + $0x28] sm:$0xf]
        %v2466 = vld [vmem:[%s2454 + $0x2c] sm:$0xf]
        %v2467 = vld [vmem:[%s2454 + $0x30] sm:$0xf]
        %v2468 = vld [vmem:[%s2454 + $0x34] sm:$0xf]
        %v2469 = vld [vmem:[%s2454 + $0x38] sm:$0xf]
        %v2470 = vld [vmem:[%s2454 + $0x3c] sm:$0xf]
        %v2472 = vunpack.c.l.b16 %v2453
        %v2473 = vpack.c.b16 %v2041, %v2472
        %vm2474 = vcmask 1046528
        %v2475 = vrot.slane %v2473, 1
        %v2476 = vrot.slane %v2051, 1
        %v2477 = vsel %vm2474, %v2475, %v2476
        %v2478 = vrot.slane %v2052, 1
        %v2479 = vsel %vm2474, %v2476, %v2478
        %v2480 = vrot.slane %v2053, 1
        %v2481 = vsel %vm2474, %v2478, %v2480
        %v2482 = vrot.slane %v2054, 1
        %v2483 = vsel %vm2474, %v2480, %v2482
        %v2505 = vunpack.c.l.b16 %v2455
        %v2506 = vunpack.c.l.b16 %v2456
        %v2507 = vunpack.c.l.b16 %v2457
        %v2508 = vunpack.c.l.b16 %v2458
        %v2509 = vunpack.c.l.b16 %v2459
        %v2510 = vunpack.c.l.b16 %v2460
        %v2511 = vunpack.c.l.b16 %v2461
        %v2512 = vunpack.c.l.b16 %v2462
        %v2513 = vunpack.c.l.b16 %v2463
        %v2514 = vunpack.c.l.b16 %v2464
        %v2515 = vunpack.c.l.b16 %v2465
        %v2516 = vunpack.c.l.b16 %v2466
        %v2517 = vunpack.c.l.b16 %v2467
        %v2518 = vunpack.c.l.b16 %v2468
        %v2519 = vunpack.c.l.b16 %v2469
        %v2520 = vunpack.c.l.b16 %v2470
        %v2521 = vpack.c.b16 %v2506, %v2505
        %v2522 = vpack.c.b16 %v2508, %v2507
        %v2523 = vpack.c.b16 %v2510, %v2509
        %v2524 = vpack.c.b16 %v2512, %v2511
        %v2525 = vpack.c.b16 %v2514, %v2513
        %v2526 = vpack.c.b16 %v2516, %v2515
        %v2527 = vpack.c.b16 %v2518, %v2517
        %v2528 = vpack.c.b16 %v2520, %v2519
        %2537 = vmatprep.subr.bf16.mxu0 0
        %2538 = vmatpush1.bf16.msra.mxu0 %v2521
        %2539 = vmatprep.subr.bf16.mxu0 0
        %2540 = vmatpush1.bf16.msra.mxu0 %v2522
        %2541 = vmatprep.subr.bf16.mxu0 0
        %2542 = vmatpush1.bf16.msra.mxu0 %v2523
        %2543 = vmatprep.subr.bf16.mxu0 0
        %2544 = vmatpush1.bf16.msra.mxu0 %v2524
        %2545 = vmatprep.subr.bf16.mxu0 0
        %2546 = vmatpush1.bf16.msra.mxu0 %v2525
        %2547 = vmatprep.subr.bf16.mxu0 0
        %2548 = vmatpush1.bf16.msra.mxu0 %v2526
        %2549 = vmatprep.subr.bf16.mxu0 0
        %2550 = vmatpush1.bf16.msra.mxu0 %v2527
        %2551 = vmatprep.subr.bf16.mxu0 0
        %2552 = vmatpush1.bf16.msra.mxu0 %v2528
        %2553 = vmatprep.subr.bf16.mxu0 0
        %2554 = vmatpush1.bf16.msra.mxu0 0
        %2555 = vmatprep.subr.bf16.mxu0 0
        %2556 = vmatpush1.bf16.msra.mxu0 0
        %2557 = vmatprep.subr.bf16.mxu0 0
        %2558 = vmatpush1.bf16.msra.mxu0 0
        %2559 = vmatprep.subr.bf16.mxu0 0
        %2560 = vmatpush1.bf16.msra.mxu0 0
        %2561 = vmatprep.subr.bf16.mxu0 0
        %2562 = vmatpush1.bf16.msra.mxu0 0
        %2563 = vmatprep.subr.bf16.mxu0 0
        %2564 = vmatpush1.bf16.msra.mxu0 0
        %2565 = vmatprep.subr.bf16.mxu0 0
        %2566 = vmatpush1.bf16.msra.mxu0 0
        %2567 = vmatprep.subr.bf16.mxu0 0
        %2568 = vmatpush1.bf16.msra.mxu0 0
        %2569 = vmatprep.mubr.bf16.mxu0 0
        %2570 = vmatmul.mubr.bf16.gmra.mrb[0].mxu0 %v2477
        %v2571 = vpop.f32.mrb[0].mxu0
        %v2572 = vadd.f32 0.0, %v2571
        %v2573 = vpop.f32.mrb[0].mxu0
        %v2574 = vpop.f32.mrb[0].mxu0
        %v2575 = vadd.f32 0.0, %v2574
        %v2576 = vpop.f32.mrb[0].mxu0
        %2577 = vmatprep.mubr.bf16.mxu0 0
        %2578 = vmatmul.mubr.bf16.gmra.mrb[0].mxu0 %v2479
        %v2579 = vpop.f32.mrb[0].mxu0
        %v2580 = vadd.f32 0.0, %v2579
        %v2581 = vpop.f32.mrb[0].mxu0
        %v2582 = vpop.f32.mrb[0].mxu0
        %v2583 = vadd.f32 0.0, %v2582
        %v2584 = vpop.f32.mrb[0].mxu0
        %2585 = vmatprep.mubr.bf16.mxu0 0
        %2586 = vmatmul.mubr.bf16.gmra.mrb[0].mxu0 %v2481
        %v2587 = vpop.f32.mrb[0].mxu0
        %v2588 = vadd.f32 0.0, %v2587
        %v2589 = vpop.f32.mrb[0].mxu0
        %v2590 = vpop.f32.mrb[0].mxu0
        %v2591 = vadd.f32 0.0, %v2590
        %v2592 = vpop.f32.mrb[0].mxu0
        %2593 = vmatprep.mubr.bf16.mxu0 0
        %2594 = vmatmul.mubr.bf16.gmra.mrb[0].mxu0 %v2483
        %v2595 = vpop.f32.mrb[0].mxu0
        %v2596 = vadd.f32 0.0, %v2595
        %v2597 = vpop.f32.mrb[0].mxu0
        %v2598 = vpop.f32.mrb[0].mxu0
        %v2599 = vadd.f32 0.0, %v2598
        %v2600 = vpop.f32.mrb[0].mxu0
        %2601 = vmatprep.mubr.bf16.mxu0 0
        %2602 = vmatmul.mubr.bf16.gmra.mrb[0].mxu0 %v2482
        %v2603 = vpop.f32.mrb[0].mxu0
        %v2604 = vadd.f32 0.0, %v2603
        %v2605 = vpop.f32.mrb[0].mxu0
        %v2606 = vpop.f32.mrb[0].mxu0
        %v2607 = vpop.f32.mrb[0].mxu0
        %2608 = vdwg.mxu0
        %v2609 = vadd.f32 %v2444, %v2572
        %v2610 = vadd.f32 %v2445, %v2575
        %v2611 = vadd.f32 %v2446, %v2580
        %v2612 = vadd.f32 %v2447, %v2583
        %v2613 = vadd.f32 %v2448, %v2588
        %v2614 = vadd.f32 %v2449, %v2591
        %v2615 = vadd.f32 %v2450, %v2596
        %v2616 = vadd.f32 %v2451, %v2599
        %v2617 = vadd.f32 %v2452, %v2604
        %v2618 = vld [vmem:[%s411 + $0x4] sm:$0xe]
        %s2619 = scalar_lea.vmem %s1, 704
        %v2620 = vld [vmem:[%s2619] sm:$0xf]
        %v2621 = vld [vmem:[%s2619 + $0x4] sm:$0xf]
        %v2622 = vld [vmem:[%s2619 + $0x8] sm:$0xf]
        %v2623 = vld [vmem:[%s2619 + $0xc] sm:$0xf]
        %v2624 = vld [vmem:[%s2619 + $0x10] sm:$0xf]
        %v2625 = vld [vmem:[%s2619 + $0x14] sm:$0xf]
        %v2626 = vld [vmem:[%s2619 + $0x18] sm:$0xf]
        %v2627 = vld [vmem:[%s2619 + $0x1c] sm:$0xf]
        %v2628 = vld [vmem:[%s2619 + $0x20] sm:$0xf]
        %v2629 = vld [vmem:[%s2619 + $0x24] sm:$0xf]
        %v2630 = vld [vmem:[%s2619 + $0x28] sm:$0xf]
        %v2631 = vld [vmem:[%s2619 + $0x2c] sm:$0xf]
        %v2632 = vld [vmem:[%s2619 + $0x30] sm:$0xf]
        %v2633 = vld [vmem:[%s2619 + $0x34] sm:$0xf]
        %v2634 = vld [vmem:[%s2619 + $0x38] sm:$0xf]
        %v2635 = vld [vmem:[%s2619 + $0x3c] sm:$0xf]
        %v2637 = vunpack.c.l.b16 %v2618
        %v2638 = vpack.c.b16 %v2266, %v2637
        %v2639 = vrot.slane %v2638, 1
        %v2640 = vrot.slane %v2276, 1
        %v2641 = vsel %vm2474, %v2639, %v2640
        %v2642 = vrot.slane %v2277, 1
        %v2643 = vsel %vm2474, %v2640, %v2642
        %v2644 = vrot.slane %v2278, 1
        %v2645 = vsel %vm2474, %v2642, %v2644
        %v2646 = vrot.slane %v2279, 1
        %v2647 = vsel %vm2474, %v2644, %v2646
        %v2669 = vunpack.c.l.b16 %v2620
        %v2670 = vunpack.c.l.b16 %v2621
        %v2671 = vunpack.c.l.b16 %v2622
        %v2672 = vunpack.c.l.b16 %v2623
        %v2673 = vunpack.c.l.b16 %v2624
        %v2674 = vunpack.c.l.b16 %v2625
        %v2675 = vunpack.c.l.b16 %v2626
        %v2676 = vunpack.c.l.b16 %v2627
        %v2677 = vunpack.c.l.b16 %v2628
        %v2678 = vunpack.c.l.b16 %v2629
        %v2679 = vunpack.c.l.b16 %v2630
        %v2680 = vunpack.c.l.b16 %v2631
        %v2681 = vunpack.c.l.b16 %v2632
        %v2682 = vunpack.c.l.b16 %v2633
        %v2683 = vunpack.c.l.b16 %v2634
        %v2684 = vunpack.c.l.b16 %v2635
        %v2685 = vpack.c.b16 %v2670, %v2669
        %v2686 = vpack.c.b16 %v2672, %v2671
        %v2687 = vpack.c.b16 %v2674, %v2673
        %v2688 = vpack.c.b16 %v2676, %v2675
        %v2689 = vpack.c.b16 %v2678, %v2677
        %v2690 = vpack.c.b16 %v2680, %v2679
        %v2691 = vpack.c.b16 %v2682, %v2681
        %v2692 = vpack.c.b16 %v2684, %v2683
        %2701 = vmatprep.subr.bf16.mxu0 0
        %2702 = vmatpush1.bf16.msra.mxu0 %v2685
        %2703 = vmatprep.subr.bf16.mxu0 0
        %2704 = vmatpush1.bf16.msra.mxu0 %v2686
        %2705 = vmatprep.subr.bf16.mxu0 0
        %2706 = vmatpush1.bf16.msra.mxu0 %v2687
        %2707 = vmatprep.subr.bf16.mxu0 0
        %2708 = vmatpush1.bf16.msra.mxu0 %v2688
        %2709 = vmatprep.subr.bf16.mxu0 0
        %2710 = vmatpush1.bf16.msra.mxu0 %v2689
        %2711 = vmatprep.subr.bf16.mxu0 0
        %2712 = vmatpush1.bf16.msra.mxu0 %v2690
        %2713 = vmatprep.subr.bf16.mxu0 0
        %2714 = vmatpush1.bf16.msra.mxu0 %v2691
        %2715 = vmatprep.subr.bf16.mxu0 0
        %2716 = vmatpush1.bf16.msra.mxu0 %v2692
        %2717 = vmatprep.subr.bf16.mxu0 0
        %2718 = vmatpush1.bf16.msra.mxu0 0
        %2719 = vmatprep.subr.bf16.mxu0 0
        %2720 = vmatpush1.bf16.msra.mxu0 0
        %2721 = vmatprep.subr.bf16.mxu0 0
        %2722 = vmatpush1.bf16.msra.mxu0 0
        %2723 = vmatprep.subr.bf16.mxu0 0
        %2724 = vmatpush1.bf16.msra.mxu0 0
        %2725 = vmatprep.subr.bf16.mxu0 0
        %2726 = vmatpush1.bf16.msra.mxu0 0
        %2727 = vmatprep.subr.bf16.mxu0 0
        %2728 = vmatpush1.bf16.msra.mxu0 0
        %2729 = vmatprep.subr.bf16.mxu0 0
        %2730 = vmatpush1.bf16.msra.mxu0 0
        %2731 = vmatprep.subr.bf16.mxu0 0
        %2732 = vmatpush1.bf16.msra.mxu0 0
        %2733 = vmatprep.mubr.bf16.mxu0 0
        %2734 = vmatmul.mubr.bf16.gmra.mrb[0].mxu0 %v2641
        %v2735 = vpop.f32.mrb[0].mxu0
        %v2736 = vadd.f32 0.0, %v2735
        %v2737 = vpop.f32.mrb[0].mxu0
        %v2738 = vpop.f32.mrb[0].mxu0
        %v2739 = vadd.f32 0.0, %v2738
        %v2740 = vpop.f32.mrb[0].mxu0
        %2741 = vmatprep.mubr.bf16.mxu0 0
        %2742 = vmatmul.mubr.bf16.gmra.mrb[0].mxu0 %v2643
        %v2743 = vpop.f32.mrb[0].mxu0
        %v2744 = vadd.f32 0.0, %v2743
        %v2745 = vpop.f32.mrb[0].mxu0
        %v2746 = vpop.f32.mrb[0].mxu0
        %v2747 = vadd.f32 0.0, %v2746
        %v2748 = vpop.f32.mrb[0].mxu0
        %2749 = vmatprep.mubr.bf16.mxu0 0
        %2750 = vmatmul.mubr.bf16.gmra.mrb[0].mxu0 %v2645
        %v2751 = vpop.f32.mrb[0].mxu0
        %v2752 = vadd.f32 0.0, %v2751
        %v2753 = vpop.f32.mrb[0].mxu0
        %v2754 = vpop.f32.mrb[0].mxu0
        %v2755 = vadd.f32 0.0, %v2754
        %v2756 = vpop.f32.mrb[0].mxu0
        %2757 = vmatprep.mubr.bf16.mxu0 0
        %2758 = vmatmul.mubr.bf16.gmra.mrb[0].mxu0 %v2647
        %v2759 = vpop.f32.mrb[0].mxu0
        %v2760 = vadd.f32 0.0, %v2759
        %v2761 = vpop.f32.mrb[0].mxu0
        %v2762 = vpop.f32.mrb[0].mxu0
        %v2763 = vadd.f32 0.0, %v2762
        %v2764 = vpop.f32.mrb[0].mxu0
        %2765 = vmatprep.mubr.bf16.mxu0 0
        %2766 = vmatmul.mubr.bf16.gmra.mrb[0].mxu0 %v2646
        %v2767 = vpop.f32.mrb[0].mxu0
        %v2768 = vadd.f32 0.0, %v2767
        %v2769 = vpop.f32.mrb[0].mxu0
        %v2770 = vpop.f32.mrb[0].mxu0
        %v2771 = vpop.f32.mrb[0].mxu0
        %2772 = vdwg.mxu0
        %v2773 = vadd.f32 %v2609, %v2736
        %v2774 = vadd.f32 %v2610, %v2739
        %v2775 = vadd.f32 %v2611, %v2744
        %v2776 = vadd.f32 %v2612, %v2747
        %v2777 = vadd.f32 %v2613, %v2752
        %v2778 = vadd.f32 %v2614, %v2755
        %v2779 = vadd.f32 %v2615, %v2760
        %v2780 = vadd.f32 %v2616, %v2763
        %v2781 = vadd.f32 %v2617, %v2768
        %v2782 = vld [vmem:[%s1185 + $0x4] sm:$0xf]
        %v2783 = vld [vmem:[%s1185 + $0x8] sm:$0xf]
        %v2784 = vld [vmem:[%s1185 + $0xc] sm:$0xf]
        %v2785 = vld [vmem:[%s1185 + $0x10] sm:$0xf]
        %v2786 = vld [vmem:[%s1185 + $0x14] sm:$0xf]
        %v2787 = vld [vmem:[%s1185 + $0x18] sm:$0xf]
        %v2788 = vld [vmem:[%s1185 + $0x1c] sm:$0xf]
        %v2789 = vld [vmem:[%s1185 + $0x20] sm:$0xf]
        %v2790 = vld [vmem:[%s1185 + $0x24] sm:$0xf]
        %v2791 = vld [vmem:[%s1185 + $0x28] sm:$0x1]
        %s2792 = scalar_lea.vmem %s1, 768
        %v2793 = vld [vmem:[%s2792] sm:$0xf]
        %v2794 = vld [vmem:[%s2792 + $0x4] sm:$0xf]
        %v2795 = vld [vmem:[%s2792 + $0x8] sm:$0xf]
        %v2796 = vld [vmem:[%s2792 + $0xc] sm:$0xf]
        %v2797 = vld [vmem:[%s2792 + $0x10] sm:$0xf]
        %v2798 = vld [vmem:[%s2792 + $0x14] sm:$0xf]
        %v2799 = vld [vmem:[%s2792 + $0x18] sm:$0xf]
        %v2800 = vld [vmem:[%s2792 + $0x1c] sm:$0xf]
        %v2801 = vld [vmem:[%s2792 + $0x20] sm:$0xf]
        %v2802 = vld [vmem:[%s2792 + $0x24] sm:$0xf]
        %v2803 = vld [vmem:[%s2792 + $0x28] sm:$0xf]
        %v2804 = vld [vmem:[%s2792 + $0x2c] sm:$0xf]
        %v2805 = vld [vmem:[%s2792 + $0x30] sm:$0xf]
        %v2806 = vld [vmem:[%s2792 + $0x34] sm:$0xf]
        %v2807 = vld [vmem:[%s2792 + $0x38] sm:$0xf]
        %v2808 = vld [vmem:[%s2792 + $0x3c] sm:$0xf]
        %v2819 = vunpack.c.l.b16 %v2782
        %v2820 = vunpack.c.l.b16 %v2783
        %v2821 = vunpack.c.l.b16 %v2784
        %v2822 = vunpack.c.l.b16 %v2785
        %v2823 = vunpack.c.l.b16 %v2786
        %v2824 = vunpack.c.l.b16 %v2787
        %v2825 = vunpack.c.l.b16 %v2788
        %v2826 = vunpack.c.l.b16 %v2789
        %v2827 = vunpack.c.l.b16 %v2790
        %v2828 = vunpack.c.l.b16 %v2791
        %v2829 = vpack.c.b16 %v2820, %v2819
        %v2830 = vpack.c.b16 %v2822, %v2821
        %v2831 = vpack.c.b16 %v2824, %v2823
        %v2832 = vpack.c.b16 %v2826, %v2825
        %v2833 = vpack.c.b16 %v2828, %v2827
        %v2835 = vshrl.u32 %v2829, 16
        %v2837 = vshll.u32 %v2829, 16
        %v2839 = vrot.slane %v2837, 1
        %v2840 = vor.u32 %v2835, %v2839
        %v2842 = vshll.u32 %v2830, 16
        %v2844 = vrot.slane %v2842, 1
        %v2845 = vsel %vm786, %v2840, %v2844
        %v2846 = vshrl.u32 %v2830, 16
        %v2848 = vor.u32 %v2846, %v2844
        %v2850 = vshll.u32 %v2831, 16
        %v2852 = vrot.slane %v2850, 1
        %v2853 = vsel %vm786, %v2848, %v2852
        %v2854 = vshrl.u32 %v2831, 16
        %v2856 = vor.u32 %v2854, %v2852
        %v2858 = vshll.u32 %v2832, 16
        %v2860 = vrot.slane %v2858, 1
        %v2861 = vsel %vm786, %v2856, %v2860
        %v2862 = vshrl.u32 %v2832, 16
        %v2864 = vor.u32 %v2862, %v2860
        %v2866 = vshll.u32 %v2833, 16
        %v2868 = vrot.slane %v2866, 1
        %v2869 = vsel %vm786, %v2864, %v2868
        %v2870 = vshrl.u32 %v2833, 16
        %v2872 = vor.u32 %v2870, %v2868
        %v2894 = vunpack.c.l.b16 %v2793
        %v2895 = vunpack.c.l.b16 %v2794
        %v2896 = vunpack.c.l.b16 %v2795
        %v2897 = vunpack.c.l.b16 %v2796
        %v2898 = vunpack.c.l.b16 %v2797
        %v2899 = vunpack.c.l.b16 %v2798
        %v2900 = vunpack.c.l.b16 %v2799
        %v2901 = vunpack.c.l.b16 %v2800
        %v2902 = vunpack.c.l.b16 %v2801
        %v2903 = vunpack.c.l.b16 %v2802
        %v2904 = vunpack.c.l.b16 %v2803
        %v2905 = vunpack.c.l.b16 %v2804
        %v2906 = vunpack.c.l.b16 %v2805
        %v2907 = vunpack.c.l.b16 %v2806
        %v2908 = vunpack.c.l.b16 %v2807
        %v2909 = vunpack.c.l.b16 %v2808
        %v2910 = vpack.c.b16 %v2895, %v2894
        %v2911 = vpack.c.b16 %v2897, %v2896
        %v2912 = vpack.c.b16 %v2899, %v2898
        %v2913 = vpack.c.b16 %v2901, %v2900
        %v2914 = vpack.c.b16 %v2903, %v2902
        %v2915 = vpack.c.b16 %v2905, %v2904
        %v2916 = vpack.c.b16 %v2907, %v2906
        %v2917 = vpack.c.b16 %v2909, %v2908
        %2926 = vmatprep.subr.bf16.mxu0 0
        %2927 = vmatpush1.bf16.msra.mxu0 %v2910
        %2928 = vmatprep.subr.bf16.mxu0 0
        %2929 = vmatpush1.bf16.msra.mxu0 %v2911
        %2930 = vmatprep.subr.bf16.mxu0 0
        %2931 = vmatpush1.bf16.msra.mxu0 %v2912
        %2932 = vmatprep.subr.bf16.mxu0 0
        %2933 = vmatpush1.bf16.msra.mxu0 %v2913
        %2934 = vmatprep.subr.bf16.mxu0 0
        %2935 = vmatpush1.bf16.msra.mxu0 %v2914
        %2936 = vmatprep.subr.bf16.mxu0 0
        %2937 = vmatpush1.bf16.msra.mxu0 %v2915
        %2938 = vmatprep.subr.bf16.mxu0 0
        %2939 = vmatpush1.bf16.msra.mxu0 %v2916
        %2940 = vmatprep.subr.bf16.mxu0 0
        %2941 = vmatpush1.bf16.msra.mxu0 %v2917
        %2942 = vmatprep.subr.bf16.mxu0 0
        %2943 = vmatpush1.bf16.msra.mxu0 0
        %2944 = vmatprep.subr.bf16.mxu0 0
        %2945 = vmatpush1.bf16.msra.mxu0 0
        %2946 = vmatprep.subr.bf16.mxu0 0
        %2947 = vmatpush1.bf16.msra.mxu0 0
        %2948 = vmatprep.subr.bf16.mxu0 0
        %2949 = vmatpush1.bf16.msra.mxu0 0
        %2950 = vmatprep.subr.bf16.mxu0 0
        %2951 = vmatpush1.bf16.msra.mxu0 0
        %2952 = vmatprep.subr.bf16.mxu0 0
        %2953 = vmatpush1.bf16.msra.mxu0 0
        %2954 = vmatprep.subr.bf16.mxu0 0
        %2955 = vmatpush1.bf16.msra.mxu0 0
        %2956 = vmatprep.subr.bf16.mxu0 0
        %2957 = vmatpush1.bf16.msra.mxu0 0
        %2958 = vmatprep.mubr.bf16.mxu0 0
        %2959 = vmatmul.mubr.bf16.gmra.mrb[0].mxu0 %v2845
        %v2960 = vpop.f32.mrb[0].mxu0
        %v2961 = vadd.f32 0.0, %v2960
        %v2962 = vpop.f32.mrb[0].mxu0
        %v2963 = vpop.f32.mrb[0].mxu0
        %v2964 = vadd.f32 0.0, %v2963
        %v2965 = vpop.f32.mrb[0].mxu0
        %2966 = vmatprep.mubr.bf16.mxu0 0
        %2967 = vmatmul.mubr.bf16.gmra.mrb[0].mxu0 %v2853
        %v2968 = vpop.f32.mrb[0].mxu0
        %v2969 = vadd.f32 0.0, %v2968
        %v2970 = vpop.f32.mrb[0].mxu0
        %v2971 = vpop.f32.mrb[0].mxu0
        %v2972 = vadd.f32 0.0, %v2971
        %v2973 = vpop.f32.mrb[0].mxu0
        %2974 = vmatprep.mubr.bf16.mxu0 0
        %2975 = vmatmul.mubr.bf16.gmra.mrb[0].mxu0 %v2861
        %v2976 = vpop.f32.mrb[0].mxu0
        %v2977 = vadd.f32 0.0, %v2976
        %v2978 = vpop.f32.mrb[0].mxu0
        %v2979 = vpop.f32.mrb[0].mxu0
        %v2980 = vadd.f32 0.0, %v2979
        %v2981 = vpop.f32.mrb[0].mxu0
        %2982 = vmatprep.mubr.bf16.mxu0 0
        %2983 = vmatmul.mubr.bf16.gmra.mrb[0].mxu0 %v2869
        %v2984 = vpop.f32.mrb[0].mxu0
        %v2985 = vadd.f32 0.0, %v2984
        %v2986 = vpop.f32.mrb[0].mxu0
        %v2987 = vpop.f32.mrb[0].mxu0
        %v2988 = vadd.f32 0.0, %v2987
        %v2989 = vpop.f32.mrb[0].mxu0
        %2990 = vmatprep.mubr.bf16.mxu0 0
        %2991 = vmatmul.mubr.bf16.gmra.mrb[0].mxu0 %v2872
        %v2992 = vpop.f32.mrb[0].mxu0
        %v2993 = vadd.f32 0.0, %v2992
        %v2994 = vpop.f32.mrb[0].mxu0
        %v2995 = vpop.f32.mrb[0].mxu0
        %v2996 = vpop.f32.mrb[0].mxu0
        %2997 = vdwg.mxu0
        %v2998 = vadd.f32 %v2773, %v2961
        %v2999 = vadd.f32 %v2774, %v2964
        %v3000 = vadd.f32 %v2775, %v2969
        %v3001 = vadd.f32 %v2776, %v2972
        %v3002 = vadd.f32 %v2777, %v2977
        %v3003 = vadd.f32 %v2778, %v2980
        %v3004 = vadd.f32 %v2779, %v2985
        %v3005 = vadd.f32 %v2780, %v2988
        %v3006 = vadd.f32 %v2781, %v2993
        %v3007 = vld [vmem:[%s1369 + $0x4] sm:$0xf]
        %v3008 = vld [vmem:[%s1369 + $0x8] sm:$0xf]
        %v3009 = vld [vmem:[%s1369 + $0xc] sm:$0xf]
        %v3010 = vld [vmem:[%s1369 + $0x10] sm:$0xf]
        %v3011 = vld [vmem:[%s1369 + $0x14] sm:$0xf]
        %v3012 = vld [vmem:[%s1369 + $0x18] sm:$0xf]
        %v3013 = vld [vmem:[%s1369 + $0x1c] sm:$0xf]
        %v3014 = vld [vmem:[%s1369 + $0x20] sm:$0xf]
        %v3015 = vld [vmem:[%s1369 + $0x24] sm:$0xf]
        %v3016 = vld [vmem:[%s1369 + $0x28] sm:$0x1]
        %s3017 = scalar_lea.vmem %s1, 832
        %v3018 = vld [vmem:[%s3017] sm:$0xf]
        %v3019 = vld [vmem:[%s3017 + $0x4] sm:$0xf]
        %v3020 = vld [vmem:[%s3017 + $0x8] sm:$0xf]
        %v3021 = vld [vmem:[%s3017 + $0xc] sm:$0xf]
        %v3022 = vld [vmem:[%s3017 + $0x10] sm:$0xf]
        %v3023 = vld [vmem:[%s3017 + $0x14] sm:$0xf]
        %v3024 = vld [vmem:[%s3017 + $0x18] sm:$0xf]
        %v3025 = vld [vmem:[%s3017 + $0x1c] sm:$0xf]
        %v3026 = vld [vmem:[%s3017 + $0x20] sm:$0xf]
        %v3027 = vld [vmem:[%s3017 + $0x24] sm:$0xf]
        %v3028 = vld [vmem:[%s3017 + $0x28] sm:$0xf]
        %v3029 = vld [vmem:[%s3017 + $0x2c] sm:$0xf]
        %v3030 = vld [vmem:[%s3017 + $0x30] sm:$0xf]
        %v3031 = vld [vmem:[%s3017 + $0x34] sm:$0xf]
        %v3032 = vld [vmem:[%s3017 + $0x38] sm:$0xf]
        %v3033 = vld [vmem:[%s3017 + $0x3c] sm:$0xf]
        %v3044 = vunpack.c.l.b16 %v3007
        %v3045 = vunpack.c.l.b16 %v3008
        %v3046 = vunpack.c.l.b16 %v3009
        %v3047 = vunpack.c.l.b16 %v3010
        %v3048 = vunpack.c.l.b16 %v3011
        %v3049 = vunpack.c.l.b16 %v3012
        %v3050 = vunpack.c.l.b16 %v3013
        %v3051 = vunpack.c.l.b16 %v3014
        %v3052 = vunpack.c.l.b16 %v3015
        %v3053 = vunpack.c.l.b16 %v3016
        %v3054 = vpack.c.b16 %v3045, %v3044
        %v3055 = vpack.c.b16 %v3047, %v3046
        %v3056 = vpack.c.b16 %v3049, %v3048
        %v3057 = vpack.c.b16 %v3051, %v3050
        %v3058 = vpack.c.b16 %v3053, %v3052
        %v3060 = vshrl.u32 %v3054, 16
        %v3062 = vshll.u32 %v3054, 16
        %v3064 = vrot.slane %v3062, 1
        %v3065 = vor.u32 %v3060, %v3064
        %v3067 = vshll.u32 %v3055, 16
        %v3069 = vrot.slane %v3067, 1
        %v3070 = vsel %vm786, %v3065, %v3069
        %v3071 = vshrl.u32 %v3055, 16
        %v3073 = vor.u32 %v3071, %v3069
        %v3075 = vshll.u32 %v3056, 16
        %v3077 = vrot.slane %v3075, 1
        %v3078 = vsel %vm786, %v3073, %v3077
        %v3079 = vshrl.u32 %v3056, 16
        %v3081 = vor.u32 %v3079, %v3077
        %v3083 = vshll.u32 %v3057, 16
        %v3085 = vrot.slane %v3083, 1
        %v3086 = vsel %vm786, %v3081, %v3085
        %v3087 = vshrl.u32 %v3057, 16
        %v3089 = vor.u32 %v3087, %v3085
        %v3091 = vshll.u32 %v3058, 16
        %v3093 = vrot.slane %v3091, 1
        %v3094 = vsel %vm786, %v3089, %v3093
        %v3095 = vshrl.u32 %v3058, 16
        %v3097 = vor.u32 %v3095, %v3093
        %v3119 = vunpack.c.l.b16 %v3018
        %v3120 = vunpack.c.l.b16 %v3019
        %v3121 = vunpack.c.l.b16 %v3020
        %v3122 = vunpack.c.l.b16 %v3021
        %v3123 = vunpack.c.l.b16 %v3022
        %v3124 = vunpack.c.l.b16 %v3023
        %v3125 = vunpack.c.l.b16 %v3024
        %v3126 = vunpack.c.l.b16 %v3025
        %v3127 = vunpack.c.l.b16 %v3026
        %v3128 = vunpack.c.l.b16 %v3027
        %v3129 = vunpack.c.l.b16 %v3028
        %v3130 = vunpack.c.l.b16 %v3029
        %v3131 = vunpack.c.l.b16 %v3030
        %v3132 = vunpack.c.l.b16 %v3031
        %v3133 = vunpack.c.l.b16 %v3032
        %v3134 = vunpack.c.l.b16 %v3033
        %v3135 = vpack.c.b16 %v3120, %v3119
        %v3136 = vpack.c.b16 %v3122, %v3121
        %v3137 = vpack.c.b16 %v3124, %v3123
        %v3138 = vpack.c.b16 %v3126, %v3125
        %v3139 = vpack.c.b16 %v3128, %v3127
        %v3140 = vpack.c.b16 %v3130, %v3129
        %v3141 = vpack.c.b16 %v3132, %v3131
        %v3142 = vpack.c.b16 %v3134, %v3133
        %3151 = vmatprep.subr.bf16.mxu0 0
        %3152 = vmatpush1.bf16.msra.mxu0 %v3135
        %3153 = vmatprep.subr.bf16.mxu0 0
        %3154 = vmatpush1.bf16.msra.mxu0 %v3136
        %3155 = vmatprep.subr.bf16.mxu0 0
        %3156 = vmatpush1.bf16.msra.mxu0 %v3137
        %3157 = vmatprep.subr.bf16.mxu0 0
        %3158 = vmatpush1.bf16.msra.mxu0 %v3138
        %3159 = vmatprep.subr.bf16.mxu0 0
        %3160 = vmatpush1.bf16.msra.mxu0 %v3139
        %3161 = vmatprep.subr.bf16.mxu0 0
        %3162 = vmatpush1.bf16.msra.mxu0 %v3140
        %3163 = vmatprep.subr.bf16.mxu0 0
        %3164 = vmatpush1.bf16.msra.mxu0 %v3141
        %3165 = vmatprep.subr.bf16.mxu0 0
        %3166 = vmatpush1.bf16.msra.mxu0 %v3142
        %3167 = vmatprep.subr.bf16.mxu0 0
        %3168 = vmatpush1.bf16.msra.mxu0 0
        %3169 = vmatprep.subr.bf16.mxu0 0
        %3170 = vmatpush1.bf16.msra.mxu0 0
        %3171 = vmatprep.subr.bf16.mxu0 0
        %3172 = vmatpush1.bf16.msra.mxu0 0
        %3173 = vmatprep.subr.bf16.mxu0 0
        %3174 = vmatpush1.bf16.msra.mxu0 0
        %3175 = vmatprep.subr.bf16.mxu0 0
        %3176 = vmatpush1.bf16.msra.mxu0 0
        %3177 = vmatprep.subr.bf16.mxu0 0
        %3178 = vmatpush1.bf16.msra.mxu0 0
        %3179 = vmatprep.subr.bf16.mxu0 0
        %3180 = vmatpush1.bf16.msra.mxu0 0
        %3181 = vmatprep.subr.bf16.mxu0 0
        %3182 = vmatpush1.bf16.msra.mxu0 0
        %3183 = vmatprep.mubr.bf16.mxu0 0
        %3184 = vmatmul.mubr.bf16.gmra.mrb[0].mxu0 %v3070
        %v3185 = vpop.f32.mrb[0].mxu0
        %v3186 = vadd.f32 0.0, %v3185
        %v3187 = vpop.f32.mrb[0].mxu0
        %v3188 = vpop.f32.mrb[0].mxu0
        %v3189 = vadd.f32 0.0, %v3188
        %v3190 = vpop.f32.mrb[0].mxu0
        %3191 = vmatprep.mubr.bf16.mxu0 0
        %3192 = vmatmul.mubr.bf16.gmra.mrb[0].mxu0 %v3078
        %v3193 = vpop.f32.mrb[0].mxu0
        %v3194 = vadd.f32 0.0, %v3193
        %v3195 = vpop.f32.mrb[0].mxu0
        %v3196 = vpop.f32.mrb[0].mxu0
        %v3197 = vadd.f32 0.0, %v3196
        %v3198 = vpop.f32.mrb[0].mxu0
        %3199 = vmatprep.mubr.bf16.mxu0 0
        %3200 = vmatmul.mubr.bf16.gmra.mrb[0].mxu0 %v3086
        %v3201 = vpop.f32.mrb[0].mxu0
        %v3202 = vadd.f32 0.0, %v3201
        %v3203 = vpop.f32.mrb[0].mxu0
        %v3204 = vpop.f32.mrb[0].mxu0
        %v3205 = vadd.f32 0.0, %v3204
        %v3206 = vpop.f32.mrb[0].mxu0
        %3207 = vmatprep.mubr.bf16.mxu0 0
        %3208 = vmatmul.mubr.bf16.gmra.mrb[0].mxu0 %v3094
        %v3209 = vpop.f32.mrb[0].mxu0
        %v3210 = vadd.f32 0.0, %v3209
        %v3211 = vpop.f32.mrb[0].mxu0
        %v3212 = vpop.f32.mrb[0].mxu0
        %v3213 = vadd.f32 0.0, %v3212
        %v3214 = vpop.f32.mrb[0].mxu0
        %3215 = vmatprep.mubr.bf16.mxu0 0
        %3216 = vmatmul.mubr.bf16.gmra.mrb[0].mxu0 %v3097
        %v3217 = vpop.f32.mrb[0].mxu0
        %v3218 = vadd.f32 0.0, %v3217
        %v3219 = vpop.f32.mrb[0].mxu0
        %v3220 = vpop.f32.mrb[0].mxu0
        %v3221 = vpop.f32.mrb[0].mxu0
        %3222 = vdwg.mxu0
        %v3223 = vadd.f32 %v2998, %v3186
        %v3224 = vadd.f32 %v2999, %v3189
        %v3225 = vadd.f32 %v3000, %v3194
        %v3226 = vadd.f32 %v3001, %v3197
        %v3227 = vadd.f32 %v3002, %v3202
        %v3228 = vadd.f32 %v3003, %v3205
        %v3229 = vadd.f32 %v3004, %v3210
        %v3230 = vadd.f32 %v3005, %v3213
        %v3231 = vadd.f32 %v3006, %v3218
        %v3232 = vld [vmem:[%s1185 + $0x4] sm:$0xe]
        %s3233 = scalar_lea.vmem %s1, 896
        %v3234 = vld [vmem:[%s3233] sm:$0xf]
        %v3235 = vld [vmem:[%s3233 + $0x4] sm:$0xf]
        %v3236 = vld [vmem:[%s3233 + $0x8] sm:$0xf]
        %v3237 = vld [vmem:[%s3233 + $0xc] sm:$0xf]
        %v3238 = vld [vmem:[%s3233 + $0x10] sm:$0xf]
        %v3239 = vld [vmem:[%s3233 + $0x14] sm:$0xf]
        %v3240 = vld [vmem:[%s3233 + $0x18] sm:$0xf]
        %v3241 = vld [vmem:[%s3233 + $0x1c] sm:$0xf]
        %v3242 = vld [vmem:[%s3233 + $0x20] sm:$0xf]
        %v3243 = vld [vmem:[%s3233 + $0x24] sm:$0xf]
        %v3244 = vld [vmem:[%s3233 + $0x28] sm:$0xf]
        %v3245 = vld [vmem:[%s3233 + $0x2c] sm:$0xf]
        %v3246 = vld [vmem:[%s3233 + $0x30] sm:$0xf]
        %v3247 = vld [vmem:[%s3233 + $0x34] sm:$0xf]
        %v3248 = vld [vmem:[%s3233 + $0x38] sm:$0xf]
        %v3249 = vld [vmem:[%s3233 + $0x3c] sm:$0xf]
        %v3251 = vunpack.c.l.b16 %v3232
        %v3252 = vpack.c.b16 %v2820, %v3251
        %v3253 = vrot.slane %v3252, 1
        %v3254 = vrot.slane %v2830, 1
        %v3255 = vsel %vm2474, %v3253, %v3254
        %v3256 = vrot.slane %v2831, 1
        %v3257 = vsel %vm2474, %v3254, %v3256
        %v3258 = vrot.slane %v2832, 1
        %v3259 = vsel %vm2474, %v3256, %v3258
        %v3260 = vrot.slane %v2833, 1
        %v3261 = vsel %vm2474, %v3258, %v3260
        %v3283 = vunpack.c.l.b16 %v3234
        %v3284 = vunpack.c.l.b16 %v3235
        %v3285 = vunpack.c.l.b16 %v3236
        %v3286 = vunpack.c.l.b16 %v3237
        %v3287 = vunpack.c.l.b16 %v3238
        %v3288 = vunpack.c.l.b16 %v3239
        %v3289 = vunpack.c.l.b16 %v3240
        %v3290 = vunpack.c.l.b16 %v3241
        %v3291 = vunpack.c.l.b16 %v3242
        %v3292 = vunpack.c.l.b16 %v3243
        %v3293 = vunpack.c.l.b16 %v3244
        %v3294 = vunpack.c.l.b16 %v3245
        %v3295 = vunpack.c.l.b16 %v3246
        %v3296 = vunpack.c.l.b16 %v3247
        %v3297 = vunpack.c.l.b16 %v3248
        %v3298 = vunpack.c.l.b16 %v3249
        %v3299 = vpack.c.b16 %v3284, %v3283
        %v3300 = vpack.c.b16 %v3286, %v3285
        %v3301 = vpack.c.b16 %v3288, %v3287
        %v3302 = vpack.c.b16 %v3290, %v3289
        %v3303 = vpack.c.b16 %v3292, %v3291
        %v3304 = vpack.c.b16 %v3294, %v3293
        %v3305 = vpack.c.b16 %v3296, %v3295
        %v3306 = vpack.c.b16 %v3298, %v3297
        %3315 = vmatprep.subr.bf16.mxu0 0
        %3316 = vmatpush1.bf16.msra.mxu0 %v3299
        %3317 = vmatprep.subr.bf16.mxu0 0
        %3318 = vmatpush1.bf16.msra.mxu0 %v3300
        %3319 = vmatprep.subr.bf16.mxu0 0
        %3320 = vmatpush1.bf16.msra.mxu0 %v3301
        %3321 = vmatprep.subr.bf16.mxu0 0
        %3322 = vmatpush1.bf16.msra.mxu0 %v3302
        %3323 = vmatprep.subr.bf16.mxu0 0
        %3324 = vmatpush1.bf16.msra.mxu0 %v3303
        %3325 = vmatprep.subr.bf16.mxu0 0
        %3326 = vmatpush1.bf16.msra.mxu0 %v3304
        %3327 = vmatprep.subr.bf16.mxu0 0
        %3328 = vmatpush1.bf16.msra.mxu0 %v3305
        %3329 = vmatprep.subr.bf16.mxu0 0
        %3330 = vmatpush1.bf16.msra.mxu0 %v3306
        %3331 = vmatprep.subr.bf16.mxu0 0
        %3332 = vmatpush1.bf16.msra.mxu0 0
        %3333 = vmatprep.subr.bf16.mxu0 0
        %3334 = vmatpush1.bf16.msra.mxu0 0
        %3335 = vmatprep.subr.bf16.mxu0 0
        %3336 = vmatpush1.bf16.msra.mxu0 0
        %3337 = vmatprep.subr.bf16.mxu0 0
        %3338 = vmatpush1.bf16.msra.mxu0 0
        %3339 = vmatprep.subr.bf16.mxu0 0
        %3340 = vmatpush1.bf16.msra.mxu0 0
        %3341 = vmatprep.subr.bf16.mxu0 0
        %3342 = vmatpush1.bf16.msra.mxu0 0
        %3343 = vmatprep.subr.bf16.mxu0 0
        %3344 = vmatpush1.bf16.msra.mxu0 0
        %3345 = vmatprep.subr.bf16.mxu0 0
        %3346 = vmatpush1.bf16.msra.mxu0 0
        %3347 = vmatprep.mubr.bf16.mxu0 0
        %3348 = vmatmul.mubr.bf16.gmra.mrb[0].mxu0 %v3255
        %v3349 = vpop.f32.mrb[0].mxu0
        %v3350 = vadd.f32 0.0, %v3349
        %v3351 = vpop.f32.mrb[0].mxu0
        %v3352 = vpop.f32.mrb[0].mxu0
        %v3353 = vadd.f32 0.0, %v3352
        %v3354 = vpop.f32.mrb[0].mxu0
        %3355 = vmatprep.mubr.bf16.mxu0 0
        %3356 = vmatmul.mubr.bf16.gmra.mrb[0].mxu0 %v3257
        %v3357 = vpop.f32.mrb[0].mxu0
        %v3358 = vadd.f32 0.0, %v3357
        %v3359 = vpop.f32.mrb[0].mxu0
        %v3360 = vpop.f32.mrb[0].mxu0
        %v3361 = vadd.f32 0.0, %v3360
        %v3362 = vpop.f32.mrb[0].mxu0
        %3363 = vmatprep.mubr.bf16.mxu0 0
        %3364 = vmatmul.mubr.bf16.gmra.mrb[0].mxu0 %v3259
        %v3365 = vpop.f32.mrb[0].mxu0
        %v3366 = vadd.f32 0.0, %v3365
        %v3367 = vpop.f32.mrb[0].mxu0
        %v3368 = vpop.f32.mrb[0].mxu0
        %v3369 = vadd.f32 0.0, %v3368
        %v3370 = vpop.f32.mrb[0].mxu0
        %3371 = vmatprep.mubr.bf16.mxu0 0
        %3372 = vmatmul.mubr.bf16.gmra.mrb[0].mxu0 %v3261
        %v3373 = vpop.f32.mrb[0].mxu0
        %v3374 = vadd.f32 0.0, %v3373
        %v3375 = vpop.f32.mrb[0].mxu0
        %v3376 = vpop.f32.mrb[0].mxu0
        %v3377 = vadd.f32 0.0, %v3376
        %v3378 = vpop.f32.mrb[0].mxu0
        %3379 = vmatprep.mubr.bf16.mxu0 0
        %3380 = vmatmul.mubr.bf16.gmra.mrb[0].mxu0 %v3260
        %v3381 = vpop.f32.mrb[0].mxu0
        %v3382 = vadd.f32 0.0, %v3381
        %v3383 = vpop.f32.mrb[0].mxu0
        %v3384 = vpop.f32.mrb[0].mxu0
        %v3385 = vpop.f32.mrb[0].mxu0
        %3386 = vdwg.mxu0
        %v3387 = vadd.f32 %v3223, %v3350
        %v3388 = vadd.f32 %v3224, %v3353
        %v3389 = vadd.f32 %v3225, %v3358
        %v3390 = vadd.f32 %v3226, %v3361
        %v3391 = vadd.f32 %v3227, %v3366
        %v3392 = vadd.f32 %v3228, %v3369
        %v3393 = vadd.f32 %v3229, %v3374
        %v3394 = vadd.f32 %v3230, %v3377
        %v3395 = vadd.f32 %v3231, %v3382
        %v3396 = vld [vmem:[%s1369 + $0x4] sm:$0xe]
        %s3397 = scalar_lea.vmem %s1, 960
        %v3398 = vld [vmem:[%s3397] sm:$0xf]
        %v3399 = vld [vmem:[%s3397 + $0x4] sm:$0xf]
        %v3400 = vld [vmem:[%s3397 + $0x8] sm:$0xf]
        %v3401 = vld [vmem:[%s3397 + $0xc] sm:$0xf]
        %v3402 = vld [vmem:[%s3397 + $0x10] sm:$0xf]
        %v3403 = vld [vmem:[%s3397 + $0x14] sm:$0xf]
        %v3404 = vld [vmem:[%s3397 + $0x18] sm:$0xf]
        %v3405 = vld [vmem:[%s3397 + $0x1c] sm:$0xf]
        %v3406 = vld [vmem:[%s3397 + $0x20] sm:$0xf]
        %v3407 = vld [vmem:[%s3397 + $0x24] sm:$0xf]
        %v3408 = vld [vmem:[%s3397 + $0x28] sm:$0xf]
        %v3409 = vld [vmem:[%s3397 + $0x2c] sm:$0xf]
        %v3410 = vld [vmem:[%s3397 + $0x30] sm:$0xf]
        %v3411 = vld [vmem:[%s3397 + $0x34] sm:$0xf]
        %v3412 = vld [vmem:[%s3397 + $0x38] sm:$0xf]
        %v3413 = vld [vmem:[%s3397 + $0x3c] sm:$0xf]
        %v3415 = vunpack.c.l.b16 %v3396
        %v3416 = vpack.c.b16 %v3045, %v3415
        %v3417 = vrot.slane %v3416, 1
        %v3418 = vrot.slane %v3055, 1
        %v3419 = vsel %vm2474, %v3417, %v3418
        %v3420 = vrot.slane %v3056, 1
        %v3421 = vsel %vm2474, %v3418, %v3420
        %v3422 = vrot.slane %v3057, 1
        %v3423 = vsel %vm2474, %v3420, %v3422
        %v3424 = vrot.slane %v3058, 1
        %v3425 = vsel %vm2474, %v3422, %v3424
        %v3447 = vunpack.c.l.b16 %v3398
        %v3448 = vunpack.c.l.b16 %v3399
        %v3449 = vunpack.c.l.b16 %v3400
        %v3450 = vunpack.c.l.b16 %v3401
        %v3451 = vunpack.c.l.b16 %v3402
        %v3452 = vunpack.c.l.b16 %v3403
        %v3453 = vunpack.c.l.b16 %v3404
        %v3454 = vunpack.c.l.b16 %v3405
        %v3455 = vunpack.c.l.b16 %v3406
        %v3456 = vunpack.c.l.b16 %v3407
        %v3457 = vunpack.c.l.b16 %v3408
        %v3458 = vunpack.c.l.b16 %v3409
        %v3459 = vunpack.c.l.b16 %v3410
        %v3460 = vunpack.c.l.b16 %v3411
        %v3461 = vunpack.c.l.b16 %v3412
        %v3462 = vunpack.c.l.b16 %v3413
        %v3463 = vpack.c.b16 %v3448, %v3447
        %v3464 = vpack.c.b16 %v3450, %v3449
        %v3465 = vpack.c.b16 %v3452, %v3451
        %v3466 = vpack.c.b16 %v3454, %v3453
        %v3467 = vpack.c.b16 %v3456, %v3455
        %v3468 = vpack.c.b16 %v3458, %v3457
        %v3469 = vpack.c.b16 %v3460, %v3459
        %v3470 = vpack.c.b16 %v3462, %v3461
        %3479 = vmatprep.subr.bf16.mxu0 0
        %3480 = vmatpush1.bf16.msra.mxu0 %v3463
        %3481 = vmatprep.subr.bf16.mxu0 0
        %3482 = vmatpush1.bf16.msra.mxu0 %v3464
        %3483 = vmatprep.subr.bf16.mxu0 0
        %3484 = vmatpush1.bf16.msra.mxu0 %v3465
        %3485 = vmatprep.subr.bf16.mxu0 0
        %3486 = vmatpush1.bf16.msra.mxu0 %v3466
        %3487 = vmatprep.subr.bf16.mxu0 0
        %3488 = vmatpush1.bf16.msra.mxu0 %v3467
        %3489 = vmatprep.subr.bf16.mxu0 0
        %3490 = vmatpush1.bf16.msra.mxu0 %v3468
        %3491 = vmatprep.subr.bf16.mxu0 0
        %3492 = vmatpush1.bf16.msra.mxu0 %v3469
        %3493 = vmatprep.subr.bf16.mxu0 0
        %3494 = vmatpush1.bf16.msra.mxu0 %v3470
        %3495 = vmatprep.subr.bf16.mxu0 0
        %3496 = vmatpush1.bf16.msra.mxu0 0
        %3497 = vmatprep.subr.bf16.mxu0 0
        %3498 = vmatpush1.bf16.msra.mxu0 0
        %3499 = vmatprep.subr.bf16.mxu0 0
        %3500 = vmatpush1.bf16.msra.mxu0 0
        %3501 = vmatprep.subr.bf16.mxu0 0
        %3502 = vmatpush1.bf16.msra.mxu0 0
        %3503 = vmatprep.subr.bf16.mxu0 0
        %3504 = vmatpush1.bf16.msra.mxu0 0
        %3505 = vmatprep.subr.bf16.mxu0 0
        %3506 = vmatpush1.bf16.msra.mxu0 0
        %3507 = vmatprep.subr.bf16.mxu0 0
        %3508 = vmatpush1.bf16.msra.mxu0 0
        %3509 = vmatprep.subr.bf16.mxu0 0
        %3510 = vmatpush1.bf16.msra.mxu0 0
        %3511 = vmatprep.mubr.bf16.mxu0 0
        %3512 = vmatmul.mubr.bf16.gmra.mrb[0].mxu0 %v3419
        %v3513 = vpop.f32.mrb[0].mxu0
        %v3514 = vadd.f32 0.0, %v3513
        %v3515 = vpop.f32.mrb[0].mxu0
        %v3516 = vpop.f32.mrb[0].mxu0
        %v3517 = vadd.f32 0.0, %v3516
        %v3518 = vpop.f32.mrb[0].mxu0
        %3519 = vmatprep.mubr.bf16.mxu0 0
        %3520 = vmatmul.mubr.bf16.gmra.mrb[0].mxu0 %v3421
        %v3521 = vpop.f32.mrb[0].mxu0
        %v3522 = vadd.f32 0.0, %v3521
        %v3523 = vpop.f32.mrb[0].mxu0
        %v3524 = vpop.f32.mrb[0].mxu0
        %v3525 = vadd.f32 0.0, %v3524
        %v3526 = vpop.f32.mrb[0].mxu0
        %3527 = vmatprep.mubr.bf16.mxu0 0
        %3528 = vmatmul.mubr.bf16.gmra.mrb[0].mxu0 %v3423
        %v3529 = vpop.f32.mrb[0].mxu0
        %v3530 = vadd.f32 0.0, %v3529
        %v3531 = vpop.f32.mrb[0].mxu0
        %v3532 = vpop.f32.mrb[0].mxu0
        %v3533 = vadd.f32 0.0, %v3532
        %v3534 = vpop.f32.mrb[0].mxu0
        %3535 = vmatprep.mubr.bf16.mxu0 0
        %3536 = vmatmul.mubr.bf16.gmra.mrb[0].mxu0 %v3425
        %v3537 = vpop.f32.mrb[0].mxu0
        %v3538 = vadd.f32 0.0, %v3537
        %v3539 = vpop.f32.mrb[0].mxu0
        %v3540 = vpop.f32.mrb[0].mxu0
        %v3541 = vadd.f32 0.0, %v3540
        %v3542 = vpop.f32.mrb[0].mxu0
        %3543 = vmatprep.mubr.bf16.mxu0 0
        %3544 = vmatmul.mubr.bf16.gmra.mrb[0].mxu0 %v3424
        %v3545 = vpop.f32.mrb[0].mxu0
        %v3546 = vadd.f32 0.0, %v3545
        %v3547 = vpop.f32.mrb[0].mxu0
        %v3548 = vpop.f32.mrb[0].mxu0
        %v3549 = vpop.f32.mrb[0].mxu0
        %3550 = vdwg.mxu0
        %v3551 = vadd.f32 %v3387, %v3514
        %v3552 = vadd.f32 %v3388, %v3517
        %v3553 = vadd.f32 %v3389, %v3522
        %v3554 = vadd.f32 %v3390, %v3525
        %v3555 = vadd.f32 %v3391, %v3530
        %v3556 = vadd.f32 %v3392, %v3533
        %v3557 = vadd.f32 %v3393, %v3538
        %v3558 = vadd.f32 %v3394, %v3541
        %v3559 = vadd.f32 %v3395, %v3546
        %v3560 = vld [vmem:[%s2] sm:$0x1]
        %v3562 = vlaneseq
        %v3563 = vshrl.u32 %v3562, 7
        %v3564 = vsub.s32 0, %v3563
        %v3565 = vrot.slane %v3560, %v3564
        %v3567 = vadd.f32 %v3551, %v3565
        %v3568 = vadd.f32 %v3552, %v3565
        %v3569 = vadd.f32 %v3553, %v3565
        %v3570 = vadd.f32 %v3554, %v3565
        %v3571 = vadd.f32 %v3555, %v3565
        %v3572 = vadd.f32 %v3556, %v3565
        %v3573 = vadd.f32 %v3557, %v3565
        %v3574 = vadd.f32 %v3558, %v3565
        %v3575 = vadd.f32 %v3559, %v3565
        %vm3576 = vcmp.gt.f32.partialorder %v3567, 0.0
        %vm3577 = vcmp.gt.f32.partialorder %v3568, 0.0
        %vm3578 = vcmp.gt.f32.partialorder %v3569, 0.0
        %vm3579 = vcmp.gt.f32.partialorder %v3570, 0.0
        %vm3580 = vcmp.gt.f32.partialorder %v3571, 0.0
        %vm3581 = vcmp.gt.f32.partialorder %v3572, 0.0
        %vm3582 = vcmp.gt.f32.partialorder %v3573, 0.0
        %vm3583 = vcmp.gt.f32.partialorder %v3574, 0.0
        %vm3584 = vcmp.gt.f32.partialorder %v3575, 0.0
        %v3585 = vmul.f32 %v3567, 0.2
        %v3586 = vmul.f32 %v3568, 0.2
        %v3587 = vmul.f32 %v3569, 0.2
        %v3588 = vmul.f32 %v3570, 0.2
        %v3589 = vmul.f32 %v3571, 0.2
        %v3590 = vmul.f32 %v3572, 0.2
        %v3591 = vmul.f32 %v3573, 0.2
        %v3592 = vmul.f32 %v3574, 0.2
        %v3593 = vmul.f32 %v3575, 0.2
        %v3594 = vsel %vm3576, %v3567, %v3585
        %v3595 = vsel %vm3577, %v3568, %v3586
        %v3596 = vsel %vm3578, %v3569, %v3587
        %v3597 = vsel %vm3579, %v3570, %v3588
        %v3598 = vsel %vm3580, %v3571, %v3589
        %v3599 = vsel %vm3581, %v3572, %v3590
        %v3600 = vsel %vm3582, %v3573, %v3591
        %v3601 = vsel %vm3583, %v3574, %v3592
        %v3602 = vsel %vm3584, %v3575, %v3593
        %v3603 = vpack.c.bf16 %v3595, %v3594
        %v3604 = vpack.c.bf16 %v3597, %v3596
        %v3605 = vpack.c.bf16 %v3599, %v3598
        %v3606 = vpack.c.bf16 %v3601, %v3600
        %v3607 = vpack.c.bf16 %v3602, %v3602
        %v3613 = vunpack.c.l.b16 %v3603
        %v3614 = vunpack.c.h.b16 %v3603
        %v3615 = vunpack.c.l.b16 %v3604
        %v3616 = vunpack.c.h.b16 %v3604
        %v3617 = vunpack.c.l.b16 %v3605
        %v3618 = vunpack.c.h.b16 %v3605
        %v3619 = vunpack.c.l.b16 %v3606
        %v3620 = vunpack.c.h.b16 %v3606
        %v3621 = vunpack.c.l.b16 %v3607
        %v3622 = vpack.c.b16 %v3613, %v3613
        %v3623 = vpack.c.b16 %v3614, %v3614
        %v3624 = vpack.c.b16 %v3615, %v3615
        %v3625 = vpack.c.b16 %v3616, %v3616
        %v3626 = vpack.c.b16 %v3617, %v3617
        %v3627 = vpack.c.b16 %v3618, %v3618
        %v3628 = vpack.c.b16 %v3619, %v3619
        %v3629 = vpack.c.b16 %v3620, %v3620
        %v3630 = vpack.c.b16 %v3621, %v3621
        %3640 = vst [vmem:[%s384] sm:$0xf] %v3622
        %3641 = vst [vmem:[%s384 + $0x4] sm:$0xf] %v3623
        %3642 = vst [vmem:[%s384 + $0x8] sm:$0xf] %v3624
        %3643 = vst [vmem:[%s384 + $0xc] sm:$0xf] %v3625
        %3644 = vst [vmem:[%s384 + $0x10] sm:$0xf] %v3626
        %3645 = vst [vmem:[%s384 + $0x14] sm:$0xf] %v3627
        %3646 = vst [vmem:[%s384 + $0x18] sm:$0xf] %v3628
        %3647 = vst [vmem:[%s384 + $0x1c] sm:$0xf] %v3629
        %3648 = vst [vmem:[%s384 + $0x20] sm:$0xf] %v3630
        %p3649 = scmp.lt.s32.totalorder %s14, 1
        %s3650 = scalar_select %p3649, %s14, 1
        %s3651 = smul.addr %s3650, 9
        %s3652 = smul.addr %s3651, 4
        %s3653 = scalar_lea.vmem %s3, %s3652
        // Predicated region
        $region74: #{discriminator_forward.3} parent=68 // pred_check
          %p3654 = pneg %p100
        $region75: #{discriminator_forward.3} parent=68 // pred_check_branch
          %3656 = sbr.rel (%p3654) target = $region77
        $region76: #{discriminator_forward.3} parent=68 // pred_region
          _
        $region77: #{discriminator_forward.3} parent=68 // pred_fallthru
          _
      $region69: #{discriminator_forward.3} parent=5 // pred_fallthru
        _
      %p3657 = scmp.le.s32.totalorder 2, %s9
      // Predicated region
      $region78: #{discriminator_forward.3} parent=5 // pred_check
        %p3658 = pneg %p3657
      $region79: #{discriminator_forward.3} parent=5 // pred_check_branch
        %3660 = sbr.rel (%p3658) target = $region81
      $region80: #{discriminator_forward.3} parent=5 // pred_region
        %s3661 = ssub.s32 %s9, 2
        // Predicated region
        $region82: #{discriminator_forward.3} parent=80 // pred_check
          %p3662 = pneg %p106
        $region83: #{discriminator_forward.3} parent=80 // pred_check_branch
          %3664 = sbr.rel (%p3662) target = $region85
        $region84: #{discriminator_forward.3} parent=80 // pred_region
          %p3665 = scmp.lt.s32.totalorder %s15, 1
          %s3666 = scalar_select %p3665, %s15, 1
          %s3667 = smul.addr %s3666, 9
          %s3668 = smul.addr %s3667, 4
          %s3669 = scalar_lea.vmem %s3, %s3668
        $region85: #{discriminator_forward.3} parent=80 // pred_fallthru
          _
      $region81: #{discriminator_forward.3} parent=5 // pred_fallthru
        _
    $region6: #{discriminator_forward.3} parent=1 // loop_footer
      %s13 = sadd.s32 1, %s9
    $region7: #{discriminator_forward.3} parent=1 // loop_footer_branch
      %8 = sbr.rel target = $region3
    $region8: #{discriminator_forward.3} parent=1 // loop_exit
      _

// kernel: discriminator_forward.4
$region0: #{discriminator_forward.4}
  #allocation0 [shape = 'u32[]', space=smem, size = 0x4, offset = 0x4, fixed_abs, tag = 'smem constant byte address 0x4 - core index']
  #allocation1 [shape = 'u32[144,128]{1,0:T(1,128)}', space=vmem, size = 0x12000, scoped, tag = 'internal scratch']
  %s0 = inlined_call_operand.vmem [shape: bf16[2,2,2,32,128], index: 0, kind: input, shape index: {}]
  %s1 = inlined_call_operand.vmem [shape: bf16[16,128,128], index: 1, kind: input, shape index: {}]
  %s2 = inlined_call_operand.vmem [shape: f32[1,128], index: 2, kind: input, shape index: {}]
  %s3 = inlined_call_operand.vmem [shape: f32[24,1], index: 3, kind: input, shape index: {}]
  %s4 = inlined_call_operand.vmem [shape: bf16[2,24,128], index: 4, kind: output, shape index: {0}]
  %s5 = inlined_call_operand.vmem [shape: f32[2,1,128], index: 5, kind: output, shape index: {1}]
  %s6 = inlined_call_operand.vmem [shape: f32[2,1,128], index: 6, kind: output, shape index: {2}]
  %7 = xla_tuple %s4, %s5, %s6
  %s8 = sld [smem:[#allocation0]]
  $region106: #{discriminator_forward.4} parent=0
    _
  %s10 = ssub.s32 1, %s8
  %s11 = scalar_select 0, %s10, %s8
  $region1: #{discriminator_forward.4} parent=0
    #allocation2 [shape = 'u8[65536]{0}', space=vmem, size = 0x10000, scoped, tag = 'input window, operand 0']
    loop: start=0, step=1, limit=4
    $region2: #{discriminator_forward.4} parent=1 // loop_pre_header
      _
    $region3: #{discriminator_forward.4} parent=1 // loop_header
      %s13 = sphi 0, %s17
      %p14 = scmp.ge.s32.totalorder %s13, 4
      %s23 = sphi 0, %s25
      %s26 = sphi 0, %s23
      %s27 = sphi 0, %s26
      %s43 = sphi 0, %s27
      %s47 = sphi 0, %s47
      %s49 = sphi 0, %s47
      %s50 = sphi 0, %s49
      %s64 = sphi 0, %s50
      %s68 = sphi 0, %s68
      %s70 = sphi 0, %s68
      %s71 = sphi 0, %s70
      %s85 = sphi 0, %s71
      %s89 = sphi 0, %s89
      %s91 = sphi 0, %s89
      %s92 = sphi 0, %s91
      %s106 = sphi 0, %s92
      %s112 = sphi 0, %s114
      %s115 = sphi 0, %s112
      %s116 = sphi 0, %s115
      %s132 = sphi 0, %s116
      %s138 = sphi 0, %s140
      %s141 = sphi 0, %s138
      %s142 = sphi 0, %s141
      %s158 = sphi 0, %s142
      %s164 = sphi 0, %s166
      %s167 = sphi 0, %s164
      %s168 = sphi 0, %s167
      %s184 = sphi 0, %s168
    $region4: #{discriminator_forward.4} parent=1 // loop_header_branch
      %16 = sbr.rel (%p14) target = $region8
    $region5: #{discriminator_forward.4} parent=1 // loop_body
      %s18 = ssub.s32 %s13, 1
      %s19 = ssub.s32 %s13, 2
      %s20 = sadd.s32 %s13, 1
      %s21 = ssub.s32 %s13, %s20
      %p22 = scmp.eq.s32.totalorder %s21, 0
      %s24 = sadd.s32 %s23, 1
      %s25 = scalar_select %p22, %s23, %s24
      %p28 = pneg %p22
      %p29 = scmp.eq.s32.totalorder %s13, 1
      %p30 = por %p28, %p29
      %p31 = scmp.ne.s32.totalorder %s23, %s26
      %p32 = scmp.eq.s32.totalorder %s13, 0
      %p33 = por %p31, %p32
      %p34 = scmp.ne.s32.totalorder %s23, %s26
      %p35 = scmp.eq.s32.totalorder %s18, 1
      %p36 = por %p34, %p35
      %p37 = scmp.ne.s32.totalorder %s26, %s27
      %p38 = scmp.eq.s32.totalorder %s18, 0
      %p39 = por %p37, %p38
      %p40 = scmp.ne.s32.totalorder %s26, %s27
      %p41 = scmp.eq.s32.totalorder %s19, 1
      %p42 = por %p40, %p41
      %p44 = scmp.ne.s32.totalorder %s27, %s43
      %p45 = scmp.eq.s32.totalorder %s19, 0
      %p46 = por %p44, %p45
      %s48 = sadd.s32 %s47, 1
      %p51 = scmp.eq.s32.totalorder %s13, 1
      %p52 = scmp.ne.s32.totalorder %s47, %s49
      %p53 = scmp.eq.s32.totalorder %s13, 0
      %p54 = por %p52, %p53
      %p55 = scmp.ne.s32.totalorder %s47, %s49
      %p56 = scmp.eq.s32.totalorder %s18, 1
      %p57 = por %p55, %p56
      %p58 = scmp.ne.s32.totalorder %s49, %s50
      %p59 = scmp.eq.s32.totalorder %s18, 0
      %p60 = por %p58, %p59
      %p61 = scmp.ne.s32.totalorder %s49, %s50
      %p62 = scmp.eq.s32.totalorder %s19, 1
      %p63 = por %p61, %p62
      %p65 = scmp.ne.s32.totalorder %s50, %s64
      %p66 = scmp.eq.s32.totalorder %s19, 0
      %p67 = por %p65, %p66
      %s69 = sadd.s32 %s68, 1
      %p72 = scmp.eq.s32.totalorder %s13, 1
      %p73 = scmp.ne.s32.totalorder %s68, %s70
      %p74 = scmp.eq.s32.totalorder %s13, 0
      %p75 = por %p73, %p74
      %p76 = scmp.ne.s32.totalorder %s68, %s70
      %p77 = scmp.eq.s32.totalorder %s18, 1
      %p78 = por %p76, %p77
      %p79 = scmp.ne.s32.totalorder %s70, %s71
      %p80 = scmp.eq.s32.totalorder %s18, 0
      %p81 = por %p79, %p80
      %p82 = scmp.ne.s32.totalorder %s70, %s71
      %p83 = scmp.eq.s32.totalorder %s19, 1
      %p84 = por %p82, %p83
      %p86 = scmp.ne.s32.totalorder %s71, %s85
      %p87 = scmp.eq.s32.totalorder %s19, 0
      %p88 = por %p86, %p87
      %s90 = sadd.s32 %s89, 1
      %p93 = scmp.eq.s32.totalorder %s13, 1
      %p94 = scmp.ne.s32.totalorder %s89, %s91
      %p95 = scmp.eq.s32.totalorder %s13, 0
      %p96 = por %p94, %p95
      %p97 = scmp.ne.s32.totalorder %s89, %s91
      %p98 = scmp.eq.s32.totalorder %s18, 1
      %p99 = por %p97, %p98
      %p100 = scmp.ne.s32.totalorder %s91, %s92
      %p101 = scmp.eq.s32.totalorder %s18, 0
      %p102 = por %p100, %p101
      %p103 = scmp.ne.s32.totalorder %s91, %s92
      %p104 = scmp.eq.s32.totalorder %s19, 1
      %p105 = por %p103, %p104
      %p107 = scmp.ne.s32.totalorder %s92, %s106
      %p108 = scmp.eq.s32.totalorder %s19, 0
      %p109 = por %p107, %p108
      %s110 = ssub.s32 %s13, %s20
      %p111 = scmp.eq.s32.totalorder %s110, 0
      %s113 = sadd.s32 %s112, 1
      %s114 = scalar_select %p111, %s112, %s113
      %p117 = pneg %p111
      %p118 = scmp.eq.s32.totalorder %s13, 1
      %p119 = por %p117, %p118
      %p120 = scmp.ne.s32.totalorder %s112, %s115
      %p121 = scmp.eq.s32.totalorder %s13, 0
      %p122 = por %p120, %p121
      %p123 = scmp.ne.s32.totalorder %s112, %s115
      %p124 = scmp.eq.s32.totalorder %s18, 1
      %p125 = por %p123, %p124
      %p126 = scmp.ne.s32.totalorder %s115, %s116
      %p127 = scmp.eq.s32.totalorder %s18, 0
      %p128 = por %p126, %p127
      %p129 = scmp.ne.s32.totalorder %s115, %s116
      %p130 = scmp.eq.s32.totalorder %s19, 1
      %p131 = por %p129, %p130
      %p133 = scmp.ne.s32.totalorder %s116, %s132
      %p134 = scmp.eq.s32.totalorder %s19, 0
      %p135 = por %p133, %p134
      %s136 = ssub.s32 %s13, %s20
      %p137 = scmp.eq.s32.totalorder %s136, 0
      %s139 = sadd.s32 %s138, 1
      %s140 = scalar_select %p137, %s138, %s139
      %p143 = pneg %p137
      %p144 = scmp.eq.s32.totalorder %s13, 1
      %p145 = por %p143, %p144
      %p146 = scmp.ne.s32.totalorder %s138, %s141
      %p147 = scmp.eq.s32.totalorder %s13, 0
      %p148 = por %p146, %p147
      %p149 = scmp.ne.s32.totalorder %s138, %s141
      %p150 = scmp.eq.s32.totalorder %s18, 1
      %p151 = por %p149, %p150
      %p152 = scmp.ne.s32.totalorder %s141, %s142
      %p153 = scmp.eq.s32.totalorder %s18, 0
      %p154 = por %p152, %p153
      %p155 = scmp.ne.s32.totalorder %s141, %s142
      %p156 = scmp.eq.s32.totalorder %s19, 1
      %p157 = por %p155, %p156
      %p159 = scmp.ne.s32.totalorder %s142, %s158
      %p160 = scmp.eq.s32.totalorder %s19, 0
      %p161 = por %p159, %p160
      %s162 = ssub.s32 %s13, %s20
      %p163 = scmp.eq.s32.totalorder %s162, 0
      %s165 = sadd.s32 %s164, 1
      %s166 = scalar_select %p163, %s164, %s165
      %p169 = pneg %p163
      %p170 = scmp.eq.s32.totalorder %s13, 1
      %p171 = por %p169, %p170
      %p172 = scmp.ne.s32.totalorder %s164, %s167
      %p173 = scmp.eq.s32.totalorder %s13, 0
      %p174 = por %p172, %p173
      %p175 = scmp.ne.s32.totalorder %s164, %s167
      %p176 = scmp.eq.s32.totalorder %s18, 1
      %p177 = por %p175, %p176
      %p178 = scmp.ne.s32.totalorder %s167, %s168
      %p179 = scmp.eq.s32.totalorder %s18, 0
      %p180 = por %p178, %p179
      %p181 = scmp.ne.s32.totalorder %s167, %s168
      %p182 = scmp.eq.s32.totalorder %s19, 1
      %p183 = por %p181, %p182
      %p185 = scmp.ne.s32.totalorder %s168, %s184
      %p186 = scmp.eq.s32.totalorder %s19, 0
      %p187 = por %p185, %p186
      %p188 = scmp.le.s32.totalorder 1, %s13
      %p189 = scmp.lt.s32.totalorder %s13, 3
      %p190 = pnand %p188, %p189
      %p191 = pneg %p190
      // Predicated region
      $region9: #{discriminator_forward.4} parent=5 // pred_check
        _
      $region10: #{discriminator_forward.4} parent=5 // pred_check_branch
        %193 = sbr.rel (%p190) target = $region12
      $region11: #{discriminator_forward.4} parent=5 // pred_region
        %s194 = ssub.s32 %s13, 1
        // Predicated region
        $region13: #{discriminator_forward.4} parent=11 // pred_check
          %p195 = pneg %p60
        $region14: #{discriminator_forward.4} parent=11 // pred_check_branch
          %197 = sbr.rel (%p195) target = $region16
        $region15: #{discriminator_forward.4} parent=11 // pred_region
          _
        $region16: #{discriminator_forward.4} parent=11 // pred_fallthru
          _
        // Predicated region
        $region17: #{discriminator_forward.4} parent=11 // pred_check
          %p198 = pneg %p81
        $region18: #{discriminator_forward.4} parent=11 // pred_check_branch
          %200 = sbr.rel (%p198) target = $region20
        $region19: #{discriminator_forward.4} parent=11 // pred_region
          _
        $region20: #{discriminator_forward.4} parent=11 // pred_fallthru
          _
        // Predicated region
        $region21: #{discriminator_forward.4} parent=11 // pred_check
          %p201 = pneg %p102
        $region22: #{discriminator_forward.4} parent=11 // pred_check_branch
          %203 = sbr.rel (%p201) target = $region24
        $region23: #{discriminator_forward.4} parent=11 // pred_region
          _
        $region24: #{discriminator_forward.4} parent=11 // pred_fallthru
          _
      $region12: #{discriminator_forward.4} parent=5 // pred_fallthru
        _
      %p204 = scmp.lt.s32.totalorder %s13, 2
      // Predicated region
      $region25: #{discriminator_forward.4} parent=5 // pred_check
        %p205 = pneg %p204
      $region26: #{discriminator_forward.4} parent=5 // pred_check_branch
        %207 = sbr.rel (%p205) target = $region28
      $region27: #{discriminator_forward.4} parent=5 // pred_region
        // Predicated region
        $region29: #{discriminator_forward.4} parent=27 // pred_check
          %p208 = pneg %p33
        $region30: #{discriminator_forward.4} parent=27 // pred_check_branch
          %210 = sbr.rel (%p208) target = $region32
        $region31: #{discriminator_forward.4} parent=27 // pred_region
          %s211 = sand.u32 %s23, 1
          %s212 = sand.u32 %s23, 1
          %s213 = smul.addr %s212, 64
          %s214 = scalar_lea.vmem [#allocation2], %s213
          %s215 = smul.addr %s13, 4
          %s216 = smul.addr %s215, 4
          %s217 = scalar_lea.vmem %s0, %s216
          // Predicated region
          $region33: #{discriminator_forward.4} parent=31 // pred_check
            _
          $region34: #{discriminator_forward.4} parent=31 // pred_check_branch
            %219 = sbr.rel (0) target = $region36
          $region35: #{discriminator_forward.4} parent=31 // pred_region
            // Predicated region
            $region37: #{discriminator_forward.4} parent=35 // pred_check
              _
            $region38: #{discriminator_forward.4} parent=35 // pred_check_branch
              %221 = sbr.rel target = $region40
            $region39: #{discriminator_forward.4} parent=35 // pred_region
              // Predicated region
              $region52: #{discriminator_forward.4} parent=39 // pred_check
                _
              $region53: #{discriminator_forward.4} parent=39 // pred_check_branch
                %266 = sbr.rel (0) target = $region55
              $region54: #{discriminator_forward.4} parent=39 // pred_region
                loop: start=0, step=1, limit=1
                $region56: #{discriminator_forward.4} parent=54 // loop_pre_header
                  _
                $region57: #{discriminator_forward.4} parent=54 // loop_header
                  %s268 = sphi 0, %s272
                  %p269 = scmp.ge.s32.totalorder %s268, 1
                  %s273 = sphi %s217, %s217
                  %s274 = sphi %s214, %s214
                $region58: #{discriminator_forward.4} parent=54 // loop_header_branch
                  %271 = sbr.rel (%p269) target = $region62
                $region59: #{discriminator_forward.4} parent=54 // loop_body
                  _
                $region60: #{discriminator_forward.4} parent=54 // loop_footer
                  %s272 = sadd.s32 1, %s268
                $region61: #{discriminator_forward.4} parent=54 // loop_footer_branch
                  %267 = sbr.rel target = $region57
                $region62: #{discriminator_forward.4} parent=54 // loop_exit
                  _
                loop: start=0, step=1, limit=1
                $region63: #{discriminator_forward.4} parent=54 // loop_pre_header
                  _
                $region64: #{discriminator_forward.4} parent=54 // loop_header
                  %s277 = sphi 0, %s281
                  %p278 = scmp.ge.s32.totalorder %s277, 1
                  %s282 = sphi %s217, %s217
                  %s283 = sphi %s214, %s214
                $region65: #{discriminator_forward.4} parent=54 // loop_header_branch
                  %280 = sbr.rel (%p278) target = $region69
                $region66: #{discriminator_forward.4} parent=54 // loop_body
                  %v284 = vld [vmem:[%s282] sm:$0xf]
                  %285 = vst [vmem:[%s283] sm:$0xf] %v284
                  %v286 = vld [vmem:[%s282 + $0x4] sm:$0xf]
                  %287 = vst [vmem:[%s283 + $0x4] sm:$0xf] %v286
                  %v288 = vld [vmem:[%s282 + $0x8] sm:$0xf]
                  %289 = vst [vmem:[%s283 + $0x8] sm:$0xf] %v288
                  %v290 = vld [vmem:[%s282 + $0xc] sm:$0xf]
                  %291 = vst [vmem:[%s283 + $0xc] sm:$0xf] %v290
                  %v292 = vld [vmem:[%s282 + $0x20] sm:$0xf]
                  %293 = vst [vmem:[%s283 + $0x10] sm:$0xf] %v292
                  %v294 = vld [vmem:[%s282 + $0x24] sm:$0xf]
                  %295 = vst [vmem:[%s283 + $0x14] sm:$0xf] %v294
                  %v296 = vld [vmem:[%s282 + $0x28] sm:$0xf]
                  %297 = vst [vmem:[%s283 + $0x18] sm:$0xf] %v296
                  %v298 = vld [vmem:[%s282 + $0x2c] sm:$0xf]
                  %299 = vst [vmem:[%s283 + $0x1c] sm:$0xf] %v298
                  %v300 = vld [vmem:[%s282 + $0x40] sm:$0xf]
                  %301 = vst [vmem:[%s283 + $0x20] sm:$0xf] %v300
                  %v302 = vld [vmem:[%s282 + $0x44] sm:$0xf]
                  %303 = vst [vmem:[%s283 + $0x24] sm:$0xf] %v302
                  %v304 = vld [vmem:[%s282 + $0x48] sm:$0xf]
                  %305 = vst [vmem:[%s283 + $0x28] sm:$0xf] %v304
                  %v306 = vld [vmem:[%s282 + $0x4c] sm:$0xf]
                  %307 = vst [vmem:[%s283 + $0x2c] sm:$0xf] %v306
                  %v308 = vld [vmem:[%s282 + $0x60] sm:$0xf]
                  %309 = vst [vmem:[%s283 + $0x30] sm:$0xf] %v308
                  %v310 = vld [vmem:[%s282 + $0x64] sm:$0xf]
                  %311 = vst [vmem:[%s283 + $0x34] sm:$0xf] %v310
                  %v312 = vld [vmem:[%s282 + $0x68] sm:$0xf]
                  %313 = vst [vmem:[%s283 + $0x38] sm:$0xf] %v312
                  %v314 = vld [vmem:[%s282 + $0x6c] sm:$0xf]
                  %315 = vst [vmem:[%s283 + $0x3c] sm:$0xf] %v314
                $region67: #{discriminator_forward.4} parent=54 // loop_footer
                  %s281 = sadd.s32 1, %s277
                $region68: #{discriminator_forward.4} parent=54 // loop_footer_branch
                  %276 = sbr.rel target = $region64
                $region69: #{discriminator_forward.4} parent=54 // loop_exit
                  _
              $region55: #{discriminator_forward.4} parent=39 // pred_fallthru
                _
            $region40: #{discriminator_forward.4} parent=35 // pred_fallthru
              _
            // Predicated region
            $region41: #{discriminator_forward.4} parent=35 // pred_check
              _
            $region42: #{discriminator_forward.4} parent=35 // pred_check_branch
              %223 = sbr.rel (0) target = $region44
            $region43: #{discriminator_forward.4} parent=35 // pred_region
              loop: start=0, step=1, limit=1
              $region45: #{discriminator_forward.4} parent=43 // loop_pre_header
                _
              $region46: #{discriminator_forward.4} parent=43 // loop_header
                %s226 = sphi 0, %s230
                %p227 = scmp.ge.s32.totalorder %s226, 1
                %s231 = sphi %s217, %s217
                %s232 = sphi %s214, %s214
              $region47: #{discriminator_forward.4} parent=43 // loop_header_branch
                %229 = sbr.rel (%p227) target = $region51
              $region48: #{discriminator_forward.4} parent=43 // loop_body
                %v233 = vld [vmem:[%s231] sm:$0xf]
                %234 = vst [vmem:[%s232] sm:$0xf] %v233
                %v235 = vld [vmem:[%s231 + $0x4] sm:$0xf]
                %236 = vst [vmem:[%s232 + $0x4] sm:$0xf] %v235
                %v237 = vld [vmem:[%s231 + $0x8] sm:$0xf]
                %238 = vst [vmem:[%s232 + $0x8] sm:$0xf] %v237
                %v239 = vld [vmem:[%s231 + $0xc] sm:$0xf]
                %240 = vst [vmem:[%s232 + $0xc] sm:$0xf] %v239
                %v241 = vld [vmem:[%s231 + $0x20] sm:$0xf]
                %242 = vst [vmem:[%s232 + $0x10] sm:$0xf] %v241
                %v243 = vld [vmem:[%s231 + $0x24] sm:$0xf]
                %244 = vst [vmem:[%s232 + $0x14] sm:$0xf] %v243
                %v245 = vld [vmem:[%s231 + $0x28] sm:$0xf]
                %246 = vst [vmem:[%s232 + $0x18] sm:$0xf] %v245
                %v247 = vld [vmem:[%s231 + $0x2c] sm:$0xf]
                %248 = vst [vmem:[%s232 + $0x1c] sm:$0xf] %v247
                %v249 = vld [vmem:[%s231 + $0x40] sm:$0xf]
                %250 = vst [vmem:[%s232 + $0x20] sm:$0xf] %v249
                %v251 = vld [vmem:[%s231 + $0x44] sm:$0xf]
                %252 = vst [vmem:[%s232 + $0x24] sm:$0xf] %v251
                %v253 = vld [vmem:[%s231 + $0x48] sm:$0xf]
                %254 = vst [vmem:[%s232 + $0x28] sm:$0xf] %v253
                %v255 = vld [vmem:[%s231 + $0x4c] sm:$0xf]
                %256 = vst [vmem:[%s232 + $0x2c] sm:$0xf] %v255
                %v257 = vld [vmem:[%s231 + $0x60] sm:$0xf]
                %258 = vst [vmem:[%s232 + $0x30] sm:$0xf] %v257
                %v259 = vld [vmem:[%s231 + $0x64] sm:$0xf]
                %260 = vst [vmem:[%s232 + $0x34] sm:$0xf] %v259
                %v261 = vld [vmem:[%s231 + $0x68] sm:$0xf]
                %262 = vst [vmem:[%s232 + $0x38] sm:$0xf] %v261
                %v263 = vld [vmem:[%s231 + $0x6c] sm:$0xf]
                %264 = vst [vmem:[%s232 + $0x3c] sm:$0xf] %v263
              $region49: #{discriminator_forward.4} parent=43 // loop_footer
                %s230 = sadd.s32 1, %s226
              $region50: #{discriminator_forward.4} parent=43 // loop_footer_branch
                %225 = sbr.rel target = $region46
              $region51: #{discriminator_forward.4} parent=43 // loop_exit
                _
            $region44: #{discriminator_forward.4} parent=35 // pred_fallthru
              _
          $region36: #{discriminator_forward.4} parent=31 // pred_fallthru
            _
          %316 = vnop
        $region32: #{discriminator_forward.4} parent=27 // pred_fallthru
          _
      $region28: #{discriminator_forward.4} parent=5 // pred_fallthru
        _
      %p317 = scmp.le.s32.totalorder 1, %s13
      %p318 = scmp.lt.s32.totalorder %s13, 3
      %p319 = pnand %p317, %p318
      %p320 = pneg %p319
      // Predicated region
      $region70: #{discriminator_forward.4} parent=5 // pred_check
        _
      $region71: #{discriminator_forward.4} parent=5 // pred_check_branch
        %322 = sbr.rel (%p319) target = $region73
      $region72: #{discriminator_forward.4} parent=5 // pred_region
        %s323 = ssub.s32 %s13, 1
        %s324 = sand.u32 %s26, 1
        %s325 = sand.u32 %s26, 1
        %s326 = smul.addr %s325, 64
        %s327 = scalar_lea.vmem [#allocation2], %s326
        // Predicated region
        $region74: #{discriminator_forward.4} parent=72 // pred_check
          %p328 = pneg %p39
        $region75: #{discriminator_forward.4} parent=72 // pred_check_branch
          %330 = sbr.rel (%p328) target = $region77
        $region76: #{discriminator_forward.4} parent=72 // pred_region
          _
        $region77: #{discriminator_forward.4} parent=72 // pred_fallthru
          _
        %s331 = sand.u32 %s26, 1
        %s332 = sand.u32 %s26, 1
        %s333 = smul.addr %s332, 64
        %s334 = scalar_lea.vmem [#allocation2], %s333
        %p335 = pneg %p39
        %p336 = pneg %p36
        %p337 = pneg %p60
        %p338 = pneg %p57
        %p339 = pneg %p81
        %p340 = pneg %p78
        %p341 = pneg %p102
        %p342 = pneg %p99
        %p343 = pneg %p128
        %p344 = pneg %p125
        %p345 = scmp.lt.s32.totalorder %s18, 1
        %s346 = scalar_select %p345, %s18, 1
        %s347 = smul.addr %s346, 3
        %s348 = smul.addr %s347, 4
        %s349 = scalar_lea.vmem %s4, %s348
        %p350 = pneg %p154
        %p351 = pneg %p151
        %p352 = scmp.lt.s32.totalorder %s18, 1
        %s353 = scalar_select %p352, %s18, 1
        %s354 = scalar_lea.vmem %s5, %s353
        %p355 = pneg %p180
        %p356 = pneg %p177
        %p357 = scmp.lt.s32.totalorder %s18, 1
        %s358 = scalar_select %p357, %s18, 1
        %s359 = scalar_lea.vmem %s6, %s358
        %p360 = scmp.lt.s32.totalorder %s18, 1
        %s361 = scalar_select %p360, %s18, 1
        %s362 = smul.addr %s361, 3
        %s363 = smul.addr %s362, 4
        %s364 = scalar_lea.vmem %s4, %s363
        %p365 = scmp.lt.s32.totalorder %s18, 1
        %s366 = scalar_select %p365, %s18, 1
        %s367 = scalar_lea.vmem %s5, %s366
        %p368 = scmp.lt.s32.totalorder %s18, 1
        %s369 = scalar_select %p368, %s18, 1
        %s370 = scalar_lea.vmem %s6, %s369
        %v372 = vld [vmem:[%s327] sm:$0xf]
        %v373 = vld [vmem:[%s327 + $0x4] sm:$0xf]
        %v374 = vld [vmem:[%s327 + $0x8] sm:$0xf]
        %v375 = vld [vmem:[%s1] sm:$0xf]
        %v376 = vld [vmem:[%s1 + $0x4] sm:$0xf]
        %v377 = vld [vmem:[%s1 + $0x8] sm:$0xf]
        %v378 = vld [vmem:[%s1 + $0xc] sm:$0xf]
        %v379 = vld [vmem:[%s1 + $0x10] sm:$0xf]
        %v380 = vld [vmem:[%s1 + $0x14] sm:$0xf]
        %v381 = vld [vmem:[%s1 + $0x18] sm:$0xf]
        %v382 = vld [vmem:[%s1 + $0x1c] sm:$0xf]
        %v383 = vld [vmem:[%s1 + $0x20] sm:$0xf]
        %v384 = vld [vmem:[%s1 + $0x24] sm:$0xf]
        %v385 = vld [vmem:[%s1 + $0x28] sm:$0xf]
        %v386 = vld [vmem:[%s1 + $0x2c] sm:$0xf]
        %v387 = vld [vmem:[%s1 + $0x30] sm:$0xf]
        %v388 = vld [vmem:[%s1 + $0x34] sm:$0xf]
        %v389 = vld [vmem:[%s1 + $0x38] sm:$0xf]
        %v390 = vld [vmem:[%s1 + $0x3c] sm:$0xf]
        %s391 = scalar_lea.vmem %s327, 16 [#allocation2]
        %v392 = vld [vmem:[%s391] sm:$0xf]
        %v393 = vld [vmem:[%s391 + $0x4] sm:$0xf]
        %v394 = vld [vmem:[%s391 + $0x8] sm:$0xf]
        %s395 = scalar_lea.vmem %s1, 64
        %v396 = vld [vmem:[%s395] sm:$0xf]
        %v397 = vld [vmem:[%s395 + $0x4] sm:$0xf]
        %v398 = vld [vmem:[%s395 + $0x8] sm:$0xf]
        %v399 = vld [vmem:[%s395 + $0xc] sm:$0xf]
        %v400 = vld [vmem:[%s395 + $0x10] sm:$0xf]
        %v401 = vld [vmem:[%s395 + $0x14] sm:$0xf]
        %v402 = vld [vmem:[%s395 + $0x18] sm:$0xf]
        %v403 = vld [vmem:[%s395 + $0x1c] sm:$0xf]
        %v404 = vld [vmem:[%s395 + $0x20] sm:$0xf]
        %v405 = vld [vmem:[%s395 + $0x24] sm:$0xf]
        %v406 = vld [vmem:[%s395 + $0x28] sm:$0xf]
        %v407 = vld [vmem:[%s395 + $0x2c] sm:$0xf]
        %v408 = vld [vmem:[%s395 + $0x30] sm:$0xf]
        %v409 = vld [vmem:[%s395 + $0x34] sm:$0xf]
        %v410 = vld [vmem:[%s395 + $0x38] sm:$0xf]
        %v411 = vld [vmem:[%s395 + $0x3c] sm:$0xf]
        %v415 = vunpack.c.l.b16 %v392
        %v416 = vunpack.c.l.b16 %v393
        %v417 = vunpack.c.l.b16 %v394
        %v418 = vpack.c.b16 %v416, %v415
        %v419 = vpack.c.b16 %v417, %v417
        %v438 = vunpack.c.l.b16 %v396
        %v439 = vunpack.c.l.b16 %v397
        %v440 = vunpack.c.l.b16 %v398
        %v441 = vunpack.c.l.b16 %v399
        %v442 = vunpack.c.l.b16 %v400
        %v443 = vunpack.c.l.b16 %v401
        %v444 = vunpack.c.l.b16 %v402
        %v445 = vunpack.c.l.b16 %v403
        %v446 = vunpack.c.l.b16 %v404
        %v447 = vunpack.c.l.b16 %v405
        %v448 = vunpack.c.l.b16 %v406
        %v449 = vunpack.c.l.b16 %v407
        %v450 = vunpack.c.l.b16 %v408
        %v451 = vunpack.c.l.b16 %v409
        %v452 = vunpack.c.l.b16 %v410
        %v453 = vunpack.c.l.b16 %v411
        %v454 = vpack.c.b16 %v439, %v438
        %v455 = vpack.c.b16 %v441, %v440
        %v456 = vpack.c.b16 %v443, %v442
        %v457 = vpack.c.b16 %v445, %v444
        %v458 = vpack.c.b16 %v447, %v446
        %v459 = vpack.c.b16 %v449, %v448
        %v460 = vpack.c.b16 %v451, %v450
        %v461 = vpack.c.b16 %v453, %v452
        %470 = vmatprep.subr.bf16.mxu0 0
        %471 = vmatpush1.bf16.msra.mxu0 %v454
        %472 = vmatprep.subr.bf16.mxu0 0
        %473 = vmatpush1.bf16.msra.mxu0 %v455
        %474 = vmatprep.subr.bf16.mxu0 0
        %475 = vmatpush1.bf16.msra.mxu0 %v456
        %476 = vmatprep.subr.bf16.mxu0 0
        %477 = vmatpush1.bf16.msra.mxu0 %v457
        %478 = vmatprep.subr.bf16.mxu0 0
        %479 = vmatpush1.bf16.msra.mxu0 %v458
        %480 = vmatprep.subr.bf16.mxu0 0
        %481 = vmatpush1.bf16.msra.mxu0 %v459
        %482 = vmatprep.subr.bf16.mxu0 0
        %483 = vmatpush1.bf16.msra.mxu0 %v460
        %484 = vmatprep.subr.bf16.mxu0 0
        %485 = vmatpush1.bf16.msra.mxu0 %v461
        %486 = vmatprep.subr.bf16.mxu0 0
        %487 = vmatpush1.bf16.msra.mxu0 0
        %488 = vmatprep.subr.bf16.mxu0 0
        %489 = vmatpush1.bf16.msra.mxu0 0
        %490 = vmatprep.subr.bf16.mxu0 0
        %491 = vmatpush1.bf16.msra.mxu0 0
        %492 = vmatprep.subr.bf16.mxu0 0
        %493 = vmatpush1.bf16.msra.mxu0 0
        %494 = vmatprep.subr.bf16.mxu0 0
        %495 = vmatpush1.bf16.msra.mxu0 0
        %496 = vmatprep.subr.bf16.mxu0 0
        %497 = vmatpush1.bf16.msra.mxu0 0
        %498 = vmatprep.subr.bf16.mxu0 0
        %499 = vmatpush1.bf16.msra.mxu0 0
        %500 = vmatprep.subr.bf16.mxu0 0
        %501 = vmatpush1.bf16.msra.mxu0 0
        %502 = vmatprep.mubr.bf16.mxu0 0
        %503 = vmatmul.mubr.bf16.gmra.mrb[0].mxu0 %v418
        %v504 = vpop.f32.mrb[0].mxu0
        %v505 = vadd.f32 0.0, %v504
        %v506 = vpop.f32.mrb[0].mxu0
        %v507 = vpop.f32.mrb[0].mxu0
        %v508 = vadd.f32 0.0, %v507
        %v509 = vpop.f32.mrb[0].mxu0
        %510 = vmatprep.mubr.bf16.mxu0 0
        %511 = vmatmul.mubr.bf16.gmra.mrb[0].mxu0 %v419
        %v512 = vpop.f32.mrb[0].mxu0
        %v513 = vadd.f32 0.0, %v512
        %v514 = vpop.f32.mrb[0].mxu0
        %v515 = vpop.f32.mrb[0].mxu0
        %v516 = vpop.f32.mrb[0].mxu0
        %517 = vdwg.mxu0
        %v521 = vunpack.c.l.b16 %v372
        %v522 = vunpack.c.l.b16 %v373
        %v523 = vunpack.c.l.b16 %v374
        %v524 = vpack.c.b16 %v522, %v521
        %v525 = vpack.c.b16 %v523, %v523
        %v544 = vunpack.c.l.b16 %v375
        %v545 = vunpack.c.l.b16 %v376
        %v546 = vunpack.c.l.b16 %v377
        %v547 = vunpack.c.l.b16 %v378
        %v548 = vunpack.c.l.b16 %v379
        %v549 = vunpack.c.l.b16 %v380
        %v550 = vunpack.c.l.b16 %v381
        %v551 = vunpack.c.l.b16 %v382
        %v552 = vunpack.c.l.b16 %v383
        %v553 = vunpack.c.l.b16 %v384
        %v554 = vunpack.c.l.b16 %v385
        %v555 = vunpack.c.l.b16 %v386
        %v556 = vunpack.c.l.b16 %v387
        %v557 = vunpack.c.l.b16 %v388
        %v558 = vunpack.c.l.b16 %v389
        %v559 = vunpack.c.l.b16 %v390
        %v560 = vpack.c.b16 %v545, %v544
        %v561 = vpack.c.b16 %v547, %v546
        %v562 = vpack.c.b16 %v549, %v548
        %v563 = vpack.c.b16 %v551, %v550
        %v564 = vpack.c.b16 %v553, %v552
        %v565 = vpack.c.b16 %v555, %v554
        %v566 = vpack.c.b16 %v557, %v556
        %v567 = vpack.c.b16 %v559, %v558
        %576 = vmatprep.subr.bf16.mxu0 0
        %577 = vmatpush1.bf16.msra.mxu0 %v560
        %578 = vmatprep.subr.bf16.mxu0 0
        %579 = vmatpush1.bf16.msra.mxu0 %v561
        %580 = vmatprep.subr.bf16.mxu0 0
        %581 = vmatpush1.bf16.msra.mxu0 %v562
        %582 = vmatprep.subr.bf16.mxu0 0
        %583 = vmatpush1.bf16.msra.mxu0 %v563
        %584 = vmatprep.subr.bf16.mxu0 0
        %585 = vmatpush1.bf16.msra.mxu0 %v564
        %586 = vmatprep.subr.bf16.mxu0 0
        %587 = vmatpush1.bf16.msra.mxu0 %v565
        %588 = vmatprep.subr.bf16.mxu0 0
        %589 = vmatpush1.bf16.msra.mxu0 %v566
        %590 = vmatprep.subr.bf16.mxu0 0
        %591 = vmatpush1.bf16.msra.mxu0 %v567
        %592 = vmatprep.subr.bf16.mxu0 0
        %593 = vmatpush1.bf16.msra.mxu0 0
        %594 = vmatprep.subr.bf16.mxu0 0
        %595 = vmatpush1.bf16.msra.mxu0 0
        %596 = vmatprep.subr.bf16.mxu0 0
        %597 = vmatpush1.bf16.msra.mxu0 0
        %598 = vmatprep.subr.bf16.mxu0 0
        %599 = vmatpush1.bf16.msra.mxu0 0
        %600 = vmatprep.subr.bf16.mxu0 0
        %601 = vmatpush1.bf16.msra.mxu0 0
        %602 = vmatprep.subr.bf16.mxu0 0
        %603 = vmatpush1.bf16.msra.mxu0 0
        %604 = vmatprep.subr.bf16.mxu0 0
        %605 = vmatpush1.bf16.msra.mxu0 0
        %606 = vmatprep.subr.bf16.mxu0 0
        %607 = vmatpush1.bf16.msra.mxu0 0
        %608 = vmatprep.mubr.bf16.mxu0 0
        %609 = vmatmul.mubr.bf16.gmra.mrb[0].mxu0 %v524
        %v610 = vpop.f32.mrb[0].mxu0
        %v611 = vadd.f32 %v505, %v610
        %v612 = vpop.f32.mrb[0].mxu0
        %v613 = vpop.f32.mrb[0].mxu0
        %v614 = vadd.f32 %v508, %v613
        %v615 = vpop.f32.mrb[0].mxu0
        %616 = vmatprep.mubr.bf16.mxu0 0
        %617 = vmatmul.mubr.bf16.gmra.mrb[0].mxu0 %v525
        %v618 = vpop.f32.mrb[0].mxu0
        %v619 = vadd.f32 %v513, %v618
        %v620 = vpop.f32.mrb[0].mxu0
        %v621 = vpop.f32.mrb[0].mxu0
        %v622 = vpop.f32.mrb[0].mxu0
        %623 = vdwg.mxu0
        %v624 = vld [vmem:[%s327] sm:$0xf]
        %v625 = vld [vmem:[%s327 + $0x4] sm:$0xf]
        %v626 = vld [vmem:[%s327 + $0x8] sm:$0xf]
        %v627 = vld [vmem:[%s327 + $0xc] sm:$0x1]
        %s628 = scalar_lea.vmem %s1, 128
        %v629 = vld [vmem:[%s628] sm:$0xf]
        %v630 = vld [vmem:[%s628 + $0x4] sm:$0xf]
        %v631 = vld [vmem:[%s628 + $0x8] sm:$0xf]
        %v632 = vld [vmem:[%s628 + $0xc] sm:$0xf]
        %v633 = vld [vmem:[%s628 + $0x10] sm:$0xf]
        %v634 = vld [vmem:[%s628 + $0x14] sm:$0xf]
        %v635 = vld [vmem:[%s628 + $0x18] sm:$0xf]
        %v636 = vld [vmem:[%s628 + $0x1c] sm:$0xf]
        %v637 = vld [vmem:[%s628 + $0x20] sm:$0xf]
        %v638 = vld [vmem:[%s628 + $0x24] sm:$0xf]
        %v639 = vld [vmem:[%s628 + $0x28] sm:$0xf]
        %v640 = vld [vmem:[%s628 + $0x2c] sm:$0xf]
        %v641 = vld [vmem:[%s628 + $0x30] sm:$0xf]
        %v642 = vld [vmem:[%s628 + $0x34] sm:$0xf]
        %v643 = vld [vmem:[%s628 + $0x38] sm:$0xf]
        %v644 = vld [vmem:[%s628 + $0x3c] sm:$0xf]
        %v649 = vunpack.c.l.b16 %v624
        %v650 = vunpack.c.l.b16 %v625
        %v651 = vunpack.c.l.b16 %v626
        %v652 = vunpack.c.l.b16 %v627
        %v653 = vpack.c.b16 %v650, %v649
        %v654 = vpack.c.b16 %v652, %v651
        %vm655 = vsmask.f32 7424
        %v657 = vshrl.u32 %v653, 16
        %v659 = vshll.u32 %v653, 16
        %v661 = vrot.slane %v659, 1
        %v662 = vor.u32 %v657, %v661
        %v664 = vshll.u32 %v654, 16
        %v666 = vrot.slane %v664, 1
        %v667 = vsel %vm655, %v662, %v666
        %v668 = vshrl.u32 %v654, 16
        %v670 = vor.u32 %v668, %v666
        %v689 = vunpack.c.l.b16 %v629
        %v690 = vunpack.c.l.b16 %v630
        %v691 = vunpack.c.l.b16 %v631
        %v692 = vunpack.c.l.b16 %v632
        %v693 = vunpack.c.l.b16 %v633
        %v694 = vunpack.c.l.b16 %v634
        %v695 = vunpack.c.l.b16 %v635
        %v696 = vunpack.c.l.b16 %v636
        %v697 = vunpack.c.l.b16 %v637
        %v698 = vunpack.c.l.b16 %v638
        %v699 = vunpack.c.l.b16 %v639
        %v700 = vunpack.c.l.b16 %v640
        %v701 = vunpack.c.l.b16 %v641
        %v702 = vunpack.c.l.b16 %v642
        %v703 = vunpack.c.l.b16 %v643
        %v704 = vunpack.c.l.b16 %v644
        %v705 = vpack.c.b16 %v690, %v689
        %v706 = vpack.c.b16 %v692, %v691
        %v707 = vpack.c.b16 %v694, %v693
        %v708 = vpack.c.b16 %v696, %v695
        %v709 = vpack.c.b16 %v698, %v697
        %v710 = vpack.c.b16 %v700, %v699
        %v711 = vpack.c.b16 %v702, %v701
        %v712 = vpack.c.b16 %v704, %v703
        %721 = vmatprep.subr.bf16.mxu0 0
        %722 = vmatpush1.bf16.msra.mxu0 %v705
        %723 = vmatprep.subr.bf16.mxu0 0
        %724 = vmatpush1.bf16.msra.mxu0 %v706
        %725 = vmatprep.subr.bf16.mxu0 0
        %726 = vmatpush1.bf16.msra.mxu0 %v707
        %727 = vmatprep.subr.bf16.mxu0 0
        %728 = vmatpush1.bf16.msra.mxu0 %v708
        %729 = vmatprep.subr.bf16.mxu0 0
        %730 = vmatpush1.bf16.msra.mxu0 %v709
        %731 = vmatprep.subr.bf16.mxu0 0
        %732 = vmatpush1.bf16.msra.mxu0 %v710
        %733 = vmatprep.subr.bf16.mxu0 0
        %734 = vmatpush1.bf16.msra.mxu0 %v711
        %735 = vmatprep.subr.bf16.mxu0 0
        %736 = vmatpush1.bf16.msra.mxu0 %v712
        %737 = vmatprep.subr.bf16.mxu0 0
        %738 = vmatpush1.bf16.msra.mxu0 0
        %739 = vmatprep.subr.bf16.mxu0 0
        %740 = vmatpush1.bf16.msra.mxu0 0
        %741 = vmatprep.subr.bf16.mxu0 0
        %742 = vmatpush1.bf16.msra.mxu0 0
        %743 = vmatprep.subr.bf16.mxu0 0
        %744 = vmatpush1.bf16.msra.mxu0 0
        %745 = vmatprep.subr.bf16.mxu0 0
        %746 = vmatpush1.bf16.msra.mxu0 0
        %747 = vmatprep.subr.bf16.mxu0 0
        %748 = vmatpush1.bf16.msra.mxu0 0
        %749 = vmatprep.subr.bf16.mxu0 0
        %750 = vmatpush1.bf16.msra.mxu0 0
        %751 = vmatprep.subr.bf16.mxu0 0
        %752 = vmatpush1.bf16.msra.mxu0 0
        %753 = vmatprep.mubr.bf16.mxu0 0
        %754 = vmatmul.mubr.bf16.gmra.mrb[0].mxu0 %v667
        %v755 = vpop.f32.mrb[0].mxu0
        %v756 = vadd.f32 0.0, %v755
        %v757 = vpop.f32.mrb[0].mxu0
        %v758 = vpop.f32.mrb[0].mxu0
        %v759 = vadd.f32 0.0, %v758
        %v760 = vpop.f32.mrb[0].mxu0
        %761 = vmatprep.mubr.bf16.mxu0 0
        %762 = vmatmul.mubr.bf16.gmra.mrb[0].mxu0 %v670
        %v763 = vpop.f32.mrb[0].mxu0
        %v764 = vadd.f32 0.0, %v763
        %v765 = vpop.f32.mrb[0].mxu0
        %v766 = vpop.f32.mrb[0].mxu0
        %v767 = vpop.f32.mrb[0].mxu0
        %768 = vdwg.mxu0
        %v769 = vadd.f32 %v611, %v756
        %v770 = vadd.f32 %v614, %v759
        %v771 = vadd.f32 %v619, %v764
        %v772 = vld [vmem:[%s391] sm:$0xf]
        %v773 = vld [vmem:[%s391 + $0x4] sm:$0xf]
        %v774 = vld [vmem:[%s391 + $0x8] sm:$0xf]
        %v775 = vld [vmem:[%s391 + $0xc] sm:$0x1]
        %s776 = scalar_lea.vmem %s1, 192
        %v777 = vld [vmem:[%s776] sm:$0xf]
        %v778 = vld [vmem:[%s776 + $0x4] sm:$0xf]
        %v779 = vld [vmem:[%s776 + $0x8] sm:$0xf]
        %v780 = vld [vmem:[%s776 + $0xc] sm:$0xf]
        %v781 = vld [vmem:[%s776 + $0x10] sm:$0xf]
        %v782 = vld [vmem:[%s776 + $0x14] sm:$0xf]
        %v783 = vld [vmem:[%s776 + $0x18] sm:$0xf]
        %v784 = vld [vmem:[%s776 + $0x1c] sm:$0xf]
        %v785 = vld [vmem:[%s776 + $0x20] sm:$0xf]
        %v786 = vld [vmem:[%s776 + $0x24] sm:$0xf]
        %v787 = vld [vmem:[%s776 + $0x28] sm:$0xf]
        %v788 = vld [vmem:[%s776 + $0x2c] sm:$0xf]
        %v789 = vld [vmem:[%s776 + $0x30] sm:$0xf]
        %v790 = vld [vmem:[%s776 + $0x34] sm:$0xf]
        %v791 = vld [vmem:[%s776 + $0x38] sm:$0xf]
        %v792 = vld [vmem:[%s776 + $0x3c] sm:$0xf]
        %v797 = vunpack.c.l.b16 %v772
        %v798 = vunpack.c.l.b16 %v773
        %v799 = vunpack.c.l.b16 %v774
        %v800 = vunpack.c.l.b16 %v775
        %v801 = vpack.c.b16 %v798, %v797
        %v802 = vpack.c.b16 %v800, %v799
        %v804 = vshrl.u32 %v801, 16
        %v806 = vshll.u32 %v801, 16
        %v808 = vrot.slane %v806, 1
        %v809 = vor.u32 %v804, %v808
        %v811 = vshll.u32 %v802, 16
        %v813 = vrot.slane %v811, 1
        %v814 = vsel %vm655, %v809, %v813
        %v815 = vshrl.u32 %v802, 16
        %v817 = vor.u32 %v815, %v813
        %v836 = vunpack.c.l.b16 %v777
        %v837 = vunpack.c.l.b16 %v778
        %v838 = vunpack.c.l.b16 %v779
        %v839 = vunpack.c.l.b16 %v780
        %v840 = vunpack.c.l.b16 %v781
        %v841 = vunpack.c.l.b16 %v782
        %v842 = vunpack.c.l.b16 %v783
        %v843 = vunpack.c.l.b16 %v784
        %v844 = vunpack.c.l.b16 %v785
        %v845 = vunpack.c.l.b16 %v786
        %v846 = vunpack.c.l.b16 %v787
        %v847 = vunpack.c.l.b16 %v788
        %v848 = vunpack.c.l.b16 %v789
        %v849 = vunpack.c.l.b16 %v790
        %v850 = vunpack.c.l.b16 %v791
        %v851 = vunpack.c.l.b16 %v792
        %v852 = vpack.c.b16 %v837, %v836
        %v853 = vpack.c.b16 %v839, %v838
        %v854 = vpack.c.b16 %v841, %v840
        %v855 = vpack.c.b16 %v843, %v842
        %v856 = vpack.c.b16 %v845, %v844
        %v857 = vpack.c.b16 %v847, %v846
        %v858 = vpack.c.b16 %v849, %v848
        %v859 = vpack.c.b16 %v851, %v850
        %868 = vmatprep.subr.bf16.mxu0 0
        %869 = vmatpush1.bf16.msra.mxu0 %v852
        %870 = vmatprep.subr.bf16.mxu0 0
        %871 = vmatpush1.bf16.msra.mxu0 %v853
        %872 = vmatprep.subr.bf16.mxu0 0
        %873 = vmatpush1.bf16.msra.mxu0 %v854
        %874 = vmatprep.subr.bf16.mxu0 0
        %875 = vmatpush1.bf16.msra.mxu0 %v855
        %876 = vmatprep.subr.bf16.mxu0 0
        %877 = vmatpush1.bf16.msra.mxu0 %v856
        %878 = vmatprep.subr.bf16.mxu0 0
        %879 = vmatpush1.bf16.msra.mxu0 %v857
        %880 = vmatprep.subr.bf16.mxu0 0
        %881 = vmatpush1.bf16.msra.mxu0 %v858
        %882 = vmatprep.subr.bf16.mxu0 0
        %883 = vmatpush1.bf16.msra.mxu0 %v859
        %884 = vmatprep.subr.bf16.mxu0 0
        %885 = vmatpush1.bf16.msra.mxu0 0
        %886 = vmatprep.subr.bf16.mxu0 0
        %887 = vmatpush1.bf16.msra.mxu0 0
        %888 = vmatprep.subr.bf16.mxu0 0
        %889 = vmatpush1.bf16.msra.mxu0 0
        %890 = vmatprep.subr.bf16.mxu0 0
        %891 = vmatpush1.bf16.msra.mxu0 0
        %892 = vmatprep.subr.bf16.mxu0 0
        %893 = vmatpush1.bf16.msra.mxu0 0
        %894 = vmatprep.subr.bf16.mxu0 0
        %895 = vmatpush1.bf16.msra.mxu0 0
        %896 = vmatprep.subr.bf16.mxu0 0
        %897 = vmatpush1.bf16.msra.mxu0 0
        %898 = vmatprep.subr.bf16.mxu0 0
        %899 = vmatpush1.bf16.msra.mxu0 0
        %900 = vmatprep.mubr.bf16.mxu0 0
        %901 = vmatmul.mubr.bf16.gmra.mrb[0].mxu0 %v814
        %v902 = vpop.f32.mrb[0].mxu0
        %v903 = vadd.f32 0.0, %v902
        %v904 = vpop.f32.mrb[0].mxu0
        %v905 = vpop.f32.mrb[0].mxu0
        %v906 = vadd.f32 0.0, %v905
        %v907 = vpop.f32.mrb[0].mxu0
        %908 = vmatprep.mubr.bf16.mxu0 0
        %909 = vmatmul.mubr.bf16.gmra.mrb[0].mxu0 %v817
        %v910 = vpop.f32.mrb[0].mxu0
        %v911 = vadd.f32 0.0, %v910
        %v912 = vpop.f32.mrb[0].mxu0
        %v913 = vpop.f32.mrb[0].mxu0
        %v914 = vpop.f32.mrb[0].mxu0
        %915 = vdwg.mxu0
        %v916 = vadd.f32 %v769, %v903
        %v917 = vadd.f32 %v770, %v906
        %v918 = vadd.f32 %v771, %v911
        %s919 = scalar_lea.vmem %s327, 32 [#allocation2]
        %v920 = vld [vmem:[%s919] sm:$0xf]
        %v921 = vld [vmem:[%s919 + $0x4] sm:$0xf]
        %v922 = vld [vmem:[%s919 + $0x8] sm:$0xf]
        %s923 = scalar_lea.vmem %s1, 256
        %v924 = vld [vmem:[%s923] sm:$0xf]
        %v925 = vld [vmem:[%s923 + $0x4] sm:$0xf]
        %v926 = vld [vmem:[%s923 + $0x8] sm:$0xf]
        %v927 = vld [vmem:[%s923 + $0xc] sm:$0xf]
        %v928 = vld [vmem:[%s923 + $0x10] sm:$0xf]
        %v929 = vld [vmem:[%s923 + $0x14] sm:$0xf]
        %v930 = vld [vmem:[%s923 + $0x18] sm:$0xf]
        %v931 = vld [vmem:[%s923 + $0x1c] sm:$0xf]
        %v932 = vld [vmem:[%s923 + $0x20] sm:$0xf]
        %v933 = vld [vmem:[%s923 + $0x24] sm:$0xf]
        %v934 = vld [vmem:[%s923 + $0x28] sm:$0xf]
        %v935 = vld [vmem:[%s923 + $0x2c] sm:$0xf]
        %v936 = vld [vmem:[%s923 + $0x30] sm:$0xf]
        %v937 = vld [vmem:[%s923 + $0x34] sm:$0xf]
        %v938 = vld [vmem:[%s923 + $0x38] sm:$0xf]
        %v939 = vld [vmem:[%s923 + $0x3c] sm:$0xf]
        %v943 = vunpack.c.l.b16 %v920
        %v944 = vunpack.c.l.b16 %v921
        %v945 = vunpack.c.l.b16 %v922
        %v946 = vpack.c.b16 %v944, %v943
        %v947 = vpack.c.b16 %v945, %v945
        %v966 = vunpack.c.l.b16 %v924
        %v967 = vunpack.c.l.b16 %v925
        %v968 = vunpack.c.l.b16 %v926
        %v969 = vunpack.c.l.b16 %v927
        %v970 = vunpack.c.l.b16 %v928
        %v971 = vunpack.c.l.b16 %v929
        %v972 = vunpack.c.l.b16 %v930
        %v973 = vunpack.c.l.b16 %v931
        %v974 = vunpack.c.l.b16 %v932
        %v975 = vunpack.c.l.b16 %v933
        %v976 = vunpack.c.l.b16 %v934
        %v977 = vunpack.c.l.b16 %v935
        %v978 = vunpack.c.l.b16 %v936
        %v979 = vunpack.c.l.b16 %v937
        %v980 = vunpack.c.l.b16 %v938
        %v981 = vunpack.c.l.b16 %v939
        %v982 = vpack.c.b16 %v967, %v966
        %v983 = vpack.c.b16 %v969, %v968
        %v984 = vpack.c.b16 %v971, %v970
        %v985 = vpack.c.b16 %v973, %v972
        %v986 = vpack.c.b16 %v975, %v974
        %v987 = vpack.c.b16 %v977, %v976
        %v988 = vpack.c.b16 %v979, %v978
        %v989 = vpack.c.b16 %v981, %v980
        %998 = vmatprep.subr.bf16.mxu0 0
        %999 = vmatpush1.bf16.msra.mxu0 %v982
        %1000 = vmatprep.subr.bf16.mxu0 0
        %1001 = vmatpush1.bf16.msra.mxu0 %v983
        %1002 = vmatprep.subr.bf16.mxu0 0
        %1003 = vmatpush1.bf16.msra.mxu0 %v984
        %1004 = vmatprep.subr.bf16.mxu0 0
        %1005 = vmatpush1.bf16.msra.mxu0 %v985
        %1006 = vmatprep.subr.bf16.mxu0 0
        %1007 = vmatpush1.bf16.msra.mxu0 %v986
        %1008 = vmatprep.subr.bf16.mxu0 0
        %1009 = vmatpush1.bf16.msra.mxu0 %v987
        %1010 = vmatprep.subr.bf16.mxu0 0
        %1011 = vmatpush1.bf16.msra.mxu0 %v988
        %1012 = vmatprep.subr.bf16.mxu0 0
        %1013 = vmatpush1.bf16.msra.mxu0 %v989
        %1014 = vmatprep.subr.bf16.mxu0 0
        %1015 = vmatpush1.bf16.msra.mxu0 0
        %1016 = vmatprep.subr.bf16.mxu0 0
        %1017 = vmatpush1.bf16.msra.mxu0 0
        %1018 = vmatprep.subr.bf16.mxu0 0
        %1019 = vmatpush1.bf16.msra.mxu0 0
        %1020 = vmatprep.subr.bf16.mxu0 0
        %1021 = vmatpush1.bf16.msra.mxu0 0
        %1022 = vmatprep.subr.bf16.mxu0 0
        %1023 = vmatpush1.bf16.msra.mxu0 0
        %1024 = vmatprep.subr.bf16.mxu0 0
        %1025 = vmatpush1.bf16.msra.mxu0 0
        %1026 = vmatprep.subr.bf16.mxu0 0
        %1027 = vmatpush1.bf16.msra.mxu0 0
        %1028 = vmatprep.subr.bf16.mxu0 0
        %1029 = vmatpush1.bf16.msra.mxu0 0
        %1030 = vmatprep.mubr.bf16.mxu0 0
        %1031 = vmatmul.mubr.bf16.gmra.mrb[0].mxu0 %v946
        %v1032 = vpop.f32.mrb[0].mxu0
        %v1033 = vadd.f32 0.0, %v1032
        %v1034 = vpop.f32.mrb[0].mxu0
        %v1035 = vpop.f32.mrb[0].mxu0
        %v1036 = vadd.f32 0.0, %v1035
        %v1037 = vpop.f32.mrb[0].mxu0
        %1038 = vmatprep.mubr.bf16.mxu0 0
        %1039 = vmatmul.mubr.bf16.gmra.mrb[0].mxu0 %v947
        %v1040 = vpop.f32.mrb[0].mxu0
        %v1041 = vadd.f32 0.0, %v1040
        %v1042 = vpop.f32.mrb[0].mxu0
        %v1043 = vpop.f32.mrb[0].mxu0
        %v1044 = vpop.f32.mrb[0].mxu0
        %1045 = vdwg.mxu0
        %v1046 = vadd.f32 %v916, %v1033
        %v1047 = vadd.f32 %v917, %v1036
        %v1048 = vadd.f32 %v918, %v1041
        %s1049 = scalar_lea.vmem %s327, 48 [#allocation2]
        %v1050 = vld [vmem:[%s1049] sm:$0xf]
        %v1051 = vld [vmem:[%s1049 + $0x4] sm:$0xf]
        %v1052 = vld [vmem:[%s1049 + $0x8] sm:$0xf]
        %s1053 = scalar_lea.vmem %s1, 320
        %v1054 = vld [vmem:[%s1053] sm:$0xf]
        %v1055 = vld [vmem:[%s1053 + $0x4] sm:$0xf]
        %v1056 = vld [vmem:[%s1053 + $0x8] sm:$0xf]
        %v1057 = vld [vmem:[%s1053 + $0xc] sm:$0xf]
        %v1058 = vld [vmem:[%s1053 + $0x10] sm:$0xf]
        %v1059 = vld [vmem:[%s1053 + $0x14] sm:$0xf]
        %v1060 = vld [vmem:[%s1053 + $0x18] sm:$0xf]
        %v1061 = vld [vmem:[%s1053 + $0x1c] sm:$0xf]
        %v1062 = vld [vmem:[%s1053 + $0x20] sm:$0xf]
        %v1063 = vld [vmem:[%s1053 + $0x24] sm:$0xf]
        %v1064 = vld [vmem:[%s1053 + $0x28] sm:$0xf]
        %v1065 = vld [vmem:[%s1053 + $0x2c] sm:$0xf]
        %v1066 = vld [vmem:[%s1053 + $0x30] sm:$0xf]
        %v1067 = vld [vmem:[%s1053 + $0x34] sm:$0xf]
        %v1068 = vld [vmem:[%s1053 + $0x38] sm:$0xf]
        %v1069 = vld [vmem:[%s1053 + $0x3c] sm:$0xf]
        %v1073 = vunpack.c.l.b16 %v1050
        %v1074 = vunpack.c.l.b16 %v1051
        %v1075 = vunpack.c.l.b16 %v1052
        %v1076 = vpack.c.b16 %v1074, %v1073
        %v1077 = vpack.c.b16 %v1075, %v1075
        %v1096 = vunpack.c.l.b16 %v1054
        %v1097 = vunpack.c.l.b16 %v1055
        %v1098 = vunpack.c.l.b16 %v1056
        %v1099 = vunpack.c.l.b16 %v1057
        %v1100 = vunpack.c.l.b16 %v1058
        %v1101 = vunpack.c.l.b16 %v1059
        %v1102 = vunpack.c.l.b16 %v1060
        %v1103 = vunpack.c.l.b16 %v1061
        %v1104 = vunpack.c.l.b16 %v1062
        %v1105 = vunpack.c.l.b16 %v1063
        %v1106 = vunpack.c.l.b16 %v1064
        %v1107 = vunpack.c.l.b16 %v1065
        %v1108 = vunpack.c.l.b16 %v1066
        %v1109 = vunpack.c.l.b16 %v1067
        %v1110 = vunpack.c.l.b16 %v1068
        %v1111 = vunpack.c.l.b16 %v1069
        %v1112 = vpack.c.b16 %v1097, %v1096
        %v1113 = vpack.c.b16 %v1099, %v1098
        %v1114 = vpack.c.b16 %v1101, %v1100
        %v1115 = vpack.c.b16 %v1103, %v1102
        %v1116 = vpack.c.b16 %v1105, %v1104
        %v1117 = vpack.c.b16 %v1107, %v1106
        %v1118 = vpack.c.b16 %v1109, %v1108
        %v1119 = vpack.c.b16 %v1111, %v1110
        %1128 = vmatprep.subr.bf16.mxu0 0
        %1129 = vmatpush1.bf16.msra.mxu0 %v1112
        %1130 = vmatprep.subr.bf16.mxu0 0
        %1131 = vmatpush1.bf16.msra.mxu0 %v1113
        %1132 = vmatprep.subr.bf16.mxu0 0
        %1133 = vmatpush1.bf16.msra.mxu0 %v1114
        %1134 = vmatprep.subr.bf16.mxu0 0
        %1135 = vmatpush1.bf16.msra.mxu0 %v1115
        %1136 = vmatprep.subr.bf16.mxu0 0
        %1137 = vmatpush1.bf16.msra.mxu0 %v1116
        %1138 = vmatprep.subr.bf16.mxu0 0
        %1139 = vmatpush1.bf16.msra.mxu0 %v1117
        %1140 = vmatprep.subr.bf16.mxu0 0
        %1141 = vmatpush1.bf16.msra.mxu0 %v1118
        %1142 = vmatprep.subr.bf16.mxu0 0
        %1143 = vmatpush1.bf16.msra.mxu0 %v1119
        %1144 = vmatprep.subr.bf16.mxu0 0
        %1145 = vmatpush1.bf16.msra.mxu0 0
        %1146 = vmatprep.subr.bf16.mxu0 0
        %1147 = vmatpush1.bf16.msra.mxu0 0
        %1148 = vmatprep.subr.bf16.mxu0 0
        %1149 = vmatpush1.bf16.msra.mxu0 0
        %1150 = vmatprep.subr.bf16.mxu0 0
        %1151 = vmatpush1.bf16.msra.mxu0 0
        %1152 = vmatprep.subr.bf16.mxu0 0
        %1153 = vmatpush1.bf16.msra.mxu0 0
        %1154 = vmatprep.subr.bf16.mxu0 0
        %1155 = vmatpush1.bf16.msra.mxu0 0
        %1156 = vmatprep.subr.bf16.mxu0 0
        %1157 = vmatpush1.bf16.msra.mxu0 0
        %1158 = vmatprep.subr.bf16.mxu0 0
        %1159 = vmatpush1.bf16.msra.mxu0 0
        %1160 = vmatprep.mubr.bf16.mxu0 0
        %1161 = vmatmul.mubr.bf16.gmra.mrb[0].mxu0 %v1076
        %v1162 = vpop.f32.mrb[0].mxu0
        %v1163 = vadd.f32 0.0, %v1162
        %v1164 = vpop.f32.mrb[0].mxu0
        %v1165 = vpop.f32.mrb[0].mxu0
        %v1166 = vadd.f32 0.0, %v1165
        %v1167 = vpop.f32.mrb[0].mxu0
        %1168 = vmatprep.mubr.bf16.mxu0 0
        %1169 = vmatmul.mubr.bf16.gmra.mrb[0].mxu0 %v1077
        %v1170 = vpop.f32.mrb[0].mxu0
        %v1171 = vadd.f32 0.0, %v1170
        %v1172 = vpop.f32.mrb[0].mxu0
        %v1173 = vpop.f32.mrb[0].mxu0
        %v1174 = vpop.f32.mrb[0].mxu0
        %1175 = vdwg.mxu0
        %v1176 = vadd.f32 %v1046, %v1163
        %v1177 = vadd.f32 %v1047, %v1166
        %v1178 = vadd.f32 %v1048, %v1171
        %v1179 = vld [vmem:[%s919] sm:$0xf]
        %v1180 = vld [vmem:[%s919 + $0x4] sm:$0xf]
        %v1181 = vld [vmem:[%s919 + $0x8] sm:$0xf]
        %v1182 = vld [vmem:[%s919 + $0xc] sm:$0x1]
        %s1183 = scalar_lea.vmem %s1, 384
        %v1184 = vld [vmem:[%s1183] sm:$0xf]
        %v1185 = vld [vmem:[%s1183 + $0x4] sm:$0xf]
        %v1186 = vld [vmem:[%s1183 + $0x8] sm:$0xf]
        %v1187 = vld [vmem:[%s1183 + $0xc] sm:$0xf]
        %v1188 = vld [vmem:[%s1183 + $0x10] sm:$0xf]
        %v1189 = vld [vmem:[%s1183 + $0x14] sm:$0xf]
        %v1190 = vld [vmem:[%s1183 + $0x18] sm:$0xf]
        %v1191 = vld [vmem:[%s1183 + $0x1c] sm:$0xf]
        %v1192 = vld [vmem:[%s1183 + $0x20] sm:$0xf]
        %v1193 = vld [vmem:[%s1183 + $0x24] sm:$0xf]
        %v1194 = vld [vmem:[%s1183 + $0x28] sm:$0xf]
        %v1195 = vld [vmem:[%s1183 + $0x2c] sm:$0xf]
        %v1196 = vld [vmem:[%s1183 + $0x30] sm:$0xf]
        %v1197 = vld [vmem:[%s1183 + $0x34] sm:$0xf]
        %v1198 = vld [vmem:[%s1183 + $0x38] sm:$0xf]
        %v1199 = vld [vmem:[%s1183 + $0x3c] sm:$0xf]
        %v1204 = vunpack.c.l.b16 %v1179
        %v1205 = vunpack.c.l.b16 %v1180
        %v1206 = vunpack.c.l.b16 %v1181
        %v1207 = vunpack.c.l.b16 %v1182
        %v1208 = vpack.c.b16 %v1205, %v1204
        %v1209 = vpack.c.b16 %v1207, %v1206
        %v1211 = vshrl.u32 %v1208, 16
        %v1213 = vshll.u32 %v1208, 16
        %v1215 = vrot.slane %v1213, 1
        %v1216 = vor.u32 %v1211, %v1215
        %v1218 = vshll.u32 %v1209, 16
        %v1220 = vrot.slane %v1218, 1
        %v1221 = vsel %vm655, %v1216, %v1220
        %v1222 = vshrl.u32 %v1209, 16
        %v1224 = vor.u32 %v1222, %v1220
        %v1243 = vunpack.c.l.b16 %v1184
        %v1244 = vunpack.c.l.b16 %v1185
        %v1245 = vunpack.c.l.b16 %v1186
        %v1246 = vunpack.c.l.b16 %v1187
        %v1247 = vunpack.c.l.b16 %v1188
        %v1248 = vunpack.c.l.b16 %v1189
        %v1249 = vunpack.c.l.b16 %v1190
        %v1250 = vunpack.c.l.b16 %v1191
        %v1251 = vunpack.c.l.b16 %v1192
        %v1252 = vunpack.c.l.b16 %v1193
        %v1253 = vunpack.c.l.b16 %v1194
        %v1254 = vunpack.c.l.b16 %v1195
        %v1255 = vunpack.c.l.b16 %v1196
        %v1256 = vunpack.c.l.b16 %v1197
        %v1257 = vunpack.c.l.b16 %v1198
        %v1258 = vunpack.c.l.b16 %v1199
        %v1259 = vpack.c.b16 %v1244, %v1243
        %v1260 = vpack.c.b16 %v1246, %v1245
        %v1261 = vpack.c.b16 %v1248, %v1247
        %v1262 = vpack.c.b16 %v1250, %v1249
        %v1263 = vpack.c.b16 %v1252, %v1251
        %v1264 = vpack.c.b16 %v1254, %v1253
        %v1265 = vpack.c.b16 %v1256, %v1255
        %v1266 = vpack.c.b16 %v1258, %v1257
        %1275 = vmatprep.subr.bf16.mxu0 0
        %1276 = vmatpush1.bf16.msra.mxu0 %v1259
        %1277 = vmatprep.subr.bf16.mxu0 0
        %1278 = vmatpush1.bf16.msra.mxu0 %v1260
        %1279 = vmatprep.subr.bf16.mxu0 0
        %1280 = vmatpush1.bf16.msra.mxu0 %v1261
        %1281 = vmatprep.subr.bf16.mxu0 0
        %1282 = vmatpush1.bf16.msra.mxu0 %v1262
        %1283 = vmatprep.subr.bf16.mxu0 0
        %1284 = vmatpush1.bf16.msra.mxu0 %v1263
        %1285 = vmatprep.subr.bf16.mxu0 0
        %1286 = vmatpush1.bf16.msra.mxu0 %v1264
        %1287 = vmatprep.subr.bf16.mxu0 0
        %1288 = vmatpush1.bf16.msra.mxu0 %v1265
        %1289 = vmatprep.subr.bf16.mxu0 0
        %1290 = vmatpush1.bf16.msra.mxu0 %v1266
        %1291 = vmatprep.subr.bf16.mxu0 0
        %1292 = vmatpush1.bf16.msra.mxu0 0
        %1293 = vmatprep.subr.bf16.mxu0 0
        %1294 = vmatpush1.bf16.msra.mxu0 0
        %1295 = vmatprep.subr.bf16.mxu0 0
        %1296 = vmatpush1.bf16.msra.mxu0 0
        %1297 = vmatprep.subr.bf16.mxu0 0
        %1298 = vmatpush1.bf16.msra.mxu0 0
        %1299 = vmatprep.subr.bf16.mxu0 0
        %1300 = vmatpush1.bf16.msra.mxu0 0
        %1301 = vmatprep.subr.bf16.mxu0 0
        %1302 = vmatpush1.bf16.msra.mxu0 0
        %1303 = vmatprep.subr.bf16.mxu0 0
        %1304 = vmatpush1.bf16.msra.mxu0 0
        %1305 = vmatprep.subr.bf16.mxu0 0
        %1306 = vmatpush1.bf16.msra.mxu0 0
        %1307 = vmatprep.mubr.bf16.mxu0 0
        %1308 = vmatmul.mubr.bf16.gmra.mrb[0].mxu0 %v1221
        %v1309 = vpop.f32.mrb[0].mxu0
        %v1310 = vadd.f32 0.0, %v1309
        %v1311 = vpop.f32.mrb[0].mxu0
        %v1312 = vpop.f32.mrb[0].mxu0
        %v1313 = vadd.f32 0.0, %v1312
        %v1314 = vpop.f32.mrb[0].mxu0
        %1315 = vmatprep.mubr.bf16.mxu0 0
        %1316 = vmatmul.mubr.bf16.gmra.mrb[0].mxu0 %v1224
        %v1317 = vpop.f32.mrb[0].mxu0
        %v1318 = vadd.f32 0.0, %v1317
        %v1319 = vpop.f32.mrb[0].mxu0
        %v1320 = vpop.f32.mrb[0].mxu0
        %v1321 = vpop.f32.mrb[0].mxu0
        %1322 = vdwg.mxu0
        %v1323 = vadd.f32 %v1176, %v1310
        %v1324 = vadd.f32 %v1177, %v1313
        %v1325 = vadd.f32 %v1178, %v1318
        %v1326 = vld [vmem:[%s1049] sm:$0xf]
        %v1327 = vld [vmem:[%s1049 + $0x4] sm:$0xf]
        %v1328 = vld [vmem:[%s1049 + $0x8] sm:$0xf]
        %v1329 = vld [vmem:[%s1049 + $0xc] sm:$0x1]
        %s1330 = scalar_lea.vmem %s1, 448
        %v1331 = vld [vmem:[%s1330] sm:$0xf]
        %v1332 = vld [vmem:[%s1330 + $0x4] sm:$0xf]
        %v1333 = vld [vmem:[%s1330 + $0x8] sm:$0xf]
        %v1334 = vld [vmem:[%s1330 + $0xc] sm:$0xf]
        %v1335 = vld [vmem:[%s1330 + $0x10] sm:$0xf]
        %v1336 = vld [vmem:[%s1330 + $0x14] sm:$0xf]
        %v1337 = vld [vmem:[%s1330 + $0x18] sm:$0xf]
        %v1338 = vld [vmem:[%s1330 + $0x1c] sm:$0xf]
        %v1339 = vld [vmem:[%s1330 + $0x20] sm:$0xf]
        %v1340 = vld [vmem:[%s1330 + $0x24] sm:$0xf]
        %v1341 = vld [vmem:[%s1330 + $0x28] sm:$0xf]
        %v1342 = vld [vmem:[%s1330 + $0x2c] sm:$0xf]
        %v1343 = vld [vmem:[%s1330 + $0x30] sm:$0xf]
        %v1344 = vld [vmem:[%s1330 + $0x34] sm:$0xf]
        %v1345 = vld [vmem:[%s1330 + $0x38] sm:$0xf]
        %v1346 = vld [vmem:[%s1330 + $0x3c] sm:$0xf]
        %v1351 = vunpack.c.l.b16 %v1326
        %v1352 = vunpack.c.l.b16 %v1327
        %v1353 = vunpack.c.l.b16 %v1328
        %v1354 = vunpack.c.l.b16 %v1329
        %v1355 = vpack.c.b16 %v1352, %v1351
        %v1356 = vpack.c.b16 %v1354, %v1353
        %v1358 = vshrl.u32 %v1355, 16
        %v1360 = vshll.u32 %v1355, 16
        %v1362 = vrot.slane %v1360, 1
        %v1363 = vor.u32 %v1358, %v1362
        %v1365 = vshll.u32 %v1356, 16
        %v1367 = vrot.slane %v1365, 1
        %v1368 = vsel %vm655, %v1363, %v1367
        %v1369 = vshrl.u32 %v1356, 16
        %v1371 = vor.u32 %v1369, %v1367
        %v1390 = vunpack.c.l.b16 %v1331
        %v1391 = vunpack.c.l.b16 %v1332
        %v1392 = vunpack.c.l.b16 %v1333
        %v1393 = vunpack.c.l.b16 %v1334
        %v1394 = vunpack.c.l.b16 %v1335
        %v1395 = vunpack.c.l.b16 %v1336
        %v1396 = vunpack.c.l.b16 %v1337
        %v1397 = vunpack.c.l.b16 %v1338
        %v1398 = vunpack.c.l.b16 %v1339
        %v1399 = vunpack.c.l.b16 %v1340
        %v1400 = vunpack.c.l.b16 %v1341
        %v1401 = vunpack.c.l.b16 %v1342
        %v1402 = vunpack.c.l.b16 %v1343
        %v1403 = vunpack.c.l.b16 %v1344
        %v1404 = vunpack.c.l.b16 %v1345
        %v1405 = vunpack.c.l.b16 %v1346
        %v1406 = vpack.c.b16 %v1391, %v1390
        %v1407 = vpack.c.b16 %v1393, %v1392
        %v1408 = vpack.c.b16 %v1395, %v1394
        %v1409 = vpack.c.b16 %v1397, %v1396
        %v1410 = vpack.c.b16 %v1399, %v1398
        %v1411 = vpack.c.b16 %v1401, %v1400
        %v1412 = vpack.c.b16 %v1403, %v1402
        %v1413 = vpack.c.b16 %v1405, %v1404
        %1422 = vmatprep.subr.bf16.mxu0 0
        %1423 = vmatpush1.bf16.msra.mxu0 %v1406
        %1424 = vmatprep.subr.bf16.mxu0 0
        %1425 = vmatpush1.bf16.msra.mxu0 %v1407
        %1426 = vmatprep.subr.bf16.mxu0 0
        %1427 = vmatpush1.bf16.msra.mxu0 %v1408
        %1428 = vmatprep.subr.bf16.mxu0 0
        %1429 = vmatpush1.bf16.msra.mxu0 %v1409
        %1430 = vmatprep.subr.bf16.mxu0 0
        %1431 = vmatpush1.bf16.msra.mxu0 %v1410
        %1432 = vmatprep.subr.bf16.mxu0 0
        %1433 = vmatpush1.bf16.msra.mxu0 %v1411
        %1434 = vmatprep.subr.bf16.mxu0 0
        %1435 = vmatpush1.bf16.msra.mxu0 %v1412
        %1436 = vmatprep.subr.bf16.mxu0 0
        %1437 = vmatpush1.bf16.msra.mxu0 %v1413
        %1438 = vmatprep.subr.bf16.mxu0 0
        %1439 = vmatpush1.bf16.msra.mxu0 0
        %1440 = vmatprep.subr.bf16.mxu0 0
        %1441 = vmatpush1.bf16.msra.mxu0 0
        %1442 = vmatprep.subr.bf16.mxu0 0
        %1443 = vmatpush1.bf16.msra.mxu0 0
        %1444 = vmatprep.subr.bf16.mxu0 0
        %1445 = vmatpush1.bf16.msra.mxu0 0
        %1446 = vmatprep.subr.bf16.mxu0 0
        %1447 = vmatpush1.bf16.msra.mxu0 0
        %1448 = vmatprep.subr.bf16.mxu0 0
        %1449 = vmatpush1.bf16.msra.mxu0 0
        %1450 = vmatprep.subr.bf16.mxu0 0
        %1451 = vmatpush1.bf16.msra.mxu0 0
        %1452 = vmatprep.subr.bf16.mxu0 0
        %1453 = vmatpush1.bf16.msra.mxu0 0
        %1454 = vmatprep.mubr.bf16.mxu0 0
        %1455 = vmatmul.mubr.bf16.gmra.mrb[0].mxu0 %v1368
        %v1456 = vpop.f32.mrb[0].mxu0
        %v1457 = vadd.f32 0.0, %v1456
        %v1458 = vpop.f32.mrb[0].mxu0
        %v1459 = vpop.f32.mrb[0].mxu0
        %v1460 = vadd.f32 0.0, %v1459
        %v1461 = vpop.f32.mrb[0].mxu0
        %1462 = vmatprep.mubr.bf16.mxu0 0
        %1463 = vmatmul.mubr.bf16.gmra.mrb[0].mxu0 %v1371
        %v1464 = vpop.f32.mrb[0].mxu0
        %v1465 = vadd.f32 0.0, %v1464
        %v1466 = vpop.f32.mrb[0].mxu0
        %v1467 = vpop.f32.mrb[0].mxu0
        %v1468 = vpop.f32.mrb[0].mxu0
        %1469 = vdwg.mxu0
        %v1470 = vadd.f32 %v1323, %v1457
        %v1471 = vadd.f32 %v1324, %v1460
        %v1472 = vadd.f32 %v1325, %v1465
        %v1473 = vld [vmem:[%s327] sm:$0xc]
        %v1474 = vld [vmem:[%s327 + $0xc] sm:$0x7]
        %s1475 = scalar_lea.vmem %s1, 512
        %v1476 = vld [vmem:[%s1475] sm:$0xf]
        %v1477 = vld [vmem:[%s1475 + $0x4] sm:$0xf]
        %v1478 = vld [vmem:[%s1475 + $0x8] sm:$0xf]
        %v1479 = vld [vmem:[%s1475 + $0xc] sm:$0xf]
        %v1480 = vld [vmem:[%s1475 + $0x10] sm:$0xf]
        %v1481 = vld [vmem:[%s1475 + $0x14] sm:$0xf]
        %v1482 = vld [vmem:[%s1475 + $0x18] sm:$0xf]
        %v1483 = vld [vmem:[%s1475 + $0x1c] sm:$0xf]
        %v1484 = vld [vmem:[%s1475 + $0x20] sm:$0xf]
        %v1485 = vld [vmem:[%s1475 + $0x24] sm:$0xf]
        %v1486 = vld [vmem:[%s1475 + $0x28] sm:$0xf]
        %v1487 = vld [vmem:[%s1475 + $0x2c] sm:$0xf]
        %v1488 = vld [vmem:[%s1475 + $0x30] sm:$0xf]
        %v1489 = vld [vmem:[%s1475 + $0x34] sm:$0xf]
        %v1490 = vld [vmem:[%s1475 + $0x38] sm:$0xf]
        %v1491 = vld [vmem:[%s1475 + $0x3c] sm:$0xf]
        %v1494 = vunpack.c.l.b16 %v1473
        %v1495 = vunpack.c.l.b16 %v1474
        %v1496 = vpack.c.b16 %v650, %v1494
        %v1497 = vpack.c.b16 %v1495, %v651
        %vm1498 = vsmask.f32 5376
        %v1500 = vshrl.u32 %v1496, 16
        %v1502 = vrot.slane %v1500, 2
        %v1503 = vshll.u32 %v1496, 16
        %v1505 = vrot.slane %v1503, 3
        %v1506 = vor.u32 %v1502, %v1505
        %v1508 = vshrl.u32 %v1497, 16
        %v1510 = vrot.slane %v1508, 2
        %v1511 = vshll.u32 %v1497, 16
        %v1513 = vrot.slane %v1511, 3
        %v1514 = vor.u32 %v1510, %v1513
        %v1515 = vsel %vm1498, %v1506, %v1514
        %v1534 = vunpack.c.l.b16 %v1476
        %v1535 = vunpack.c.l.b16 %v1477
        %v1536 = vunpack.c.l.b16 %v1478
        %v1537 = vunpack.c.l.b16 %v1479
        %v1538 = vunpack.c.l.b16 %v1480
        %v1539 = vunpack.c.l.b16 %v1481
        %v1540 = vunpack.c.l.b16 %v1482
        %v1541 = vunpack.c.l.b16 %v1483
        %v1542 = vunpack.c.l.b16 %v1484
        %v1543 = vunpack.c.l.b16 %v1485
        %v1544 = vunpack.c.l.b16 %v1486
        %v1545 = vunpack.c.l.b16 %v1487
        %v1546 = vunpack.c.l.b16 %v1488
        %v1547 = vunpack.c.l.b16 %v1489
        %v1548 = vunpack.c.l.b16 %v1490
        %v1549 = vunpack.c.l.b16 %v1491
        %v1550 = vpack.c.b16 %v1535, %v1534
        %v1551 = vpack.c.b16 %v1537, %v1536
        %v1552 = vpack.c.b16 %v1539, %v1538
        %v1553 = vpack.c.b16 %v1541, %v1540
        %v1554 = vpack.c.b16 %v1543, %v1542
        %v1555 = vpack.c.b16 %v1545, %v1544
        %v1556 = vpack.c.b16 %v1547, %v1546
        %v1557 = vpack.c.b16 %v1549, %v1548
        %1566 = vmatprep.subr.bf16.mxu0 0
        %1567 = vmatpush1.bf16.msra.mxu0 %v1550
        %1568 = vmatprep.subr.bf16.mxu0 0
        %1569 = vmatpush1.bf16.msra.mxu0 %v1551
        %1570 = vmatprep.subr.bf16.mxu0 0
        %1571 = vmatpush1.bf16.msra.mxu0 %v1552
        %1572 = vmatprep.subr.bf16.mxu0 0
        %1573 = vmatpush1.bf16.msra.mxu0 %v1553
        %1574 = vmatprep.subr.bf16.mxu0 0
        %1575 = vmatpush1.bf16.msra.mxu0 %v1554
        %1576 = vmatprep.subr.bf16.mxu0 0
        %1577 = vmatpush1.bf16.msra.mxu0 %v1555
        %1578 = vmatprep.subr.bf16.mxu0 0
        %1579 = vmatpush1.bf16.msra.mxu0 %v1556
        %1580 = vmatprep.subr.bf16.mxu0 0
        %1581 = vmatpush1.bf16.msra.mxu0 %v1557
        %1582 = vmatprep.subr.bf16.mxu0 0
        %1583 = vmatpush1.bf16.msra.mxu0 0
        %1584 = vmatprep.subr.bf16.mxu0 0
        %1585 = vmatpush1.bf16.msra.mxu0 0
        %1586 = vmatprep.subr.bf16.mxu0 0
        %1587 = vmatpush1.bf16.msra.mxu0 0
        %1588 = vmatprep.subr.bf16.mxu0 0
        %1589 = vmatpush1.bf16.msra.mxu0 0
        %1590 = vmatprep.subr.bf16.mxu0 0
        %1591 = vmatpush1.bf16.msra.mxu0 0
        %1592 = vmatprep.subr.bf16.mxu0 0
        %1593 = vmatpush1.bf16.msra.mxu0 0
        %1594 = vmatprep.subr.bf16.mxu0 0
        %1595 = vmatpush1.bf16.msra.mxu0 0
        %1596 = vmatprep.subr.bf16.mxu0 0
        %1597 = vmatpush1.bf16.msra.mxu0 0
        %1598 = vmatprep.mubr.bf16.mxu0 0
        %1599 = vmatmul.mubr.bf16.gmra.mrb[0].mxu0 %v1515
        %v1600 = vpop.f32.mrb[0].mxu0
        %v1601 = vadd.f32 0.0, %v1600
        %v1602 = vpop.f32.mrb[0].mxu0
        %v1603 = vpop.f32.mrb[0].mxu0
        %v1604 = vadd.f32 0.0, %v1603
        %v1605 = vpop.f32.mrb[0].mxu0
        %1606 = vmatprep.mubr.bf16.mxu0 0
        %1607 = vmatmul.mubr.bf16.gmra.mrb[0].mxu0 %v1514
        %v1608 = vpop.f32.mrb[0].mxu0
        %v1609 = vadd.f32 0.0, %v1608
        %v1610 = vpop.f32.mrb[0].mxu0
        %v1611 = vpop.f32.mrb[0].mxu0
        %v1612 = vpop.f32.mrb[0].mxu0
        %1613 = vdwg.mxu0
        %v1614 = vadd.f32 %v1470, %v1601
        %v1615 = vadd.f32 %v1471, %v1604
        %v1616 = vadd.f32 %v1472, %v1609
        %v1617 = vld [vmem:[%s391] sm:$0xc]
        %v1618 = vld [vmem:[%s391 + $0xc] sm:$0x7]
        %s1619 = scalar_lea.vmem %s1, 576
        %v1620 = vld [vmem:[%s1619] sm:$0xf]
        %v1621 = vld [vmem:[%s1619 + $0x4] sm:$0xf]
        %v1622 = vld [vmem:[%s1619 + $0x8] sm:$0xf]
        %v1623 = vld [vmem:[%s1619 + $0xc] sm:$0xf]
        %v1624 = vld [vmem:[%s1619 + $0x10] sm:$0xf]
        %v1625 = vld [vmem:[%s1619 + $0x14] sm:$0xf]
        %v1626 = vld [vmem:[%s1619 + $0x18] sm:$0xf]
        %v1627 = vld [vmem:[%s1619 + $0x1c] sm:$0xf]
        %v1628 = vld [vmem:[%s1619 + $0x20] sm:$0xf]
        %v1629 = vld [vmem:[%s1619 + $0x24] sm:$0xf]
        %v1630 = vld [vmem:[%s1619 + $0x28] sm:$0xf]
        %v1631 = vld [vmem:[%s1619 + $0x2c] sm:$0xf]
        %v1632 = vld [vmem:[%s1619 + $0x30] sm:$0xf]
        %v1633 = vld [vmem:[%s1619 + $0x34] sm:$0xf]
        %v1634 = vld [vmem:[%s1619 + $0x38] sm:$0xf]
        %v1635 = vld [vmem:[%s1619 + $0x3c] sm:$0xf]
        %v1638 = vunpack.c.l.b16 %v1617
        %v1639 = vunpack.c.l.b16 %v1618
        %v1640 = vpack.c.b16 %v798, %v1638
        %v1641 = vpack.c.b16 %v1639, %v799
        %v1643 = vshrl.u32 %v1640, 16
        %v1645 = vrot.slane %v1643, 2
        %v1646 = vshll.u32 %v1640, 16
        %v1648 = vrot.slane %v1646, 3
        %v1649 = vor.u32 %v1645, %v1648
        %v1651 = vshrl.u32 %v1641, 16
        %v1653 = vrot.slane %v1651, 2
        %v1654 = vshll.u32 %v1641, 16
        %v1656 = vrot.slane %v1654, 3
        %v1657 = vor.u32 %v1653, %v1656
        %v1658 = vsel %vm1498, %v1649, %v1657
        %v1677 = vunpack.c.l.b16 %v1620
        %v1678 = vunpack.c.l.b16 %v1621
        %v1679 = vunpack.c.l.b16 %v1622
        %v1680 = vunpack.c.l.b16 %v1623
        %v1681 = vunpack.c.l.b16 %v1624
        %v1682 = vunpack.c.l.b16 %v1625
        %v1683 = vunpack.c.l.b16 %v1626
        %v1684 = vunpack.c.l.b16 %v1627
        %v1685 = vunpack.c.l.b16 %v1628
        %v1686 = vunpack.c.l.b16 %v1629
        %v1687 = vunpack.c.l.b16 %v1630
        %v1688 = vunpack.c.l.b16 %v1631
        %v1689 = vunpack.c.l.b16 %v1632
        %v1690 = vunpack.c.l.b16 %v1633
        %v1691 = vunpack.c.l.b16 %v1634
        %v1692 = vunpack.c.l.b16 %v1635
        %v1693 = vpack.c.b16 %v1678, %v1677
        %v1694 = vpack.c.b16 %v1680, %v1679
        %v1695 = vpack.c.b16 %v1682, %v1681
        %v1696 = vpack.c.b16 %v1684, %v1683
        %v1697 = vpack.c.b16 %v1686, %v1685
        %v1698 = vpack.c.b16 %v1688, %v1687
        %v1699 = vpack.c.b16 %v1690, %v1689
        %v1700 = vpack.c.b16 %v1692, %v1691
        %1709 = vmatprep.subr.bf16.mxu0 0
        %1710 = vmatpush1.bf16.msra.mxu0 %v1693
        %1711 = vmatprep.subr.bf16.mxu0 0
        %1712 = vmatpush1.bf16.msra.mxu0 %v1694
        %1713 = vmatprep.subr.bf16.mxu0 0
        %1714 = vmatpush1.bf16.msra.mxu0 %v1695
        %1715 = vmatprep.subr.bf16.mxu0 0
        %1716 = vmatpush1.bf16.msra.mxu0 %v1696
        %1717 = vmatprep.subr.bf16.mxu0 0
        %1718 = vmatpush1.bf16.msra.mxu0 %v1697
        %1719 = vmatprep.subr.bf16.mxu0 0
        %1720 = vmatpush1.bf16.msra.mxu0 %v1698
        %1721 = vmatprep.subr.bf16.mxu0 0
        %1722 = vmatpush1.bf16.msra.mxu0 %v1699
        %1723 = vmatprep.subr.bf16.mxu0 0
        %1724 = vmatpush1.bf16.msra.mxu0 %v1700
        %1725 = vmatprep.subr.bf16.mxu0 0
        %1726 = vmatpush1.bf16.msra.mxu0 0
        %1727 = vmatprep.subr.bf16.mxu0 0
        %1728 = vmatpush1.bf16.msra.mxu0 0
        %1729 = vmatprep.subr.bf16.mxu0 0
        %1730 = vmatpush1.bf16.msra.mxu0 0
        %1731 = vmatprep.subr.bf16.mxu0 0
        %1732 = vmatpush1.bf16.msra.mxu0 0
        %1733 = vmatprep.subr.bf16.mxu0 0
        %1734 = vmatpush1.bf16.msra.mxu0 0
        %1735 = vmatprep.subr.bf16.mxu0 0
        %1736 = vmatpush1.bf16.msra.mxu0 0
        %1737 = vmatprep.subr.bf16.mxu0 0
        %1738 = vmatpush1.bf16.msra.mxu0 0
        %1739 = vmatprep.subr.bf16.mxu0 0
        %1740 = vmatpush1.bf16.msra.mxu0 0
        %1741 = vmatprep.mubr.bf16.mxu0 0
        %1742 = vmatmul.mubr.bf16.gmra.mrb[0].mxu0 %v1658
        %v1743 = vpop.f32.mrb[0].mxu0
        %v1744 = vadd.f32 0.0, %v1743
        %v1745 = vpop.f32.mrb[0].mxu0
        %v1746 = vpop.f32.mrb[0].mxu0
        %v1747 = vadd.f32 0.0, %v1746
        %v1748 = vpop.f32.mrb[0].mxu0
        %1749 = vmatprep.mubr.bf16.mxu0 0
        %1750 = vmatmul.mubr.bf16.gmra.mrb[0].mxu0 %v1657
        %v1751 = vpop.f32.mrb[0].mxu0
        %v1752 = vadd.f32 0.0, %v1751
        %v1753 = vpop.f32.mrb[0].mxu0
        %v1754 = vpop.f32.mrb[0].mxu0
        %v1755 = vpop.f32.mrb[0].mxu0
        %1756 = vdwg.mxu0
        %v1757 = vadd.f32 %v1614, %v1744
        %v1758 = vadd.f32 %v1615, %v1747
        %v1759 = vadd.f32 %v1616, %v1752
        %v1760 = vld [vmem:[%s327] sm:$0x8]
        %s1761 = scalar_lea.vmem %s1, 640
        %v1762 = vld [vmem:[%s1761] sm:$0xf]
        %v1763 = vld [vmem:[%s1761 + $0x4] sm:$0xf]
        %v1764 = vld [vmem:[%s1761 + $0x8] sm:$0xf]
        %v1765 = vld [vmem:[%s1761 + $0xc] sm:$0xf]
        %v1766 = vld [vmem:[%s1761 + $0x10] sm:$0xf]
        %v1767 = vld [vmem:[%s1761 + $0x14] sm:$0xf]
        %v1768 = vld [vmem:[%s1761 + $0x18] sm:$0xf]
        %v1769 = vld [vmem:[%s1761 + $0x1c] sm:$0xf]
        %v1770 = vld [vmem:[%s1761 + $0x20] sm:$0xf]
        %v1771 = vld [vmem:[%s1761 + $0x24] sm:$0xf]
        %v1772 = vld [vmem:[%s1761 + $0x28] sm:$0xf]
        %v1773 = vld [vmem:[%s1761 + $0x2c] sm:$0xf]
        %v1774 = vld [vmem:[%s1761 + $0x30] sm:$0xf]
        %v1775 = vld [vmem:[%s1761 + $0x34] sm:$0xf]
        %v1776 = vld [vmem:[%s1761 + $0x38] sm:$0xf]
        %v1777 = vld [vmem:[%s1761 + $0x3c] sm:$0xf]
        %v1779 = vunpack.c.l.b16 %v1760
        %v1780 = vpack.c.b16 %v650, %v1779
        %vm1781 = vcmask 1044480
        %v1782 = vrot.slane %v1780, 3
        %v1783 = vrot.slane %v1497, 3
        %v1784 = vsel %vm1781, %v1782, %v1783
        %v1803 = vunpack.c.l.b16 %v1762
        %v1804 = vunpack.c.l.b16 %v1763
        %v1805 = vunpack.c.l.b16 %v1764
        %v1806 = vunpack.c.l.b16 %v1765
        %v1807 = vunpack.c.l.b16 %v1766
        %v1808 = vunpack.c.l.b16 %v1767
        %v1809 = vunpack.c.l.b16 %v1768
        %v1810 = vunpack.c.l.b16 %v1769
        %v1811 = vunpack.c.l.b16 %v1770
        %v1812 = vunpack.c.l.b16 %v1771
        %v1813 = vunpack.c.l.b16 %v1772
        %v1814 = vunpack.c.l.b16 %v1773
        %v1815 = vunpack.c.l.b16 %v1774
        %v1816 = vunpack.c.l.b16 %v1775
        %v1817 = vunpack.c.l.b16 %v1776
        %v1818 = vunpack.c.l.b16 %v1777
        %v1819 = vpack.c.b16 %v1804, %v1803
        %v1820 = vpack.c.b16 %v1806, %v1805
        %v1821 = vpack.c.b16 %v1808, %v1807
        %v1822 = vpack.c.b16 %v1810, %v1809
        %v1823 = vpack.c.b16 %v1812, %v1811
        %v1824 = vpack.c.b16 %v1814, %v1813
        %v1825 = vpack.c.b16 %v1816, %v1815
        %v1826 = vpack.c.b16 %v1818, %v1817
        %1835 = vmatprep.subr.bf16.mxu0 0
        %1836 = vmatpush1.bf16.msra.mxu0 %v1819
        %1837 = vmatprep.subr.bf16.mxu0 0
        %1838 = vmatpush1.bf16.msra.mxu0 %v1820
        %1839 = vmatprep.subr.bf16.mxu0 0
        %1840 = vmatpush1.bf16.msra.mxu0 %v1821
        %1841 = vmatprep.subr.bf16.mxu0 0
        %1842 = vmatpush1.bf16.msra.mxu0 %v1822
        %1843 = vmatprep.subr.bf16.mxu0 0
        %1844 = vmatpush1.bf16.msra.mxu0 %v1823
        %1845 = vmatprep.subr.bf16.mxu0 0
        %1846 = vmatpush1.bf16.msra.mxu0 %v1824
        %1847 = vmatprep.subr.bf16.mxu0 0
        %1848 = vmatpush1.bf16.msra.mxu0 %v1825
        %1849 = vmatprep.subr.bf16.mxu0 0
        %1850 = vmatpush1.bf16.msra.mxu0 %v1826
        %1851 = vmatprep.subr.bf16.mxu0 0
        %1852 = vmatpush1.bf16.msra.mxu0 0
        %1853 = vmatprep.subr.bf16.mxu0 0
        %1854 = vmatpush1.bf16.msra.mxu0 0
        %1855 = vmatprep.subr.bf16.mxu0 0
        %1856 = vmatpush1.bf16.msra.mxu0 0
        %1857 = vmatprep.subr.bf16.mxu0 0
        %1858 = vmatpush1.bf16.msra.mxu0 0
        %1859 = vmatprep.subr.bf16.mxu0 0
        %1860 = vmatpush1.bf16.msra.mxu0 0
        %1861 = vmatprep.subr.bf16.mxu0 0
        %1862 = vmatpush1.bf16.msra.mxu0 0
        %1863 = vmatprep.subr.bf16.mxu0 0
        %1864 = vmatpush1.bf16.msra.mxu0 0
        %1865 = vmatprep.subr.bf16.mxu0 0
        %1866 = vmatpush1.bf16.msra.mxu0 0
        %1867 = vmatprep.mubr.bf16.mxu0 0
        %1868 = vmatmul.mubr.bf16.gmra.mrb[0].mxu0 %v1784
        %v1869 = vpop.f32.mrb[0].mxu0
        %v1870 = vadd.f32 0.0, %v1869
        %v1871 = vpop.f32.mrb[0].mxu0
        %v1872 = vpop.f32.mrb[0].mxu0
        %v1873 = vadd.f32 0.0, %v1872
        %v1874 = vpop.f32.mrb[0].mxu0
        %1875 = vmatprep.mubr.bf16.mxu0 0
        %1876 = vmatmul.mubr.bf16.gmra.mrb[0].mxu0 %v1783
        %v1877 = vpop.f32.mrb[0].mxu0
        %v1878 = vadd.f32 0.0, %v1877
        %v1879 = vpop.f32.mrb[0].mxu0
        %v1880 = vpop.f32.mrb[0].mxu0
        %v1881 = vpop.f32.mrb[0].mxu0
        %1882 = vdwg.mxu0
        %v1883 = vadd.f32 %v1757, %v1870
        %v1884 = vadd.f32 %v1758, %v1873
        %v1885 = vadd.f32 %v1759, %v1878
        %v1886 = vld [vmem:[%s391] sm:$0x8]
        %s1887 = scalar_lea.vmem %s1, 704
        %v1888 = vld [vmem:[%s1887] sm:$0xf]
        %v1889 = vld [vmem:[%s1887 + $0x4] sm:$0xf]
        %v1890 = vld [vmem:[%s1887 + $0x8] sm:$0xf]
        %v1891 = vld [vmem:[%s1887 + $0xc] sm:$0xf]
        %v1892 = vld [vmem:[%s1887 + $0x10] sm:$0xf]
        %v1893 = vld [vmem:[%s1887 + $0x14] sm:$0xf]
        %v1894 = vld [vmem:[%s1887 + $0x18] sm:$0xf]
        %v1895 = vld [vmem:[%s1887 + $0x1c] sm:$0xf]
        %v1896 = vld [vmem:[%s1887 + $0x20] sm:$0xf]
        %v1897 = vld [vmem:[%s1887 + $0x24] sm:$0xf]
        %v1898 = vld [vmem:[%s1887 + $0x28] sm:$0xf]
        %v1899 = vld [vmem:[%s1887 + $0x2c] sm:$0xf]
        %v1900 = vld [vmem:[%s1887 + $0x30] sm:$0xf]
        %v1901 = vld [vmem:[%s1887 + $0x34] sm:$0xf]
        %v1902 = vld [vmem:[%s1887 + $0x38] sm:$0xf]
        %v1903 = vld [vmem:[%s1887 + $0x3c] sm:$0xf]
        %v1905 = vunpack.c.l.b16 %v1886
        %v1906 = vpack.c.b16 %v798, %v1905
        %v1907 = vrot.slane %v1906, 3
        %v1908 = vrot.slane %v1641, 3
        %v1909 = vsel %vm1781, %v1907, %v1908
        %v1928 = vunpack.c.l.b16 %v1888
        %v1929 = vunpack.c.l.b16 %v1889
        %v1930 = vunpack.c.l.b16 %v1890
        %v1931 = vunpack.c.l.b16 %v1891
        %v1932 = vunpack.c.l.b16 %v1892
        %v1933 = vunpack.c.l.b16 %v1893
        %v1934 = vunpack.c.l.b16 %v1894
        %v1935 = vunpack.c.l.b16 %v1895
        %v1936 = vunpack.c.l.b16 %v1896
        %v1937 = vunpack.c.l.b16 %v1897
        %v1938 = vunpack.c.l.b16 %v1898
        %v1939 = vunpack.c.l.b16 %v1899
        %v1940 = vunpack.c.l.b16 %v1900
        %v1941 = vunpack.c.l.b16 %v1901
        %v1942 = vunpack.c.l.b16 %v1902
        %v1943 = vunpack.c.l.b16 %v1903
        %v1944 = vpack.c.b16 %v1929, %v1928
        %v1945 = vpack.c.b16 %v1931, %v1930
        %v1946 = vpack.c.b16 %v1933, %v1932
        %v1947 = vpack.c.b16 %v1935, %v1934
        %v1948 = vpack.c.b16 %v1937, %v1936
        %v1949 = vpack.c.b16 %v1939, %v1938
        %v1950 = vpack.c.b16 %v1941, %v1940
        %v1951 = vpack.c.b16 %v1943, %v1942
        %1960 = vmatprep.subr.bf16.mxu0 0
        %1961 = vmatpush1.bf16.msra.mxu0 %v1944
        %1962 = vmatprep.subr.bf16.mxu0 0
        %1963 = vmatpush1.bf16.msra.mxu0 %v1945
        %1964 = vmatprep.subr.bf16.mxu0 0
        %1965 = vmatpush1.bf16.msra.mxu0 %v1946
        %1966 = vmatprep.subr.bf16.mxu0 0
        %1967 = vmatpush1.bf16.msra.mxu0 %v1947
        %1968 = vmatprep.subr.bf16.mxu0 0
        %1969 = vmatpush1.bf16.msra.mxu0 %v1948
        %1970 = vmatprep.subr.bf16.mxu0 0
        %1971 = vmatpush1.bf16.msra.mxu0 %v1949
        %1972 = vmatprep.subr.bf16.mxu0 0
        %1973 = vmatpush1.bf16.msra.mxu0 %v1950
        %1974 = vmatprep.subr.bf16.mxu0 0
        %1975 = vmatpush1.bf16.msra.mxu0 %v1951
        %1976 = vmatprep.subr.bf16.mxu0 0
        %1977 = vmatpush1.bf16.msra.mxu0 0
        %1978 = vmatprep.subr.bf16.mxu0 0
        %1979 = vmatpush1.bf16.msra.mxu0 0
        %1980 = vmatprep.subr.bf16.mxu0 0
        %1981 = vmatpush1.bf16.msra.mxu0 0
        %1982 = vmatprep.subr.bf16.mxu0 0
        %1983 = vmatpush1.bf16.msra.mxu0 0
        %1984 = vmatprep.subr.bf16.mxu0 0
        %1985 = vmatpush1.bf16.msra.mxu0 0
        %1986 = vmatprep.subr.bf16.mxu0 0
        %1987 = vmatpush1.bf16.msra.mxu0 0
        %1988 = vmatprep.subr.bf16.mxu0 0
        %1989 = vmatpush1.bf16.msra.mxu0 0
        %1990 = vmatprep.subr.bf16.mxu0 0
        %1991 = vmatpush1.bf16.msra.mxu0 0
        %1992 = vmatprep.mubr.bf16.mxu0 0
        %1993 = vmatmul.mubr.bf16.gmra.mrb[0].mxu0 %v1909
        %v1994 = vpop.f32.mrb[0].mxu0
        %v1995 = vadd.f32 0.0, %v1994
        %v1996 = vpop.f32.mrb[0].mxu0
        %v1997 = vpop.f32.mrb[0].mxu0
        %v1998 = vadd.f32 0.0, %v1997
        %v1999 = vpop.f32.mrb[0].mxu0
        %2000 = vmatprep.mubr.bf16.mxu0 0
        %2001 = vmatmul.mubr.bf16.gmra.mrb[0].mxu0 %v1908
        %v2002 = vpop.f32.mrb[0].mxu0
        %v2003 = vadd.f32 0.0, %v2002
        %v2004 = vpop.f32.mrb[0].mxu0
        %v2005 = vpop.f32.mrb[0].mxu0
        %v2006 = vpop.f32.mrb[0].mxu0
        %2007 = vdwg.mxu0
        %v2008 = vadd.f32 %v1883, %v1995
        %v2009 = vadd.f32 %v1884, %v1998
        %v2010 = vadd.f32 %v1885, %v2003
        %v2011 = vld [vmem:[%s919] sm:$0xc]
        %v2012 = vld [vmem:[%s919 + $0xc] sm:$0x7]
        %s2013 = scalar_lea.vmem %s1, 768
        %v2014 = vld [vmem:[%s2013] sm:$0xf]
        %v2015 = vld [vmem:[%s2013 + $0x4] sm:$0xf]
        %v2016 = vld [vmem:[%s2013 + $0x8] sm:$0xf]
        %v2017 = vld [vmem:[%s2013 + $0xc] sm:$0xf]
        %v2018 = vld [vmem:[%s2013 + $0x10] sm:$0xf]
        %v2019 = vld [vmem:[%s2013 + $0x14] sm:$0xf]
        %v2020 = vld [vmem:[%s2013 + $0x18] sm:$0xf]
        %v2021 = vld [vmem:[%s2013 + $0x1c] sm:$0xf]
        %v2022 = vld [vmem:[%s2013 + $0x20] sm:$0xf]
        %v2023 = vld [vmem:[%s2013 + $0x24] sm:$0xf]
        %v2024 = vld [vmem:[%s2013 + $0x28] sm:$0xf]
        %v2025 = vld [vmem:[%s2013 + $0x2c] sm:$0xf]
        %v2026 = vld [vmem:[%s2013 + $0x30] sm:$0xf]
        %v2027 = vld [vmem:[%s2013 + $0x34] sm:$0xf]
        %v2028 = vld [vmem:[%s2013 + $0x38] sm:$0xf]
        %v2029 = vld [vmem:[%s2013 + $0x3c] sm:$0xf]
        %v2032 = vunpack.c.l.b16 %v2011
        %v2033 = vunpack.c.l.b16 %v2012
        %v2034 = vpack.c.b16 %v1205, %v2032
        %v2035 = vpack.c.b16 %v2033, %v1206
        %v2037 = vshrl.u32 %v2034, 16
        %v2039 = vrot.slane %v2037, 2
        %v2040 = vshll.u32 %v2034, 16
        %v2042 = vrot.slane %v2040, 3
        %v2043 = vor.u32 %v2039, %v2042
        %v2045 = vshrl.u32 %v2035, 16
        %v2047 = vrot.slane %v2045, 2
        %v2048 = vshll.u32 %v2035, 16
        %v2050 = vrot.slane %v2048, 3
        %v2051 = vor.u32 %v2047, %v2050
        %v2052 = vsel %vm1498, %v2043, %v2051
        %v2071 = vunpack.c.l.b16 %v2014
        %v2072 = vunpack.c.l.b16 %v2015
        %v2073 = vunpack.c.l.b16 %v2016
        %v2074 = vunpack.c.l.b16 %v2017
        %v2075 = vunpack.c.l.b16 %v2018
        %v2076 = vunpack.c.l.b16 %v2019
        %v2077 = vunpack.c.l.b16 %v2020
        %v2078 = vunpack.c.l.b16 %v2021
        %v2079 = vunpack.c.l.b16 %v2022
        %v2080 = vunpack.c.l.b16 %v2023
        %v2081 = vunpack.c.l.b16 %v2024
        %v2082 = vunpack.c.l.b16 %v2025
        %v2083 = vunpack.c.l.b16 %v2026
        %v2084 = vunpack.c.l.b16 %v2027
        %v2085 = vunpack.c.l.b16 %v2028
        %v2086 = vunpack.c.l.b16 %v2029
        %v2087 = vpack.c.b16 %v2072, %v2071
        %v2088 = vpack.c.b16 %v2074, %v2073
        %v2089 = vpack.c.b16 %v2076, %v2075
        %v2090 = vpack.c.b16 %v2078, %v2077
        %v2091 = vpack.c.b16 %v2080, %v2079
        %v2092 = vpack.c.b16 %v2082, %v2081
        %v2093 = vpack.c.b16 %v2084, %v2083
        %v2094 = vpack.c.b16 %v2086, %v2085
        %2103 = vmatprep.subr.bf16.mxu0 0
        %2104 = vmatpush1.bf16.msra.mxu0 %v2087
        %2105 = vmatprep.subr.bf16.mxu0 0
        %2106 = vmatpush1.bf16.msra.mxu0 %v2088
        %2107 = vmatprep.subr.bf16.mxu0 0
        %2108 = vmatpush1.bf16.msra.mxu0 %v2089
        %2109 = vmatprep.subr.bf16.mxu0 0
        %2110 = vmatpush1.bf16.msra.mxu0 %v2090
        %2111 = vmatprep.subr.bf16.mxu0 0
        %2112 = vmatpush1.bf16.msra.mxu0 %v2091
        %2113 = vmatprep.subr.bf16.mxu0 0
        %2114 = vmatpush1.bf16.msra.mxu0 %v2092
        %2115 = vmatprep.subr.bf16.mxu0 0
        %2116 = vmatpush1.bf16.msra.mxu0 %v2093
        %2117 = vmatprep.subr.bf16.mxu0 0
        %2118 = vmatpush1.bf16.msra.mxu0 %v2094
        %2119 = vmatprep.subr.bf16.mxu0 0
        %2120 = vmatpush1.bf16.msra.mxu0 0
        %2121 = vmatprep.subr.bf16.mxu0 0
        %2122 = vmatpush1.bf16.msra.mxu0 0
        %2123 = vmatprep.subr.bf16.mxu0 0
        %2124 = vmatpush1.bf16.msra.mxu0 0
        %2125 = vmatprep.subr.bf16.mxu0 0
        %2126 = vmatpush1.bf16.msra.mxu0 0
        %2127 = vmatprep.subr.bf16.mxu0 0
        %2128 = vmatpush1.bf16.msra.mxu0 0
        %2129 = vmatprep.subr.bf16.mxu0 0
        %2130 = vmatpush1.bf16.msra.mxu0 0
        %2131 = vmatprep.subr.bf16.mxu0 0
        %2132 = vmatpush1.bf16.msra.mxu0 0
        %2133 = vmatprep.subr.bf16.mxu0 0
        %2134 = vmatpush1.bf16.msra.mxu0 0
        %2135 = vmatprep.mubr.bf16.mxu0 0
        %2136 = vmatmul.mubr.bf16.gmra.mrb[0].mxu0 %v2052
        %v2137 = vpop.f32.mrb[0].mxu0
        %v2138 = vadd.f32 0.0, %v2137
        %v2139 = vpop.f32.mrb[0].mxu0
        %v2140 = vpop.f32.mrb[0].mxu0
        %v2141 = vadd.f32 0.0, %v2140
        %v2142 = vpop.f32.mrb[0].mxu0
        %2143 = vmatprep.mubr.bf16.mxu0 0
        %2144 = vmatmul.mubr.bf16.gmra.mrb[0].mxu0 %v2051
        %v2145 = vpop.f32.mrb[0].mxu0
        %v2146 = vadd.f32 0.0, %v2145
        %v2147 = vpop.f32.mrb[0].mxu0
        %v2148 = vpop.f32.mrb[0].mxu0
        %v2149 = vpop.f32.mrb[0].mxu0
        %2150 = vdwg.mxu0
        %v2151 = vadd.f32 %v2008, %v2138
        %v2152 = vadd.f32 %v2009, %v2141
        %v2153 = vadd.f32 %v2010, %v2146
        %v2154 = vld [vmem:[%s1049] sm:$0xc]
        %v2155 = vld [vmem:[%s1049 + $0xc] sm:$0x7]
        %s2156 = scalar_lea.vmem %s1, 832
        %v2157 = vld [vmem:[%s2156] sm:$0xf]
        %v2158 = vld [vmem:[%s2156 + $0x4] sm:$0xf]
        %v2159 = vld [vmem:[%s2156 + $0x8] sm:$0xf]
        %v2160 = vld [vmem:[%s2156 + $0xc] sm:$0xf]
        %v2161 = vld [vmem:[%s2156 + $0x10] sm:$0xf]
        %v2162 = vld [vmem:[%s2156 + $0x14] sm:$0xf]
        %v2163 = vld [vmem:[%s2156 + $0x18] sm:$0xf]
        %v2164 = vld [vmem:[%s2156 + $0x1c] sm:$0xf]
        %v2165 = vld [vmem:[%s2156 + $0x20] sm:$0xf]
        %v2166 = vld [vmem:[%s2156 + $0x24] sm:$0xf]
        %v2167 = vld [vmem:[%s2156 + $0x28] sm:$0xf]
        %v2168 = vld [vmem:[%s2156 + $0x2c] sm:$0xf]
        %v2169 = vld [vmem:[%s2156 + $0x30] sm:$0xf]
        %v2170 = vld [vmem:[%s2156 + $0x34] sm:$0xf]
        %v2171 = vld [vmem:[%s2156 + $0x38] sm:$0xf]
        %v2172 = vld [vmem:[%s2156 + $0x3c] sm:$0xf]
        %v2175 = vunpack.c.l.b16 %v2154
        %v2176 = vunpack.c.l.b16 %v2155
        %v2177 = vpack.c.b16 %v1352, %v2175
        %v2178 = vpack.c.b16 %v2176, %v1353
        %v2180 = vshrl.u32 %v2177, 16
        %v2182 = vrot.slane %v2180, 2
        %v2183 = vshll.u32 %v2177, 16
        %v2185 = vrot.slane %v2183, 3
        %v2186 = vor.u32 %v2182, %v2185
        %v2188 = vshrl.u32 %v2178, 16
        %v2190 = vrot.slane %v2188, 2
        %v2191 = vshll.u32 %v2178, 16
        %v2193 = vrot.slane %v2191, 3
        %v2194 = vor.u32 %v2190, %v2193
        %v2195 = vsel %vm1498, %v2186, %v2194
        %v2214 = vunpack.c.l.b16 %v2157
        %v2215 = vunpack.c.l.b16 %v2158
        %v2216 = vunpack.c.l.b16 %v2159
        %v2217 = vunpack.c.l.b16 %v2160
        %v2218 = vunpack.c.l.b16 %v2161
        %v2219 = vunpack.c.l.b16 %v2162
        %v2220 = vunpack.c.l.b16 %v2163
        %v2221 = vunpack.c.l.b16 %v2164
        %v2222 = vunpack.c.l.b16 %v2165
        %v2223 = vunpack.c.l.b16 %v2166
        %v2224 = vunpack.c.l.b16 %v2167
        %v2225 = vunpack.c.l.b16 %v2168
        %v2226 = vunpack.c.l.b16 %v2169
        %v2227 = vunpack.c.l.b16 %v2170
        %v2228 = vunpack.c.l.b16 %v2171
        %v2229 = vunpack.c.l.b16 %v2172
        %v2230 = vpack.c.b16 %v2215, %v2214
        %v2231 = vpack.c.b16 %v2217, %v2216
        %v2232 = vpack.c.b16 %v2219, %v2218
        %v2233 = vpack.c.b16 %v2221, %v2220
        %v2234 = vpack.c.b16 %v2223, %v2222
        %v2235 = vpack.c.b16 %v2225, %v2224
        %v2236 = vpack.c.b16 %v2227, %v2226
        %v2237 = vpack.c.b16 %v2229, %v2228
        %2246 = vmatprep.subr.bf16.mxu0 0
        %2247 = vmatpush1.bf16.msra.mxu0 %v2230
        %2248 = vmatprep.subr.bf16.mxu0 0
        %2249 = vmatpush1.bf16.msra.mxu0 %v2231
        %2250 = vmatprep.subr.bf16.mxu0 0
        %2251 = vmatpush1.bf16.msra.mxu0 %v2232
        %2252 = vmatprep.subr.bf16.mxu0 0
        %2253 = vmatpush1.bf16.msra.mxu0 %v2233
        %2254 = vmatprep.subr.bf16.mxu0 0
        %2255 = vmatpush1.bf16.msra.mxu0 %v2234
        %2256 = vmatprep.subr.bf16.mxu0 0
        %2257 = vmatpush1.bf16.msra.mxu0 %v2235
        %2258 = vmatprep.subr.bf16.mxu0 0
        %2259 = vmatpush1.bf16.msra.mxu0 %v2236
        %2260 = vmatprep.subr.bf16.mxu0 0
        %2261 = vmatpush1.bf16.msra.mxu0 %v2237
        %2262 = vmatprep.subr.bf16.mxu0 0
        %2263 = vmatpush1.bf16.msra.mxu0 0
        %2264 = vmatprep.subr.bf16.mxu0 0
        %2265 = vmatpush1.bf16.msra.mxu0 0
        %2266 = vmatprep.subr.bf16.mxu0 0
        %2267 = vmatpush1.bf16.msra.mxu0 0
        %2268 = vmatprep.subr.bf16.mxu0 0
        %2269 = vmatpush1.bf16.msra.mxu0 0
        %2270 = vmatprep.subr.bf16.mxu0 0
        %2271 = vmatpush1.bf16.msra.mxu0 0
        %2272 = vmatprep.subr.bf16.mxu0 0
        %2273 = vmatpush1.bf16.msra.mxu0 0
        %2274 = vmatprep.subr.bf16.mxu0 0
        %2275 = vmatpush1.bf16.msra.mxu0 0
        %2276 = vmatprep.subr.bf16.mxu0 0
        %2277 = vmatpush1.bf16.msra.mxu0 0
        %2278 = vmatprep.mubr.bf16.mxu0 0
        %2279 = vmatmul.mubr.bf16.gmra.mrb[0].mxu0 %v2195
        %v2280 = vpop.f32.mrb[0].mxu0
        %v2281 = vadd.f32 0.0, %v2280
        %v2282 = vpop.f32.mrb[0].mxu0
        %v2283 = vpop.f32.mrb[0].mxu0
        %v2284 = vadd.f32 0.0, %v2283
        %v2285 = vpop.f32.mrb[0].mxu0
        %2286 = vmatprep.mubr.bf16.mxu0 0
        %2287 = vmatmul.mubr.bf16.gmra.mrb[0].mxu0 %v2194
        %v2288 = vpop.f32.mrb[0].mxu0
        %v2289 = vadd.f32 0.0, %v2288
        %v2290 = vpop.f32.mrb[0].mxu0
        %v2291 = vpop.f32.mrb[0].mxu0
        %v2292 = vpop.f32.mrb[0].mxu0
        %2293 = vdwg.mxu0
        %v2294 = vadd.f32 %v2151, %v2281
        %v2295 = vadd.f32 %v2152, %v2284
        %v2296 = vadd.f32 %v2153, %v2289
        %v2297 = vld [vmem:[%s919] sm:$0x8]
        %s2298 = scalar_lea.vmem %s1, 896
        %v2299 = vld [vmem:[%s2298] sm:$0xf]
        %v2300 = vld [vmem:[%s2298 + $0x4] sm:$0xf]
        %v2301 = vld [vmem:[%s2298 + $0x8] sm:$0xf]
        %v2302 = vld [vmem:[%s2298 + $0xc] sm:$0xf]
        %v2303 = vld [vmem:[%s2298 + $0x10] sm:$0xf]
        %v2304 = vld [vmem:[%s2298 + $0x14] sm:$0xf]
        %v2305 = vld [vmem:[%s2298 + $0x18] sm:$0xf]
        %v2306 = vld [vmem:[%s2298 + $0x1c] sm:$0xf]
        %v2307 = vld [vmem:[%s2298 + $0x20] sm:$0xf]
        %v2308 = vld [vmem:[%s2298 + $0x24] sm:$0xf]
        %v2309 = vld [vmem:[%s2298 + $0x28] sm:$0xf]
        %v2310 = vld [vmem:[%s2298 + $0x2c] sm:$0xf]
        %v2311 = vld [vmem:[%s2298 + $0x30] sm:$0xf]
        %v2312 = vld [vmem:[%s2298 + $0x34] sm:$0xf]
        %v2313 = vld [vmem:[%s2298 + $0x38] sm:$0xf]
        %v2314 = vld [vmem:[%s2298 + $0x3c] sm:$0xf]
        %v2316 = vunpack.c.l.b16 %v2297
        %v2317 = vpack.c.b16 %v1205, %v2316
        %v2318 = vrot.slane %v2317, 3
        %v2319 = vrot.slane %v2035, 3
        %v2320 = vsel %vm1781, %v2318, %v2319
        %v2339 = vunpack.c.l.b16 %v2299
        %v2340 = vunpack.c.l.b16 %v2300
        %v2341 = vunpack.c.l.b16 %v2301
        %v2342 = vunpack.c.l.b16 %v2302
        %v2343 = vunpack.c.l.b16 %v2303
        %v2344 = vunpack.c.l.b16 %v2304
        %v2345 = vunpack.c.l.b16 %v2305
        %v2346 = vunpack.c.l.b16 %v2306
        %v2347 = vunpack.c.l.b16 %v2307
        %v2348 = vunpack.c.l.b16 %v2308
        %v2349 = vunpack.c.l.b16 %v2309
        %v2350 = vunpack.c.l.b16 %v2310
        %v2351 = vunpack.c.l.b16 %v2311
        %v2352 = vunpack.c.l.b16 %v2312
        %v2353 = vunpack.c.l.b16 %v2313
        %v2354 = vunpack.c.l.b16 %v2314
        %v2355 = vpack.c.b16 %v2340, %v2339
        %v2356 = vpack.c.b16 %v2342, %v2341
        %v2357 = vpack.c.b16 %v2344, %v2343
        %v2358 = vpack.c.b16 %v2346, %v2345
        %v2359 = vpack.c.b16 %v2348, %v2347
        %v2360 = vpack.c.b16 %v2350, %v2349
        %v2361 = vpack.c.b16 %v2352, %v2351
        %v2362 = vpack.c.b16 %v2354, %v2353
        %2371 = vmatprep.subr.bf16.mxu0 0
        %2372 = vmatpush1.bf16.msra.mxu0 %v2355
        %2373 = vmatprep.subr.bf16.mxu0 0
        %2374 = vmatpush1.bf16.msra.mxu0 %v2356
        %2375 = vmatprep.subr.bf16.mxu0 0
        %2376 = vmatpush1.bf16.msra.mxu0 %v2357
        %2377 = vmatprep.subr.bf16.mxu0 0
        %2378 = vmatpush1.bf16.msra.mxu0 %v2358
        %2379 = vmatprep.subr.bf16.mxu0 0
        %2380 = vmatpush1.bf16.msra.mxu0 %v2359
        %2381 = vmatprep.subr.bf16.mxu0 0
        %2382 = vmatpush1.bf16.msra.mxu0 %v2360
        %2383 = vmatprep.subr.bf16.mxu0 0
        %2384 = vmatpush1.bf16.msra.mxu0 %v2361
        %2385 = vmatprep.subr.bf16.mxu0 0
        %2386 = vmatpush1.bf16.msra.mxu0 %v2362
        %2387 = vmatprep.subr.bf16.mxu0 0
        %2388 = vmatpush1.bf16.msra.mxu0 0
        %2389 = vmatprep.subr.bf16.mxu0 0
        %2390 = vmatpush1.bf16.msra.mxu0 0
        %2391 = vmatprep.subr.bf16.mxu0 0
        %2392 = vmatpush1.bf16.msra.mxu0 0
        %2393 = vmatprep.subr.bf16.mxu0 0
        %2394 = vmatpush1.bf16.msra.mxu0 0
        %2395 = vmatprep.subr.bf16.mxu0 0
        %2396 = vmatpush1.bf16.msra.mxu0 0
        %2397 = vmatprep.subr.bf16.mxu0 0
        %2398 = vmatpush1.bf16.msra.mxu0 0
        %2399 = vmatprep.subr.bf16.mxu0 0
        %2400 = vmatpush1.bf16.msra.mxu0 0
        %2401 = vmatprep.subr.bf16.mxu0 0
        %2402 = vmatpush1.bf16.msra.mxu0 0
        %2403 = vmatprep.mubr.bf16.mxu0 0
        %2404 = vmatmul.mubr.bf16.gmra.mrb[0].mxu0 %v2320
        %v2405 = vpop.f32.mrb[0].mxu0
        %v2406 = vadd.f32 0.0, %v2405
        %v2407 = vpop.f32.mrb[0].mxu0
        %v2408 = vpop.f32.mrb[0].mxu0
        %v2409 = vadd.f32 0.0, %v2408
        %v2410 = vpop.f32.mrb[0].mxu0
        %2411 = vmatprep.mubr.bf16.mxu0 0
        %2412 = vmatmul.mubr.bf16.gmra.mrb[0].mxu0 %v2319
        %v2413 = vpop.f32.mrb[0].mxu0
        %v2414 = vadd.f32 0.0, %v2413
        %v2415 = vpop.f32.mrb[0].mxu0
        %v2416 = vpop.f32.mrb[0].mxu0
        %v2417 = vpop.f32.mrb[0].mxu0
        %2418 = vdwg.mxu0
        %v2419 = vadd.f32 %v2294, %v2406
        %v2420 = vadd.f32 %v2295, %v2409
        %v2421 = vadd.f32 %v2296, %v2414
        %v2422 = vld [vmem:[%s1049] sm:$0x8]
        %s2423 = scalar_lea.vmem %s1, 960
        %v2424 = vld [vmem:[%s2423] sm:$0xf]
        %v2425 = vld [vmem:[%s2423 + $0x4] sm:$0xf]
        %v2426 = vld [vmem:[%s2423 + $0x8] sm:$0xf]
        %v2427 = vld [vmem:[%s2423 + $0xc] sm:$0xf]
        %v2428 = vld [vmem:[%s2423 + $0x10] sm:$0xf]
        %v2429 = vld [vmem:[%s2423 + $0x14] sm:$0xf]
        %v2430 = vld [vmem:[%s2423 + $0x18] sm:$0xf]
        %v2431 = vld [vmem:[%s2423 + $0x1c] sm:$0xf]
        %v2432 = vld [vmem:[%s2423 + $0x20] sm:$0xf]
        %v2433 = vld [vmem:[%s2423 + $0x24] sm:$0xf]
        %v2434 = vld [vmem:[%s2423 + $0x28] sm:$0xf]
        %v2435 = vld [vmem:[%s2423 + $0x2c] sm:$0xf]
        %v2436 = vld [vmem:[%s2423 + $0x30] sm:$0xf]
        %v2437 = vld [vmem:[%s2423 + $0x34] sm:$0xf]
        %v2438 = vld [vmem:[%s2423 + $0x38] sm:$0xf]
        %v2439 = vld [vmem:[%s2423 + $0x3c] sm:$0xf]
        %v2441 = vunpack.c.l.b16 %v2422
        %v2442 = vpack.c.b16 %v1352, %v2441
        %v2443 = vrot.slane %v2442, 3
        %v2444 = vrot.slane %v2178, 3
        %v2445 = vsel %vm1781, %v2443, %v2444
        %v2464 = vunpack.c.l.b16 %v2424
        %v2465 = vunpack.c.l.b16 %v2425
        %v2466 = vunpack.c.l.b16 %v2426
        %v2467 = vunpack.c.l.b16 %v2427
        %v2468 = vunpack.c.l.b16 %v2428
        %v2469 = vunpack.c.l.b16 %v2429
        %v2470 = vunpack.c.l.b16 %v2430
        %v2471 = vunpack.c.l.b16 %v2431
        %v2472 = vunpack.c.l.b16 %v2432
        %v2473 = vunpack.c.l.b16 %v2433
        %v2474 = vunpack.c.l.b16 %v2434
        %v2475 = vunpack.c.l.b16 %v2435
        %v2476 = vunpack.c.l.b16 %v2436
        %v2477 = vunpack.c.l.b16 %v2437
        %v2478 = vunpack.c.l.b16 %v2438
        %v2479 = vunpack.c.l.b16 %v2439
        %v2480 = vpack.c.b16 %v2465, %v2464
        %v2481 = vpack.c.b16 %v2467, %v2466
        %v2482 = vpack.c.b16 %v2469, %v2468
        %v2483 = vpack.c.b16 %v2471, %v2470
        %v2484 = vpack.c.b16 %v2473, %v2472
        %v2485 = vpack.c.b16 %v2475, %v2474
        %v2486 = vpack.c.b16 %v2477, %v2476
        %v2487 = vpack.c.b16 %v2479, %v2478
        %2496 = vmatprep.subr.bf16.mxu0 0
        %2497 = vmatpush1.bf16.msra.mxu0 %v2480
        %2498 = vmatprep.subr.bf16.mxu0 0
        %2499 = vmatpush1.bf16.msra.mxu0 %v2481
        %2500 = vmatprep.subr.bf16.mxu0 0
        %2501 = vmatpush1.bf16.msra.mxu0 %v2482
        %2502 = vmatprep.subr.bf16.mxu0 0
        %2503 = vmatpush1.bf16.msra.mxu0 %v2483
        %2504 = vmatprep.subr.bf16.mxu0 0
        %2505 = vmatpush1.bf16.msra.mxu0 %v2484
        %2506 = vmatprep.subr.bf16.mxu0 0
        %2507 = vmatpush1.bf16.msra.mxu0 %v2485
        %2508 = vmatprep.subr.bf16.mxu0 0
        %2509 = vmatpush1.bf16.msra.mxu0 %v2486
        %2510 = vmatprep.subr.bf16.mxu0 0
        %2511 = vmatpush1.bf16.msra.mxu0 %v2487
        %2512 = vmatprep.subr.bf16.mxu0 0
        %2513 = vmatpush1.bf16.msra.mxu0 0
        %2514 = vmatprep.subr.bf16.mxu0 0
        %2515 = vmatpush1.bf16.msra.mxu0 0
        %2516 = vmatprep.subr.bf16.mxu0 0
        %2517 = vmatpush1.bf16.msra.mxu0 0
        %2518 = vmatprep.subr.bf16.mxu0 0
        %2519 = vmatpush1.bf16.msra.mxu0 0
        %2520 = vmatprep.subr.bf16.mxu0 0
        %2521 = vmatpush1.bf16.msra.mxu0 0
        %2522 = vmatprep.subr.bf16.mxu0 0
        %2523 = vmatpush1.bf16.msra.mxu0 0
        %2524 = vmatprep.subr.bf16.mxu0 0
        %2525 = vmatpush1.bf16.msra.mxu0 0
        %2526 = vmatprep.subr.bf16.mxu0 0
        %2527 = vmatpush1.bf16.msra.mxu0 0
        %2528 = vmatprep.mubr.bf16.mxu0 0
        %2529 = vmatmul.mubr.bf16.gmra.mrb[0].mxu0 %v2445
        %v2530 = vpop.f32.mrb[0].mxu0
        %v2531 = vadd.f32 0.0, %v2530
        %v2532 = vpop.f32.mrb[0].mxu0
        %v2533 = vpop.f32.mrb[0].mxu0
        %v2534 = vadd.f32 0.0, %v2533
        %v2535 = vpop.f32.mrb[0].mxu0
        %2536 = vmatprep.mubr.bf16.mxu0 0
        %2537 = vmatmul.mubr.bf16.gmra.mrb[0].mxu0 %v2444
        %v2538 = vpop.f32.mrb[0].mxu0
        %v2539 = vadd.f32 0.0, %v2538
        %v2540 = vpop.f32.mrb[0].mxu0
        %v2541 = vpop.f32.mrb[0].mxu0
        %v2542 = vpop.f32.mrb[0].mxu0
        %2543 = vdwg.mxu0
        %v2544 = vadd.f32 %v2419, %v2531
        %v2545 = vadd.f32 %v2420, %v2534
        %v2546 = vadd.f32 %v2421, %v2539
        %v2547 = vld [vmem:[%s2] sm:$0x1]
        %v2549 = vlaneseq
        %v2550 = vshrl.u32 %v2549, 7
        %v2551 = vsub.s32 0, %v2550
        %v2552 = vrot.slane %v2547, %v2551
        %v2554 = vadd.f32 %v2544, %v2552
        %v2555 = vadd.f32 %v2545, %v2552
        %v2556 = vadd.f32 %v2546, %v2552
        %v2557 = vld [vmem:[%s3] sm:$0xff]
        %v2558 = vld [vmem:[%s3 + $0x8] sm:$0xff]
        %v2559 = vld [vmem:[%s3 + $0x10] sm:$0xff]
        %2561 = vset.pattern.permute.xlu0 0
        %2562 = vperm.xlu0 %2561, %v2557
        %v2563 = vpop.permute.xlu0 %2562
        %2566 = vset.pattern.permute.xlu0 0
        %2567 = vperm.xlu0 %2566, %v2558
        %v2568 = vpop.permute.xlu0 %2567
        %2571 = vset.pattern.permute.xlu0 0
        %2572 = vperm.xlu0 %2571, %v2559
        %v2573 = vpop.permute.xlu0 %2572
        %v2575 = vmul.f32 %v2554, %v2563
        %v2576 = vmul.f32 %v2555, %v2568
        %v2577 = vmul.f32 %v2556, %v2573
        %v2578 = vadd.f32 %v2575, %v2576
        %v2579 = vadd.f32 %v2578, %v2577
        %v2580 = vrot.slane %v2579, 4
        %v2581 = vadd.f32 %v2579, %v2580
        %v2582 = vrot.slane %v2581, 2
        %v2583 = vadd.f32 %v2581, %v2582
        %v2584 = vrot.slane %v2583, 1
        %v2585 = vadd.f32 %v2583, %v2584
        %2586 = vst [vmem:[%s367] sm:$0x1] %v2585
        %v2587 = vmul.f32 %v2575, %v2554
        %v2588 = vmul.f32 %v2576, %v2555
        %v2589 = vmul.f32 %v2577, %v2556
        %v2590 = vadd.f32 %v2587, %v2588
        %v2591 = vadd.f32 %v2590, %v2589
        %v2592 = vrot.slane %v2591, 4
        %v2593 = vadd.f32 %v2591, %v2592
        %v2594 = vrot.slane %v2593, 2
        %v2595 = vadd.f32 %v2593, %v2594
        %v2596 = vrot.slane %v2595, 1
        %v2597 = vadd.f32 %v2595, %v2596
        %2598 = vst [vmem:[%s370] sm:$0x1] %v2597
        %v2599 = vpack.c.bf16 %v2555, %v2554
        %v2600 = vpack.c.bf16 %v2556, %v2556
        %v2603 = vunpack.c.l.b16 %v2599
        %v2604 = vunpack.c.h.b16 %v2599
        %v2605 = vunpack.c.l.b16 %v2600
        %v2606 = vpack.c.b16 %v2603, %v2603
        %v2607 = vpack.c.b16 %v2604, %v2604
        %v2608 = vpack.c.b16 %v2605, %v2605
        %2612 = vst [vmem:[%s364] sm:$0xf] %v2606
        %2613 = vst [vmem:[%s364 + $0x4] sm:$0xf] %v2607
        %2614 = vst [vmem:[%s364 + $0x8] sm:$0xf] %v2608
        %p2615 = scmp.lt.s32.totalorder %s18, 1
        %s2616 = scalar_select %p2615, %s18, 1
        %s2617 = smul.addr %s2616, 3
        %s2618 = smul.addr %s2617, 4
        %s2619 = scalar_lea.vmem %s4, %s2618
        %p2620 = scmp.lt.s32.totalorder %s18, 1
        %s2621 = scalar_select %p2620, %s18, 1
        %s2622 = scalar_lea.vmem %s5, %s2621
        %p2623 = scmp.lt.s32.totalorder %s18, 1
        %s2624 = scalar_select %p2623, %s18, 1
        %s2625 = scalar_lea.vmem %s6, %s2624
        // Predicated region
        $region78: #{discriminator_forward.4} parent=72 // pred_check
          %p2626 = pneg %p125
        $region79: #{discriminator_forward.4} parent=72 // pred_check_branch
          %2628 = sbr.rel (%p2626) target = $region81
        $region80: #{discriminator_forward.4} parent=72 // pred_region
          _
        $region81: #{discriminator_forward.4} parent=72 // pred_fallthru
          _
        // Predicated region
        $region82: #{discriminator_forward.4} parent=72 // pred_check
          %p2629 = pneg %p151
        $region83: #{discriminator_forward.4} parent=72 // pred_check_branch
          %2631 = sbr.rel (%p2629) target = $region85
        $region84: #{discriminator_forward.4} parent=72 // pred_region
          _
        $region85: #{discriminator_forward.4} parent=72 // pred_fallthru
          _
        // Predicated region
        $region86: #{discriminator_forward.4} parent=72 // pred_check
          %p2632 = pneg %p177
        $region87: #{discriminator_forward.4} parent=72 // pred_check_branch
          %2634 = sbr.rel (%p2632) target = $region89
        $region88: #{discriminator_forward.4} parent=72 // pred_region
          _
        $region89: #{discriminator_forward.4} parent=72 // pred_fallthru
          _
      $region73: #{discriminator_forward.4} parent=5 // pred_fallthru
        _
      %p2635 = scmp.le.s32.totalorder 2, %s13
      // Predicated region
      $region90: #{discriminator_forward.4} parent=5 // pred_check
        %p2636 = pneg %p2635
      $region91: #{discriminator_forward.4} parent=5 // pred_check_branch
        %2638 = sbr.rel (%p2636) target = $region93
      $region92: #{discriminator_forward.4} parent=5 // pred_region
        %s2639 = ssub.s32 %s13, 2
        // Predicated region
        $region94: #{discriminator_forward.4} parent=92 // pred_check
          %p2640 = pneg %p131
        $region95: #{discriminator_forward.4} parent=92 // pred_check_branch
          %2642 = sbr.rel (%p2640) target = $region97
        $region96: #{discriminator_forward.4} parent=92 // pred_region
          %p2643 = scmp.lt.s32.totalorder %s19, 1
          %s2644 = scalar_select %p2643, %s19, 1
          %s2645 = smul.addr %s2644, 3
          %s2646 = smul.addr %s2645, 4
          %s2647 = scalar_lea.vmem %s4, %s2646
        $region97: #{discriminator_forward.4} parent=92 // pred_fallthru
          _
        // Predicated region
        $region98: #{discriminator_forward.4} parent=92 // pred_check
          %p2648 = pneg %p157
        $region99: #{discriminator_forward.4} parent=92 // pred_check_branch
          %2650 = sbr.rel (%p2648) target = $region101
        $region100: #{discriminator_forward.4} parent=92 // pred_region
          %p2651 = scmp.lt.s32.totalorder %s19, 1
          %s2652 = scalar_select %p2651, %s19, 1
          %s2653 = scalar_lea.vmem %s5, %s2652
        $region101: #{discriminator_forward.4} parent=92 // pred_fallthru
          _
        // Predicated region
        $region102: #{discriminator_forward.4} parent=92 // pred_check
          %p2654 = pneg %p183
        $region103: #{discriminator_forward.4} parent=92 // pred_check_branch
          %2656 = sbr.rel (%p2654) target = $region105
        $region104: #{discriminator_forward.4} parent=92 // pred_region
          %p2657 = scmp.lt.s32.totalorder %s19, 1
          %s2658 = scalar_select %p2657, %s19, 1
          %s2659 = scalar_lea.vmem %s6, %s2658
        $region105: #{discriminator_forward.4} parent=92 // pred_fallthru
          _
      $region93: #{discriminator_forward.4} parent=5 // pred_fallthru
        _
    $region6: #{discriminator_forward.4} parent=1 // loop_footer
      %s17 = sadd.s32 1, %s13
    $region7: #{discriminator_forward.4} parent=1 // loop_footer_branch
      %12 = sbr.rel target = $region3
    $region8: #{discriminator_forward.4} parent=1 // loop_exit
      _

// kernel: discriminator_forward.5
$region0: #{discriminator_forward.5}
  #allocation0 [shape = 'u32[]', space=smem, size = 0x4, offset = 0x4, fixed_abs, tag = 'smem constant byte address 0x4 - core index']
  #allocation1 [shape = 'u32[144,128]{1,0:T(1,128)}', space=vmem, size = 0x12000, scoped, tag = 'internal scratch']
  %s0 = inlined_call_operand.vmem [shape: bf16[2,2,2,16,128], index: 0, kind: input, shape index: {}]
  %s1 = inlined_call_operand.vmem [shape: bf16[16,128,128], index: 1, kind: input, shape index: {}]
  %s2 = inlined_call_operand.vmem [shape: f32[1,128], index: 2, kind: input, shape index: {}]
  %s3 = inlined_call_operand.vmem [shape: f32[2,8,128], index: 3, kind: output, shape index: {}]
  %s4 = sld [smem:[#allocation0]]
  $region86: #{discriminator_forward.5} parent=0
    _
  %s6 = ssub.s32 1, %s4
  %s7 = scalar_select 0, %s6, %s4
  $region1: #{discriminator_forward.5} parent=0
    #allocation2 [shape = 'u8[32768]{0}', space=vmem, size = 0x8000, scoped, tag = 'input window, operand 0']
    loop: start=0, step=1, limit=4
    $region2: #{discriminator_forward.5} parent=1 // loop_pre_header
      _
    $region3: #{discriminator_forward.5} parent=1 // loop_header
      %s9 = sphi 0, %s13
      %p10 = scmp.ge.s32.totalorder %s9, 4
      %s19 = sphi 0, %s21
      %s22 = sphi 0, %s19
      %s23 = sphi 0, %s22
      %s39 = sphi 0, %s23
      %s43 = sphi 0, %s43
      %s45 = sphi 0, %s43
      %s46 = sphi 0, %s45
      %s60 = sphi 0, %s46
      %s64 = sphi 0, %s64
      %s66 = sphi 0, %s64
      %s67 = sphi 0, %s66
      %s81 = sphi 0, %s67
      %s87 = sphi 0, %s89
      %s90 = sphi 0, %s87
      %s91 = sphi 0, %s90
      %s107 = sphi 0, %s91
    $region4: #{discriminator_forward.5} parent=1 // loop_header_branch
      %12 = sbr.rel (%p10) target = $region8
    $region5: #{discriminator_forward.5} parent=1 // loop_body
      %s14 = ssub.s32 %s9, 1
      %s15 = ssub.s32 %s9, 2
      %s16 = sadd.s32 %s9, 1
      %s17 = ssub.s32 %s9, %s16
      %p18 = scmp.eq.s32.totalorder %s17, 0
      %s20 = sadd.s32 %s19, 1
      %s21 = scalar_select %p18, %s19, %s20
      %p24 = pneg %p18
      %p25 = scmp.eq.s32.totalorder %s9, 1
      %p26 = por %p24, %p25
      %p27 = scmp.ne.s32.totalorder %s19, %s22
      %p28 = scmp.eq.s32.totalorder %s9, 0
      %p29 = por %p27, %p28
      %p30 = scmp.ne.s32.totalorder %s19, %s22
      %p31 = scmp.eq.s32.totalorder %s14, 1
      %p32 = por %p30, %p31
      %p33 = scmp.ne.s32.totalorder %s22, %s23
      %p34 = scmp.eq.s32.totalorder %s14, 0
      %p35 = por %p33, %p34
      %p36 = scmp.ne.s32.totalorder %s22, %s23
      %p37 = scmp.eq.s32.totalorder %s15, 1
      %p38 = por %p36, %p37
      %p40 = scmp.ne.s32.totalorder %s23, %s39
      %p41 = scmp.eq.s32.totalorder %s15, 0
      %p42 = por %p40, %p41
      %s44 = sadd.s32 %s43, 1
      %p47 = scmp.eq.s32.totalorder %s9, 1
      %p48 = scmp.ne.s32.totalorder %s43, %s45
      %p49 = scmp.eq.s32.totalorder %s9, 0
      %p50 = por %p48, %p49
      %p51 = scmp.ne.s32.totalorder %s43, %s45
      %p52 = scmp.eq.s32.totalorder %s14, 1
      %p53 = por %p51, %p52
      %p54 = scmp.ne.s32.totalorder %s45, %s46
      %p55 = scmp.eq.s32.totalorder %s14, 0
      %p56 = por %p54, %p55
      %p57 = scmp.ne.s32.totalorder %s45, %s46
      %p58 = scmp.eq.s32.totalorder %s15, 1
      %p59 = por %p57, %p58
      %p61 = scmp.ne.s32.totalorder %s46, %s60
      %p62 = scmp.eq.s32.totalorder %s15, 0
      %p63 = por %p61, %p62
      %s65 = sadd.s32 %s64, 1
      %p68 = scmp.eq.s32.totalorder %s9, 1
      %p69 = scmp.ne.s32.totalorder %s64, %s66
      %p70 = scmp.eq.s32.totalorder %s9, 0
      %p71 = por %p69, %p70
      %p72 = scmp.ne.s32.totalorder %s64, %s66
      %p73 = scmp.eq.s32.totalorder %s14, 1
      %p74 = por %p72, %p73
      %p75 = scmp.ne.s32.totalorder %s66, %s67
      %p76 = scmp.eq.s32.totalorder %s14, 0
      %p77 = por %p75, %p76
      %p78 = scmp.ne.s32.totalorder %s66, %s67
      %p79 = scmp.eq.s32.totalorder %s15, 1
      %p80 = por %p78, %p79
      %p82 = scmp.ne.s32.totalorder %s67, %s81
      %p83 = scmp.eq.s32.totalorder %s15, 0
      %p84 = por %p82, %p83
      %s85 = ssub.s32 %s9, %s16
      %p86 = scmp.eq.s32.totalorder %s85, 0
      %s88 = sadd.s32 %s87, 1
      %s89 = scalar_select %p86, %s87, %s88
      %p92 = pneg %p86
      %p93 = scmp.eq.s32.totalorder %s9, 1
      %p94 = por %p92, %p93
      %p95 = scmp.ne.s32.totalorder %s87, %s90
      %p96 = scmp.eq.s32.totalorder %s9, 0
      %p97 = por %p95, %p96
      %p98 = scmp.ne.s32.totalorder %s87, %s90
      %p99 = scmp.eq.s32.totalorder %s14, 1
      %p100 = por %p98, %p99
      %p101 = scmp.ne.s32.totalorder %s90, %s91
      %p102 = scmp.eq.s32.totalorder %s14, 0
      %p103 = por %p101, %p102
      %p104 = scmp.ne.s32.totalorder %s90, %s91
      %p105 = scmp.eq.s32.totalorder %s15, 1
      %p106 = por %p104, %p105
      %p108 = scmp.ne.s32.totalorder %s91, %s107
      %p109 = scmp.eq.s32.totalorder %s15, 0
      %p110 = por %p108, %p109
      %p111 = scmp.le.s32.totalorder 1, %s9
      %p112 = scmp.lt.s32.totalorder %s9, 3
      %p113 = pnand %p111, %p112
      %p114 = pneg %p113
      // Predicated region
      $region9: #{discriminator_forward.5} parent=5 // pred_check
        _
      $region10: #{discriminator_forward.5} parent=5 // pred_check_branch
        %116 = sbr.rel (%p113) target = $region12
      $region11: #{discriminator_forward.5} parent=5 // pred_region
        %s117 = ssub.s32 %s9, 1
        // Predicated region
        $region13: #{discriminator_forward.5} parent=11 // pred_check
          %p118 = pneg %p56
        $region14: #{discriminator_forward.5} parent=11 // pred_check_branch
          %120 = sbr.rel (%p118) target = $region16
        $region15: #{discriminator_forward.5} parent=11 // pred_region
          _
        $region16: #{discriminator_forward.5} parent=11 // pred_fallthru
          _
        // Predicated region
        $region17: #{discriminator_forward.5} parent=11 // pred_check
          %p121 = pneg %p77
        $region18: #{discriminator_forward.5} parent=11 // pred_check_branch
          %123 = sbr.rel (%p121) target = $region20
        $region19: #{discriminator_forward.5} parent=11 // pred_region
          _
        $region20: #{discriminator_forward.5} parent=11 // pred_fallthru
          _
      $region12: #{discriminator_forward.5} parent=5 // pred_fallthru
        _
      %p124 = scmp.lt.s32.totalorder %s9, 2
      // Predicated region
      $region21: #{discriminator_forward.5} parent=5 // pred_check
        %p125 = pneg %p124
      $region22: #{discriminator_forward.5} parent=5 // pred_check_branch
        %127 = sbr.rel (%p125) target = $region24
      $region23: #{discriminator_forward.5} parent=5 // pred_region
        // Predicated region
        $region25: #{discriminator_forward.5} parent=23 // pred_check
          %p128 = pneg %p29
        $region26: #{discriminator_forward.5} parent=23 // pred_check_branch
          %130 = sbr.rel (%p128) target = $region28
        $region27: #{discriminator_forward.5} parent=23 // pred_region
          %s131 = sand.u32 %s19, 1
          %s132 = sand.u32 %s19, 1
          %s133 = smul.addr %s132, 32
          %s134 = scalar_lea.vmem [#allocation2], %s133
          %s135 = smul.addr %s9, 2
          %s136 = smul.addr %s135, 4
          %s137 = scalar_lea.vmem %s0, %s136
          // Predicated region
          $region29: #{discriminator_forward.5} parent=27 // pred_check
            _
          $region30: #{discriminator_forward.5} parent=27 // pred_check_branch
            %139 = sbr.rel (0) target = $region32
          $region31: #{discriminator_forward.5} parent=27 // pred_region
            // Predicated region
            $region33: #{discriminator_forward.5} parent=31 // pred_check
              _
            $region34: #{discriminator_forward.5} parent=31 // pred_check_branch
              %141 = sbr.rel target = $region36
            $region35: #{discriminator_forward.5} parent=31 // pred_region
              // Predicated region
              $region48: #{discriminator_forward.5} parent=35 // pred_check
                _
              $region49: #{discriminator_forward.5} parent=35 // pred_check_branch
                %170 = sbr.rel (0) target = $region51
              $region50: #{discriminator_forward.5} parent=35 // pred_region
                loop: start=0, step=1, limit=1
                $region52: #{discriminator_forward.5} parent=50 // loop_pre_header
                  _
                $region53: #{discriminator_forward.5} parent=50 // loop_header
                  %s172 = sphi 0, %s176
                  %p173 = scmp.ge.s32.totalorder %s172, 1
                  %s177 = sphi %s137, %s137
                  %s178 = sphi %s134, %s134
                $region54: #{discriminator_forward.5} parent=50 // loop_header_branch
                  %175 = sbr.rel (%p173) target = $region58
                $region55: #{discriminator_forward.5} parent=50 // loop_body
                  _
                $region56: #{discriminator_forward.5} parent=50 // loop_footer
                  %s176 = sadd.s32 1, %s172
                $region57: #{discriminator_forward.5} parent=50 // loop_footer_branch
                  %171 = sbr.rel target = $region53
                $region58: #{discriminator_forward.5} parent=50 // loop_exit
                  _
                loop: start=0, step=1, limit=1
                $region59: #{discriminator_forward.5} parent=50 // loop_pre_header
                  _
                $region60: #{discriminator_forward.5} parent=50 // loop_header
                  %s181 = sphi 0, %s185
                  %p182 = scmp.ge.s32.totalorder %s181, 1
                  %s186 = sphi %s137, %s137
                  %s187 = sphi %s134, %s134
                $region61: #{discriminator_forward.5} parent=50 // loop_header_branch
                  %184 = sbr.rel (%p182) target = $region65
                $region62: #{discriminator_forward.5} parent=50 // loop_body
                  %v188 = vld [vmem:[%s186] sm:$0xf]
                  %189 = vst [vmem:[%s187] sm:$0xf] %v188
                  %v190 = vld [vmem:[%s186 + $0x4] sm:$0xf]
                  %191 = vst [vmem:[%s187 + $0x4] sm:$0xf] %v190
                  %v192 = vld [vmem:[%s186 + $0x10] sm:$0xf]
                  %193 = vst [vmem:[%s187 + $0x8] sm:$0xf] %v192
                  %v194 = vld [vmem:[%s186 + $0x14] sm:$0xf]
                  %195 = vst [vmem:[%s187 + $0xc] sm:$0xf] %v194
                  %v196 = vld [vmem:[%s186 + $0x20] sm:$0xf]
                  %197 = vst [vmem:[%s187 + $0x10] sm:$0xf] %v196
                  %v198 = vld [vmem:[%s186 + $0x24] sm:$0xf]
                  %199 = vst [vmem:[%s187 + $0x14] sm:$0xf] %v198
                  %v200 = vld [vmem:[%s186 + $0x30] sm:$0xf]
                  %201 = vst [vmem:[%s187 + $0x18] sm:$0xf] %v200
                  %v202 = vld [vmem:[%s186 + $0x34] sm:$0xf]
                  %203 = vst [vmem:[%s187 + $0x1c] sm:$0xf] %v202
                $region63: #{discriminator_forward.5} parent=50 // loop_footer
                  %s185 = sadd.s32 1, %s181
                $region64: #{discriminator_forward.5} parent=50 // loop_footer_branch
                  %180 = sbr.rel target = $region60
                $region65: #{discriminator_forward.5} parent=50 // loop_exit
                  _
              $region51: #{discriminator_forward.5} parent=35 // pred_fallthru
                _
            $region36: #{discriminator_forward.5} parent=31 // pred_fallthru
              _
            // Predicated region
            $region37: #{discriminator_forward.5} parent=31 // pred_check
              _
            $region38: #{discriminator_forward.5} parent=31 // pred_check_branch
              %143 = sbr.rel (0) target = $region40
            $region39: #{discriminator_forward.5} parent=31 // pred_region
              loop: start=0, step=1, limit=1
              $region41: #{discriminator_forward.5} parent=39 // loop_pre_header
                _
              $region42: #{discriminator_forward.5} parent=39 // loop_header
                %s146 = sphi 0, %s150
                %p147 = scmp.ge.s32.totalorder %s146, 1
                %s151 = sphi %s137, %s137
                %s152 = sphi %s134, %s134
              $region43: #{discriminator_forward.5} parent=39 // loop_header_branch
                %149 = sbr.rel (%p147) target = $region47
              $region44: #{discriminator_forward.5} parent=39 // loop_body
                %v153 = vld [vmem:[%s151] sm:$0xf]
                %154 = vst [vmem:[%s152] sm:$0xf] %v153
                %v155 = vld [vmem:[%s151 + $0x4] sm:$0xf]
                %156 = vst [vmem:[%s152 + $0x4] sm:$0xf] %v155
                %v157 = vld [vmem:[%s151 + $0x10] sm:$0xf]
                %158 = vst [vmem:[%s152 + $0x8] sm:$0xf] %v157
                %v159 = vld [vmem:[%s151 + $0x14] sm:$0xf]
                %160 = vst [vmem:[%s152 + $0xc] sm:$0xf] %v159
                %v161 = vld [vmem:[%s151 + $0x20] sm:$0xf]
                %162 = vst [vmem:[%s152 + $0x10] sm:$0xf] %v161
                %v163 = vld [vmem:[%s151 + $0x24] sm:$0xf]
                %164 = vst [vmem:[%s152 + $0x14] sm:$0xf] %v163
                %v165 = vld [vmem:[%s151 + $0x30] sm:$0xf]
                %166 = vst [vmem:[%s152 + $0x18] sm:$0xf] %v165
                %v167 = vld [vmem:[%s151 + $0x34] sm:$0xf]
                %168 = vst [vmem:[%s152 + $0x1c] sm:$0xf] %v167
              $region45: #{discriminator_forward.5} parent=39 // loop_footer
                %s150 = sadd.s32 1, %s146
              $region46: #{discriminator_forward.5} parent=39 // loop_footer_branch
                %145 = sbr.rel target = $region42
              $region47: #{discriminator_forward.5} parent=39 // loop_exit
                _
            $region40: #{discriminator_forward.5} parent=31 // pred_fallthru
              _
          $region32: #{discriminator_forward.5} parent=27 // pred_fallthru
            _
          %204 = vnop
        $region28: #{discriminator_forward.5} parent=23 // pred_fallthru
          _
      $region24: #{discriminator_forward.5} parent=5 // pred_fallthru
        _
      %p205 = scmp.le.s32.totalorder 1, %s9
      %p206 = scmp.lt.s32.totalorder %s9, 3
      %p207 = pnand %p205, %p206
      %p208 = pneg %p207
      // Predicated region
      $region66: #{discriminator_forward.5} parent=5 // pred_check
        _
      $region67: #{discriminator_forward.5} parent=5 // pred_check_branch
        %210 = sbr.rel (%p207) target = $region69
      $region68: #{discriminator_forward.5} parent=5 // pred_region
        %s211 = ssub.s32 %s9, 1
        %s212 = sand.u32 %s22, 1
        %s213 = sand.u32 %s22, 1
        %s214 = smul.addr %s213, 32
        %s215 = scalar_lea.vmem [#allocation2], %s214
        // Predicated region
        $region70: #{discriminator_forward.5} parent=68 // pred_check
          %p216 = pneg %p35
        $region71: #{discriminator_forward.5} parent=68 // pred_check_branch
          %218 = sbr.rel (%p216) target = $region73
        $region72: #{discriminator_forward.5} parent=68 // pred_region
          _
        $region73: #{discriminator_forward.5} parent=68 // pred_fallthru
          _
        %s219 = sand.u32 %s22, 1
        %s220 = sand.u32 %s22, 1
        %s221 = smul.addr %s220, 32
        %s222 = scalar_lea.vmem [#allocation2], %s221
        %p223 = pneg %p35
        %p224 = pneg %p32
        %p225 = pneg %p56
        %p226 = pneg %p53
        %p227 = pneg %p77
        %p228 = pneg %p74
        %p229 = pneg %p103
        %p230 = pneg %p100
        %p231 = scmp.lt.s32.totalorder %s14, 1
        %s232 = scalar_select %p231, %s14, 1
        %s233 = smul.addr %s232, 8
        %s234 = scalar_lea.vmem %s3, %s233
        %p235 = scmp.lt.s32.totalorder %s14, 1
        %s236 = scalar_select %p235, %s14, 1
        %s237 = smul.addr %s236, 8
        %s238 = scalar_lea.vmem %s3, %s237
        %v240 = vld [vmem:[%s215] sm:$0xf]
        %v241 = vld [vmem:[%s1] sm:$0xf]
        %v242 = vld [vmem:[%s1 + $0x4] sm:$0xf]
        %v243 = vld [vmem:[%s1 + $0x8] sm:$0xf]
        %v244 = vld [vmem:[%s1 + $0xc] sm:$0xf]
        %v245 = vld [vmem:[%s1 + $0x10] sm:$0xf]
        %v246 = vld [vmem:[%s1 + $0x14] sm:$0xf]
        %v247 = vld [vmem:[%s1 + $0x18] sm:$0xf]
        %v248 = vld [vmem:[%s1 + $0x1c] sm:$0xf]
        %v249 = vld [vmem:[%s1 + $0x20] sm:$0xf]
        %v250 = vld [vmem:[%s1 + $0x24] sm:$0xf]
        %v251 = vld [vmem:[%s1 + $0x28] sm:$0xf]
        %v252 = vld [vmem:[%s1 + $0x2c] sm:$0xf]
        %v253 = vld [vmem:[%s1 + $0x30] sm:$0xf]
        %v254 = vld [vmem:[%s1 + $0x34] sm:$0xf]
        %v255 = vld [vmem:[%s1 + $0x38] sm:$0xf]
        %v256 = vld [vmem:[%s1 + $0x3c] sm:$0xf]
        %s257 = scalar_lea.vmem %s215, 8 [#allocation2]
        %v258 = vld [vmem:[%s257] sm:$0xf]
        %s259 = scalar_lea.vmem %s1, 64
        %v260 = vld [vmem:[%s259] sm:$0xf]
        %v261 = vld [vmem:[%s259 + $0x4] sm:$0xf]
        %v262 = vld [vmem:[%s259 + $0x8] sm:$0xf]
        %v263 = vld [vmem:[%s259 + $0xc] sm:$0xf]
        %v264 = vld [vmem:[%s259 + $0x10] sm:$0xf]
        %v265 = vld [vmem:[%s259 + $0x14] sm:$0xf]
        %v266 = vld [vmem:[%s259 + $0x18] sm:$0xf]
        %v267 = vld [vmem:[%s259 + $0x1c] sm:$0xf]
        %v268 = vld [vmem:[%s259 + $0x20] sm:$0xf]
        %v269 = vld [vmem:[%s259 + $0x24] sm:$0xf]
        %v270 = vld [vmem:[%s259 + $0x28] sm:$0xf]
        %v271 = vld [vmem:[%s259 + $0x2c] sm:$0xf]
        %v272 = vld [vmem:[%s259 + $0x30] sm:$0xf]
        %v273 = vld [vmem:[%s259 + $0x34] sm:$0xf]
        %v274 = vld [vmem:[%s259 + $0x38] sm:$0xf]
        %v275 = vld [vmem:[%s259 + $0x3c] sm:$0xf]
        %v292 = vunpack.c.l.b16 %v260
        %v293 = vunpack.c.l.b16 %v261
        %v294 = vunpack.c.l.b16 %v262
        %v295 = vunpack.c.l.b16 %v263
        %v296 = vunpack.c.l.b16 %v264
        %v297 = vunpack.c.l.b16 %v265
        %v298 = vunpack.c.l.b16 %v266
        %v299 = vunpack.c.l.b16 %v267
        %v300 = vunpack.c.l.b16 %v268
        %v301 = vunpack.c.l.b16 %v269
        %v302 = vunpack.c.l.b16 %v270
        %v303 = vunpack.c.l.b16 %v271
        %v304 = vunpack.c.l.b16 %v272
        %v305 = vunpack.c.l.b16 %v273
        %v306 = vunpack.c.l.b16 %v274
        %v307 = vunpack.c.l.b16 %v275
        %v308 = vpack.c.b16 %v293, %v292
        %v309 = vpack.c.b16 %v295, %v294
        %v310 = vpack.c.b16 %v297, %v296
        %v311 = vpack.c.b16 %v299, %v298
        %v312 = vpack.c.b16 %v301, %v300
        %v313 = vpack.c.b16 %v303, %v302
        %v314 = vpack.c.b16 %v305, %v304
        %v315 = vpack.c.b16 %v307, %v306
        %324 = vmatprep.subr.bf16.mxu0 0
        %325 = vmatpush1.bf16.msra.mxu0 %v308
        %326 = vmatprep.subr.bf16.mxu0 0
        %327 = vmatpush1.bf16.msra.mxu0 %v309
        %328 = vmatprep.subr.bf16.mxu0 0
        %329 = vmatpush1.bf16.msra.mxu0 %v310
        %330 = vmatprep.subr.bf16.mxu0 0
        %331 = vmatpush1.bf16.msra.mxu0 %v311
        %332 = vmatprep.subr.bf16.mxu0 0
        %333 = vmatpush1.bf16.msra.mxu0 %v312
        %334 = vmatprep.subr.bf16.mxu0 0
        %335 = vmatpush1.bf16.msra.mxu0 %v313
        %336 = vmatprep.subr.bf16.mxu0 0
        %337 = vmatpush1.bf16.msra.mxu0 %v314
        %338 = vmatprep.subr.bf16.mxu0 0
        %339 = vmatpush1.bf16.msra.mxu0 %v315
        %340 = vmatprep.subr.bf16.mxu0 0
        %341 = vmatpush1.bf16.msra.mxu0 0
        %342 = vmatprep.subr.bf16.mxu0 0
        %343 = vmatpush1.bf16.msra.mxu0 0
        %344 = vmatprep.subr.bf16.mxu0 0
        %345 = vmatpush1.bf16.msra.mxu0 0
        %346 = vmatprep.subr.bf16.mxu0 0
        %347 = vmatpush1.bf16.msra.mxu0 0
        %348 = vmatprep.subr.bf16.mxu0 0
        %349 = vmatpush1.bf16.msra.mxu0 0
        %350 = vmatprep.subr.bf16.mxu0 0
        %351 = vmatpush1.bf16.msra.mxu0 0
        %352 = vmatprep.subr.bf16.mxu0 0
        %353 = vmatpush1.bf16.msra.mxu0 0
        %354 = vmatprep.subr.bf16.mxu0 0
        %355 = vmatpush1.bf16.msra.mxu0 0
        %356 = vmatprep.mubr.bf16.mxu0 0
        %357 = vmatmul.mubr.bf16.gmra.mrb[0].mxu0 %v258
        %v358 = vpop.f32.mrb[0].mxu0
        %v359 = vadd.f32 0.0, %v358
        %v360 = vpop.f32.mrb[0].mxu0
        %v361 = vpop.f32.mrb[0].mxu0
        %v362 = vpop.f32.mrb[0].mxu0
        %363 = vdwg.mxu0
        %v380 = vunpack.c.l.b16 %v241
        %v381 = vunpack.c.l.b16 %v242
        %v382 = vunpack.c.l.b16 %v243
        %v383 = vunpack.c.l.b16 %v244
        %v384 = vunpack.c.l.b16 %v245
        %v385 = vunpack.c.l.b16 %v246
        %v386 = vunpack.c.l.b16 %v247
        %v387 = vunpack.c.l.b16 %v248
        %v388 = vunpack.c.l.b16 %v249
        %v389 = vunpack.c.l.b16 %v250
        %v390 = vunpack.c.l.b16 %v251
        %v391 = vunpack.c.l.b16 %v252
        %v392 = vunpack.c.l.b16 %v253
        %v393 = vunpack.c.l.b16 %v254
        %v394 = vunpack.c.l.b16 %v255
        %v395 = vunpack.c.l.b16 %v256
        %v396 = vpack.c.b16 %v381, %v380
        %v397 = vpack.c.b16 %v383, %v382
        %v398 = vpack.c.b16 %v385, %v384
        %v399 = vpack.c.b16 %v387, %v386
        %v400 = vpack.c.b16 %v389, %v388
        %v401 = vpack.c.b16 %v391, %v390
        %v402 = vpack.c.b16 %v393, %v392
        %v403 = vpack.c.b16 %v395, %v394
        %412 = vmatprep.subr.bf16.mxu0 0
        %413 = vmatpush1.bf16.msra.mxu0 %v396
        %414 = vmatprep.subr.bf16.mxu0 0
        %415 = vmatpush1.bf16.msra.mxu0 %v397
        %416 = vmatprep.subr.bf16.mxu0 0
        %417 = vmatpush1.bf16.msra.mxu0 %v398
        %418 = vmatprep.subr.bf16.mxu0 0
        %419 = vmatpush1.bf16.msra.mxu0 %v399
        %420 = vmatprep.subr.bf16.mxu0 0
        %421 = vmatpush1.bf16.msra.mxu0 %v400
        %422 = vmatprep.subr.bf16.mxu0 0
        %423 = vmatpush1.bf16.msra.mxu0 %v401
        %424 = vmatprep.subr.bf16.mxu0 0
        %425 = vmatpush1.bf16.msra.mxu0 %v402
        %426 = vmatprep.subr.bf16.mxu0 0
        %427 = vmatpush1.bf16.msra.mxu0 %v403
        %428 = vmatprep.subr.bf16.mxu0 0
        %429 = vmatpush1.bf16.msra.mxu0 0
        %430 = vmatprep.subr.bf16.mxu0 0
        %431 = vmatpush1.bf16.msra.mxu0 0
        %432 = vmatprep.subr.bf16.mxu0 0
        %433 = vmatpush1.bf16.msra.mxu0 0
        %434 = vmatprep.subr.bf16.mxu0 0
        %435 = vmatpush1.bf16.msra.mxu0 0
        %436 = vmatprep.subr.bf16.mxu0 0
        %437 = vmatpush1.bf16.msra.mxu0 0
        %438 = vmatprep.subr.bf16.mxu0 0
        %439 = vmatpush1.bf16.msra.mxu0 0
        %440 = vmatprep.subr.bf16.mxu0 0
        %441 = vmatpush1.bf16.msra.mxu0 0
        %442 = vmatprep.subr.bf16.mxu0 0
        %443 = vmatpush1.bf16.msra.mxu0 0
        %444 = vmatprep.mubr.bf16.mxu0 0
        %445 = vmatmul.mubr.bf16.gmra.mrb[0].mxu0 %v240
        %v446 = vpop.f32.mrb[0].mxu0
        %v447 = vadd.f32 %v359, %v446
        %v448 = vpop.f32.mrb[0].mxu0
        %v449 = vpop.f32.mrb[0].mxu0
        %v450 = vpop.f32.mrb[0].mxu0
        %451 = vdwg.mxu0
        %v452 = vld [vmem:[%s215] sm:$0xf]
        %v453 = vld [vmem:[%s215 + $0x4] sm:$0x1]
        %s454 = scalar_lea.vmem %s1, 128
        %v455 = vld [vmem:[%s454] sm:$0xf]
        %v456 = vld [vmem:[%s454 + $0x4] sm:$0xf]
        %v457 = vld [vmem:[%s454 + $0x8] sm:$0xf]
        %v458 = vld [vmem:[%s454 + $0xc] sm:$0xf]
        %v459 = vld [vmem:[%s454 + $0x10] sm:$0xf]
        %v460 = vld [vmem:[%s454 + $0x14] sm:$0xf]
        %v461 = vld [vmem:[%s454 + $0x18] sm:$0xf]
        %v462 = vld [vmem:[%s454 + $0x1c] sm:$0xf]
        %v463 = vld [vmem:[%s454 + $0x20] sm:$0xf]
        %v464 = vld [vmem:[%s454 + $0x24] sm:$0xf]
        %v465 = vld [vmem:[%s454 + $0x28] sm:$0xf]
        %v466 = vld [vmem:[%s454 + $0x2c] sm:$0xf]
        %v467 = vld [vmem:[%s454 + $0x30] sm:$0xf]
        %v468 = vld [vmem:[%s454 + $0x34] sm:$0xf]
        %v469 = vld [vmem:[%s454 + $0x38] sm:$0xf]
        %v470 = vld [vmem:[%s454 + $0x3c] sm:$0xf]
        %v473 = vunpack.c.l.b16 %v452
        %v474 = vunpack.c.l.b16 %v453
        %v475 = vpack.c.b16 %v474, %v473
        %v477 = vshrl.u32 %v475, 16
        %v479 = vshll.u32 %v475, 16
        %v481 = vrot.slane %v479, 1
        %v482 = vor.u32 %v477, %v481
        %v500 = vunpack.c.l.b16 %v455
        %v501 = vunpack.c.l.b16 %v456
        %v502 = vunpack.c.l.b16 %v457
        %v503 = vunpack.c.l.b16 %v458
        %v504 = vunpack.c.l.b16 %v459
        %v505 = vunpack.c.l.b16 %v460
        %v506 = vunpack.c.l.b16 %v461
        %v507 = vunpack.c.l.b16 %v462
        %v508 = vunpack.c.l.b16 %v463
        %v509 = vunpack.c.l.b16 %v464
        %v510 = vunpack.c.l.b16 %v465
        %v511 = vunpack.c.l.b16 %v466
        %v512 = vunpack.c.l.b16 %v467
        %v513 = vunpack.c.l.b16 %v468
        %v514 = vunpack.c.l.b16 %v469
        %v515 = vunpack.c.l.b16 %v470
        %v516 = vpack.c.b16 %v501, %v500
        %v517 = vpack.c.b16 %v503, %v502
        %v518 = vpack.c.b16 %v505, %v504
        %v519 = vpack.c.b16 %v507, %v506
        %v520 = vpack.c.b16 %v509, %v508
        %v521 = vpack.c.b16 %v511, %v510
        %v522 = vpack.c.b16 %v513, %v512
        %v523 = vpack.c.b16 %v515, %v514
        %532 = vmatprep.subr.bf16.mxu0 0
        %533 = vmatpush1.bf16.msra.mxu0 %v516
        %534 = vmatprep.subr.bf16.mxu0 0
        %535 = vmatpush1.bf16.msra.mxu0 %v517
        %536 = vmatprep.subr.bf16.mxu0 0
        %537 = vmatpush1.bf16.msra.mxu0 %v518
        %538 = vmatprep.subr.bf16.mxu0 0
        %539 = vmatpush1.bf16.msra.mxu0 %v519
        %540 = vmatprep.subr.bf16.mxu0 0
        %541 = vmatpush1.bf16.msra.mxu0 %v520
        %542 = vmatprep.subr.bf16.mxu0 0
        %543 = vmatpush1.bf16.msra.mxu0 %v521
        %544 = vmatprep.subr.bf16.mxu0 0
        %545 = vmatpush1.bf16.msra.mxu0 %v522
        %546 = vmatprep.subr.bf16.mxu0 0
        %547 = vmatpush1.bf16.msra.mxu0 %v523
        %548 = vmatprep.subr.bf16.mxu0 0
        %549 = vmatpush1.bf16.msra.mxu0 0
        %550 = vmatprep.subr.bf16.mxu0 0
        %551 = vmatpush1.bf16.msra.mxu0 0
        %552 = vmatprep.subr.bf16.mxu0 0
        %553 = vmatpush1.bf16.msra.mxu0 0
        %554 = vmatprep.subr.bf16.mxu0 0
        %555 = vmatpush1.bf16.msra.mxu0 0
        %556 = vmatprep.subr.bf16.mxu0 0
        %557 = vmatpush1.bf16.msra.mxu0 0
        %558 = vmatprep.subr.bf16.mxu0 0
        %559 = vmatpush1.bf16.msra.mxu0 0
        %560 = vmatprep.subr.bf16.mxu0 0
        %561 = vmatpush1.bf16.msra.mxu0 0
        %562 = vmatprep.subr.bf16.mxu0 0
        %563 = vmatpush1.bf16.msra.mxu0 0
        %564 = vmatprep.mubr.bf16.mxu0 0
        %565 = vmatmul.mubr.bf16.gmra.mrb[0].mxu0 %v482
        %v566 = vpop.f32.mrb[0].mxu0
        %v567 = vadd.f32 0.0, %v566
        %v568 = vpop.f32.mrb[0].mxu0
        %v569 = vpop.f32.mrb[0].mxu0
        %v570 = vpop.f32.mrb[0].mxu0
        %571 = vdwg.mxu0
        %v572 = vadd.f32 %v447, %v567
        %v573 = vld [vmem:[%s257] sm:$0xf]
        %v574 = vld [vmem:[%s257 + $0x4] sm:$0x1]
        %s575 = scalar_lea.vmem %s1, 192
        %v576 = vld [vmem:[%s575] sm:$0xf]
        %v577 = vld [vmem:[%s575 + $0x4] sm:$0xf]
        %v578 = vld [vmem:[%s575 + $0x8] sm:$0xf]
        %v579 = vld [vmem:[%s575 + $0xc] sm:$0xf]
        %v580 = vld [vmem:[%s575 + $0x10] sm:$0xf]
        %v581 = vld [vmem:[%s575 + $0x14] sm:$0xf]
        %v582 = vld [vmem:[%s575 + $0x18] sm:$0xf]
        %v583 = vld [vmem:[%s575 + $0x1c] sm:$0xf]
        %v584 = vld [vmem:[%s575 + $0x20] sm:$0xf]
        %v585 = vld [vmem:[%s575 + $0x24] sm:$0xf]
        %v586 = vld [vmem:[%s575 + $0x28] sm:$0xf]
        %v587 = vld [vmem:[%s575 + $0x2c] sm:$0xf]
        %v588 = vld [vmem:[%s575 + $0x30] sm:$0xf]
        %v589 = vld [vmem:[%s575 + $0x34] sm:$0xf]
        %v590 = vld [vmem:[%s575 + $0x38] sm:$0xf]
        %v591 = vld [vmem:[%s575 + $0x3c] sm:$0xf]
        %v594 = vunpack.c.l.b16 %v573
        %v595 = vunpack.c.l.b16 %v574
        %v596 = vpack.c.b16 %v595, %v594
        %v598 = vshrl.u32 %v596, 16
        %v600 = vshll.u32 %v596, 16
        %v602 = vrot.slane %v600, 1
        %v603 = vor.u32 %v598, %v602
        %v621 = vunpack.c.l.b16 %v576
        %v622 = vunpack.c.l.b16 %v577
        %v623 = vunpack.c.l.b16 %v578
        %v624 = vunpack.c.l.b16 %v579
        %v625 = vunpack.c.l.b16 %v580
        %v626 = vunpack.c.l.b16 %v581
        %v627 = vunpack.c.l.b16 %v582
        %v628 = vunpack.c.l.b16 %v583
        %v629 = vunpack.c.l.b16 %v584
        %v630 = vunpack.c.l.b16 %v585
        %v631 = vunpack.c.l.b16 %v586
        %v632 = vunpack.c.l.b16 %v587
        %v633 = vunpack.c.l.b16 %v588
        %v634 = vunpack.c.l.b16 %v589
        %v635 = vunpack.c.l.b16 %v590
        %v636 = vunpack.c.l.b16 %v591
        %v637 = vpack.c.b16 %v622, %v621
        %v638 = vpack.c.b16 %v624, %v623
        %v639 = vpack.c.b16 %v626, %v625
        %v640 = vpack.c.b16 %v628, %v627
        %v641 = vpack.c.b16 %v630, %v629
        %v642 = vpack.c.b16 %v632, %v631
        %v643 = vpack.c.b16 %v634, %v633
        %v644 = vpack.c.b16 %v636, %v635
        %653 = vmatprep.subr.bf16.mxu0 0
        %654 = vmatpush1.bf16.msra.mxu0 %v637
        %655 = vmatprep.subr.bf16.mxu0 0
        %656 = vmatpush1.bf16.msra.mxu0 %v638
        %657 = vmatprep.subr.bf16.mxu0 0
        %658 = vmatpush1.bf16.msra.mxu0 %v639
        %659 = vmatprep.subr.bf16.mxu0 0
        %660 = vmatpush1.bf16.msra.mxu0 %v640
        %661 = vmatprep.subr.bf16.mxu0 0
        %662 = vmatpush1.bf16.msra.mxu0 %v641
        %663 = vmatprep.subr.bf16.mxu0 0
        %664 = vmatpush1.bf16.msra.mxu0 %v642
        %665 = vmatprep.subr.bf16.mxu0 0
        %666 = vmatpush1.bf16.msra.mxu0 %v643
        %667 = vmatprep.subr.bf16.mxu0 0
        %668 = vmatpush1.bf16.msra.mxu0 %v644
        %669 = vmatprep.subr.bf16.mxu0 0
        %670 = vmatpush1.bf16.msra.mxu0 0
        %671 = vmatprep.subr.bf16.mxu0 0
        %672 = vmatpush1.bf16.msra.mxu0 0
        %673 = vmatprep.subr.bf16.mxu0 0
        %674 = vmatpush1.bf16.msra.mxu0 0
        %675 = vmatprep.subr.bf16.mxu0 0
        %676 = vmatpush1.bf16.msra.mxu0 0
        %677 = vmatprep.subr.bf16.mxu0 0
        %678 = vmatpush1.bf16.msra.mxu0 0
        %679 = vmatprep.subr.bf16.mxu0 0
        %680 = vmatpush1.bf16.msra.mxu0 0
        %681 = vmatprep.subr.bf16.mxu0 0
        %682 = vmatpush1.bf16.msra.mxu0 0
        %683 = vmatprep.subr.bf16.mxu0 0
        %684 = vmatpush1.bf16.msra.mxu0 0
        %685 = vmatprep.mubr.bf16.mxu0 0
        %686 = vmatmul.mubr.bf16.gmra.mrb[0].mxu0 %v603
        %v687 = vpop.f32.mrb[0].mxu0
        %v688 = vadd.f32 0.0, %v687
        %v689 = vpop.f32.mrb[0].mxu0
        %v690 = vpop.f32.mrb[0].mxu0
        %v691 = vpop.f32.mrb[0].mxu0
        %692 = vdwg.mxu0
        %v693 = vadd.f32 %v572, %v688
        %s694 = scalar_lea.vmem %s215, 16 [#allocation2]
        %v695 = vld [vmem:[%s694] sm:$0xf]
        %s696 = scalar_lea.vmem %s1, 256
        %v697 = vld [vmem:[%s696] sm:$0xf]
        %v698 = vld [vmem:[%s696 + $0x4] sm:$0xf]
        %v699 = vld [vmem:[%s696 + $0x8] sm:$0xf]
        %v700 = vld [vmem:[%s696 + $0xc] sm:$0xf]
        %v701 = vld [vmem:[%s696 + $0x10] sm:$0xf]
        %v702 = vld [vmem:[%s696 + $0x14] sm:$0xf]
        %v703 = vld [vmem:[%s696 + $0x18] sm:$0xf]
        %v704 = vld [vmem:[%s696 + $0x1c] sm:$0xf]
        %v705 = vld [vmem:[%s696 + $0x20] sm:$0xf]
        %v706 = vld [vmem:[%s696 + $0x24] sm:$0xf]
        %v707 = vld [vmem:[%s696 + $0x28] sm:$0xf]
        %v708 = vld [vmem:[%s696 + $0x2c] sm:$0xf]
        %v709 = vld [vmem:[%s696 + $0x30] sm:$0xf]
        %v710 = vld [vmem:[%s696 + $0x34] sm:$0xf]
        %v711 = vld [vmem:[%s696 + $0x38] sm:$0xf]
        %v712 = vld [vmem:[%s696 + $0x3c] sm:$0xf]
        %v729 = vunpack.c.l.b16 %v697
        %v730 = vunpack.c.l.b16 %v698
        %v731 = vunpack.c.l.b16 %v699
        %v732 = vunpack.c.l.b16 %v700
        %v733 = vunpack.c.l.b16 %v701
        %v734 = vunpack.c.l.b16 %v702
        %v735 = vunpack.c.l.b16 %v703
        %v736 = vunpack.c.l.b16 %v704
        %v737 = vunpack.c.l.b16 %v705
        %v738 = vunpack.c.l.b16 %v706
        %v739 = vunpack.c.l.b16 %v707
        %v740 = vunpack.c.l.b16 %v708
        %v741 = vunpack.c.l.b16 %v709
        %v742 = vunpack.c.l.b16 %v710
        %v743 = vunpack.c.l.b16 %v711
        %v744 = vunpack.c.l.b16 %v712
        %v745 = vpack.c.b16 %v730, %v729
        %v746 = vpack.c.b16 %v732, %v731
        %v747 = vpack.c.b16 %v734, %v733
        %v748 = vpack.c.b16 %v736, %v735
        %v749 = vpack.c.b16 %v738, %v737
        %v750 = vpack.c.b16 %v740, %v739
        %v751 = vpack.c.b16 %v742, %v741
        %v752 = vpack.c.b16 %v744, %v743
        %761 = vmatprep.subr.bf16.mxu0 0
        %762 = vmatpush1.bf16.msra.mxu0 %v745
        %763 = vmatprep.subr.bf16.mxu0 0
        %764 = vmatpush1.bf16.msra.mxu0 %v746
        %765 = vmatprep.subr.bf16.mxu0 0
        %766 = vmatpush1.bf16.msra.mxu0 %v747
        %767 = vmatprep.subr.bf16.mxu0 0
        %768 = vmatpush1.bf16.msra.mxu0 %v748
        %769 = vmatprep.subr.bf16.mxu0 0
        %770 = vmatpush1.bf16.msra.mxu0 %v749
        %771 = vmatprep.subr.bf16.mxu0 0
        %772 = vmatpush1.bf16.msra.mxu0 %v750
        %773 = vmatprep.subr.bf16.mxu0 0
        %774 = vmatpush1.bf16.msra.mxu0 %v751
        %775 = vmatprep.subr.bf16.mxu0 0
        %776 = vmatpush1.bf16.msra.mxu0 %v752
        %777 = vmatprep.subr.bf16.mxu0 0
        %778 = vmatpush1.bf16.msra.mxu0 0
        %779 = vmatprep.subr.bf16.mxu0 0
        %780 = vmatpush1.bf16.msra.mxu0 0
        %781 = vmatprep.subr.bf16.mxu0 0
        %782 = vmatpush1.bf16.msra.mxu0 0
        %783 = vmatprep.subr.bf16.mxu0 0
        %784 = vmatpush1.bf16.msra.mxu0 0
        %785 = vmatprep.subr.bf16.mxu0 0
        %786 = vmatpush1.bf16.msra.mxu0 0
        %787 = vmatprep.subr.bf16.mxu0 0
        %788 = vmatpush1.bf16.msra.mxu0 0
        %789 = vmatprep.subr.bf16.mxu0 0
        %790 = vmatpush1.bf16.msra.mxu0 0
        %791 = vmatprep.subr.bf16.mxu0 0
        %792 = vmatpush1.bf16.msra.mxu0 0
        %793 = vmatprep.mubr.bf16.mxu0 0
        %794 = vmatmul.mubr.bf16.gmra.mrb[0].mxu0 %v695
        %v795 = vpop.f32.mrb[0].mxu0
        %v796 = vadd.f32 0.0, %v795
        %v797 = vpop.f32.mrb[0].mxu0
        %v798 = vpop.f32.mrb[0].mxu0
        %v799 = vpop.f32.mrb[0].mxu0
        %800 = vdwg.mxu0
        %v801 = vadd.f32 %v693, %v796
        %s802 = scalar_lea.vmem %s215, 24 [#allocation2]
        %v803 = vld [vmem:[%s802] sm:$0xf]
        %s804 = scalar_lea.vmem %s1, 320
        %v805 = vld [vmem:[%s804] sm:$0xf]
        %v806 = vld [vmem:[%s804 + $0x4] sm:$0xf]
        %v807 = vld [vmem:[%s804 + $0x8] sm:$0xf]
        %v808 = vld [vmem:[%s804 + $0xc] sm:$0xf]
        %v809 = vld [vmem:[%s804 + $0x10] sm:$0xf]
        %v810 = vld [vmem:[%s804 + $0x14] sm:$0xf]
        %v811 = vld [vmem:[%s804 + $0x18] sm:$0xf]
        %v812 = vld [vmem:[%s804 + $0x1c] sm:$0xf]
        %v813 = vld [vmem:[%s804 + $0x20] sm:$0xf]
        %v814 = vld [vmem:[%s804 + $0x24] sm:$0xf]
        %v815 = vld [vmem:[%s804 + $0x28] sm:$0xf]
        %v816 = vld [vmem:[%s804 + $0x2c] sm:$0xf]
        %v817 = vld [vmem:[%s804 + $0x30] sm:$0xf]
        %v818 = vld [vmem:[%s804 + $0x34] sm:$0xf]
        %v819 = vld [vmem:[%s804 + $0x38] sm:$0xf]
        %v820 = vld [vmem:[%s804 + $0x3c] sm:$0xf]
        %v837 = vunpack.c.l.b16 %v805
        %v838 = vunpack.c.l.b16 %v806
        %v839 = vunpack.c.l.b16 %v807
        %v840 = vunpack.c.l.b16 %v808
        %v841 = vunpack.c.l.b16 %v809
        %v842 = vunpack.c.l.b16 %v810
        %v843 = vunpack.c.l.b16 %v811
        %v844 = vunpack.c.l.b16 %v812
        %v845 = vunpack.c.l.b16 %v813
        %v846 = vunpack.c.l.b16 %v814
        %v847 = vunpack.c.l.b16 %v815
        %v848 = vunpack.c.l.b16 %v816
        %v849 = vunpack.c.l.b16 %v817
        %v850 = vunpack.c.l.b16 %v818
        %v851 = vunpack.c.l.b16 %v819
        %v852 = vunpack.c.l.b16 %v820
        %v853 = vpack.c.b16 %v838, %v837
        %v854 = vpack.c.b16 %v840, %v839
        %v855 = vpack.c.b16 %v842, %v841
        %v856 = vpack.c.b16 %v844, %v843
        %v857 = vpack.c.b16 %v846, %v845
        %v858 = vpack.c.b16 %v848, %v847
        %v859 = vpack.c.b16 %v850, %v849
        %v860 = vpack.c.b16 %v852, %v851
        %869 = vmatprep.subr.bf16.mxu0 0
        %870 = vmatpush1.bf16.msra.mxu0 %v853
        %871 = vmatprep.subr.bf16.mxu0 0
        %872 = vmatpush1.bf16.msra.mxu0 %v854
        %873 = vmatprep.subr.bf16.mxu0 0
        %874 = vmatpush1.bf16.msra.mxu0 %v855
        %875 = vmatprep.subr.bf16.mxu0 0
        %876 = vmatpush1.bf16.msra.mxu0 %v856
        %877 = vmatprep.subr.bf16.mxu0 0
        %878 = vmatpush1.bf16.msra.mxu0 %v857
        %879 = vmatprep.subr.bf16.mxu0 0
        %880 = vmatpush1.bf16.msra.mxu0 %v858
        %881 = vmatprep.subr.bf16.mxu0 0
        %882 = vmatpush1.bf16.msra.mxu0 %v859
        %883 = vmatprep.subr.bf16.mxu0 0
        %884 = vmatpush1.bf16.msra.mxu0 %v860
        %885 = vmatprep.subr.bf16.mxu0 0
        %886 = vmatpush1.bf16.msra.mxu0 0
        %887 = vmatprep.subr.bf16.mxu0 0
        %888 = vmatpush1.bf16.msra.mxu0 0
        %889 = vmatprep.subr.bf16.mxu0 0
        %890 = vmatpush1.bf16.msra.mxu0 0
        %891 = vmatprep.subr.bf16.mxu0 0
        %892 = vmatpush1.bf16.msra.mxu0 0
        %893 = vmatprep.subr.bf16.mxu0 0
        %894 = vmatpush1.bf16.msra.mxu0 0
        %895 = vmatprep.subr.bf16.mxu0 0
        %896 = vmatpush1.bf16.msra.mxu0 0
        %897 = vmatprep.subr.bf16.mxu0 0
        %898 = vmatpush1.bf16.msra.mxu0 0
        %899 = vmatprep.subr.bf16.mxu0 0
        %900 = vmatpush1.bf16.msra.mxu0 0
        %901 = vmatprep.mubr.bf16.mxu0 0
        %902 = vmatmul.mubr.bf16.gmra.mrb[0].mxu0 %v803
        %v903 = vpop.f32.mrb[0].mxu0
        %v904 = vadd.f32 0.0, %v903
        %v905 = vpop.f32.mrb[0].mxu0
        %v906 = vpop.f32.mrb[0].mxu0
        %v907 = vpop.f32.mrb[0].mxu0
        %908 = vdwg.mxu0
        %v909 = vadd.f32 %v801, %v904
        %v910 = vld [vmem:[%s694] sm:$0xf]
        %v911 = vld [vmem:[%s694 + $0x4] sm:$0x1]
        %s912 = scalar_lea.vmem %s1, 384
        %v913 = vld [vmem:[%s912] sm:$0xf]
        %v914 = vld [vmem:[%s912 + $0x4] sm:$0xf]
        %v915 = vld [vmem:[%s912 + $0x8] sm:$0xf]
        %v916 = vld [vmem:[%s912 + $0xc] sm:$0xf]
        %v917 = vld [vmem:[%s912 + $0x10] sm:$0xf]
        %v918 = vld [vmem:[%s912 + $0x14] sm:$0xf]
        %v919 = vld [vmem:[%s912 + $0x18] sm:$0xf]
        %v920 = vld [vmem:[%s912 + $0x1c] sm:$0xf]
        %v921 = vld [vmem:[%s912 + $0x20] sm:$0xf]
        %v922 = vld [vmem:[%s912 + $0x24] sm:$0xf]
        %v923 = vld [vmem:[%s912 + $0x28] sm:$0xf]
        %v924 = vld [vmem:[%s912 + $0x2c] sm:$0xf]
        %v925 = vld [vmem:[%s912 + $0x30] sm:$0xf]
        %v926 = vld [vmem:[%s912 + $0x34] sm:$0xf]
        %v927 = vld [vmem:[%s912 + $0x38] sm:$0xf]
        %v928 = vld [vmem:[%s912 + $0x3c] sm:$0xf]
        %v931 = vunpack.c.l.b16 %v910
        %v932 = vunpack.c.l.b16 %v911
        %v933 = vpack.c.b16 %v932, %v931
        %v935 = vshrl.u32 %v933, 16
        %v937 = vshll.u32 %v933, 16
        %v939 = vrot.slane %v937, 1
        %v940 = vor.u32 %v935, %v939
        %v958 = vunpack.c.l.b16 %v913
        %v959 = vunpack.c.l.b16 %v914
        %v960 = vunpack.c.l.b16 %v915
        %v961 = vunpack.c.l.b16 %v916
        %v962 = vunpack.c.l.b16 %v917
        %v963 = vunpack.c.l.b16 %v918
        %v964 = vunpack.c.l.b16 %v919
        %v965 = vunpack.c.l.b16 %v920
        %v966 = vunpack.c.l.b16 %v921
        %v967 = vunpack.c.l.b16 %v922
        %v968 = vunpack.c.l.b16 %v923
        %v969 = vunpack.c.l.b16 %v924
        %v970 = vunpack.c.l.b16 %v925
        %v971 = vunpack.c.l.b16 %v926
        %v972 = vunpack.c.l.b16 %v927
        %v973 = vunpack.c.l.b16 %v928
        %v974 = vpack.c.b16 %v959, %v958
        %v975 = vpack.c.b16 %v961, %v960
        %v976 = vpack.c.b16 %v963, %v962
        %v977 = vpack.c.b16 %v965, %v964
        %v978 = vpack.c.b16 %v967, %v966
        %v979 = vpack.c.b16 %v969, %v968
        %v980 = vpack.c.b16 %v971, %v970
        %v981 = vpack.c.b16 %v973, %v972
        %990 = vmatprep.subr.bf16.mxu0 0
        %991 = vmatpush1.bf16.msra.mxu0 %v974
        %992 = vmatprep.subr.bf16.mxu0 0
        %993 = vmatpush1.bf16.msra.mxu0 %v975
        %994 = vmatprep.subr.bf16.mxu0 0
        %995 = vmatpush1.bf16.msra.mxu0 %v976
        %996 = vmatprep.subr.bf16.mxu0 0
        %997 = vmatpush1.bf16.msra.mxu0 %v977
        %998 = vmatprep.subr.bf16.mxu0 0
        %999 = vmatpush1.bf16.msra.mxu0 %v978
        %1000 = vmatprep.subr.bf16.mxu0 0
        %1001 = vmatpush1.bf16.msra.mxu0 %v979
        %1002 = vmatprep.subr.bf16.mxu0 0
        %1003 = vmatpush1.bf16.msra.mxu0 %v980
        %1004 = vmatprep.subr.bf16.mxu0 0
        %1005 = vmatpush1.bf16.msra.mxu0 %v981
        %1006 = vmatprep.subr.bf16.mxu0 0
        %1007 = vmatpush1.bf16.msra.mxu0 0
        %1008 = vmatprep.subr.bf16.mxu0 0
        %1009 = vmatpush1.bf16.msra.mxu0 0
        %1010 = vmatprep.subr.bf16.mxu0 0
        %1011 = vmatpush1.bf16.msra.mxu0 0
        %1012 = vmatprep.subr.bf16.mxu0 0
        %1013 = vmatpush1.bf16.msra.mxu0 0
        %1014 = vmatprep.subr.bf16.mxu0 0
        %1015 = vmatpush1.bf16.msra.mxu0 0
        %1016 = vmatprep.subr.bf16.mxu0 0
        %1017 = vmatpush1.bf16.msra.mxu0 0
        %1018 = vmatprep.subr.bf16.mxu0 0
        %1019 = vmatpush1.bf16.msra.mxu0 0
        %1020 = vmatprep.subr.bf16.mxu0 0
        %1021 = vmatpush1.bf16.msra.mxu0 0
        %1022 = vmatprep.mubr.bf16.mxu0 0
        %1023 = vmatmul.mubr.bf16.gmra.mrb[0].mxu0 %v940
        %v1024 = vpop.f32.mrb[0].mxu0
        %v1025 = vadd.f32 0.0, %v1024
        %v1026 = vpop.f32.mrb[0].mxu0
        %v1027 = vpop.f32.mrb[0].mxu0
        %v1028 = vpop.f32.mrb[0].mxu0
        %1029 = vdwg.mxu0
        %v1030 = vadd.f32 %v909, %v1025
        %v1031 = vld [vmem:[%s802] sm:$0xf]
        %v1032 = vld [vmem:[%s802 + $0x4] sm:$0x1]
        %s1033 = scalar_lea.vmem %s1, 448
        %v1034 = vld [vmem:[%s1033] sm:$0xf]
        %v1035 = vld [vmem:[%s1033 + $0x4] sm:$0xf]
        %v1036 = vld [vmem:[%s1033 + $0x8] sm:$0xf]
        %v1037 = vld [vmem:[%s1033 + $0xc] sm:$0xf]
        %v1038 = vld [vmem:[%s1033 + $0x10] sm:$0xf]
        %v1039 = vld [vmem:[%s1033 + $0x14] sm:$0xf]
        %v1040 = vld [vmem:[%s1033 + $0x18] sm:$0xf]
        %v1041 = vld [vmem:[%s1033 + $0x1c] sm:$0xf]
        %v1042 = vld [vmem:[%s1033 + $0x20] sm:$0xf]
        %v1043 = vld [vmem:[%s1033 + $0x24] sm:$0xf]
        %v1044 = vld [vmem:[%s1033 + $0x28] sm:$0xf]
        %v1045 = vld [vmem:[%s1033 + $0x2c] sm:$0xf]
        %v1046 = vld [vmem:[%s1033 + $0x30] sm:$0xf]
        %v1047 = vld [vmem:[%s1033 + $0x34] sm:$0xf]
        %v1048 = vld [vmem:[%s1033 + $0x38] sm:$0xf]
        %v1049 = vld [vmem:[%s1033 + $0x3c] sm:$0xf]
        %v1052 = vunpack.c.l.b16 %v1031
        %v1053 = vunpack.c.l.b16 %v1032
        %v1054 = vpack.c.b16 %v1053, %v1052
        %v1056 = vshrl.u32 %v1054, 16
        %v1058 = vshll.u32 %v1054, 16
        %v1060 = vrot.slane %v1058, 1
        %v1061 = vor.u32 %v1056, %v1060
        %v1079 = vunpack.c.l.b16 %v1034
        %v1080 = vunpack.c.l.b16 %v1035
        %v1081 = vunpack.c.l.b16 %v1036
        %v1082 = vunpack.c.l.b16 %v1037
        %v1083 = vunpack.c.l.b16 %v1038
        %v1084 = vunpack.c.l.b16 %v1039
        %v1085 = vunpack.c.l.b16 %v1040
        %v1086 = vunpack.c.l.b16 %v1041
        %v1087 = vunpack.c.l.b16 %v1042
        %v1088 = vunpack.c.l.b16 %v1043
        %v1089 = vunpack.c.l.b16 %v1044
        %v1090 = vunpack.c.l.b16 %v1045
        %v1091 = vunpack.c.l.b16 %v1046
        %v1092 = vunpack.c.l.b16 %v1047
        %v1093 = vunpack.c.l.b16 %v1048
        %v1094 = vunpack.c.l.b16 %v1049
        %v1095 = vpack.c.b16 %v1080, %v1079
        %v1096 = vpack.c.b16 %v1082, %v1081
        %v1097 = vpack.c.b16 %v1084, %v1083
        %v1098 = vpack.c.b16 %v1086, %v1085
        %v1099 = vpack.c.b16 %v1088, %v1087
        %v1100 = vpack.c.b16 %v1090, %v1089
        %v1101 = vpack.c.b16 %v1092, %v1091
        %v1102 = vpack.c.b16 %v1094, %v1093
        %1111 = vmatprep.subr.bf16.mxu0 0
        %1112 = vmatpush1.bf16.msra.mxu0 %v1095
        %1113 = vmatprep.subr.bf16.mxu0 0
        %1114 = vmatpush1.bf16.msra.mxu0 %v1096
        %1115 = vmatprep.subr.bf16.mxu0 0
        %1116 = vmatpush1.bf16.msra.mxu0 %v1097
        %1117 = vmatprep.subr.bf16.mxu0 0
        %1118 = vmatpush1.bf16.msra.mxu0 %v1098
        %1119 = vmatprep.subr.bf16.mxu0 0
        %1120 = vmatpush1.bf16.msra.mxu0 %v1099
        %1121 = vmatprep.subr.bf16.mxu0 0
        %1122 = vmatpush1.bf16.msra.mxu0 %v1100
        %1123 = vmatprep.subr.bf16.mxu0 0
        %1124 = vmatpush1.bf16.msra.mxu0 %v1101
        %1125 = vmatprep.subr.bf16.mxu0 0
        %1126 = vmatpush1.bf16.msra.mxu0 %v1102
        %1127 = vmatprep.subr.bf16.mxu0 0
        %1128 = vmatpush1.bf16.msra.mxu0 0
        %1129 = vmatprep.subr.bf16.mxu0 0
        %1130 = vmatpush1.bf16.msra.mxu0 0
        %1131 = vmatprep.subr.bf16.mxu0 0
        %1132 = vmatpush1.bf16.msra.mxu0 0
        %1133 = vmatprep.subr.bf16.mxu0 0
        %1134 = vmatpush1.bf16.msra.mxu0 0
        %1135 = vmatprep.subr.bf16.mxu0 0
        %1136 = vmatpush1.bf16.msra.mxu0 0
        %1137 = vmatprep.subr.bf16.mxu0 0
        %1138 = vmatpush1.bf16.msra.mxu0 0
        %1139 = vmatprep.subr.bf16.mxu0 0
        %1140 = vmatpush1.bf16.msra.mxu0 0
        %1141 = vmatprep.subr.bf16.mxu0 0
        %1142 = vmatpush1.bf16.msra.mxu0 0
        %1143 = vmatprep.mubr.bf16.mxu0 0
        %1144 = vmatmul.mubr.bf16.gmra.mrb[0].mxu0 %v1061
        %v1145 = vpop.f32.mrb[0].mxu0
        %v1146 = vadd.f32 0.0, %v1145
        %v1147 = vpop.f32.mrb[0].mxu0
        %v1148 = vpop.f32.mrb[0].mxu0
        %v1149 = vpop.f32.mrb[0].mxu0
        %1150 = vdwg.mxu0
        %v1151 = vadd.f32 %v1030, %v1146
        %v1152 = vld [vmem:[%s215] sm:$0xe]
        %v1153 = vld [vmem:[%s215 + $0x4] sm:$0x3]
        %s1154 = scalar_lea.vmem %s1, 512
        %v1155 = vld [vmem:[%s1154] sm:$0xf]
        %v1156 = vld [vmem:[%s1154 + $0x4] sm:$0xf]
        %v1157 = vld [vmem:[%s1154 + $0x8] sm:$0xf]
        %v1158 = vld [vmem:[%s1154 + $0xc] sm:$0xf]
        %v1159 = vld [vmem:[%s1154 + $0x10] sm:$0xf]
        %v1160 = vld [vmem:[%s1154 + $0x14] sm:$0xf]
        %v1161 = vld [vmem:[%s1154 + $0x18] sm:$0xf]
        %v1162 = vld [vmem:[%s1154 + $0x1c] sm:$0xf]
        %v1163 = vld [vmem:[%s1154 + $0x20] sm:$0xf]
        %v1164 = vld [vmem:[%s1154 + $0x24] sm:$0xf]
        %v1165 = vld [vmem:[%s1154 + $0x28] sm:$0xf]
        %v1166 = vld [vmem:[%s1154 + $0x2c] sm:$0xf]
        %v1167 = vld [vmem:[%s1154 + $0x30] sm:$0xf]
        %v1168 = vld [vmem:[%s1154 + $0x34] sm:$0xf]
        %v1169 = vld [vmem:[%s1154 + $0x38] sm:$0xf]
        %v1170 = vld [vmem:[%s1154 + $0x3c] sm:$0xf]
        %v1173 = vunpack.c.l.b16 %v1152
        %v1174 = vunpack.c.l.b16 %v1153
        %v1175 = vpack.c.b16 %v1174, %v1173
        %v1177 = vshrl.u32 %v1175, 16
        %v1179 = vrot.slane %v1177, 1
        %v1180 = vshll.u32 %v1175, 16
        %v1182 = vrot.slane %v1180, 2
        %v1183 = vor.u32 %v1179, %v1182
        %v1201 = vunpack.c.l.b16 %v1155
        %v1202 = vunpack.c.l.b16 %v1156
        %v1203 = vunpack.c.l.b16 %v1157
        %v1204 = vunpack.c.l.b16 %v1158
        %v1205 = vunpack.c.l.b16 %v1159
        %v1206 = vunpack.c.l.b16 %v1160
        %v1207 = vunpack.c.l.b16 %v1161
        %v1208 = vunpack.c.l.b16 %v1162
        %v1209 = vunpack.c.l.b16 %v1163
        %v1210 = vunpack.c.l.b16 %v1164
        %v1211 = vunpack.c.l.b16 %v1165
        %v1212 = vunpack.c.l.b16 %v1166
        %v1213 = vunpack.c.l.b16 %v1167
        %v1214 = vunpack.c.l.b16 %v1168
        %v1215 = vunpack.c.l.b16 %v1169
        %v1216 = vunpack.c.l.b16 %v1170
        %v1217 = vpack.c.b16 %v1202, %v1201
        %v1218 = vpack.c.b16 %v1204, %v1203
        %v1219 = vpack.c.b16 %v1206, %v1205
        %v1220 = vpack.c.b16 %v1208, %v1207
        %v1221 = vpack.c.b16 %v1210, %v1209
        %v1222 = vpack.c.b16 %v1212, %v1211
        %v1223 = vpack.c.b16 %v1214, %v1213
        %v1224 = vpack.c.b16 %v1216, %v1215
        %1233 = vmatprep.subr.bf16.mxu0 0
        %1234 = vmatpush1.bf16.msra.mxu0 %v1217
        %1235 = vmatprep.subr.bf16.mxu0 0
        %1236 = vmatpush1.bf16.msra.mxu0 %v1218
        %1237 = vmatprep.subr.bf16.mxu0 0
        %1238 = vmatpush1.bf16.msra.mxu0 %v1219
        %1239 = vmatprep.subr.bf16.mxu0 0
        %1240 = vmatpush1.bf16.msra.mxu0 %v1220
        %1241 = vmatprep.subr.bf16.mxu0 0
        %1242 = vmatpush1.bf16.msra.mxu0 %v1221
        %1243 = vmatprep.subr.bf16.mxu0 0
        %1244 = vmatpush1.bf16.msra.mxu0 %v1222
        %1245 = vmatprep.subr.bf16.mxu0 0
        %1246 = vmatpush1.bf16.msra.mxu0 %v1223
        %1247 = vmatprep.subr.bf16.mxu0 0
        %1248 = vmatpush1.bf16.msra.mxu0 %v1224
        %1249 = vmatprep.subr.bf16.mxu0 0
        %1250 = vmatpush1.bf16.msra.mxu0 0
        %1251 = vmatprep.subr.bf16.mxu0 0
        %1252 = vmatpush1.bf16.msra.mxu0 0
        %1253 = vmatprep.subr.bf16.mxu0 0
        %1254 = vmatpush1.bf16.msra.mxu0 0
        %1255 = vmatprep.subr.bf16.mxu0 0
        %1256 = vmatpush1.bf16.msra.mxu0 0
        %1257 = vmatprep.subr.bf16.mxu0 0
        %1258 = vmatpush1.bf16.msra.mxu0 0
        %1259 = vmatprep.subr.bf16.mxu0 0
        %1260 = vmatpush1.bf16.msra.mxu0 0
        %1261 = vmatprep.subr.bf16.mxu0 0
        %1262 = vmatpush1.bf16.msra.mxu0 0
        %1263 = vmatprep.subr.bf16.mxu0 0
        %1264 = vmatpush1.bf16.msra.mxu0 0
        %1265 = vmatprep.mubr.bf16.mxu0 0
        %1266 = vmatmul.mubr.bf16.gmra.mrb[0].mxu0 %v1183
        %v1267 = vpop.f32.mrb[0].mxu0
        %v1268 = vadd.f32 0.0, %v1267
        %v1269 = vpop.f32.mrb[0].mxu0
        %v1270 = vpop.f32.mrb[0].mxu0
        %v1271 = vpop.f32.mrb[0].mxu0
        %1272 = vdwg.mxu0
        %v1273 = vadd.f32 %v1151, %v1268
        %v1274 = vld [vmem:[%s257] sm:$0xe]
        %v1275 = vld [vmem:[%s257 + $0x4] sm:$0x3]
        %s1276 = scalar_lea.vmem %s1, 576
        %v1277 = vld [vmem:[%s1276] sm:$0xf]
        %v1278 = vld [vmem:[%s1276 + $0x4] sm:$0xf]
        %v1279 = vld [vmem:[%s1276 + $0x8] sm:$0xf]
        %v1280 = vld [vmem:[%s1276 + $0xc] sm:$0xf]
        %v1281 = vld [vmem:[%s1276 + $0x10] sm:$0xf]
        %v1282 = vld [vmem:[%s1276 + $0x14] sm:$0xf]
        %v1283 = vld [vmem:[%s1276 + $0x18] sm:$0xf]
        %v1284 = vld [vmem:[%s1276 + $0x1c] sm:$0xf]
        %v1285 = vld [vmem:[%s1276 + $0x20] sm:$0xf]
        %v1286 = vld [vmem:[%s1276 + $0x24] sm:$0xf]
        %v1287 = vld [vmem:[%s1276 + $0x28] sm:$0xf]
        %v1288 = vld [vmem:[%s1276 + $0x2c] sm:$0xf]
        %v1289 = vld [vmem:[%s1276 + $0x30] sm:$0xf]
        %v1290 = vld [vmem:[%s1276 + $0x34] sm:$0xf]
        %v1291 = vld [vmem:[%s1276 + $0x38] sm:$0xf]
        %v1292 = vld [vmem:[%s1276 + $0x3c] sm:$0xf]
        %v1295 = vunpack.c.l.b16 %v1274
        %v1296 = vunpack.c.l.b16 %v1275
        %v1297 = vpack.c.b16 %v1296, %v1295
        %v1299 = vshrl.u32 %v1297, 16
        %v1301 = vrot.slane %v1299, 1
        %v1302 = vshll.u32 %v1297, 16
        %v1304 = vrot.slane %v1302, 2
        %v1305 = vor.u32 %v1301, %v1304
        %v1323 = vunpack.c.l.b16 %v1277
        %v1324 = vunpack.c.l.b16 %v1278
        %v1325 = vunpack.c.l.b16 %v1279
        %v1326 = vunpack.c.l.b16 %v1280
        %v1327 = vunpack.c.l.b16 %v1281
        %v1328 = vunpack.c.l.b16 %v1282
        %v1329 = vunpack.c.l.b16 %v1283
        %v1330 = vunpack.c.l.b16 %v1284
        %v1331 = vunpack.c.l.b16 %v1285
        %v1332 = vunpack.c.l.b16 %v1286
        %v1333 = vunpack.c.l.b16 %v1287
        %v1334 = vunpack.c.l.b16 %v1288
        %v1335 = vunpack.c.l.b16 %v1289
        %v1336 = vunpack.c.l.b16 %v1290
        %v1337 = vunpack.c.l.b16 %v1291
        %v1338 = vunpack.c.l.b16 %v1292
        %v1339 = vpack.c.b16 %v1324, %v1323
        %v1340 = vpack.c.b16 %v1326, %v1325
        %v1341 = vpack.c.b16 %v1328, %v1327
        %v1342 = vpack.c.b16 %v1330, %v1329
        %v1343 = vpack.c.b16 %v1332, %v1331
        %v1344 = vpack.c.b16 %v1334, %v1333
        %v1345 = vpack.c.b16 %v1336, %v1335
        %v1346 = vpack.c.b16 %v1338, %v1337
        %1355 = vmatprep.subr.bf16.mxu0 0
        %1356 = vmatpush1.bf16.msra.mxu0 %v1339
        %1357 = vmatprep.subr.bf16.mxu0 0
        %1358 = vmatpush1.bf16.msra.mxu0 %v1340
        %1359 = vmatprep.subr.bf16.mxu0 0
        %1360 = vmatpush1.bf16.msra.mxu0 %v1341
        %1361 = vmatprep.subr.bf16.mxu0 0
        %1362 = vmatpush1.bf16.msra.mxu0 %v1342
        %1363 = vmatprep.subr.bf16.mxu0 0
        %1364 = vmatpush1.bf16.msra.mxu0 %v1343
        %1365 = vmatprep.subr.bf16.mxu0 0
        %1366 = vmatpush1.bf16.msra.mxu0 %v1344
        %1367 = vmatprep.subr.bf16.mxu0 0
        %1368 = vmatpush1.bf16.msra.mxu0 %v1345
        %1369 = vmatprep.subr.bf16.mxu0 0
        %1370 = vmatpush1.bf16.msra.mxu0 %v1346
        %1371 = vmatprep.subr.bf16.mxu0 0
        %1372 = vmatpush1.bf16.msra.mxu0 0
        %1373 = vmatprep.subr.bf16.mxu0 0
        %1374 = vmatpush1.bf16.msra.mxu0 0
        %1375 = vmatprep.subr.bf16.mxu0 0
        %1376 = vmatpush1.bf16.msra.mxu0 0
        %1377 = vmatprep.subr.bf16.mxu0 0
        %1378 = vmatpush1.bf16.msra.mxu0 0
        %1379 = vmatprep.subr.bf16.mxu0 0
        %1380 = vmatpush1.bf16.msra.mxu0 0
        %1381 = vmatprep.subr.bf16.mxu0 0
        %1382 = vmatpush1.bf16.msra.mxu0 0
        %1383 = vmatprep.subr.bf16.mxu0 0
        %1384 = vmatpush1.bf16.msra.mxu0 0
        %1385 = vmatprep.subr.bf16.mxu0 0
        %1386 = vmatpush1.bf16.msra.mxu0 0
        %1387 = vmatprep.mubr.bf16.mxu0 0
        %1388 = vmatmul.mubr.bf16.gmra.mrb[0].mxu0 %v1305
        %v1389 = vpop.f32.mrb[0].mxu0
        %v1390 = vadd.f32 0.0, %v1389
        %v1391 = vpop.f32.mrb[0].mxu0
        %v1392 = vpop.f32.mrb[0].mxu0
        %v1393 = vpop.f32.mrb[0].mxu0
        %1394 = vdwg.mxu0
        %v1395 = vadd.f32 %v1273, %v1390
        %v1396 = vld [vmem:[%s215] sm:$0xc]
        %s1397 = scalar_lea.vmem %s1, 640
        %v1398 = vld [vmem:[%s1397] sm:$0xf]
        %v1399 = vld [vmem:[%s1397 + $0x4] sm:$0xf]
        %v1400 = vld [vmem:[%s1397 + $0x8] sm:$0xf]
        %v1401 = vld [vmem:[%s1397 + $0xc] sm:$0xf]
        %v1402 = vld [vmem:[%s1397 + $0x10] sm:$0xf]
        %v1403 = vld [vmem:[%s1397 + $0x14] sm:$0xf]
        %v1404 = vld [vmem:[%s1397 + $0x18] sm:$0xf]
        %v1405 = vld [vmem:[%s1397 + $0x1c] sm:$0xf]
        %v1406 = vld [vmem:[%s1397 + $0x20] sm:$0xf]
        %v1407 = vld [vmem:[%s1397 + $0x24] sm:$0xf]
        %v1408 = vld [vmem:[%s1397 + $0x28] sm:$0xf]
        %v1409 = vld [vmem:[%s1397 + $0x2c] sm:$0xf]
        %v1410 = vld [vmem:[%s1397 + $0x30] sm:$0xf]
        %v1411 = vld [vmem:[%s1397 + $0x34] sm:$0xf]
        %v1412 = vld [vmem:[%s1397 + $0x38] sm:$0xf]
        %v1413 = vld [vmem:[%s1397 + $0x3c] sm:$0xf]
        %v1415 = vunpack.c.l.b16 %v1396
        %v1416 = vpack.c.b16 %v1174, %v1415
        %v1417 = vrot.slane %v1416, 2
        %v1435 = vunpack.c.l.b16 %v1398
        %v1436 = vunpack.c.l.b16 %v1399
        %v1437 = vunpack.c.l.b16 %v1400
        %v1438 = vunpack.c.l.b16 %v1401
        %v1439 = vunpack.c.l.b16 %v1402
        %v1440 = vunpack.c.l.b16 %v1403
        %v1441 = vunpack.c.l.b16 %v1404
        %v1442 = vunpack.c.l.b16 %v1405
        %v1443 = vunpack.c.l.b16 %v1406
        %v1444 = vunpack.c.l.b16 %v1407
        %v1445 = vunpack.c.l.b16 %v1408
        %v1446 = vunpack.c.l.b16 %v1409
        %v1447 = vunpack.c.l.b16 %v1410
        %v1448 = vunpack.c.l.b16 %v1411
        %v1449 = vunpack.c.l.b16 %v1412
        %v1450 = vunpack.c.l.b16 %v1413
        %v1451 = vpack.c.b16 %v1436, %v1435
        %v1452 = vpack.c.b16 %v1438, %v1437
        %v1453 = vpack.c.b16 %v1440, %v1439
        %v1454 = vpack.c.b16 %v1442, %v1441
        %v1455 = vpack.c.b16 %v1444, %v1443
        %v1456 = vpack.c.b16 %v1446, %v1445
        %v1457 = vpack.c.b16 %v1448, %v1447
        %v1458 = vpack.c.b16 %v1450, %v1449
        %1467 = vmatprep.subr.bf16.mxu0 0
        %1468 = vmatpush1.bf16.msra.mxu0 %v1451
        %1469 = vmatprep.subr.bf16.mxu0 0
        %1470 = vmatpush1.bf16.msra.mxu0 %v1452
        %1471 = vmatprep.subr.bf16.mxu0 0
        %1472 = vmatpush1.bf16.msra.mxu0 %v1453
        %1473 = vmatprep.subr.bf16.mxu0 0
        %1474 = vmatpush1.bf16.msra.mxu0 %v1454
        %1475 = vmatprep.subr.bf16.mxu0 0
        %1476 = vmatpush1.bf16.msra.mxu0 %v1455
        %1477 = vmatprep.subr.bf16.mxu0 0
        %1478 = vmatpush1.bf16.msra.mxu0 %v1456
        %1479 = vmatprep.subr.bf16.mxu0 0
        %1480 = vmatpush1.bf16.msra.mxu0 %v1457
        %1481 = vmatprep.subr.bf16.mxu0 0
        %1482 = vmatpush1.bf16.msra.mxu0 %v1458
        %1483 = vmatprep.subr.bf16.mxu0 0
        %1484 = vmatpush1.bf16.msra.mxu0 0
        %1485 = vmatprep.subr.bf16.mxu0 0
        %1486 = vmatpush1.bf16.msra.mxu0 0
        %1487 = vmatprep.subr.bf16.mxu0 0
        %1488 = vmatpush1.bf16.msra.mxu0 0
        %1489 = vmatprep.subr.bf16.mxu0 0
        %1490 = vmatpush1.bf16.msra.mxu0 0
        %1491 = vmatprep.subr.bf16.mxu0 0
        %1492 = vmatpush1.bf16.msra.mxu0 0
        %1493 = vmatprep.subr.bf16.mxu0 0
        %1494 = vmatpush1.bf16.msra.mxu0 0
        %1495 = vmatprep.subr.bf16.mxu0 0
        %1496 = vmatpush1.bf16.msra.mxu0 0
        %1497 = vmatprep.subr.bf16.mxu0 0
        %1498 = vmatpush1.bf16.msra.mxu0 0
        %1499 = vmatprep.mubr.bf16.mxu0 0
        %1500 = vmatmul.mubr.bf16.gmra.mrb[0].mxu0 %v1417
        %v1501 = vpop.f32.mrb[0].mxu0
        %v1502 = vadd.f32 0.0, %v1501
        %v1503 = vpop.f32.mrb[0].mxu0
        %v1504 = vpop.f32.mrb[0].mxu0
        %v1505 = vpop.f32.mrb[0].mxu0
        %1506 = vdwg.mxu0
        %v1507 = vadd.f32 %v1395, %v1502
        %v1508 = vld [vmem:[%s257] sm:$0xc]
        %s1509 = scalar_lea.vmem %s1, 704
        %v1510 = vld [vmem:[%s1509] sm:$0xf]
        %v1511 = vld [vmem:[%s1509 + $0x4] sm:$0xf]
        %v1512 = vld [vmem:[%s1509 + $0x8] sm:$0xf]
        %v1513 = vld [vmem:[%s1509 + $0xc] sm:$0xf]
        %v1514 = vld [vmem:[%s1509 + $0x10] sm:$0xf]
        %v1515 = vld [vmem:[%s1509 + $0x14] sm:$0xf]
        %v1516 = vld [vmem:[%s1509 + $0x18] sm:$0xf]
        %v1517 = vld [vmem:[%s1509 + $0x1c] sm:$0xf]
        %v1518 = vld [vmem:[%s1509 + $0x20] sm:$0xf]
        %v1519 = vld [vmem:[%s1509 + $0x24] sm:$0xf]
        %v1520 = vld [vmem:[%s1509 + $0x28] sm:$0xf]
        %v1521 = vld [vmem:[%s1509 + $0x2c] sm:$0xf]
        %v1522 = vld [vmem:[%s1509 + $0x30] sm:$0xf]
        %v1523 = vld [vmem:[%s1509 + $0x34] sm:$0xf]
        %v1524 = vld [vmem:[%s1509 + $0x38] sm:$0xf]
        %v1525 = vld [vmem:[%s1509 + $0x3c] sm:$0xf]
        %v1527 = vunpack.c.l.b16 %v1508
        %v1528 = vpack.c.b16 %v1296, %v1527
        %v1529 = vrot.slane %v1528, 2
        %v1547 = vunpack.c.l.b16 %v1510
        %v1548 = vunpack.c.l.b16 %v1511
        %v1549 = vunpack.c.l.b16 %v1512
        %v1550 = vunpack.c.l.b16 %v1513
        %v1551 = vunpack.c.l.b16 %v1514
        %v1552 = vunpack.c.l.b16 %v1515
        %v1553 = vunpack.c.l.b16 %v1516
        %v1554 = vunpack.c.l.b16 %v1517
        %v1555 = vunpack.c.l.b16 %v1518
        %v1556 = vunpack.c.l.b16 %v1519
        %v1557 = vunpack.c.l.b16 %v1520
        %v1558 = vunpack.c.l.b16 %v1521
        %v1559 = vunpack.c.l.b16 %v1522
        %v1560 = vunpack.c.l.b16 %v1523
        %v1561 = vunpack.c.l.b16 %v1524
        %v1562 = vunpack.c.l.b16 %v1525
        %v1563 = vpack.c.b16 %v1548, %v1547
        %v1564 = vpack.c.b16 %v1550, %v1549
        %v1565 = vpack.c.b16 %v1552, %v1551
        %v1566 = vpack.c.b16 %v1554, %v1553
        %v1567 = vpack.c.b16 %v1556, %v1555
        %v1568 = vpack.c.b16 %v1558, %v1557
        %v1569 = vpack.c.b16 %v1560, %v1559
        %v1570 = vpack.c.b16 %v1562, %v1561
        %1579 = vmatprep.subr.bf16.mxu0 0
        %1580 = vmatpush1.bf16.msra.mxu0 %v1563
        %1581 = vmatprep.subr.bf16.mxu0 0
        %1582 = vmatpush1.bf16.msra.mxu0 %v1564
        %1583 = vmatprep.subr.bf16.mxu0 0
        %1584 = vmatpush1.bf16.msra.mxu0 %v1565
        %1585 = vmatprep.subr.bf16.mxu0 0
        %1586 = vmatpush1.bf16.msra.mxu0 %v1566
        %1587 = vmatprep.subr.bf16.mxu0 0
        %1588 = vmatpush1.bf16.msra.mxu0 %v1567
        %1589 = vmatprep.subr.bf16.mxu0 0
        %1590 = vmatpush1.bf16.msra.mxu0 %v1568
        %1591 = vmatprep.subr.bf16.mxu0 0
        %1592 = vmatpush1.bf16.msra.mxu0 %v1569
        %1593 = vmatprep.subr.bf16.mxu0 0
        %1594 = vmatpush1.bf16.msra.mxu0 %v1570
        %1595 = vmatprep.subr.bf16.mxu0 0
        %1596 = vmatpush1.bf16.msra.mxu0 0
        %1597 = vmatprep.subr.bf16.mxu0 0
        %1598 = vmatpush1.bf16.msra.mxu0 0
        %1599 = vmatprep.subr.bf16.mxu0 0
        %1600 = vmatpush1.bf16.msra.mxu0 0
        %1601 = vmatprep.subr.bf16.mxu0 0
        %1602 = vmatpush1.bf16.msra.mxu0 0
        %1603 = vmatprep.subr.bf16.mxu0 0
        %1604 = vmatpush1.bf16.msra.mxu0 0
        %1605 = vmatprep.subr.bf16.mxu0 0
        %1606 = vmatpush1.bf16.msra.mxu0 0
        %1607 = vmatprep.subr.bf16.mxu0 0
        %1608 = vmatpush1.bf16.msra.mxu0 0
        %1609 = vmatprep.subr.bf16.mxu0 0
        %1610 = vmatpush1.bf16.msra.mxu0 0
        %1611 = vmatprep.mubr.bf16.mxu0 0
        %1612 = vmatmul.mubr.bf16.gmra.mrb[0].mxu0 %v1529
        %v1613 = vpop.f32.mrb[0].mxu0
        %v1614 = vadd.f32 0.0, %v1613
        %v1615 = vpop.f32.mrb[0].mxu0
        %v1616 = vpop.f32.mrb[0].mxu0
        %v1617 = vpop.f32.mrb[0].mxu0
        %1618 = vdwg.mxu0
        %v1619 = vadd.f32 %v1507, %v1614
        %v1620 = vld [vmem:[%s694] sm:$0xe]
        %v1621 = vld [vmem:[%s694 + $0x4] sm:$0x3]
        %s1622 = scalar_lea.vmem %s1, 768
        %v1623 = vld [vmem:[%s1622] sm:$0xf]
        %v1624 = vld [vmem:[%s1622 + $0x4] sm:$0xf]
        %v1625 = vld [vmem:[%s1622 + $0x8] sm:$0xf]
        %v1626 = vld [vmem:[%s1622 + $0xc] sm:$0xf]
        %v1627 = vld [vmem:[%s1622 + $0x10] sm:$0xf]
        %v1628 = vld [vmem:[%s1622 + $0x14] sm:$0xf]
        %v1629 = vld [vmem:[%s1622 + $0x18] sm:$0xf]
        %v1630 = vld [vmem:[%s1622 + $0x1c] sm:$0xf]
        %v1631 = vld [vmem:[%s1622 + $0x20] sm:$0xf]
        %v1632 = vld [vmem:[%s1622 + $0x24] sm:$0xf]
        %v1633 = vld [vmem:[%s1622 + $0x28] sm:$0xf]
        %v1634 = vld [vmem:[%s1622 + $0x2c] sm:$0xf]
        %v1635 = vld [vmem:[%s1622 + $0x30] sm:$0xf]
        %v1636 = vld [vmem:[%s1622 + $0x34] sm:$0xf]
        %v1637 = vld [vmem:[%s1622 + $0x38] sm:$0xf]
        %v1638 = vld [vmem:[%s1622 + $0x3c] sm:$0xf]
        %v1641 = vunpack.c.l.b16 %v1620
        %v1642 = vunpack.c.l.b16 %v1621
        %v1643 = vpack.c.b16 %v1642, %v1641
        %v1645 = vshrl.u32 %v1643, 16
        %v1647 = vrot.slane %v1645, 1
        %v1648 = vshll.u32 %v1643, 16
        %v1650 = vrot.slane %v1648, 2
        %v1651 = vor.u32 %v1647, %v1650
        %v1669 = vunpack.c.l.b16 %v1623
        %v1670 = vunpack.c.l.b16 %v1624
        %v1671 = vunpack.c.l.b16 %v1625
        %v1672 = vunpack.c.l.b16 %v1626
        %v1673 = vunpack.c.l.b16 %v1627
        %v1674 = vunpack.c.l.b16 %v1628
        %v1675 = vunpack.c.l.b16 %v1629
        %v1676 = vunpack.c.l.b16 %v1630
        %v1677 = vunpack.c.l.b16 %v1631
        %v1678 = vunpack.c.l.b16 %v1632
        %v1679 = vunpack.c.l.b16 %v1633
        %v1680 = vunpack.c.l.b16 %v1634
        %v1681 = vunpack.c.l.b16 %v1635
        %v1682 = vunpack.c.l.b16 %v1636
        %v1683 = vunpack.c.l.b16 %v1637
        %v1684 = vunpack.c.l.b16 %v1638
        %v1685 = vpack.c.b16 %v1670, %v1669
        %v1686 = vpack.c.b16 %v1672, %v1671
        %v1687 = vpack.c.b16 %v1674, %v1673
        %v1688 = vpack.c.b16 %v1676, %v1675
        %v1689 = vpack.c.b16 %v1678, %v1677
        %v1690 = vpack.c.b16 %v1680, %v1679
        %v1691 = vpack.c.b16 %v1682, %v1681
        %v1692 = vpack.c.b16 %v1684, %v1683
        %1701 = vmatprep.subr.bf16.mxu0 0
        %1702 = vmatpush1.bf16.msra.mxu0 %v1685
        %1703 = vmatprep.subr.bf16.mxu0 0
        %1704 = vmatpush1.bf16.msra.mxu0 %v1686
        %1705 = vmatprep.subr.bf16.mxu0 0
        %1706 = vmatpush1.bf16.msra.mxu0 %v1687
        %1707 = vmatprep.subr.bf16.mxu0 0
        %1708 = vmatpush1.bf16.msra.mxu0 %v1688
        %1709 = vmatprep.subr.bf16.mxu0 0
        %1710 = vmatpush1.bf16.msra.mxu0 %v1689
        %1711 = vmatprep.subr.bf16.mxu0 0
        %1712 = vmatpush1.bf16.msra.mxu0 %v1690
        %1713 = vmatprep.subr.bf16.mxu0 0
        %1714 = vmatpush1.bf16.msra.mxu0 %v1691
        %1715 = vmatprep.subr.bf16.mxu0 0
        %1716 = vmatpush1.bf16.msra.mxu0 %v1692
        %1717 = vmatprep.subr.bf16.mxu0 0
        %1718 = vmatpush1.bf16.msra.mxu0 0
        %1719 = vmatprep.subr.bf16.mxu0 0
        %1720 = vmatpush1.bf16.msra.mxu0 0
        %1721 = vmatprep.subr.bf16.mxu0 0
        %1722 = vmatpush1.bf16.msra.mxu0 0
        %1723 = vmatprep.subr.bf16.mxu0 0
        %1724 = vmatpush1.bf16.msra.mxu0 0
        %1725 = vmatprep.subr.bf16.mxu0 0
        %1726 = vmatpush1.bf16.msra.mxu0 0
        %1727 = vmatprep.subr.bf16.mxu0 0
        %1728 = vmatpush1.bf16.msra.mxu0 0
        %1729 = vmatprep.subr.bf16.mxu0 0
        %1730 = vmatpush1.bf16.msra.mxu0 0
        %1731 = vmatprep.subr.bf16.mxu0 0
        %1732 = vmatpush1.bf16.msra.mxu0 0
        %1733 = vmatprep.mubr.bf16.mxu0 0
        %1734 = vmatmul.mubr.bf16.gmra.mrb[0].mxu0 %v1651
        %v1735 = vpop.f32.mrb[0].mxu0
        %v1736 = vadd.f32 0.0, %v1735
        %v1737 = vpop.f32.mrb[0].mxu0
        %v1738 = vpop.f32.mrb[0].mxu0
        %v1739 = vpop.f32.mrb[0].mxu0
        %1740 = vdwg.mxu0
        %v1741 = vadd.f32 %v1619, %v1736
        %v1742 = vld [vmem:[%s802] sm:$0xe]
        %v1743 = vld [vmem:[%s802 + $0x4] sm:$0x3]
        %s1744 = scalar_lea.vmem %s1, 832
        %v1745 = vld [vmem:[%s1744] sm:$0xf]
        %v1746 = vld [vmem:[%s1744 + $0x4] sm:$0xf]
        %v1747 = vld [vmem:[%s1744 + $0x8] sm:$0xf]
        %v1748 = vld [vmem:[%s1744 + $0xc] sm:$0xf]
        %v1749 = vld [vmem:[%s1744 + $0x10] sm:$0xf]
        %v1750 = vld [vmem:[%s1744 + $0x14] sm:$0xf]
        %v1751 = vld [vmem:[%s1744 + $0x18] sm:$0xf]
        %v1752 = vld [vmem:[%s1744 + $0x1c] sm:$0xf]
        %v1753 = vld [vmem:[%s1744 + $0x20] sm:$0xf]
        %v1754 = vld [vmem:[%s1744 + $0x24] sm:$0xf]
        %v1755 = vld [vmem:[%s1744 + $0x28] sm:$0xf]
        %v1756 = vld [vmem:[%s1744 + $0x2c] sm:$0xf]
        %v1757 = vld [vmem:[%s1744 + $0x30] sm:$0xf]
        %v1758 = vld [vmem:[%s1744 + $0x34] sm:$0xf]
        %v1759 = vld [vmem:[%s1744 + $0x38] sm:$0xf]
        %v1760 = vld [vmem:[%s1744 + $0x3c] sm:$0xf]
        %v1763 = vunpack.c.l.b16 %v1742
        %v1764 = vunpack.c.l.b16 %v1743
        %v1765 = vpack.c.b16 %v1764, %v1763
        %v1767 = vshrl.u32 %v1765, 16
        %v1769 = vrot.slane %v1767, 1
        %v1770 = vshll.u32 %v1765, 16
        %v1772 = vrot.slane %v1770, 2
        %v1773 = vor.u32 %v1769, %v1772
        %v1791 = vunpack.c.l.b16 %v1745
        %v1792 = vunpack.c.l.b16 %v1746
        %v1793 = vunpack.c.l.b16 %v1747
        %v1794 = vunpack.c.l.b16 %v1748
        %v1795 = vunpack.c.l.b16 %v1749
        %v1796 = vunpack.c.l.b16 %v1750
        %v1797 = vunpack.c.l.b16 %v1751
        %v1798 = vunpack.c.l.b16 %v1752
        %v1799 = vunpack.c.l.b16 %v1753
        %v1800 = vunpack.c.l.b16 %v1754
        %v1801 = vunpack.c.l.b16 %v1755
        %v1802 = vunpack.c.l.b16 %v1756
        %v1803 = vunpack.c.l.b16 %v1757
        %v1804 = vunpack.c.l.b16 %v1758
        %v1805 = vunpack.c.l.b16 %v1759
        %v1806 = vunpack.c.l.b16 %v1760
        %v1807 = vpack.c.b16 %v1792, %v1791
        %v1808 = vpack.c.b16 %v1794, %v1793
        %v1809 = vpack.c.b16 %v1796, %v1795
        %v1810 = vpack.c.b16 %v1798, %v1797
        %v1811 = vpack.c.b16 %v1800, %v1799
        %v1812 = vpack.c.b16 %v1802, %v1801
        %v1813 = vpack.c.b16 %v1804, %v1803
        %v1814 = vpack.c.b16 %v1806, %v1805
        %1823 = vmatprep.subr.bf16.mxu0 0
        %1824 = vmatpush1.bf16.msra.mxu0 %v1807
        %1825 = vmatprep.subr.bf16.mxu0 0
        %1826 = vmatpush1.bf16.msra.mxu0 %v1808
        %1827 = vmatprep.subr.bf16.mxu0 0
        %1828 = vmatpush1.bf16.msra.mxu0 %v1809
        %1829 = vmatprep.subr.bf16.mxu0 0
        %1830 = vmatpush1.bf16.msra.mxu0 %v1810
        %1831 = vmatprep.subr.bf16.mxu0 0
        %1832 = vmatpush1.bf16.msra.mxu0 %v1811
        %1833 = vmatprep.subr.bf16.mxu0 0
        %1834 = vmatpush1.bf16.msra.mxu0 %v1812
        %1835 = vmatprep.subr.bf16.mxu0 0
        %1836 = vmatpush1.bf16.msra.mxu0 %v1813
        %1837 = vmatprep.subr.bf16.mxu0 0
        %1838 = vmatpush1.bf16.msra.mxu0 %v1814
        %1839 = vmatprep.subr.bf16.mxu0 0
        %1840 = vmatpush1.bf16.msra.mxu0 0
        %1841 = vmatprep.subr.bf16.mxu0 0
        %1842 = vmatpush1.bf16.msra.mxu0 0
        %1843 = vmatprep.subr.bf16.mxu0 0
        %1844 = vmatpush1.bf16.msra.mxu0 0
        %1845 = vmatprep.subr.bf16.mxu0 0
        %1846 = vmatpush1.bf16.msra.mxu0 0
        %1847 = vmatprep.subr.bf16.mxu0 0
        %1848 = vmatpush1.bf16.msra.mxu0 0
        %1849 = vmatprep.subr.bf16.mxu0 0
        %1850 = vmatpush1.bf16.msra.mxu0 0
        %1851 = vmatprep.subr.bf16.mxu0 0
        %1852 = vmatpush1.bf16.msra.mxu0 0
        %1853 = vmatprep.subr.bf16.mxu0 0
        %1854 = vmatpush1.bf16.msra.mxu0 0
        %1855 = vmatprep.mubr.bf16.mxu0 0
        %1856 = vmatmul.mubr.bf16.gmra.mrb[0].mxu0 %v1773
        %v1857 = vpop.f32.mrb[0].mxu0
        %v1858 = vadd.f32 0.0, %v1857
        %v1859 = vpop.f32.mrb[0].mxu0
        %v1860 = vpop.f32.mrb[0].mxu0
        %v1861 = vpop.f32.mrb[0].mxu0
        %1862 = vdwg.mxu0
        %v1863 = vadd.f32 %v1741, %v1858
        %v1864 = vld [vmem:[%s694] sm:$0xc]
        %s1865 = scalar_lea.vmem %s1, 896
        %v1866 = vld [vmem:[%s1865] sm:$0xf]
        %v1867 = vld [vmem:[%s1865 + $0x4] sm:$0xf]
        %v1868 = vld [vmem:[%s1865 + $0x8] sm:$0xf]
        %v1869 = vld [vmem:[%s1865 + $0xc] sm:$0xf]
        %v1870 = vld [vmem:[%s1865 + $0x10] sm:$0xf]
        %v1871 = vld [vmem:[%s1865 + $0x14] sm:$0xf]
        %v1872 = vld [vmem:[%s1865 + $0x18] sm:$0xf]
        %v1873 = vld [vmem:[%s1865 + $0x1c] sm:$0xf]
        %v1874 = vld [vmem:[%s1865 + $0x20] sm:$0xf]
        %v1875 = vld [vmem:[%s1865 + $0x24] sm:$0xf]
        %v1876 = vld [vmem:[%s1865 + $0x28] sm:$0xf]
        %v1877 = vld [vmem:[%s1865 + $0x2c] sm:$0xf]
        %v1878 = vld [vmem:[%s1865 + $0x30] sm:$0xf]
        %v1879 = vld [vmem:[%s1865 + $0x34] sm:$0xf]
        %v1880 = vld [vmem:[%s1865 + $0x38] sm:$0xf]
        %v1881 = vld [vmem:[%s1865 + $0x3c] sm:$0xf]
        %v1883 = vunpack.c.l.b16 %v1864
        %v1884 = vpack.c.b16 %v1642, %v1883
        %v1885 = vrot.slane %v1884, 2
        %v1903 = vunpack.c.l.b16 %v1866
        %v1904 = vunpack.c.l.b16 %v1867
        %v1905 = vunpack.c.l.b16 %v1868
        %v1906 = vunpack.c.l.b16 %v1869
        %v1907 = vunpack.c.l.b16 %v1870
        %v1908 = vunpack.c.l.b16 %v1871
        %v1909 = vunpack.c.l.b16 %v1872
        %v1910 = vunpack.c.l.b16 %v1873
        %v1911 = vunpack.c.l.b16 %v1874
        %v1912 = vunpack.c.l.b16 %v1875
        %v1913 = vunpack.c.l.b16 %v1876
        %v1914 = vunpack.c.l.b16 %v1877
        %v1915 = vunpack.c.l.b16 %v1878
        %v1916 = vunpack.c.l.b16 %v1879
        %v1917 = vunpack.c.l.b16 %v1880
        %v1918 = vunpack.c.l.b16 %v1881
        %v1919 = vpack.c.b16 %v1904, %v1903
        %v1920 = vpack.c.b16 %v1906, %v1905
        %v1921 = vpack.c.b16 %v1908, %v1907
        %v1922 = vpack.c.b16 %v1910, %v1909
        %v1923 = vpack.c.b16 %v1912, %v1911
        %v1924 = vpack.c.b16 %v1914, %v1913
        %v1925 = vpack.c.b16 %v1916, %v1915
        %v1926 = vpack.c.b16 %v1918, %v1917
        %1935 = vmatprep.subr.bf16.mxu0 0
        %1936 = vmatpush1.bf16.msra.mxu0 %v1919
        %1937 = vmatprep.subr.bf16.mxu0 0
        %1938 = vmatpush1.bf16.msra.mxu0 %v1920
        %1939 = vmatprep.subr.bf16.mxu0 0
        %1940 = vmatpush1.bf16.msra.mxu0 %v1921
        %1941 = vmatprep.subr.bf16.mxu0 0
        %1942 = vmatpush1.bf16.msra.mxu0 %v1922
        %1943 = vmatprep.subr.bf16.mxu0 0
        %1944 = vmatpush1.bf16.msra.mxu0 %v1923
        %1945 = vmatprep.subr.bf16.mxu0 0
        %1946 = vmatpush1.bf16.msra.mxu0 %v1924
        %1947 = vmatprep.subr.bf16.mxu0 0
        %1948 = vmatpush1.bf16.msra.mxu0 %v1925
        %1949 = vmatprep.subr.bf16.mxu0 0
        %1950 = vmatpush1.bf16.msra.mxu0 %v1926
        %1951 = vmatprep.subr.bf16.mxu0 0
        %1952 = vmatpush1.bf16.msra.mxu0 0
        %1953 = vmatprep.subr.bf16.mxu0 0
        %1954 = vmatpush1.bf16.msra.mxu0 0
        %1955 = vmatprep.subr.bf16.mxu0 0
        %1956 = vmatpush1.bf16.msra.mxu0 0
        %1957 = vmatprep.subr.bf16.mxu0 0
        %1958 = vmatpush1.bf16.msra.mxu0 0
        %1959 = vmatprep.subr.bf16.mxu0 0
        %1960 = vmatpush1.bf16.msra.mxu0 0
        %1961 = vmatprep.subr.bf16.mxu0 0
        %1962 = vmatpush1.bf16.msra.mxu0 0
        %1963 = vmatprep.subr.bf16.mxu0 0
        %1964 = vmatpush1.bf16.msra.mxu0 0
        %1965 = vmatprep.subr.bf16.mxu0 0
        %1966 = vmatpush1.bf16.msra.mxu0 0
        %1967 = vmatprep.mubr.bf16.mxu0 0
        %1968 = vmatmul.mubr.bf16.gmra.mrb[0].mxu0 %v1885
        %v1969 = vpop.f32.mrb[0].mxu0
        %v1970 = vadd.f32 0.0, %v1969
        %v1971 = vpop.f32.mrb[0].mxu0
        %v1972 = vpop.f32.mrb[0].mxu0
        %v1973 = vpop.f32.mrb[0].mxu0
        %1974 = vdwg.mxu0
        %v1975 = vadd.f32 %v1863, %v1970
        %v1976 = vld [vmem:[%s802] sm:$0xc]
        %s1977 = scalar_lea.vmem %s1, 960
        %v1978 = vld [vmem:[%s1977] sm:$0xf]
        %v1979 = vld [vmem:[%s1977 + $0x4] sm:$0xf]
        %v1980 = vld [vmem:[%s1977 + $0x8] sm:$0xf]
        %v1981 = vld [vmem:[%s1977 + $0xc] sm:$0xf]
        %v1982 = vld [vmem:[%s1977 + $0x10] sm:$0xf]
        %v1983 = vld [vmem:[%s1977 + $0x14] sm:$0xf]
        %v1984 = vld [vmem:[%s1977 + $0x18] sm:$0xf]
        %v1985 = vld [vmem:[%s1977 + $0x1c] sm:$0xf]
        %v1986 = vld [vmem:[%s1977 + $0x20] sm:$0xf]
        %v1987 = vld [vmem:[%s1977 + $0x24] sm:$0xf]
        %v1988 = vld [vmem:[%s1977 + $0x28] sm:$0xf]
        %v1989 = vld [vmem:[%s1977 + $0x2c] sm:$0xf]
        %v1990 = vld [vmem:[%s1977 + $0x30] sm:$0xf]
        %v1991 = vld [vmem:[%s1977 + $0x34] sm:$0xf]
        %v1992 = vld [vmem:[%s1977 + $0x38] sm:$0xf]
        %v1993 = vld [vmem:[%s1977 + $0x3c] sm:$0xf]
        %v1995 = vunpack.c.l.b16 %v1976
        %v1996 = vpack.c.b16 %v1764, %v1995
        %v1997 = vrot.slane %v1996, 2
        %v2015 = vunpack.c.l.b16 %v1978
        %v2016 = vunpack.c.l.b16 %v1979
        %v2017 = vunpack.c.l.b16 %v1980
        %v2018 = vunpack.c.l.b16 %v1981
        %v2019 = vunpack.c.l.b16 %v1982
        %v2020 = vunpack.c.l.b16 %v1983
        %v2021 = vunpack.c.l.b16 %v1984
        %v2022 = vunpack.c.l.b16 %v1985
        %v2023 = vunpack.c.l.b16 %v1986
        %v2024 = vunpack.c.l.b16 %v1987
        %v2025 = vunpack.c.l.b16 %v1988
        %v2026 = vunpack.c.l.b16 %v1989
        %v2027 = vunpack.c.l.b16 %v1990
        %v2028 = vunpack.c.l.b16 %v1991
        %v2029 = vunpack.c.l.b16 %v1992
        %v2030 = vunpack.c.l.b16 %v1993
        %v2031 = vpack.c.b16 %v2016, %v2015
        %v2032 = vpack.c.b16 %v2018, %v2017
        %v2033 = vpack.c.b16 %v2020, %v2019
        %v2034 = vpack.c.b16 %v2022, %v2021
        %v2035 = vpack.c.b16 %v2024, %v2023
        %v2036 = vpack.c.b16 %v2026, %v2025
        %v2037 = vpack.c.b16 %v2028, %v2027
        %v2038 = vpack.c.b16 %v2030, %v2029
        %2047 = vmatprep.subr.bf16.mxu0 0
        %2048 = vmatpush1.bf16.msra.mxu0 %v2031
        %2049 = vmatprep.subr.bf16.mxu0 0
        %2050 = vmatpush1.bf16.msra.mxu0 %v2032
        %2051 = vmatprep.subr.bf16.mxu0 0
        %2052 = vmatpush1.bf16.msra.mxu0 %v2033
        %2053 = vmatprep.subr.bf16.mxu0 0
        %2054 = vmatpush1.bf16.msra.mxu0 %v2034
        %2055 = vmatprep.subr.bf16.mxu0 0
        %2056 = vmatpush1.bf16.msra.mxu0 %v2035
        %2057 = vmatprep.subr.bf16.mxu0 0
        %2058 = vmatpush1.bf16.msra.mxu0 %v2036
        %2059 = vmatprep.subr.bf16.mxu0 0
        %2060 = vmatpush1.bf16.msra.mxu0 %v2037
        %2061 = vmatprep.subr.bf16.mxu0 0
        %2062 = vmatpush1.bf16.msra.mxu0 %v2038
        %2063 = vmatprep.subr.bf16.mxu0 0
        %2064 = vmatpush1.bf16.msra.mxu0 0
        %2065 = vmatprep.subr.bf16.mxu0 0
        %2066 = vmatpush1.bf16.msra.mxu0 0
        %2067 = vmatprep.subr.bf16.mxu0 0
        %2068 = vmatpush1.bf16.msra.mxu0 0
        %2069 = vmatprep.subr.bf16.mxu0 0
        %2070 = vmatpush1.bf16.msra.mxu0 0
        %2071 = vmatprep.subr.bf16.mxu0 0
        %2072 = vmatpush1.bf16.msra.mxu0 0
        %2073 = vmatprep.subr.bf16.mxu0 0
        %2074 = vmatpush1.bf16.msra.mxu0 0
        %2075 = vmatprep.subr.bf16.mxu0 0
        %2076 = vmatpush1.bf16.msra.mxu0 0
        %2077 = vmatprep.subr.bf16.mxu0 0
        %2078 = vmatpush1.bf16.msra.mxu0 0
        %2079 = vmatprep.mubr.bf16.mxu0 0
        %2080 = vmatmul.mubr.bf16.gmra.mrb[0].mxu0 %v1997
        %v2081 = vpop.f32.mrb[0].mxu0
        %v2082 = vadd.f32 0.0, %v2081
        %v2083 = vpop.f32.mrb[0].mxu0
        %v2084 = vpop.f32.mrb[0].mxu0
        %v2085 = vpop.f32.mrb[0].mxu0
        %2086 = vdwg.mxu0
        %v2087 = vadd.f32 %v1975, %v2082
        %v2088 = vld [vmem:[%s2] sm:$0x1]
        %v2090 = vlaneseq
        %v2091 = vshrl.u32 %v2090, 7
        %v2092 = vsub.s32 0, %v2091
        %v2093 = vrot.slane %v2088, %v2092
        %v2095 = vadd.f32 %v2087, %v2093
        %v2096 = vsub.f32 0.0, %v2095
        %v2097 = vmul.f32 %v2096, 1.442695
        %v2098 = vpow.pop %v2097
        %v2099 = vadd.f32 %v2098, 1.0
        %v2100 = vrcp.pop %v2099
        %v2101 = vmul.f32 1.0, %v2100
        %2102 = vst [vmem:[%s238] sm:$0xff] %v2101
        %p2103 = scmp.lt.s32.totalorder %s14, 1
        %s2104 = scalar_select %p2103, %s14, 1
        %s2105 = smul.addr %s2104, 8
        %s2106 = scalar_lea.vmem %s3, %s2105
        // Predicated region
        $region74: #{discriminator_forward.5} parent=68 // pred_check
          %p2107 = pneg %p100
        $region75: #{discriminator_forward.5} parent=68 // pred_check_branch
          %2109 = sbr.rel (%p2107) target = $region77
        $region76: #{discriminator_forward.5} parent=68 // pred_region
          _
        $region77: #{discriminator_forward.5} parent=68 // pred_fallthru
          _
      $region69: #{discriminator_forward.5} parent=5 // pred_fallthru
        _
      %p2110 = scmp.le.s32.totalorder 2, %s9
      // Predicated region
      $region78: #{discriminator_forward.5} parent=5 // pred_check
        %p2111 = pneg %p2110
      $region79: #{discriminator_forward.5} parent=5 // pred_check_branch
        %2113 = sbr.rel (%p2111) target = $region81
      $region80: #{discriminator_forward.5} parent=5 // pred_region
        %s2114 = ssub.s32 %s9, 2
        // Predicated region
        $region82: #{discriminator_forward.5} parent=80 // pred_check
          %p2115 = pneg %p106
        $region83: #{discriminator_forward.5} parent=80 // pred_check_branch
          %2117 = sbr.rel (%p2115) target = $region85
        $region84: #{discriminator_forward.5} parent=80 // pred_region
          %p2118 = scmp.lt.s32.totalorder %s15, 1
          %s2119 = scalar_select %p2118, %s15, 1
          %s2120 = smul.addr %s2119, 8
          %s2121 = scalar_lea.vmem %s3, %s2120
        $region85: #{discriminator_forward.5} parent=80 // pred_fallthru
          _
      $region81: #{discriminator_forward.5} parent=5 // pred_fallthru
        _
    $region6: #{discriminator_forward.5} parent=1 // loop_footer
      %s13 = sadd.s32 1, %s9
    $region7: #{discriminator_forward.5} parent=1 // loop_footer_branch
      %8 = sbr.rel target = $region3
    $region8: #{discriminator_forward.5} parent=1 // loop_exit
      _

</llo_original>
